<compile_context>
chip_gen: v7x
topology: tpu7x:2x2x1
jax: 0.10.0
libtpu: 0.0.40
codegen_flags: <defaults>
</compile_context>

<pallas_src>
import functools

import jax
import jax.numpy as jnp
import numpy as np
from jax import lax
from jax.experimental import pallas as pl
from jax.experimental.pallas import tpu as pltpu


# --------------------------------------------------------------------------------------
# Small helpers
# --------------------------------------------------------------------------------------
def _round_up(x, m):
    return ((x + m - 1) // m) * m


def _sublane_rows(dtype):
    """Second-minor tile granularity: 8 rows (32-bit), 16 (16-bit), 32 (8-bit)."""
    return {1: 32, 2: 16}.get(jnp.dtype(dtype).itemsize, 8)


def _vmem_budget():
    """Per-generation VMEM budget.

    Returns (vmem_limit_bytes, block_budget_bytes): ~70% of physical VMEM as the
    Mosaic scoped limit (v7x: ~45 MiB of 64; v5e/v6e: ~90 MiB of 128) and ~85% of
    that for our double-buffered blocks (headroom for Mosaic internal scratch).
    """
    try:
        cap = int(pltpu.get_tpu_info().vmem_capacity_bytes)
    except Exception:
        cap = 64 * 1024 * 1024          # conservative default: smallest (v7x per-TC)
    limit = min(int(cap * 0.70), 100 * 1024 * 1024)
    return limit, int(limit * 0.85)


def _pick_tile_h(H, row_bytes, min_rows, budget_bytes):
    """Largest row tile (multiple of `min_rows`) whose working set fits the budget,
    capped so the grid keeps >=2 (ideally >=4) steps for pipelining / v7x megacore."""
    tile = max(min_rows, budget_bytes // max(row_bytes, 1))
    tile = min(tile, 1024)                              # diminishing returns past ~1K rows
    if H >= 2 * min_rows:
        steps = 4 if H >= 4 * min_rows else 2
        tile = min(tile, max(min_rows, ((H // steps) // min_rows) * min_rows))
    if tile >= H:
        return H                                        # full-extent block is always legal
    # TODO(synk): add a second ("parallel") W-tiling grid axis for panoramic images where
    # even a `min_rows` tile exceeds the budget.
    return max(min_rows, (tile // min_rows) * min_rows)


_BYTE_SHIFTS = None


def _byte_shifts():
    """Byte position of channel c inside a bitcast uint32 word (endianness-probed once)."""
    global _BYTE_SHIFTS
    if _BYTE_SHIFTS is None:
        probe = lax.bitcast_convert_type(
            jnp.arange(1, 5, dtype=jnp.uint8).reshape(1, 4), jnp.uint32)
        elem0_is_low_byte = (int(jax.device_get(probe)[0]) & 0xFF) == 1
        if elem0_is_low_byte:
            _BYTE_SHIFTS = tuple(8 * c for c in range(4))
        else:
            _BYTE_SHIFTS = tuple(8 * (3 - c) for c in range(4))
    return _BYTE_SHIFTS


def _compiler_params(vmem_limit):
    return pltpu.CompilerParams(
        dimension_semantics=("parallel",),              # row tiles are independent
        vmem_limit_bytes=vmem_limit,
    )


# --------------------------------------------------------------------------------------
# Kernels
# --------------------------------------------------------------------------------------
def _cast_kernel(pic_ref, out_ref):
    """C == 1 with a dtype cast.  pic_ref: (tile_h, W); out_ref: (1, tile_h, W)."""
    out_ref[0, :, :] = pic_ref[...].astype(out_ref.dtype)


def _unpack_words_kernel(words_ref, out_ref, *, shifts):
    """uint8 RGBA packed as uint32 words.  words_ref: (tile_h, W) u32; out_ref: (4, tile_h, W).

    Pure VPU: shift + mask + convert.  No XLU relayout, lane-dense loads and stores.
    """
    w = words_ref[...]
    for c, sh in enumerate(shifts):                     # static, unrolled
        out_ref[c, :, :] = ((w >> sh) & 0xFF).astype(out_ref.dtype)


def _deinterleave_kernel(pic_ref, out_ref, tposed_ref):
    """General C de-interleave on a lane-dense 2-D tile.

    pic_ref:    (tile_h, W*C) input dtype   (lane-dense DMA)
    out_ref:    (C, tile_h, W) output dtype (lane-dense stores, W on lanes)
    tposed_ref: (W*C, tile_h) VMEM scratch

    The channel stride C sits on the *lane* axis of the input tile; Mosaic strided
    loads need unit lane stride, so we transpose the tile once (XLU) to move that
    stride onto the sublane axis and then use sublane-strided ref loads.
    """
    C, tile_h, W = out_ref.shape
    x = pic_ref[...].astype(out_ref.dtype)              # cast once on the dense tile (VPU)
    tposed_ref[...] = x.T                                # (W*C, tile_h): channel stride -> sublanes
    for c in range(C):                                   # C in {2,3,4}: static, unrolled
        plane_t = tposed_ref[pl.ds(c, W, stride=C), :]   # sublane-strided load -> (W, tile_h)
        out_ref[c, :, :] = plane_t.T                     # back to (tile_h, W)


def _basic_kernel(pic_ref, out_ref):
    """Safety-net kernel on a 3-D (tile_h, W, C) block (lane-padded, slower)."""
    C = out_ref.shape[0]
    for c in range(C):
        out_ref[c, :, :] = pic_ref[:, :, c].astype(out_ref.dtype)


# --------------------------------------------------------------------------------------
# Per-layout wrappers
# --------------------------------------------------------------------------------------
def _forward_c1(pic, out_dtype, vmem_limit, budget):
    """C == 1: no de-interleave needed."""
    plane = pic[:, :, 0]
    H, W = plane.shape
    if plane.dtype == out_dtype:
        return plane[None]                               # pure metadata reshape; no kernel
    in_isz = jnp.dtype(plane.dtype).itemsize
    out_isz = jnp.dtype(out_dtype).itemsize
    min_rows = _sublane_rows(plane.dtype)
    row_bytes = 2 * _round_up(W, 128) * (in_isz + out_isz)
    tile_h = _pick_tile_h(H, row_bytes, min_rows, budget)
    return pl.pallas_call(
        _cast_kernel,
        out_shape=jax.ShapeDtypeStruct((1, H, W), out_dtype),
        grid=(pl.cdiv(H, tile_h),),
        in_specs=[pl.BlockSpec((tile_h, W), lambda i: (i, 0))],
        out_specs=pl.BlockSpec((1, tile_h, W), lambda i: (0, i, 0)),
        compiler_params=_compiler_params(vmem_limit),
        cost_estimate=pl.CostEstimate(
            flops=H * W, transcendentals=0,
            bytes_accessed=H * W * (in_isz + out_isz)),
    )(plane)


def _forward_packed_u8(pic, out_dtype, vmem_limit, budget):
    """uint8, C == 4: reinterpret each RGBA pixel as a uint32 word and unpack on the VPU."""
    H, W, C = pic.shape
    assert C == 4 and pic.dtype == jnp.uint8
    words = lax.bitcast_convert_type(pic, jnp.uint32)    # (H, W): free bitcast on HWC data
    shifts = _byte_shifts()
    out_isz = jnp.dtype(out_dtype).itemsize
    w_pad = _round_up(W, 128)
    row_bytes = 2 * (w_pad * 4 + C * w_pad * out_isz)    # double-buffered in + out blocks
    tile_h = _pick_tile_h(H, row_bytes, 8, budget)       # uint32 words -> 8-row sublanes
    return pl.pallas_call(
        functools.partial(_unpack_words_kernel, shifts=shifts),
        out_shape=jax.ShapeDtypeStruct((C, H, W), out_dtype),
        grid=(pl.cdiv(H, tile_h),),
        in_specs=[pl.BlockSpec((tile_h, W), lambda i: (i, 0))],
        out_specs=pl.BlockSpec((C, tile_h, W), lambda i: (0, i, 0)),
        compiler_params=_compiler_params(vmem_limit),
        cost_estimate=pl.CostEstimate(
            flops=3 * H * W * C, transcendentals=0,
            bytes_accessed=H * W * C * (1 + out_isz)),
    )(words)


def _forward_generic(pic, out_dtype, vmem_limit, budget):
    """Any C >= 2 / any dtype: lane-dense 2-D tiles + one in-tile transpose de-interleave."""
    H, W, C = pic.shape
    flat = pic.reshape(H, W * C)                         # free: contiguous HWC -> (H, W*C)
    in_isz = jnp.dtype(pic.dtype).itemsize
    out_isz = jnp.dtype(out_dtype).itemsize
    min_rows = _sublane_rows(pic.dtype)
    wc_pad = _round_up(W * C, 128)
    w_pad = _round_up(W, 128)
    # double-buffered in + out blocks, plus the (W*C, tile_h) transpose scratch
    row_bytes = 2 * (wc_pad * in_isz + C * w_pad * out_isz) + W * C * out_isz
    tile_h = _pick_tile_h(H, row_bytes, min_rows, budget)
    return pl.pallas_call(
        _deinterleave_kernel,
        out_shape=jax.ShapeDtypeStruct((C, H, W), out_dtype),
        grid=(pl.cdiv(H, tile_h),),
        in_specs=[pl.BlockSpec((tile_h, W * C), lambda i: (i, 0))],
        out_specs=pl.BlockSpec((C, tile_h, W), lambda i: (0, i, 0)),
        scratch_shapes=[pltpu.VMEM((W * C, tile_h), out_dtype)],
        compiler_params=_compiler_params(vmem_limit),
        cost_estimate=pl.CostEstimate(
            flops=H * W * C, transcendentals=0,
            bytes_accessed=H * W * C * (in_isz + out_isz)),
    )(flat)


def _forward_basic(pic, out_dtype, vmem_limit, budget):
    """Safety net: 3-D (tile_h, W, C) blocks + per-channel slice.

    The C axis lane-pads to 128, so blocks are ~128/C larger than the data; the
    footprint below accounts for that (this was the VMEM-sizing bug previously).
    Only used if the lane-dense kernels fail to lower on a given jax/TPU version.
    """
    H, W, C = pic.shape
    in_isz = jnp.dtype(pic.dtype).itemsize
    out_isz = jnp.dtype(out_dtype).itemsize
    min_rows = _sublane_rows(pic.dtype)
    in_row = _round_up(W, min_rows) * 128 * in_isz       # C pads to 128 lanes, W on sublanes
    out_row = C * _round_up(W, 128) * out_isz
    tile_h = _pick_tile_h(H, 2 * (in_row + out_row), 8, budget)
    return pl.pallas_call(
        _basic_kernel,
        out_shape=jax.ShapeDtypeStruct((C, H, W), out_dtype),
        grid=(pl.cdiv(H, tile_h),),
        in_specs=[pl.BlockSpec((tile_h, W, C), lambda i: (i, 0, 0))],
        out_specs=pl.BlockSpec((C, tile_h, W), lambda i: (0, i, 0)),
        compiler_params=_compiler_params(vmem_limit),
        cost_estimate=pl.CostEstimate(
            flops=H * W * C, transcendentals=0,
            bytes_accessed=H * W * C * (in_isz + out_isz)),
    )(pic)


# --------------------------------------------------------------------------------------
# Public entry point (eager; mirrors ToOnlyTensor.forward for array inputs)
# --------------------------------------------------------------------------------------
def to_only_tensor(pic):
    """JAX/Pallas equivalent of ToOnlyTensor.forward for an array input.

    Args:
      pic: array of shape (H, W, C) or (H, W) (HWC image).
    Returns:
      (C, H, W) array; float32 if the input was uint8, else the input dtype.
    """
    if pic.ndim == 2:                                    # matches pic[:, :, None] in the spec
        pic = pic[:, :, None]
    if pic.ndim != 3:
        raise ValueError(f"expected HWC or HW input, got shape {pic.shape}")
    out_dtype = jnp.float32 if pic.dtype == jnp.uint8 else pic.dtype
    vmem_limit, budget = _vmem_budget()
    C = pic.shape[2]

    if C == 1:
        return _forward_c1(pic, out_dtype, vmem_limit, budget)

    candidates = []
    if pic.dtype == jnp.uint8 and C == 4:
        candidates.append(_forward_packed_u8)            # pure-VPU unpack path
    candidates.append(_forward_generic)                  # lane-dense + 1 transpose
    candidates.append(_forward_basic)                    # conservative safety net

    # Mosaic op coverage (transposes / strided loads / bitcasts) differs across
    # jaxlib & TPU generations; fall through to the next variant on lowering failure.
    # (Intended for eager use — under jit the first variant is always taken.)
    err = None
    for fn in candidates:
        try:
            return jax.block_until_ready(fn(pic, out_dtype, vmem_limit, budget))
        except Exception as e:                           # lowering / compile failure
            err = e
    raise err


# --------------------------------------------------------------------------------------
# Self-test
# --------------------------------------------------------------------------------------
if __name__ == "__main__":
    key = jax.random.PRNGKey(0)
    k1, k2, k3, k4 = jax.random.split(key, 4)
    H, W = 64, 128

    # 1) uint8 HWC RGB (the canonical PIL -> ByteTensor case): permute + cast, no /255.
    rgb = jax.random.randint(k1, (H, W, 3), 0, 256, dtype=jnp.int32).astype(jnp.uint8)
    out = jax.block_until_ready(to_only_tensor(rgb))
    ref = jnp.transpose(rgb, (2, 0, 1)).astype(jnp.float32)
    assert out.shape == (3, H, W) and out.dtype == jnp.float32, (out.shape, out.dtype)
    np.testing.assert_array_equal(np.asarray(out), np.asarray(ref))

    # 2) uint8 HWC RGBA: packed-uint32 fast path.
    rgba = jax.random.randint(k2, (H, W, 4), 0, 256, dtype=jnp.int32).astype(jnp.uint8)
    out = jax.block_until_ready(to_only_tensor(rgba))
    ref = jnp.transpose(rgba, (2, 0, 1)).astype(jnp.float32)
    assert out.shape == (4, H, W) and out.dtype == jnp.float32, (out.shape, out.dtype)
    np.testing.assert_array_equal(np.asarray(out), np.asarray(ref))

    # 3) uint8 2-D (grayscale): -> (1, H, W) float32 via the cast kernel.
    gray = jax.random.randint(k3, (H, W), 0, 256, dtype=jnp.int32).astype(jnp.uint8)
    out = jax.block_until_ready(to_only_tensor(gray))
    ref = gray[None].astype(jnp.float32)
    assert out.shape == (1, H, W) and out.dtype == jnp.float32, (out.shape, out.dtype)
    np.testing.assert_array_equal(np.asarray(out), np.asarray(ref))

    # 4) float32 HWC: dtype preserved, no cast, no scaling.
    fimg = jax.random.uniform(k4, (H, W, 3), dtype=jnp.float32)
    out = jax.block_until_ready(to_only_tensor(fimg))
    ref = jnp.transpose(fimg, (2, 0, 1))
    assert out.shape == (3, H, W) and out.dtype == jnp.float32, (out.shape, out.dtype)
    np.testing.assert_array_equal(np.asarray(out), np.asarray(ref))

    print("KERNEL_OK")
</pallas_src>

<mosaic_0001>
module attributes {stable_mosaic.version = 11 : i64} {
  func.func @_deinterleave_kernel(%arg0: i32, %arg1: memref<32x384xi8, #tpu.memory_space<vmem>>, %arg2: memref<3x32x128xf32, #tpu.memory_space<vmem>>, %arg3: memref<384x32xf32, #tpu.memory_space<vmem>>) attributes {dimension_semantics = [#tpu.dimension_semantics<parallel>], iteration_bounds = array<i64: 2>, scalar_prefetch = 0 : i64, scratch_operands = 1 : i64, tpu.core_type = #tpu.core_type<tc>, window_params = [{transform_indices = @transform_0, window_bounds = array<i64: 32, 384>}, {transform_indices = @transform_1, window_bounds = array<i64: 3, 32, 128>}]} {
    %c0 = arith.constant 0 : index
    %c0_0 = arith.constant 0 : index
    %0 = vector.load %arg1[%c0, %c0_0] : memref<32x384xi8, #tpu.memory_space<vmem>>, vector<32x384xi8>
    %1 = arith.uitofp %0 : vector<32x384xi8> to vector<32x384xf32>
    %2 = tpu.transpose %1, [1, 0] : vector<32x384xf32> -> vector<384x32xf32>
    %c0_1 = arith.constant 0 : index
    %c0_2 = arith.constant 0 : index
    %3 = vector.load %arg3[%c0_1, %c0_2] : memref<384x32xf32, #tpu.memory_space<vmem>>, vector<384x32xf32>
    tpu.vector_store %arg3[%c0_1, %c0_2], %2 {strides = array<i32>} : memref<384x32xf32, #tpu.memory_space<vmem>>, vector<384x32xf32>,
    %c0_3 = arith.constant 0 : index
    %c0_4 = arith.constant 0 : index
    %4 = tpu.strided_load %arg3[%c0_3, %c0_4] {strides = array<i32: 3, 1>} : memref<384x32xf32, #tpu.memory_space<vmem>>, vector<128x32xf32>
    %5 = tpu.transpose %4, [1, 0] : vector<128x32xf32> -> vector<32x128xf32>
    %c0_5 = arith.constant 0 : index
    %c0_6 = arith.constant 0 : index
    %c0_7 = arith.constant 0 : index
    %6 = vector.load %arg2[%c0_5, %c0_6, %c0_7] : memref<3x32x128xf32, #tpu.memory_space<vmem>>, vector<1x32x128xf32>
    %7 = vector.shape_cast %6 : vector<1x32x128xf32> to vector<32x128xf32>
    %8 = vector.shape_cast %5 : vector<32x128xf32> to vector<1x32x128xf32>
    tpu.vector_store %arg2[%c0_5, %c0_6, %c0_7], %8 {strides = array<i32>} : memref<3x32x128xf32, #tpu.memory_space<vmem>>, vector<1x32x128xf32>,
    %c1 = arith.constant 1 : index
    %c0_8 = arith.constant 0 : index
    %9 = tpu.strided_load %arg3[%c1, %c0_8] {strides = array<i32: 3, 1>} : memref<384x32xf32, #tpu.memory_space<vmem>>, vector<128x32xf32>
    %10 = tpu.transpose %9, [1, 0] : vector<128x32xf32> -> vector<32x128xf32>
    %c1_9 = arith.constant 1 : index
    %c0_10 = arith.constant 0 : index
    %c0_11 = arith.constant 0 : index
    %11 = vector.load %arg2[%c1_9, %c0_10, %c0_11] : memref<3x32x128xf32, #tpu.memory_space<vmem>>, vector<1x32x128xf32>
    %12 = vector.shape_cast %11 : vector<1x32x128xf32> to vector<32x128xf32>
    %13 = vector.shape_cast %10 : vector<32x128xf32> to vector<1x32x128xf32>
    tpu.vector_store %arg2[%c1_9, %c0_10, %c0_11], %13 {strides = array<i32>} : memref<3x32x128xf32, #tpu.memory_space<vmem>>, vector<1x32x128xf32>,
    %c2 = arith.constant 2 : index
    %c0_12 = arith.constant 0 : index
    %14 = tpu.strided_load %arg3[%c2, %c0_12] {strides = array<i32: 3, 1>} : memref<384x32xf32, #tpu.memory_space<vmem>>, vector<128x32xf32>
    %15 = tpu.transpose %14, [1, 0] : vector<128x32xf32> -> vector<32x128xf32>
    %c2_13 = arith.constant 2 : index
    %c0_14 = arith.constant 0 : index
    %c0_15 = arith.constant 0 : index
    %16 = vector.load %arg2[%c2_13, %c0_14, %c0_15] : memref<3x32x128xf32, #tpu.memory_space<vmem>>, vector<1x32x128xf32>
    %17 = vector.shape_cast %16 : vector<1x32x128xf32> to vector<32x128xf32>
    %18 = vector.shape_cast %15 : vector<32x128xf32> to vector<1x32x128xf32>
    tpu.vector_store %arg2[%c2_13, %c0_14, %c0_15], %18 {strides = array<i32>} : memref<3x32x128xf32, #tpu.memory_space<vmem>>, vector<1x32x128xf32>,
    return
  }
  func.func @transform_0(%arg0: i32) -> (i32, i32) {
    %c0_i32 = arith.constant 0 : i32
    %c0_i32_0 = arith.constant 0 : i32
    return %arg0, %c0_i32 : i32, i32
  }
  func.func @transform_1(%arg0: i32) -> (i32, i32, i32) {
    %c0_i32 = arith.constant 0 : i32
    %c0_i32_0 = arith.constant 0 : i32
    %c0_i32_1 = arith.constant 0 : i32
    return %c0_i32, %arg0, %c0_i32_0 : i32, i32, i32
  }
}

module attributes {stable_mosaic.version = 11 : i64} {
  func.func @_basic_kernel(%arg0: i32, %arg1: memref<16x128x3xi8, #tpu.memory_space<vmem>>, %arg2: memref<3x16x128xf32, #tpu.memory_space<vmem>>) attributes {dimension_semantics = [#tpu.dimension_semantics<parallel>], iteration_bounds = array<i64: 4>, scalar_prefetch = 0 : i64, scratch_operands = 0 : i64, tpu.core_type = #tpu.core_type<tc>, window_params = [{transform_indices = @transform_0, window_bounds = array<i64: 16, 128, 3>}, {transform_indices = @transform_1, window_bounds = array<i64: 3, 16, 128>}]} {
    %c0 = arith.constant 0 : index
    %c0_0 = arith.constant 0 : index
    %c0_1 = arith.constant 0 : index
    %0 = vector.load %arg1[%c0, %c0_0, %c0_1] : memref<16x128x3xi8, #tpu.memory_space<vmem>>, vector<16x128x1xi8>
    %1 = vector.shape_cast %0 : vector<16x128x1xi8> to vector<16x128xi8>
    %2 = arith.uitofp %1 : vector<16x128xi8> to vector<16x128xf32>
    %c0_2 = arith.constant 0 : index
    %c0_3 = arith.constant 0 : index
    %c0_4 = arith.constant 0 : index
    %3 = vector.load %arg2[%c0_2, %c0_3, %c0_4] : memref<3x16x128xf32, #tpu.memory_space<vmem>>, vector<1x16x128xf32>
    %4 = vector.shape_cast %3 : vector<1x16x128xf32> to vector<16x128xf32>
    %5 = vector.shape_cast %2 : vector<16x128xf32> to vector<1x16x128xf32>
    tpu.vector_store %arg2[%c0_2, %c0_3, %c0_4], %5 {strides = array<i32>} : memref<3x16x128xf32, #tpu.memory_space<vmem>>, vector<1x16x128xf32>,
    %c0_5 = arith.constant 0 : index
    %c0_6 = arith.constant 0 : index
    %c1 = arith.constant 1 : index
    %6 = vector.load %arg1[%c0_5, %c0_6, %c1] : memref<16x128x3xi8, #tpu.memory_space<vmem>>, vector<16x128x1xi8>
    %7 = vector.shape_cast %6 : vector<16x128x1xi8> to vector<16x128xi8>
    %8 = arith.uitofp %7 : vector<16x128xi8> to vector<16x128xf32>
    %c1_7 = arith.constant 1 : index
    %c0_8 = arith.constant 0 : index
    %c0_9 = arith.constant 0 : index
    %9 = vector.load %arg2[%c1_7, %c0_8, %c0_9] : memref<3x16x128xf32, #tpu.memory_space<vmem>>, vector<1x16x128xf32>
    %10 = vector.shape_cast %9 : vector<1x16x128xf32> to vector<16x128xf32>
    %11 = vector.shape_cast %8 : vector<16x128xf32> to vector<1x16x128xf32>
    tpu.vector_store %arg2[%c1_7, %c0_8, %c0_9], %11 {strides = array<i32>} : memref<3x16x128xf32, #tpu.memory_space<vmem>>, vector<1x16x128xf32>,
    %c0_10 = arith.constant 0 : index
    %c0_11 = arith.constant 0 : index
    %c2 = arith.constant 2 : index
    %12 = vector.load %arg1[%c0_10, %c0_11, %c2] : memref<16x128x3xi8, #tpu.memory_space<vmem>>, vector<16x128x1xi8>
    %13 = vector.shape_cast %12 : vector<16x128x1xi8> to vector<16x128xi8>
    %14 = arith.uitofp %13 : vector<16x128xi8> to vector<16x128xf32>
    %c2_12 = arith.constant 2 : index
    %c0_13 = arith.constant 0 : index
    %c0_14 = arith.constant 0 : index
    %15 = vector.load %arg2[%c2_12, %c0_13, %c0_14] : memref<3x16x128xf32, #tpu.memory_space<vmem>>, vector<1x16x128xf32>
    %16 = vector.shape_cast %15 : vector<1x16x128xf32> to vector<16x128xf32>
    %17 = vector.shape_cast %14 : vector<16x128xf32> to vector<1x16x128xf32>
    tpu.vector_store %arg2[%c2_12, %c0_13, %c0_14], %17 {strides = array<i32>} : memref<3x16x128xf32, #tpu.memory_space<vmem>>, vector<1x16x128xf32>,
    return
  }
  func.func @transform_0(%arg0: i32) -> (i32, i32, i32) {
    %c0_i32 = arith.constant 0 : i32
    %c0_i32_0 = arith.constant 0 : i32
    %c0_i32_1 = arith.constant 0 : i32
    return %arg0, %c0_i32, %c0_i32_0 : i32, i32, i32
  }
  func.func @transform_1(%arg0: i32) -> (i32, i32, i32) {
    %c0_i32 = arith.constant 0 : i32
    %c0_i32_0 = arith.constant 0 : i32
    %c0_i32_1 = arith.constant 0 : i32
    return %c0_i32, %arg0, %c0_i32_0 : i32, i32, i32
  }
}

</mosaic_0001>

<llo_original>
// kernel: tpu_custom_call.1
$region0: #{tpu_custom_call.1}
  #allocation0 [shape = 'u32[]', space=smem, size = 0x4, offset = 0x4, fixed_abs, tag = 'smem constant byte address 0x4 - core index']
  #allocation1 [shape = 'u32[144,128]{1,0:T(1,128)}', space=vmem, size = 0x12000, scoped, tag = 'internal scratch']
  #allocation2 [shape = 'f32[384,32]{1,0:T(8,128)}', space=vmem, size = 0x30000, scoped, tag = 'scratch operand']
  #allocation7 [shape = 's32[]', space=sflag, size = 0x4, offset = 0, fixed_abs, tag = 'sflag constant byte address 0x0 - dummy sync flag']
  %s0 = inlined_call_operand.hbm [shape: u8[64,384], index: 0, kind: input, shape index: {}]
  %s1 = inlined_call_operand.hbm [shape: f32[3,64,128], index: 1, kind: output, shape index: {}]
  %s2 = sld [smem:[#allocation0]]
  $region41: #{tpu_custom_call.1} parent=0
    _
  %s4 = ssub.s32 1, %s2
  %s5 = scalar_select 0, %s4, %s2
  $region1: #{tpu_custom_call.1} parent=0
    #allocation3 [shape = 'u8[24576]{0}', space=vmem, size = 0x6000, scoped, tag = 'input window, operand 0']
    #allocation4 [shape = 's32[2]{0}', space=sflag, size = 0x8, scoped, tag = 'scoped memory for tpu_custom_call.1']
    #allocation5 [shape = 's32[2]{0}', space=sflag, size = 0x8, scoped, tag = 'scoped memory for tpu_custom_call.1']
    #allocation6 [shape = 'u8[98304]{0}', space=vmem, size = 0x18000, scoped, tag = 'output window, operand 0']
    %6 = vsyncpa [#allocation4], 0
    %s7 = scalar_lea.sflag [#allocation4], 1
    %8 = vsyncpa %s7, 0
    %9 = vsyncpa [#allocation5], 0
    %s10 = scalar_lea.sflag [#allocation5], 1
    %11 = vsyncpa %s10, 0
    loop: start=0, step=1, limit=4
    $region2: #{tpu_custom_call.1} parent=1 // loop_pre_header
      _
    $region3: #{tpu_custom_call.1} parent=1 // loop_header
      %s13 = sphi 0, %s17
      %p14 = scmp.ge.s32.totalorder %s13, 4
      %s23 = sphi 0, %s25
      %s26 = sphi 0, %s23
      %s27 = sphi 0, %s26
      %s43 = sphi 0, %s27
      %s49 = sphi 0, %s51
      %s52 = sphi 0, %s49
      %s53 = sphi 0, %s52
      %s69 = sphi 0, %s53
    $region4: #{tpu_custom_call.1} parent=1 // loop_header_branch
      %16 = sbr.rel (%p14) target = $region8
    $region5: #{tpu_custom_call.1} parent=1 // loop_body
      %s18 = ssub.s32 %s13, 1
      %s19 = ssub.s32 %s13, 2
      %s20 = sadd.s32 %s13, 1
      %s21 = ssub.s32 %s13, %s20
      %p22 = scmp.eq.s32.totalorder %s21, 0
      %s24 = sadd.s32 %s23, 1
      %s25 = scalar_select %p22, %s23, %s24
      %p28 = pneg %p22
      %p29 = scmp.eq.s32.totalorder %s13, 1
      %p30 = por %p28, %p29
      %p31 = scmp.ne.s32.totalorder %s23, %s26
      %p32 = scmp.eq.s32.totalorder %s13, 0
      %p33 = por %p31, %p32
      %p34 = scmp.ne.s32.totalorder %s23, %s26
      %p35 = scmp.eq.s32.totalorder %s18, 1
      %p36 = por %p34, %p35
      %p37 = scmp.ne.s32.totalorder %s26, %s27
      %p38 = scmp.eq.s32.totalorder %s18, 0
      %p39 = por %p37, %p38
      %p40 = scmp.ne.s32.totalorder %s26, %s27
      %p41 = scmp.eq.s32.totalorder %s19, 1
      %p42 = por %p40, %p41
      %p44 = scmp.ne.s32.totalorder %s27, %s43
      %p45 = scmp.eq.s32.totalorder %s19, 0
      %p46 = por %p44, %p45
      %s47 = ssub.s32 %s13, %s20
      %p48 = scmp.eq.s32.totalorder %s47, 0
      %s50 = sadd.s32 %s49, 1
      %s51 = scalar_select %p48, %s49, %s50
      %p54 = pneg %p48
      %p55 = scmp.eq.s32.totalorder %s13, 1
      %p56 = por %p54, %p55
      %p57 = scmp.ne.s32.totalorder %s49, %s52
      %p58 = scmp.eq.s32.totalorder %s13, 0
      %p59 = por %p57, %p58
      %p60 = scmp.ne.s32.totalorder %s49, %s52
      %p61 = scmp.eq.s32.totalorder %s18, 1
      %p62 = por %p60, %p61
      %p63 = scmp.ne.s32.totalorder %s52, %s53
      %p64 = scmp.eq.s32.totalorder %s18, 0
      %p65 = por %p63, %p64
      %p66 = scmp.ne.s32.totalorder %s52, %s53
      %p67 = scmp.eq.s32.totalorder %s19, 1
      %p68 = por %p66, %p67
      %p70 = scmp.ne.s32.totalorder %s53, %s69
      %p71 = scmp.eq.s32.totalorder %s19, 0
      %p72 = por %p70, %p71
      %p73 = scmp.le.s32.totalorder 1, %s13
      %p74 = scmp.lt.s32.totalorder %s13, 3
      %p75 = pnand %p73, %p74
      %p76 = pneg %p75
      // Predicated region
      $region9: #{tpu_custom_call.1} parent=5 // pred_check
        _
      $region10: #{tpu_custom_call.1} parent=5 // pred_check_branch
        %78 = sbr.rel (%p75) target = $region12
      $region11: #{tpu_custom_call.1} parent=5 // pred_region
        %s79 = ssub.s32 %s13, 1
      $region12: #{tpu_custom_call.1} parent=5 // pred_fallthru
        _
      %p80 = scmp.lt.s32.totalorder %s13, 2
      // Predicated region
      $region13: #{tpu_custom_call.1} parent=5 // pred_check
        %p81 = pneg %p80
      $region14: #{tpu_custom_call.1} parent=5 // pred_check_branch
        %83 = sbr.rel (%p81) target = $region16
      $region15: #{tpu_custom_call.1} parent=5 // pred_region
        // Predicated region
        $region17: #{tpu_custom_call.1} parent=15 // pred_check
          %p84 = pneg %p33
        $region18: #{tpu_custom_call.1} parent=15 // pred_check_branch
          %86 = sbr.rel (%p84) target = $region20
        $region19: #{tpu_custom_call.1} parent=15 // pred_region
          %s87 = sand.u32 %s23, 1
          %s88 = scalar_lea.sflag [#allocation4], %s87
          %s89 = sand.u32 %s23, 1
          %s90 = smul.addr %s89, 24
          %s91 = scalar_lea.vmem [#allocation3], %s90
          %s93 = ssub.s32 384, 384
          %94 = vsyncadd %s88, %s93
          %s95 = smul.addr %s13, 3
          %s96 = smul.addr %s95, 128
          %s97 = scalar_lea.hbm %s0, %s96
          %s99 = sshll.u32 %s91, 4
          %s100 = int_to_ptr.vmem [resolvable:$true] %s99
          %102 = dma.hbm_to_vmem [thread:$0]  %s97, 384, %s100, %s88
        $region20: #{tpu_custom_call.1} parent=15 // pred_fallthru
          _
      $region16: #{tpu_custom_call.1} parent=5 // pred_fallthru
        _
      %p103 = scmp.le.s32.totalorder 1, %s13
      %p104 = scmp.lt.s32.totalorder %s13, 3
      %p105 = pnand %p103, %p104
      %p106 = pneg %p105
      // Predicated region
      $region21: #{tpu_custom_call.1} parent=5 // pred_check
        _
      $region22: #{tpu_custom_call.1} parent=5 // pred_check_branch
        %108 = sbr.rel (%p105) target = $region24
      $region23: #{tpu_custom_call.1} parent=5 // pred_region
        %s109 = ssub.s32 %s13, 1
        %s110 = sand.u32 %s26, 1
        %s111 = scalar_lea.sflag [#allocation4], %s110
        %s112 = sand.u32 %s26, 1
        %s113 = smul.addr %s112, 24
        %s114 = scalar_lea.vmem [#allocation3], %s113
        // Predicated region
        $region25: #{tpu_custom_call.1} parent=23 // pred_check
          %p115 = pneg %p39
        $region26: #{tpu_custom_call.1} parent=23 // pred_check_branch
          %117 = sbr.rel (%p115) target = $region28
        $region27: #{tpu_custom_call.1} parent=23 // pred_region
          %118 = dma.done %s111, 384
        $region28: #{tpu_custom_call.1} parent=23 // pred_fallthru
          _
        %s119 = sand.u32 %s26, 1
        %s120 = scalar_lea.sflag [#allocation4], %s119
        %s121 = sand.u32 %s26, 1
        %s122 = smul.addr %s121, 24
        %s123 = scalar_lea.vmem [#allocation3], %s122
        %p124 = pneg %p39
        %p125 = pneg %p36
        %p126 = pneg %p65
        %p127 = pneg %p62
        %s128 = sand.u32 %s52, 1
        %s129 = scalar_lea.sflag [#allocation5], %s128
        %s130 = sand.u32 %s52, 1
        %s131 = smul.addr %s130, 96
        %s132 = scalar_lea.vmem [#allocation6], %s131
        %s133 = smul.u32 4, %s18
        %v134 = vld [vmem:[%s114] sm:$0xff]
        %v135 = vld [vmem:[%s114 + $0x8] sm:$0xff]
        %v136 = vld [vmem:[%s114 + $0x10] sm:$0xff]
        %v137 = vunpack.c.0.s8 %v134
        %v138 = vunpack.c.0.s8 %v135
        %v139 = vunpack.c.0.s8 %v136
        %v140 = vunpack.c.1.s8 %v134
        %v141 = vunpack.c.1.s8 %v135
        %v142 = vunpack.c.1.s8 %v136
        %v143 = vunpack.c.2.s8 %v134
        %v144 = vunpack.c.2.s8 %v135
        %v145 = vunpack.c.2.s8 %v136
        %v146 = vunpack.c.3.s8 %v134
        %v147 = vunpack.c.3.s8 %v135
        %v148 = vunpack.c.3.s8 %v136
        %v149 = vand.u32 %v137, 255
        %v150 = vand.u32 %v138, 255
        %v151 = vand.u32 %v139, 255
        %v152 = vand.u32 %v140, 255
        %v153 = vand.u32 %v141, 255
        %v154 = vand.u32 %v142, 255
        %v155 = vand.u32 %v143, 255
        %v156 = vand.u32 %v144, 255
        %v157 = vand.u32 %v145, 255
        %v158 = vand.u32 %v146, 255
        %v159 = vand.u32 %v147, 255
        %v160 = vand.u32 %v148, 255
        %v161 = vcvt.s32.f32 %v149
        %v162 = vcvt.s32.f32 %v150
        %v163 = vcvt.s32.f32 %v151
        %v164 = vcvt.s32.f32 %v152
        %v165 = vcvt.s32.f32 %v153
        %v166 = vcvt.s32.f32 %v154
        %v167 = vcvt.s32.f32 %v155
        %v168 = vcvt.s32.f32 %v156
        %v169 = vcvt.s32.f32 %v157
        %v170 = vcvt.s32.f32 %v158
        %v171 = vcvt.s32.f32 %v159
        %v172 = vcvt.s32.f32 %v160
        %173 = vxpose.xlu0.b32.start [1/16] %v161, 128
        %174 = vxpose.xlu0.b32.cont [2/16] %v164, 128
        %175 = vxpose.xlu0.b32.cont [3/16] %v167, 128
        %176 = vxpose.xlu0.b32.cont [4/16] %v170, 128
        %177 = vxpose.xlu0.b32.cont [5/16] 0.0, 128
        %178 = vxpose.xlu0.b32.cont [6/16] 0.0, 128
        %179 = vxpose.xlu0.b32.cont [7/16] 0.0, 128
        %180 = vxpose.xlu0.b32.cont [8/16] 0.0, 128
        %181 = vxpose.xlu0.b32.cont [9/16] 0.0, 128
        %182 = vxpose.xlu0.b32.cont [10/16] 0.0, 128
        %183 = vxpose.xlu0.b32.cont [11/16] 0.0, 128
        %184 = vxpose.xlu0.b32.cont [12/16] 0.0, 128
        %185 = vxpose.xlu0.b32.cont [13/16] 0.0, 128
        %186 = vxpose.xlu0.b32.cont [14/16] 0.0, 128
        %187 = vxpose.xlu0.b32.cont [15/16] 0.0, 128
        %188 = vxpose.xlu0.b32.end [16/16] 0.0, 128
        %v189 = vpop.trf.xlu0
        %v190 = vpop.trf.xlu0
        %v191 = vpop.trf.xlu0
        %v192 = vpop.trf.xlu0
        %v193 = vpop.trf.xlu0
        %v194 = vpop.trf.xlu0
        %v195 = vpop.trf.xlu0
        %v196 = vpop.trf.xlu0
        %v197 = vpop.trf.xlu0
        %v198 = vpop.trf.xlu0
        %v199 = vpop.trf.xlu0
        %v200 = vpop.trf.xlu0
        %v201 = vpop.trf.xlu0
        %v202 = vpop.trf.xlu0
        %v203 = vpop.trf.xlu0
        %v204 = vpop.trf.xlu0
        %205 = vxpose.xlu0.b32.start [1/16] %v162, 128
        %206 = vxpose.xlu0.b32.cont [2/16] %v165, 128
        %207 = vxpose.xlu0.b32.cont [3/16] %v168, 128
        %208 = vxpose.xlu0.b32.cont [4/16] %v171, 128
        %209 = vxpose.xlu0.b32.cont [5/16] 0.0, 128
        %210 = vxpose.xlu0.b32.cont [6/16] 0.0, 128
        %211 = vxpose.xlu0.b32.cont [7/16] 0.0, 128
        %212 = vxpose.xlu0.b32.cont [8/16] 0.0, 128
        %213 = vxpose.xlu0.b32.cont [9/16] 0.0, 128
        %214 = vxpose.xlu0.b32.cont [10/16] 0.0, 128
        %215 = vxpose.xlu0.b32.cont [11/16] 0.0, 128
        %216 = vxpose.xlu0.b32.cont [12/16] 0.0, 128
        %217 = vxpose.xlu0.b32.cont [13/16] 0.0, 128
        %218 = vxpose.xlu0.b32.cont [14/16] 0.0, 128
        %219 = vxpose.xlu0.b32.cont [15/16] 0.0, 128
        %220 = vxpose.xlu0.b32.end [16/16] 0.0, 128
        %v221 = vpop.trf.xlu0
        %v222 = vpop.trf.xlu0
        %v223 = vpop.trf.xlu0
        %v224 = vpop.trf.xlu0
        %v225 = vpop.trf.xlu0
        %v226 = vpop.trf.xlu0
        %v227 = vpop.trf.xlu0
        %v228 = vpop.trf.xlu0
        %v229 = vpop.trf.xlu0
        %v230 = vpop.trf.xlu0
        %v231 = vpop.trf.xlu0
        %v232 = vpop.trf.xlu0
        %v233 = vpop.trf.xlu0
        %v234 = vpop.trf.xlu0
        %v235 = vpop.trf.xlu0
        %v236 = vpop.trf.xlu0
        %237 = vxpose.xlu0.b32.start [1/16] %v163, 128
        %238 = vxpose.xlu0.b32.cont [2/16] %v166, 128
        %239 = vxpose.xlu0.b32.cont [3/16] %v169, 128
        %240 = vxpose.xlu0.b32.cont [4/16] %v172, 128
        %241 = vxpose.xlu0.b32.cont [5/16] 0.0, 128
        %242 = vxpose.xlu0.b32.cont [6/16] 0.0, 128
        %243 = vxpose.xlu0.b32.cont [7/16] 0.0, 128
        %244 = vxpose.xlu0.b32.cont [8/16] 0.0, 128
        %245 = vxpose.xlu0.b32.cont [9/16] 0.0, 128
        %246 = vxpose.xlu0.b32.cont [10/16] 0.0, 128
        %247 = vxpose.xlu0.b32.cont [11/16] 0.0, 128
        %248 = vxpose.xlu0.b32.cont [12/16] 0.0, 128
        %249 = vxpose.xlu0.b32.cont [13/16] 0.0, 128
        %250 = vxpose.xlu0.b32.cont [14/16] 0.0, 128
        %251 = vxpose.xlu0.b32.cont [15/16] 0.0, 128
        %252 = vxpose.xlu0.b32.end [16/16] 0.0, 128
        %v253 = vpop.trf.xlu0
        %v254 = vpop.trf.xlu0
        %v255 = vpop.trf.xlu0
        %v256 = vpop.trf.xlu0
        %v257 = vpop.trf.xlu0
        %v258 = vpop.trf.xlu0
        %v259 = vpop.trf.xlu0
        %v260 = vpop.trf.xlu0
        %v261 = vpop.trf.xlu0
        %v262 = vpop.trf.xlu0
        %v263 = vpop.trf.xlu0
        %v264 = vpop.trf.xlu0
        %v265 = vpop.trf.xlu0
        %v266 = vpop.trf.xlu0
        %v267 = vpop.trf.xlu0
        %v268 = vpop.trf.xlu0
        %vm269 = vcmask 261120
        %270 = vst.msk [vmem:[#allocation2] sm:$0xff] %vm269, %v189
        %271 = vst.msk [vmem:[#allocation2 + $0x8] sm:$0xff] %vm269, %v190
        %272 = vst.msk [vmem:[#allocation2 + $0x10] sm:$0xff] %vm269, %v191
        %273 = vst.msk [vmem:[#allocation2 + $0x18] sm:$0xff] %vm269, %v192
        %274 = vst.msk [vmem:[#allocation2 + $0x20] sm:$0xff] %vm269, %v193
        %275 = vst.msk [vmem:[#allocation2 + $0x28] sm:$0xff] %vm269, %v194
        %276 = vst.msk [vmem:[#allocation2 + $0x30] sm:$0xff] %vm269, %v195
        %277 = vst.msk [vmem:[#allocation2 + $0x38] sm:$0xff] %vm269, %v196
        %278 = vst.msk [vmem:[#allocation2 + $0x40] sm:$0xff] %vm269, %v197
        %279 = vst.msk [vmem:[#allocation2 + $0x48] sm:$0xff] %vm269, %v198
        %280 = vst.msk [vmem:[#allocation2 + $0x50] sm:$0xff] %vm269, %v199
        %281 = vst.msk [vmem:[#allocation2 + $0x58] sm:$0xff] %vm269, %v200
        %282 = vst.msk [vmem:[#allocation2 + $0x60] sm:$0xff] %vm269, %v201
        %283 = vst.msk [vmem:[#allocation2 + $0x68] sm:$0xff] %vm269, %v202
        %284 = vst.msk [vmem:[#allocation2 + $0x70] sm:$0xff] %vm269, %v203
        %285 = vst.msk [vmem:[#allocation2 + $0x78] sm:$0xff] %vm269, %v204
        %286 = vst.msk [vmem:[#allocation2 + $0x80] sm:$0xff] %vm269, %v221
        %287 = vst.msk [vmem:[#allocation2 + $0x88] sm:$0xff] %vm269, %v222
        %288 = vst.msk [vmem:[#allocation2 + $0x90] sm:$0xff] %vm269, %v223
        %289 = vst.msk [vmem:[#allocation2 + $0x98] sm:$0xff] %vm269, %v224
        %290 = vst.msk [vmem:[#allocation2 + $0xa0] sm:$0xff] %vm269, %v225
        %291 = vst.msk [vmem:[#allocation2 + $0xa8] sm:$0xff] %vm269, %v226
        %292 = vst.msk [vmem:[#allocation2 + $0xb0] sm:$0xff] %vm269, %v227
        %293 = vst.msk [vmem:[#allocation2 + $0xb8] sm:$0xff] %vm269, %v228
        %294 = vst.msk [vmem:[#allocation2 + $0xc0] sm:$0xff] %vm269, %v229
        %295 = vst.msk [vmem:[#allocation2 + $0xc8] sm:$0xff] %vm269, %v230
        %296 = vst.msk [vmem:[#allocation2 + $0xd0] sm:$0xff] %vm269, %v231
        %297 = vst.msk [vmem:[#allocation2 + $0xd8] sm:$0xff] %vm269, %v232
        %298 = vst.msk [vmem:[#allocation2 + $0xe0] sm:$0xff] %vm269, %v233
        %299 = vst.msk [vmem:[#allocation2 + $0xe8] sm:$0xff] %vm269, %v234
        %300 = vst.msk [vmem:[#allocation2 + $0xf0] sm:$0xff] %vm269, %v235
        %301 = vst.msk [vmem:[#allocation2 + $0xf8] sm:$0xff] %vm269, %v236
        %302 = vst.msk [vmem:[#allocation2 + $0x100] sm:$0xff] %vm269, %v253
        %303 = vst.msk [vmem:[#allocation2 + $0x108] sm:$0xff] %vm269, %v254
        %304 = vst.msk [vmem:[#allocation2 + $0x110] sm:$0xff] %vm269, %v255
        %305 = vst.msk [vmem:[#allocation2 + $0x118] sm:$0xff] %vm269, %v256
        %306 = vst.msk [vmem:[#allocation2 + $0x120] sm:$0xff] %vm269, %v257
        %307 = vst.msk [vmem:[#allocation2 + $0x128] sm:$0xff] %vm269, %v258
        %308 = vst.msk [vmem:[#allocation2 + $0x130] sm:$0xff] %vm269, %v259
        %309 = vst.msk [vmem:[#allocation2 + $0x138] sm:$0xff] %vm269, %v260
        %310 = vst.msk [vmem:[#allocation2 + $0x140] sm:$0xff] %vm269, %v261
        %311 = vst.msk [vmem:[#allocation2 + $0x148] sm:$0xff] %vm269, %v262
        %312 = vst.msk [vmem:[#allocation2 + $0x150] sm:$0xff] %vm269, %v263
        %313 = vst.msk [vmem:[#allocation2 + $0x158] sm:$0xff] %vm269, %v264
        %314 = vst.msk [vmem:[#allocation2 + $0x160] sm:$0xff] %vm269, %v265
        %315 = vst.msk [vmem:[#allocation2 + $0x168] sm:$0xff] %vm269, %v266
        %316 = vst.msk [vmem:[#allocation2 + $0x170] sm:$0xff] %vm269, %v267
        %317 = vst.msk [vmem:[#allocation2 + $0x178] sm:$0xff] %vm269, %v268
        %v318 = vld [vmem:[#allocation2] ss:$3 sm:$0xff]
        %s319 = scalar_lea.vmem [#allocation2], 24
        %v320 = vld [vmem:[%s319] ss:$3 sm:$0xff]
        %s321 = scalar_lea.vmem [#allocation2], 48
        %v322 = vld [vmem:[%s321] ss:$3 sm:$0xff]
        %s323 = scalar_lea.vmem [#allocation2], 72
        %v324 = vld [vmem:[%s323] ss:$3 sm:$0xff]
        %s325 = scalar_lea.vmem [#allocation2], 96
        %v326 = vld [vmem:[%s325] ss:$3 sm:$0xff]
        %s327 = scalar_lea.vmem [#allocation2], 120
        %v328 = vld [vmem:[%s327] ss:$3 sm:$0xff]
        %s329 = scalar_lea.vmem [#allocation2], 144
        %v330 = vld [vmem:[%s329] ss:$3 sm:$0xff]
        %s331 = scalar_lea.vmem [#allocation2], 168
        %v332 = vld [vmem:[%s331] ss:$3 sm:$0xff]
        %s333 = scalar_lea.vmem [#allocation2], 192
        %v334 = vld [vmem:[%s333] ss:$3 sm:$0xff]
        %s335 = scalar_lea.vmem [#allocation2], 216
        %v336 = vld [vmem:[%s335] ss:$3 sm:$0xff]
        %s337 = scalar_lea.vmem [#allocation2], 240
        %v338 = vld [vmem:[%s337] ss:$3 sm:$0xff]
        %s339 = scalar_lea.vmem [#allocation2], 264
        %v340 = vld [vmem:[%s339] ss:$3 sm:$0xff]
        %s341 = scalar_lea.vmem [#allocation2], 288
        %v342 = vld [vmem:[%s341] ss:$3 sm:$0xff]
        %s343 = scalar_lea.vmem [#allocation2], 312
        %v344 = vld [vmem:[%s343] ss:$3 sm:$0xff]
        %s345 = scalar_lea.vmem [#allocation2], 336
        %v346 = vld [vmem:[%s345] ss:$3 sm:$0xff]
        %s347 = scalar_lea.vmem [#allocation2], 360
        %v348 = vld [vmem:[%s347] ss:$3 sm:$0xff]
        %349 = vxpose.xlu0.b32.start [1/16] %v318, 128
        %350 = vxpose.xlu0.b32.cont [2/16] %v320, 128
        %351 = vxpose.xlu0.b32.cont [3/16] %v322, 128
        %352 = vxpose.xlu0.b32.cont [4/16] %v324, 128
        %353 = vxpose.xlu0.b32.cont [5/16] %v326, 128
        %354 = vxpose.xlu0.b32.cont [6/16] %v328, 128
        %355 = vxpose.xlu0.b32.cont [7/16] %v330, 128
        %356 = vxpose.xlu0.b32.cont [8/16] %v332, 128
        %357 = vxpose.xlu0.b32.cont [9/16] %v334, 128
        %358 = vxpose.xlu0.b32.cont [10/16] %v336, 128
        %359 = vxpose.xlu0.b32.cont [11/16] %v338, 128
        %360 = vxpose.xlu0.b32.cont [12/16] %v340, 128
        %361 = vxpose.xlu0.b32.cont [13/16] %v342, 128
        %362 = vxpose.xlu0.b32.cont [14/16] %v344, 128
        %363 = vxpose.xlu0.b32.cont [15/16] %v346, 128
        %364 = vxpose.xlu0.b32.end [16/16] %v348, 128
        %v365 = vpop.trf.xlu0
        %v366 = vpop.trf.xlu0
        %v367 = vpop.trf.xlu0
        %v368 = vpop.trf.xlu0
        %v369 = vpop.trf.xlu0
        %v370 = vpop.trf.xlu0
        %v371 = vpop.trf.xlu0
        %v372 = vpop.trf.xlu0
        %v373 = vpop.trf.xlu0
        %v374 = vpop.trf.xlu0
        %v375 = vpop.trf.xlu0
        %v376 = vpop.trf.xlu0
        %v377 = vpop.trf.xlu0
        %v378 = vpop.trf.xlu0
        %v379 = vpop.trf.xlu0
        %v380 = vpop.trf.xlu0
        %381 = vst [vmem:[%s132] sm:$0xff] %v365
        %382 = vst [vmem:[%s132 + $0x8] sm:$0xff] %v366
        %383 = vst [vmem:[%s132 + $0x10] sm:$0xff] %v367
        %384 = vst [vmem:[%s132 + $0x18] sm:$0xff] %v368
        %s385 = scalar_lea.vmem [#allocation2], 1
        %v386 = vld [vmem:[%s385] ss:$3 sm:$0xff]
        %s387 = scalar_lea.vmem [#allocation2], 25
        %v388 = vld [vmem:[%s387] ss:$3 sm:$0xff]
        %s389 = scalar_lea.vmem [#allocation2], 49
        %v390 = vld [vmem:[%s389] ss:$3 sm:$0xff]
        %s391 = scalar_lea.vmem [#allocation2], 73
        %v392 = vld [vmem:[%s391] ss:$3 sm:$0xff]
        %s393 = scalar_lea.vmem [#allocation2], 97
        %v394 = vld [vmem:[%s393] ss:$3 sm:$0xff]
        %s395 = scalar_lea.vmem [#allocation2], 121
        %v396 = vld [vmem:[%s395] ss:$3 sm:$0xff]
        %s397 = scalar_lea.vmem [#allocation2], 145
        %v398 = vld [vmem:[%s397] ss:$3 sm:$0xff]
        %s399 = scalar_lea.vmem [#allocation2], 169
        %v400 = vld [vmem:[%s399] ss:$3 sm:$0xff]
        %s401 = scalar_lea.vmem [#allocation2], 193
        %v402 = vld [vmem:[%s401] ss:$3 sm:$0xff]
        %s403 = scalar_lea.vmem [#allocation2], 217
        %v404 = vld [vmem:[%s403] ss:$3 sm:$0xff]
        %s405 = scalar_lea.vmem [#allocation2], 241
        %v406 = vld [vmem:[%s405] ss:$3 sm:$0xff]
        %s407 = scalar_lea.vmem [#allocation2], 265
        %v408 = vld [vmem:[%s407] ss:$3 sm:$0xff]
        %s409 = scalar_lea.vmem [#allocation2], 289
        %v410 = vld [vmem:[%s409] ss:$3 sm:$0xff]
        %s411 = scalar_lea.vmem [#allocation2], 313
        %v412 = vld [vmem:[%s411] ss:$3 sm:$0xff]
        %s413 = scalar_lea.vmem [#allocation2], 337
        %v414 = vld [vmem:[%s413] ss:$3 sm:$0xff]
        %s415 = scalar_lea.vmem [#allocation2], 361
        %v416 = vld [vmem:[%s415] ss:$3 sm:$0xff]
        %417 = vxpose.xlu0.b32.start [1/16] %v386, 128
        %418 = vxpose.xlu0.b32.cont [2/16] %v388, 128
        %419 = vxpose.xlu0.b32.cont [3/16] %v390, 128
        %420 = vxpose.xlu0.b32.cont [4/16] %v392, 128
        %421 = vxpose.xlu0.b32.cont [5/16] %v394, 128
        %422 = vxpose.xlu0.b32.cont [6/16] %v396, 128
        %423 = vxpose.xlu0.b32.cont [7/16] %v398, 128
        %424 = vxpose.xlu0.b32.cont [8/16] %v400, 128
        %425 = vxpose.xlu0.b32.cont [9/16] %v402, 128
        %426 = vxpose.xlu0.b32.cont [10/16] %v404, 128
        %427 = vxpose.xlu0.b32.cont [11/16] %v406, 128
        %428 = vxpose.xlu0.b32.cont [12/16] %v408, 128
        %429 = vxpose.xlu0.b32.cont [13/16] %v410, 128
        %430 = vxpose.xlu0.b32.cont [14/16] %v412, 128
        %431 = vxpose.xlu0.b32.cont [15/16] %v414, 128
        %432 = vxpose.xlu0.b32.end [16/16] %v416, 128
        %v433 = vpop.trf.xlu0
        %v434 = vpop.trf.xlu0
        %v435 = vpop.trf.xlu0
        %v436 = vpop.trf.xlu0
        %v437 = vpop.trf.xlu0
        %v438 = vpop.trf.xlu0
        %v439 = vpop.trf.xlu0
        %v440 = vpop.trf.xlu0
        %v441 = vpop.trf.xlu0
        %v442 = vpop.trf.xlu0
        %v443 = vpop.trf.xlu0
        %v444 = vpop.trf.xlu0
        %v445 = vpop.trf.xlu0
        %v446 = vpop.trf.xlu0
        %v447 = vpop.trf.xlu0
        %v448 = vpop.trf.xlu0
        %s449 = scalar_lea.vmem %s132, 32 [#allocation6]
        %450 = vst [vmem:[%s449] sm:$0xff] %v433
        %451 = vst [vmem:[%s449 + $0x8] sm:$0xff] %v434
        %452 = vst [vmem:[%s449 + $0x10] sm:$0xff] %v435
        %453 = vst [vmem:[%s449 + $0x18] sm:$0xff] %v436
        %s454 = scalar_lea.vmem [#allocation2], 2
        %v455 = vld [vmem:[%s454] ss:$3 sm:$0xff]
        %s456 = scalar_lea.vmem [#allocation2], 26
        %v457 = vld [vmem:[%s456] ss:$3 sm:$0xff]
        %s458 = scalar_lea.vmem [#allocation2], 50
        %v459 = vld [vmem:[%s458] ss:$3 sm:$0xff]
        %s460 = scalar_lea.vmem [#allocation2], 74
        %v461 = vld [vmem:[%s460] ss:$3 sm:$0xff]
        %s462 = scalar_lea.vmem [#allocation2], 98
        %v463 = vld [vmem:[%s462] ss:$3 sm:$0xff]
        %s464 = scalar_lea.vmem [#allocation2], 122
        %v465 = vld [vmem:[%s464] ss:$3 sm:$0xff]
        %s466 = scalar_lea.vmem [#allocation2], 146
        %v467 = vld [vmem:[%s466] ss:$3 sm:$0xff]
        %s468 = scalar_lea.vmem [#allocation2], 170
        %v469 = vld [vmem:[%s468] ss:$3 sm:$0xff]
        %s470 = scalar_lea.vmem [#allocation2], 194
        %v471 = vld [vmem:[%s470] ss:$3 sm:$0xff]
        %s472 = scalar_lea.vmem [#allocation2], 218
        %v473 = vld [vmem:[%s472] ss:$3 sm:$0xff]
        %s474 = scalar_lea.vmem [#allocation2], 242
        %v475 = vld [vmem:[%s474] ss:$3 sm:$0xff]
        %s476 = scalar_lea.vmem [#allocation2], 266
        %v477 = vld [vmem:[%s476] ss:$3 sm:$0xff]
        %s478 = scalar_lea.vmem [#allocation2], 290
        %v479 = vld [vmem:[%s478] ss:$3 sm:$0xff]
        %s480 = scalar_lea.vmem [#allocation2], 314
        %v481 = vld [vmem:[%s480] ss:$3 sm:$0xff]
        %s482 = scalar_lea.vmem [#allocation2], 338
        %v483 = vld [vmem:[%s482] ss:$3 sm:$0xff]
        %s484 = scalar_lea.vmem [#allocation2], 362
        %v485 = vld [vmem:[%s484] ss:$3 sm:$0xff]
        %486 = vxpose.xlu0.b32.start [1/16] %v455, 128
        %487 = vxpose.xlu0.b32.cont [2/16] %v457, 128
        %488 = vxpose.xlu0.b32.cont [3/16] %v459, 128
        %489 = vxpose.xlu0.b32.cont [4/16] %v461, 128
        %490 = vxpose.xlu0.b32.cont [5/16] %v463, 128
        %491 = vxpose.xlu0.b32.cont [6/16] %v465, 128
        %492 = vxpose.xlu0.b32.cont [7/16] %v467, 128
        %493 = vxpose.xlu0.b32.cont [8/16] %v469, 128
        %494 = vxpose.xlu0.b32.cont [9/16] %v471, 128
        %495 = vxpose.xlu0.b32.cont [10/16] %v473, 128
        %496 = vxpose.xlu0.b32.cont [11/16] %v475, 128
        %497 = vxpose.xlu0.b32.cont [12/16] %v477, 128
        %498 = vxpose.xlu0.b32.cont [13/16] %v479, 128
        %499 = vxpose.xlu0.b32.cont [14/16] %v481, 128
        %500 = vxpose.xlu0.b32.cont [15/16] %v483, 128
        %501 = vxpose.xlu0.b32.end [16/16] %v485, 128
        %v502 = vpop.trf.xlu0
        %v503 = vpop.trf.xlu0
        %v504 = vpop.trf.xlu0
        %v505 = vpop.trf.xlu0
        %v506 = vpop.trf.xlu0
        %v507 = vpop.trf.xlu0
        %v508 = vpop.trf.xlu0
        %v509 = vpop.trf.xlu0
        %v510 = vpop.trf.xlu0
        %v511 = vpop.trf.xlu0
        %v512 = vpop.trf.xlu0
        %v513 = vpop.trf.xlu0
        %v514 = vpop.trf.xlu0
        %v515 = vpop.trf.xlu0
        %v516 = vpop.trf.xlu0
        %v517 = vpop.trf.xlu0
        %s518 = scalar_lea.vmem %s132, 64 [#allocation6]
        %519 = vst [vmem:[%s518] sm:$0xff] %v502
        %520 = vst [vmem:[%s518 + $0x8] sm:$0xff] %v503
        %521 = vst [vmem:[%s518 + $0x10] sm:$0xff] %v504
        %522 = vst [vmem:[%s518 + $0x18] sm:$0xff] %v505
        %s523 = sand.u32 %s52, 1
        %s524 = scalar_lea.sflag [#allocation5], %s523
        %s525 = sand.u32 %s52, 1
        %s526 = smul.addr %s525, 96
        %s527 = scalar_lea.vmem [#allocation6], %s526
        // Predicated region
        $region29: #{tpu_custom_call.1} parent=23 // pred_check
          %p528 = pneg %p62
        $region30: #{tpu_custom_call.1} parent=23 // pred_check_branch
          %530 = sbr.rel (%p528) target = $region32
        $region31: #{tpu_custom_call.1} parent=23 // pred_region
          #allocation8 [shape = 'u32[6]{0}', space=smem, size = 0x18, scoped, tag = 'DMA stride descriptor']
          %s531 = smul.u32 4, %s18
          %s533 = ssub.s32 1536, 1536
          %534 = vsyncadd %s524, %s533
          %s535 = smul.addr %s531, 128
          %s536 = scalar_lea.hbm %s1, %s535
          %s538 = sshll.u32 1, 14
          %s539 = sxor.u32 4294967295, %s538
          %s542 = sshll.u32 7, 18
          %s543 = sxor.u32 4294967295, %s542
          %s544 = sand.u32 0, %s543
          %s546 = sor.u32 %s544, 0
          %s548 = sshll.u32 3, 24
          %s549 = sxor.u32 4294967295, %s548
          %s550 = sand.u32 %s546, %s549
          %s552 = sor.u32 %s550, 0
          %s553 = sshll.u32 %s527, 4
          %s554 = int_to_ptr.vmem [resolvable:$true] %s553
          %560 = sst [smem:[#allocation8]] 512
          %s561 = scalar_lea.smem [#allocation8], 1
          %562 = sst [smem:[%s561]] 1024
          %s563 = scalar_lea.smem [#allocation8], 2
          %564 = sst [smem:[%s563]] 4
          %s565 = scalar_lea.smem [#allocation8], 3
          %566 = sst [smem:[%s565]] 128
          %s567 = scalar_lea.smem [#allocation8], 4
          %568 = sst [smem:[%s567]] 128
          %s569 = scalar_lea.smem [#allocation8], 5
          %570 = sst [smem:[%s569]] 8
          %572 = dma.general %s554, 1536, %s536, %s524, [#allocation7], [#allocation8], %s552, 0
        $region32: #{tpu_custom_call.1} parent=23 // pred_fallthru
          _
      $region24: #{tpu_custom_call.1} parent=5 // pred_fallthru
        _
      %p573 = scmp.le.s32.totalorder 2, %s13
      // Predicated region
      $region33: #{tpu_custom_call.1} parent=5 // pred_check
        %p574 = pneg %p573
      $region34: #{tpu_custom_call.1} parent=5 // pred_check_branch
        %576 = sbr.rel (%p574) target = $region36
      $region35: #{tpu_custom_call.1} parent=5 // pred_region
        %s577 = ssub.s32 %s13, 2
        // Predicated region
        $region37: #{tpu_custom_call.1} parent=35 // pred_check
          %p578 = pneg %p68
        $region38: #{tpu_custom_call.1} parent=35 // pred_check_branch
          %580 = sbr.rel (%p578) target = $region40
        $region39: #{tpu_custom_call.1} parent=35 // pred_region
          %s581 = sand.u32 %s53, 1
          %s582 = scalar_lea.sflag [#allocation5], %s581
          %s583 = sand.u32 %s53, 1
          %s584 = smul.addr %s583, 96
          %s585 = scalar_lea.vmem [#allocation6], %s584
          %586 = dma.done %s582, 1536
        $region40: #{tpu_custom_call.1} parent=35 // pred_fallthru
          _
      $region36: #{tpu_custom_call.1} parent=5 // pred_fallthru
        _
    $region6: #{tpu_custom_call.1} parent=1 // loop_footer
      %s17 = sadd.s32 1, %s13
    $region7: #{tpu_custom_call.1} parent=1 // loop_footer_branch
      %12 = sbr.rel target = $region3
    $region8: #{tpu_custom_call.1} parent=1 // loop_exit
      _
    %587 = vsyncpa [#allocation4], 1
    %s588 = scalar_lea.sflag [#allocation4], 1
    %589 = vsyncpa %s588, 1
    %590 = vsyncpa [#allocation5], 1
    %s591 = scalar_lea.sflag [#allocation5], 1
    %592 = vsyncpa %s591, 1

// kernel: tpu_custom_call.1
$region0: #{tpu_custom_call.1}
  #allocation0 [shape = 'u32[]', space=smem, size = 0x4, offset = 0x4, fixed_abs, tag = 'smem constant byte address 0x4 - core index']
  #allocation1 [shape = 'u32[144,128]{1,0:T(1,128)}', space=vmem, size = 0x12000, scoped, tag = 'internal scratch']
  #allocation4 [shape = 's32[]', space=sflag, size = 0x4, offset = 0, fixed_abs, tag = 'sflag constant byte address 0x0 - dummy sync flag']
  %s0 = inlined_call_operand.vmem [shape: u8[64,128,3], index: 0, kind: input, shape index: {}]
  %s1 = inlined_call_operand.hbm [shape: f32[3,64,128], index: 1, kind: output, shape index: {}]
  %s2 = sld [smem:[#allocation0]]
  $region37: #{tpu_custom_call.1} parent=0
    _
  %s4 = ssub.s32 1, %s2
  %s5 = scalar_select 0, %s4, %s2
  $region1: #{tpu_custom_call.1} parent=0
    #allocation2 [shape = 'u8[49152]{0}', space=vmem, size = 0xc000, scoped, tag = 'output window, operand 0']
    #allocation3 [shape = 's32[2]{0}', space=sflag, size = 0x8, scoped, tag = 'scoped memory for tpu_custom_call.1']
    %6 = vsyncpa [#allocation3], 0
    %s7 = scalar_lea.sflag [#allocation3], 1
    %8 = vsyncpa %s7, 0
    loop: start=0, step=1, limit=6
    $region2: #{tpu_custom_call.1} parent=1 // loop_pre_header
      _
    $region3: #{tpu_custom_call.1} parent=1 // loop_header
      %s10 = sphi 0, %s14
      %p11 = scmp.ge.s32.totalorder %s10, 6
      %s20 = sphi 0, %s22
      %s23 = sphi 0, %s20
      %s24 = sphi 0, %s23
      %s40 = sphi 0, %s24
      %s46 = sphi 0, %s48
      %s49 = sphi 0, %s46
      %s50 = sphi 0, %s49
      %s66 = sphi 0, %s50
    $region4: #{tpu_custom_call.1} parent=1 // loop_header_branch
      %13 = sbr.rel (%p11) target = $region8
    $region5: #{tpu_custom_call.1} parent=1 // loop_body
      %s15 = ssub.s32 %s10, 1
      %s16 = ssub.s32 %s10, 2
      %s17 = sadd.s32 %s10, 1
      %s18 = ssub.s32 %s10, %s17
      %p19 = scmp.eq.s32.totalorder %s18, 0
      %s21 = sadd.s32 %s20, 1
      %s22 = scalar_select %p19, %s20, %s21
      %p25 = pneg %p19
      %p26 = scmp.eq.s32.totalorder %s10, 3
      %p27 = por %p25, %p26
      %p28 = scmp.ne.s32.totalorder %s20, %s23
      %p29 = scmp.eq.s32.totalorder %s10, 0
      %p30 = por %p28, %p29
      %p31 = scmp.ne.s32.totalorder %s20, %s23
      %p32 = scmp.eq.s32.totalorder %s15, 3
      %p33 = por %p31, %p32
      %p34 = scmp.ne.s32.totalorder %s23, %s24
      %p35 = scmp.eq.s32.totalorder %s15, 0
      %p36 = por %p34, %p35
      %p37 = scmp.ne.s32.totalorder %s23, %s24
      %p38 = scmp.eq.s32.totalorder %s16, 3
      %p39 = por %p37, %p38
      %p41 = scmp.ne.s32.totalorder %s24, %s40
      %p42 = scmp.eq.s32.totalorder %s16, 0
      %p43 = por %p41, %p42
      %s44 = ssub.s32 %s10, %s17
      %p45 = scmp.eq.s32.totalorder %s44, 0
      %s47 = sadd.s32 %s46, 1
      %s48 = scalar_select %p45, %s46, %s47
      %p51 = pneg %p45
      %p52 = scmp.eq.s32.totalorder %s10, 3
      %p53 = por %p51, %p52
      %p54 = scmp.ne.s32.totalorder %s46, %s49
      %p55 = scmp.eq.s32.totalorder %s10, 0
      %p56 = por %p54, %p55
      %p57 = scmp.ne.s32.totalorder %s46, %s49
      %p58 = scmp.eq.s32.totalorder %s15, 3
      %p59 = por %p57, %p58
      %p60 = scmp.ne.s32.totalorder %s49, %s50
      %p61 = scmp.eq.s32.totalorder %s15, 0
      %p62 = por %p60, %p61
      %p63 = scmp.ne.s32.totalorder %s49, %s50
      %p64 = scmp.eq.s32.totalorder %s16, 3
      %p65 = por %p63, %p64
      %p67 = scmp.ne.s32.totalorder %s50, %s66
      %p68 = scmp.eq.s32.totalorder %s16, 0
      %p69 = por %p67, %p68
      %p70 = scmp.le.s32.totalorder 1, %s10
      %p71 = scmp.lt.s32.totalorder %s10, 5
      %p72 = pnand %p70, %p71
      %p73 = pneg %p72
      // Predicated region
      $region9: #{tpu_custom_call.1} parent=5 // pred_check
        _
      $region10: #{tpu_custom_call.1} parent=5 // pred_check_branch
        %75 = sbr.rel (%p72) target = $region12
      $region11: #{tpu_custom_call.1} parent=5 // pred_region
        %s76 = ssub.s32 %s10, 1
      $region12: #{tpu_custom_call.1} parent=5 // pred_fallthru
        _
      %p77 = scmp.lt.s32.totalorder %s10, 4
      // Predicated region
      $region13: #{tpu_custom_call.1} parent=5 // pred_check
        %p78 = pneg %p77
      $region14: #{tpu_custom_call.1} parent=5 // pred_check_branch
        %80 = sbr.rel (%p78) target = $region16
      $region15: #{tpu_custom_call.1} parent=5 // pred_region
        // Predicated region
        $region17: #{tpu_custom_call.1} parent=15 // pred_check
          %p81 = pneg %p30
        $region18: #{tpu_custom_call.1} parent=15 // pred_check_branch
          %83 = sbr.rel (%p81) target = $region20
        $region19: #{tpu_custom_call.1} parent=15 // pred_region
          %s84 = smul.u32 16, %s10
          %p85 = scmp.lt.s32.totalorder %s84, 63
          %s86 = scalar_select %p85, %s84, 63
          %s87 = smul.addr %s86, 16
          %s88 = smul.addr %s87, 2
          %s89 = scalar_lea.vmem %s0, %s88
          %s90 = smul.u32 16, %s10
        $region20: #{tpu_custom_call.1} parent=15 // pred_fallthru
          _
      $region16: #{tpu_custom_call.1} parent=5 // pred_fallthru
        _
      %p91 = scmp.le.s32.totalorder 1, %s10
      %p92 = scmp.lt.s32.totalorder %s10, 5
      %p93 = pnand %p91, %p92
      %p94 = pneg %p93
      // Predicated region
      $region21: #{tpu_custom_call.1} parent=5 // pred_check
        _
      $region22: #{tpu_custom_call.1} parent=5 // pred_check_branch
        %96 = sbr.rel (%p93) target = $region24
      $region23: #{tpu_custom_call.1} parent=5 // pred_region
        %s97 = ssub.s32 %s10, 1
        %s98 = smul.u32 16, %s15
        %p99 = scmp.lt.s32.totalorder %s98, 63
        %s100 = scalar_select %p99, %s98, 63
        %s101 = smul.addr %s100, 16
        %s102 = smul.addr %s101, 2
        %s103 = scalar_lea.vmem %s0, %s102
        %p104 = pneg %p36
        %p105 = pneg %p33
        %p106 = pneg %p62
        %p107 = pneg %p59
        %s108 = sand.u32 %s49, 1
        %s109 = scalar_lea.sflag [#allocation3], %s108
        %s110 = sand.u32 %s49, 1
        %s111 = smul.addr %s110, 48
        %s112 = scalar_lea.vmem [#allocation2], %s111
        %s113 = smul.u32 16, %s15
        %p114 = scmp.lt.s32.totalorder %s113, 63
        %s115 = scalar_select %p114, %s113, 63
        %s116 = smul.addr %s115, 16
        %s117 = smul.addr %s116, 2
        %s118 = scalar_lea.vmem %s0, %s117
        %s119 = smul.u32 16, %s15
        %s120 = smul.u32 2, %s15
        %v121 = vld [vmem:[%s118] sm:$0x3]
        %v122 = vld [vmem:[%s118 + $0x2] sm:$0x3]
        %v123 = vld [vmem:[%s118 + $0x4] sm:$0x3]
        %v124 = vld [vmem:[%s118 + $0x6] sm:$0x3]
        %v125 = vld [vmem:[%s118 + $0x8] sm:$0x3]
        %v126 = vld [vmem:[%s118 + $0xa] sm:$0x3]
        %v127 = vld [vmem:[%s118 + $0xc] sm:$0x3]
        %v128 = vld [vmem:[%s118 + $0xe] sm:$0x3]
        %v129 = vld [vmem:[%s118 + $0x10] sm:$0x3]
        %v130 = vld [vmem:[%s118 + $0x12] sm:$0x3]
        %v131 = vld [vmem:[%s118 + $0x14] sm:$0x3]
        %v132 = vld [vmem:[%s118 + $0x16] sm:$0x3]
        %v133 = vld [vmem:[%s118 + $0x18] sm:$0x3]
        %v134 = vld [vmem:[%s118 + $0x1a] sm:$0x3]
        %v135 = vld [vmem:[%s118 + $0x1c] sm:$0x3]
        %v136 = vld [vmem:[%s118 + $0x1e] sm:$0x3]
        %v137 = vld [vmem:[%s118 + $0x20] sm:$0x3]
        %v138 = vld [vmem:[%s118 + $0x22] sm:$0x3]
        %v139 = vld [vmem:[%s118 + $0x24] sm:$0x3]
        %v140 = vld [vmem:[%s118 + $0x26] sm:$0x3]
        %v141 = vld [vmem:[%s118 + $0x28] sm:$0x3]
        %v142 = vld [vmem:[%s118 + $0x2a] sm:$0x3]
        %v143 = vld [vmem:[%s118 + $0x2c] sm:$0x3]
        %v144 = vld [vmem:[%s118 + $0x2e] sm:$0x3]
        %v145 = vld [vmem:[%s118 + $0x30] sm:$0x3]
        %v146 = vld [vmem:[%s118 + $0x32] sm:$0x3]
        %v147 = vld [vmem:[%s118 + $0x34] sm:$0x3]
        %v148 = vld [vmem:[%s118 + $0x36] sm:$0x3]
        %v149 = vld [vmem:[%s118 + $0x38] sm:$0x3]
        %v150 = vld [vmem:[%s118 + $0x3a] sm:$0x3]
        %v151 = vld [vmem:[%s118 + $0x3c] sm:$0x3]
        %v152 = vld [vmem:[%s118 + $0x3e] sm:$0x3]
        %v153 = vld [vmem:[%s118 + $0x40] sm:$0x3]
        %v154 = vld [vmem:[%s118 + $0x42] sm:$0x3]
        %v155 = vld [vmem:[%s118 + $0x44] sm:$0x3]
        %v156 = vld [vmem:[%s118 + $0x46] sm:$0x3]
        %v157 = vld [vmem:[%s118 + $0x48] sm:$0x3]
        %v158 = vld [vmem:[%s118 + $0x4a] sm:$0x3]
        %v159 = vld [vmem:[%s118 + $0x4c] sm:$0x3]
        %v160 = vld [vmem:[%s118 + $0x4e] sm:$0x3]
        %v161 = vld [vmem:[%s118 + $0x50] sm:$0x3]
        %v162 = vld [vmem:[%s118 + $0x52] sm:$0x3]
        %v163 = vld [vmem:[%s118 + $0x54] sm:$0x3]
        %v164 = vld [vmem:[%s118 + $0x56] sm:$0x3]
        %v165 = vld [vmem:[%s118 + $0x58] sm:$0x3]
        %v166 = vld [vmem:[%s118 + $0x5a] sm:$0x3]
        %v167 = vld [vmem:[%s118 + $0x5c] sm:$0x3]
        %v168 = vld [vmem:[%s118 + $0x5e] sm:$0x3]
        %v169 = vld [vmem:[%s118 + $0x60] sm:$0x3]
        %v170 = vld [vmem:[%s118 + $0x62] sm:$0x3]
        %v171 = vld [vmem:[%s118 + $0x64] sm:$0x3]
        %v172 = vld [vmem:[%s118 + $0x66] sm:$0x3]
        %v173 = vld [vmem:[%s118 + $0x68] sm:$0x3]
        %v174 = vld [vmem:[%s118 + $0x6a] sm:$0x3]
        %v175 = vld [vmem:[%s118 + $0x6c] sm:$0x3]
        %v176 = vld [vmem:[%s118 + $0x6e] sm:$0x3]
        %v177 = vld [vmem:[%s118 + $0x70] sm:$0x3]
        %v178 = vld [vmem:[%s118 + $0x72] sm:$0x3]
        %v179 = vld [vmem:[%s118 + $0x74] sm:$0x3]
        %v180 = vld [vmem:[%s118 + $0x76] sm:$0x3]
        %v181 = vld [vmem:[%s118 + $0x78] sm:$0x3]
        %v182 = vld [vmem:[%s118 + $0x7a] sm:$0x3]
        %v183 = vld [vmem:[%s118 + $0x7c] sm:$0x3]
        %v184 = vld [vmem:[%s118 + $0x7e] sm:$0x3]
        %v185 = vld [vmem:[%s118 + $0x80] sm:$0x3]
        %v186 = vld [vmem:[%s118 + $0x82] sm:$0x3]
        %v187 = vld [vmem:[%s118 + $0x84] sm:$0x3]
        %v188 = vld [vmem:[%s118 + $0x86] sm:$0x3]
        %v189 = vld [vmem:[%s118 + $0x88] sm:$0x3]
        %v190 = vld [vmem:[%s118 + $0x8a] sm:$0x3]
        %v191 = vld [vmem:[%s118 + $0x8c] sm:$0x3]
        %v192 = vld [vmem:[%s118 + $0x8e] sm:$0x3]
        %v193 = vld [vmem:[%s118 + $0x90] sm:$0x3]
        %v194 = vld [vmem:[%s118 + $0x92] sm:$0x3]
        %v195 = vld [vmem:[%s118 + $0x94] sm:$0x3]
        %v196 = vld [vmem:[%s118 + $0x96] sm:$0x3]
        %v197 = vld [vmem:[%s118 + $0x98] sm:$0x3]
        %v198 = vld [vmem:[%s118 + $0x9a] sm:$0x3]
        %v199 = vld [vmem:[%s118 + $0x9c] sm:$0x3]
        %v200 = vld [vmem:[%s118 + $0x9e] sm:$0x3]
        %v201 = vld [vmem:[%s118 + $0xa0] sm:$0x3]
        %v202 = vld [vmem:[%s118 + $0xa2] sm:$0x3]
        %v203 = vld [vmem:[%s118 + $0xa4] sm:$0x3]
        %v204 = vld [vmem:[%s118 + $0xa6] sm:$0x3]
        %v205 = vld [vmem:[%s118 + $0xa8] sm:$0x3]
        %v206 = vld [vmem:[%s118 + $0xaa] sm:$0x3]
        %v207 = vld [vmem:[%s118 + $0xac] sm:$0x3]
        %v208 = vld [vmem:[%s118 + $0xae] sm:$0x3]
        %v209 = vld [vmem:[%s118 + $0xb0] sm:$0x3]
        %v210 = vld [vmem:[%s118 + $0xb2] sm:$0x3]
        %v211 = vld [vmem:[%s118 + $0xb4] sm:$0x3]
        %v212 = vld [vmem:[%s118 + $0xb6] sm:$0x3]
        %v213 = vld [vmem:[%s118 + $0xb8] sm:$0x3]
        %v214 = vld [vmem:[%s118 + $0xba] sm:$0x3]
        %v215 = vld [vmem:[%s118 + $0xbc] sm:$0x3]
        %v216 = vld [vmem:[%s118 + $0xbe] sm:$0x3]
        %v217 = vld [vmem:[%s118 + $0xc0] sm:$0x3]
        %v218 = vld [vmem:[%s118 + $0xc2] sm:$0x3]
        %v219 = vld [vmem:[%s118 + $0xc4] sm:$0x3]
        %v220 = vld [vmem:[%s118 + $0xc6] sm:$0x3]
        %v221 = vld [vmem:[%s118 + $0xc8] sm:$0x3]
        %v222 = vld [vmem:[%s118 + $0xca] sm:$0x3]
        %v223 = vld [vmem:[%s118 + $0xcc] sm:$0x3]
        %v224 = vld [vmem:[%s118 + $0xce] sm:$0x3]
        %v225 = vld [vmem:[%s118 + $0xd0] sm:$0x3]
        %v226 = vld [vmem:[%s118 + $0xd2] sm:$0x3]
        %v227 = vld [vmem:[%s118 + $0xd4] sm:$0x3]
        %v228 = vld [vmem:[%s118 + $0xd6] sm:$0x3]
        %v229 = vld [vmem:[%s118 + $0xd8] sm:$0x3]
        %v230 = vld [vmem:[%s118 + $0xda] sm:$0x3]
        %v231 = vld [vmem:[%s118 + $0xdc] sm:$0x3]
        %v232 = vld [vmem:[%s118 + $0xde] sm:$0x3]
        %v233 = vld [vmem:[%s118 + $0xe0] sm:$0x3]
        %v234 = vld [vmem:[%s118 + $0xe2] sm:$0x3]
        %v235 = vld [vmem:[%s118 + $0xe4] sm:$0x3]
        %v236 = vld [vmem:[%s118 + $0xe6] sm:$0x3]
        %v237 = vld [vmem:[%s118 + $0xe8] sm:$0x3]
        %v238 = vld [vmem:[%s118 + $0xea] sm:$0x3]
        %v239 = vld [vmem:[%s118 + $0xec] sm:$0x3]
        %v240 = vld [vmem:[%s118 + $0xee] sm:$0x3]
        %v241 = vld [vmem:[%s118 + $0xf0] sm:$0x3]
        %v242 = vld [vmem:[%s118 + $0xf2] sm:$0x3]
        %v243 = vld [vmem:[%s118 + $0xf4] sm:$0x3]
        %v244 = vld [vmem:[%s118 + $0xf6] sm:$0x3]
        %v245 = vld [vmem:[%s118 + $0xf8] sm:$0x3]
        %v246 = vld [vmem:[%s118 + $0xfa] sm:$0x3]
        %v247 = vld [vmem:[%s118 + $0xfc] sm:$0x3]
        %v248 = vld [vmem:[%s118 + $0xfe] sm:$0x3]
        %v249 = vld [vmem:[%s118 + $0x100] sm:$0x3]
        %v250 = vld [vmem:[%s118 + $0x102] sm:$0x3]
        %v251 = vld [vmem:[%s118 + $0x104] sm:$0x3]
        %v252 = vld [vmem:[%s118 + $0x106] sm:$0x3]
        %v253 = vld [vmem:[%s118 + $0x108] sm:$0x3]
        %v254 = vld [vmem:[%s118 + $0x10a] sm:$0x3]
        %v255 = vld [vmem:[%s118 + $0x10c] sm:$0x3]
        %v256 = vld [vmem:[%s118 + $0x10e] sm:$0x3]
        %v257 = vld [vmem:[%s118 + $0x110] sm:$0x3]
        %v258 = vld [vmem:[%s118 + $0x112] sm:$0x3]
        %v259 = vld [vmem:[%s118 + $0x114] sm:$0x3]
        %v260 = vld [vmem:[%s118 + $0x116] sm:$0x3]
        %v261 = vld [vmem:[%s118 + $0x118] sm:$0x3]
        %v262 = vld [vmem:[%s118 + $0x11a] sm:$0x3]
        %v263 = vld [vmem:[%s118 + $0x11c] sm:$0x3]
        %v264 = vld [vmem:[%s118 + $0x11e] sm:$0x3]
        %v265 = vld [vmem:[%s118 + $0x120] sm:$0x3]
        %v266 = vld [vmem:[%s118 + $0x122] sm:$0x3]
        %v267 = vld [vmem:[%s118 + $0x124] sm:$0x3]
        %v268 = vld [vmem:[%s118 + $0x126] sm:$0x3]
        %v269 = vld [vmem:[%s118 + $0x128] sm:$0x3]
        %v270 = vld [vmem:[%s118 + $0x12a] sm:$0x3]
        %v271 = vld [vmem:[%s118 + $0x12c] sm:$0x3]
        %v272 = vld [vmem:[%s118 + $0x12e] sm:$0x3]
        %v273 = vld [vmem:[%s118 + $0x130] sm:$0x3]
        %v274 = vld [vmem:[%s118 + $0x132] sm:$0x3]
        %v275 = vld [vmem:[%s118 + $0x134] sm:$0x3]
        %v276 = vld [vmem:[%s118 + $0x136] sm:$0x3]
        %v277 = vld [vmem:[%s118 + $0x138] sm:$0x3]
        %v278 = vld [vmem:[%s118 + $0x13a] sm:$0x3]
        %v279 = vld [vmem:[%s118 + $0x13c] sm:$0x3]
        %v280 = vld [vmem:[%s118 + $0x13e] sm:$0x3]
        %v281 = vld [vmem:[%s118 + $0x140] sm:$0x3]
        %v282 = vld [vmem:[%s118 + $0x142] sm:$0x3]
        %v283 = vld [vmem:[%s118 + $0x144] sm:$0x3]
        %v284 = vld [vmem:[%s118 + $0x146] sm:$0x3]
        %v285 = vld [vmem:[%s118 + $0x148] sm:$0x3]
        %v286 = vld [vmem:[%s118 + $0x14a] sm:$0x3]
        %v287 = vld [vmem:[%s118 + $0x14c] sm:$0x3]
        %v288 = vld [vmem:[%s118 + $0x14e] sm:$0x3]
        %v289 = vld [vmem:[%s118 + $0x150] sm:$0x3]
        %v290 = vld [vmem:[%s118 + $0x152] sm:$0x3]
        %v291 = vld [vmem:[%s118 + $0x154] sm:$0x3]
        %v292 = vld [vmem:[%s118 + $0x156] sm:$0x3]
        %v293 = vld [vmem:[%s118 + $0x158] sm:$0x3]
        %v294 = vld [vmem:[%s118 + $0x15a] sm:$0x3]
        %v295 = vld [vmem:[%s118 + $0x15c] sm:$0x3]
        %v296 = vld [vmem:[%s118 + $0x15e] sm:$0x3]
        %v297 = vld [vmem:[%s118 + $0x160] sm:$0x3]
        %v298 = vld [vmem:[%s118 + $0x162] sm:$0x3]
        %v299 = vld [vmem:[%s118 + $0x164] sm:$0x3]
        %v300 = vld [vmem:[%s118 + $0x166] sm:$0x3]
        %v301 = vld [vmem:[%s118 + $0x168] sm:$0x3]
        %v302 = vld [vmem:[%s118 + $0x16a] sm:$0x3]
        %v303 = vld [vmem:[%s118 + $0x16c] sm:$0x3]
        %v304 = vld [vmem:[%s118 + $0x16e] sm:$0x3]
        %v305 = vld [vmem:[%s118 + $0x170] sm:$0x3]
        %v306 = vld [vmem:[%s118 + $0x172] sm:$0x3]
        %v307 = vld [vmem:[%s118 + $0x174] sm:$0x3]
        %v308 = vld [vmem:[%s118 + $0x176] sm:$0x3]
        %v309 = vld [vmem:[%s118 + $0x178] sm:$0x3]
        %v310 = vld [vmem:[%s118 + $0x17a] sm:$0x3]
        %v311 = vld [vmem:[%s118 + $0x17c] sm:$0x3]
        %v312 = vld [vmem:[%s118 + $0x17e] sm:$0x3]
        %v313 = vld [vmem:[%s118 + $0x180] sm:$0x3]
        %v314 = vld [vmem:[%s118 + $0x182] sm:$0x3]
        %v315 = vld [vmem:[%s118 + $0x184] sm:$0x3]
        %v316 = vld [vmem:[%s118 + $0x186] sm:$0x3]
        %v317 = vld [vmem:[%s118 + $0x188] sm:$0x3]
        %v318 = vld [vmem:[%s118 + $0x18a] sm:$0x3]
        %v319 = vld [vmem:[%s118 + $0x18c] sm:$0x3]
        %v320 = vld [vmem:[%s118 + $0x18e] sm:$0x3]
        %v321 = vld [vmem:[%s118 + $0x190] sm:$0x3]
        %v322 = vld [vmem:[%s118 + $0x192] sm:$0x3]
        %v323 = vld [vmem:[%s118 + $0x194] sm:$0x3]
        %v324 = vld [vmem:[%s118 + $0x196] sm:$0x3]
        %v325 = vld [vmem:[%s118 + $0x198] sm:$0x3]
        %v326 = vld [vmem:[%s118 + $0x19a] sm:$0x3]
        %v327 = vld [vmem:[%s118 + $0x19c] sm:$0x3]
        %v328 = vld [vmem:[%s118 + $0x19e] sm:$0x3]
        %v329 = vld [vmem:[%s118 + $0x1a0] sm:$0x3]
        %v330 = vld [vmem:[%s118 + $0x1a2] sm:$0x3]
        %v331 = vld [vmem:[%s118 + $0x1a4] sm:$0x3]
        %v332 = vld [vmem:[%s118 + $0x1a6] sm:$0x3]
        %v333 = vld [vmem:[%s118 + $0x1a8] sm:$0x3]
        %v334 = vld [vmem:[%s118 + $0x1aa] sm:$0x3]
        %v335 = vld [vmem:[%s118 + $0x1ac] sm:$0x3]
        %v336 = vld [vmem:[%s118 + $0x1ae] sm:$0x3]
        %v337 = vld [vmem:[%s118 + $0x1b0] sm:$0x3]
        %v338 = vld [vmem:[%s118 + $0x1b2] sm:$0x3]
        %v339 = vld [vmem:[%s118 + $0x1b4] sm:$0x3]
        %v340 = vld [vmem:[%s118 + $0x1b6] sm:$0x3]
        %v341 = vld [vmem:[%s118 + $0x1b8] sm:$0x3]
        %v342 = vld [vmem:[%s118 + $0x1ba] sm:$0x3]
        %v343 = vld [vmem:[%s118 + $0x1bc] sm:$0x3]
        %v344 = vld [vmem:[%s118 + $0x1be] sm:$0x3]
        %v345 = vld [vmem:[%s118 + $0x1c0] sm:$0x3]
        %v346 = vld [vmem:[%s118 + $0x1c2] sm:$0x3]
        %v347 = vld [vmem:[%s118 + $0x1c4] sm:$0x3]
        %v348 = vld [vmem:[%s118 + $0x1c6] sm:$0x3]
        %v349 = vld [vmem:[%s118 + $0x1c8] sm:$0x3]
        %v350 = vld [vmem:[%s118 + $0x1ca] sm:$0x3]
        %v351 = vld [vmem:[%s118 + $0x1cc] sm:$0x3]
        %v352 = vld [vmem:[%s118 + $0x1ce] sm:$0x3]
        %v353 = vld [vmem:[%s118 + $0x1d0] sm:$0x3]
        %v354 = vld [vmem:[%s118 + $0x1d2] sm:$0x3]
        %v355 = vld [vmem:[%s118 + $0x1d4] sm:$0x3]
        %v356 = vld [vmem:[%s118 + $0x1d6] sm:$0x3]
        %v357 = vld [vmem:[%s118 + $0x1d8] sm:$0x3]
        %v358 = vld [vmem:[%s118 + $0x1da] sm:$0x3]
        %v359 = vld [vmem:[%s118 + $0x1dc] sm:$0x3]
        %v360 = vld [vmem:[%s118 + $0x1de] sm:$0x3]
        %v361 = vld [vmem:[%s118 + $0x1e0] sm:$0x3]
        %v362 = vld [vmem:[%s118 + $0x1e2] sm:$0x3]
        %v363 = vld [vmem:[%s118 + $0x1e4] sm:$0x3]
        %v364 = vld [vmem:[%s118 + $0x1e6] sm:$0x3]
        %v365 = vld [vmem:[%s118 + $0x1e8] sm:$0x3]
        %v366 = vld [vmem:[%s118 + $0x1ea] sm:$0x3]
        %v367 = vld [vmem:[%s118 + $0x1ec] sm:$0x3]
        %v368 = vld [vmem:[%s118 + $0x1ee] sm:$0x3]
        %v369 = vld [vmem:[%s118 + $0x1f0] sm:$0x3]
        %v370 = vld [vmem:[%s118 + $0x1f2] sm:$0x3]
        %v371 = vld [vmem:[%s118 + $0x1f4] sm:$0x3]
        %v372 = vld [vmem:[%s118 + $0x1f6] sm:$0x3]
        %v373 = vld [vmem:[%s118 + $0x1f8] sm:$0x3]
        %v374 = vld [vmem:[%s118 + $0x1fa] sm:$0x3]
        %v375 = vld [vmem:[%s118 + $0x1fc] sm:$0x3]
        %v376 = vld [vmem:[%s118 + $0x1fe] sm:$0x3]
        %v377 = vunpack.c.0.s8 %v121
        %v378 = vunpack.c.0.s8 %v122
        %v379 = vunpack.c.0.s8 %v123
        %v380 = vunpack.c.0.s8 %v124
        %v381 = vunpack.c.0.s8 %v125
        %v382 = vunpack.c.0.s8 %v126
        %v383 = vunpack.c.0.s8 %v127
        %v384 = vunpack.c.0.s8 %v128
        %v385 = vunpack.c.0.s8 %v129
        %v386 = vunpack.c.0.s8 %v130
        %v387 = vunpack.c.0.s8 %v131
        %v388 = vunpack.c.0.s8 %v132
        %v389 = vunpack.c.0.s8 %v133
        %v390 = vunpack.c.0.s8 %v134
        %v391 = vunpack.c.0.s8 %v135
        %v392 = vunpack.c.0.s8 %v136
        %v393 = vunpack.c.0.s8 %v137
        %v394 = vunpack.c.0.s8 %v138
        %v395 = vunpack.c.0.s8 %v139
        %v396 = vunpack.c.0.s8 %v140
        %v397 = vunpack.c.0.s8 %v141
        %v398 = vunpack.c.0.s8 %v142
        %v399 = vunpack.c.0.s8 %v143
        %v400 = vunpack.c.0.s8 %v144
        %v401 = vunpack.c.0.s8 %v145
        %v402 = vunpack.c.0.s8 %v146
        %v403 = vunpack.c.0.s8 %v147
        %v404 = vunpack.c.0.s8 %v148
        %v405 = vunpack.c.0.s8 %v149
        %v406 = vunpack.c.0.s8 %v150
        %v407 = vunpack.c.0.s8 %v151
        %v408 = vunpack.c.0.s8 %v152
        %v409 = vunpack.c.0.s8 %v153
        %v410 = vunpack.c.0.s8 %v154
        %v411 = vunpack.c.0.s8 %v155
        %v412 = vunpack.c.0.s8 %v156
        %v413 = vunpack.c.0.s8 %v157
        %v414 = vunpack.c.0.s8 %v158
        %v415 = vunpack.c.0.s8 %v159
        %v416 = vunpack.c.0.s8 %v160
        %v417 = vunpack.c.0.s8 %v161
        %v418 = vunpack.c.0.s8 %v162
        %v419 = vunpack.c.0.s8 %v163
        %v420 = vunpack.c.0.s8 %v164
        %v421 = vunpack.c.0.s8 %v165
        %v422 = vunpack.c.0.s8 %v166
        %v423 = vunpack.c.0.s8 %v167
        %v424 = vunpack.c.0.s8 %v168
        %v425 = vunpack.c.0.s8 %v169
        %v426 = vunpack.c.0.s8 %v170
        %v427 = vunpack.c.0.s8 %v171
        %v428 = vunpack.c.0.s8 %v172
        %v429 = vunpack.c.0.s8 %v173
        %v430 = vunpack.c.0.s8 %v174
        %v431 = vunpack.c.0.s8 %v175
        %v432 = vunpack.c.0.s8 %v176
        %v433 = vunpack.c.0.s8 %v177
        %v434 = vunpack.c.0.s8 %v178
        %v435 = vunpack.c.0.s8 %v179
        %v436 = vunpack.c.0.s8 %v180
        %v437 = vunpack.c.0.s8 %v181
        %v438 = vunpack.c.0.s8 %v182
        %v439 = vunpack.c.0.s8 %v183
        %v440 = vunpack.c.0.s8 %v184
        %v441 = vunpack.c.0.s8 %v185
        %v442 = vunpack.c.0.s8 %v186
        %v443 = vunpack.c.0.s8 %v187
        %v444 = vunpack.c.0.s8 %v188
        %v445 = vunpack.c.0.s8 %v189
        %v446 = vunpack.c.0.s8 %v190
        %v447 = vunpack.c.0.s8 %v191
        %v448 = vunpack.c.0.s8 %v192
        %v449 = vunpack.c.0.s8 %v193
        %v450 = vunpack.c.0.s8 %v194
        %v451 = vunpack.c.0.s8 %v195
        %v452 = vunpack.c.0.s8 %v196
        %v453 = vunpack.c.0.s8 %v197
        %v454 = vunpack.c.0.s8 %v198
        %v455 = vunpack.c.0.s8 %v199
        %v456 = vunpack.c.0.s8 %v200
        %v457 = vunpack.c.0.s8 %v201
        %v458 = vunpack.c.0.s8 %v202
        %v459 = vunpack.c.0.s8 %v203
        %v460 = vunpack.c.0.s8 %v204
        %v461 = vunpack.c.0.s8 %v205
        %v462 = vunpack.c.0.s8 %v206
        %v463 = vunpack.c.0.s8 %v207
        %v464 = vunpack.c.0.s8 %v208
        %v465 = vunpack.c.0.s8 %v209
        %v466 = vunpack.c.0.s8 %v210
        %v467 = vunpack.c.0.s8 %v211
        %v468 = vunpack.c.0.s8 %v212
        %v469 = vunpack.c.0.s8 %v213
        %v470 = vunpack.c.0.s8 %v214
        %v471 = vunpack.c.0.s8 %v215
        %v472 = vunpack.c.0.s8 %v216
        %v473 = vunpack.c.0.s8 %v217
        %v474 = vunpack.c.0.s8 %v218
        %v475 = vunpack.c.0.s8 %v219
        %v476 = vunpack.c.0.s8 %v220
        %v477 = vunpack.c.0.s8 %v221
        %v478 = vunpack.c.0.s8 %v222
        %v479 = vunpack.c.0.s8 %v223
        %v480 = vunpack.c.0.s8 %v224
        %v481 = vunpack.c.0.s8 %v225
        %v482 = vunpack.c.0.s8 %v226
        %v483 = vunpack.c.0.s8 %v227
        %v484 = vunpack.c.0.s8 %v228
        %v485 = vunpack.c.0.s8 %v229
        %v486 = vunpack.c.0.s8 %v230
        %v487 = vunpack.c.0.s8 %v231
        %v488 = vunpack.c.0.s8 %v232
        %v489 = vunpack.c.0.s8 %v233
        %v490 = vunpack.c.0.s8 %v234
        %v491 = vunpack.c.0.s8 %v235
        %v492 = vunpack.c.0.s8 %v236
        %v493 = vunpack.c.0.s8 %v237
        %v494 = vunpack.c.0.s8 %v238
        %v495 = vunpack.c.0.s8 %v239
        %v496 = vunpack.c.0.s8 %v240
        %v497 = vunpack.c.0.s8 %v241
        %v498 = vunpack.c.0.s8 %v242
        %v499 = vunpack.c.0.s8 %v243
        %v500 = vunpack.c.0.s8 %v244
        %v501 = vunpack.c.0.s8 %v245
        %v502 = vunpack.c.0.s8 %v246
        %v503 = vunpack.c.0.s8 %v247
        %v504 = vunpack.c.0.s8 %v248
        %v505 = vunpack.c.0.s8 %v249
        %v506 = vunpack.c.0.s8 %v250
        %v507 = vunpack.c.0.s8 %v251
        %v508 = vunpack.c.0.s8 %v252
        %v509 = vunpack.c.0.s8 %v253
        %v510 = vunpack.c.0.s8 %v254
        %v511 = vunpack.c.0.s8 %v255
        %v512 = vunpack.c.0.s8 %v256
        %v513 = vunpack.c.0.s8 %v257
        %v514 = vunpack.c.0.s8 %v258
        %v515 = vunpack.c.0.s8 %v259
        %v516 = vunpack.c.0.s8 %v260
        %v517 = vunpack.c.0.s8 %v261
        %v518 = vunpack.c.0.s8 %v262
        %v519 = vunpack.c.0.s8 %v263
        %v520 = vunpack.c.0.s8 %v264
        %v521 = vunpack.c.0.s8 %v265
        %v522 = vunpack.c.0.s8 %v266
        %v523 = vunpack.c.0.s8 %v267
        %v524 = vunpack.c.0.s8 %v268
        %v525 = vunpack.c.0.s8 %v269
        %v526 = vunpack.c.0.s8 %v270
        %v527 = vunpack.c.0.s8 %v271
        %v528 = vunpack.c.0.s8 %v272
        %v529 = vunpack.c.0.s8 %v273
        %v530 = vunpack.c.0.s8 %v274
        %v531 = vunpack.c.0.s8 %v275
        %v532 = vunpack.c.0.s8 %v276
        %v533 = vunpack.c.0.s8 %v277
        %v534 = vunpack.c.0.s8 %v278
        %v535 = vunpack.c.0.s8 %v279
        %v536 = vunpack.c.0.s8 %v280
        %v537 = vunpack.c.0.s8 %v281
        %v538 = vunpack.c.0.s8 %v282
        %v539 = vunpack.c.0.s8 %v283
        %v540 = vunpack.c.0.s8 %v284
        %v541 = vunpack.c.0.s8 %v285
        %v542 = vunpack.c.0.s8 %v286
        %v543 = vunpack.c.0.s8 %v287
        %v544 = vunpack.c.0.s8 %v288
        %v545 = vunpack.c.0.s8 %v289
        %v546 = vunpack.c.0.s8 %v290
        %v547 = vunpack.c.0.s8 %v291
        %v548 = vunpack.c.0.s8 %v292
        %v549 = vunpack.c.0.s8 %v293
        %v550 = vunpack.c.0.s8 %v294
        %v551 = vunpack.c.0.s8 %v295
        %v552 = vunpack.c.0.s8 %v296
        %v553 = vunpack.c.0.s8 %v297
        %v554 = vunpack.c.0.s8 %v298
        %v555 = vunpack.c.0.s8 %v299
        %v556 = vunpack.c.0.s8 %v300
        %v557 = vunpack.c.0.s8 %v301
        %v558 = vunpack.c.0.s8 %v302
        %v559 = vunpack.c.0.s8 %v303
        %v560 = vunpack.c.0.s8 %v304
        %v561 = vunpack.c.0.s8 %v305
        %v562 = vunpack.c.0.s8 %v306
        %v563 = vunpack.c.0.s8 %v307
        %v564 = vunpack.c.0.s8 %v308
        %v565 = vunpack.c.0.s8 %v309
        %v566 = vunpack.c.0.s8 %v310
        %v567 = vunpack.c.0.s8 %v311
        %v568 = vunpack.c.0.s8 %v312
        %v569 = vunpack.c.0.s8 %v313
        %v570 = vunpack.c.0.s8 %v314
        %v571 = vunpack.c.0.s8 %v315
        %v572 = vunpack.c.0.s8 %v316
        %v573 = vunpack.c.0.s8 %v317
        %v574 = vunpack.c.0.s8 %v318
        %v575 = vunpack.c.0.s8 %v319
        %v576 = vunpack.c.0.s8 %v320
        %v577 = vunpack.c.0.s8 %v321
        %v578 = vunpack.c.0.s8 %v322
        %v579 = vunpack.c.0.s8 %v323
        %v580 = vunpack.c.0.s8 %v324
        %v581 = vunpack.c.0.s8 %v325
        %v582 = vunpack.c.0.s8 %v326
        %v583 = vunpack.c.0.s8 %v327
        %v584 = vunpack.c.0.s8 %v328
        %v585 = vunpack.c.0.s8 %v329
        %v586 = vunpack.c.0.s8 %v330
        %v587 = vunpack.c.0.s8 %v331
        %v588 = vunpack.c.0.s8 %v332
        %v589 = vunpack.c.0.s8 %v333
        %v590 = vunpack.c.0.s8 %v334
        %v591 = vunpack.c.0.s8 %v335
        %v592 = vunpack.c.0.s8 %v336
        %v593 = vunpack.c.0.s8 %v337
        %v594 = vunpack.c.0.s8 %v338
        %v595 = vunpack.c.0.s8 %v339
        %v596 = vunpack.c.0.s8 %v340
        %v597 = vunpack.c.0.s8 %v341
        %v598 = vunpack.c.0.s8 %v342
        %v599 = vunpack.c.0.s8 %v343
        %v600 = vunpack.c.0.s8 %v344
        %v601 = vunpack.c.0.s8 %v345
        %v602 = vunpack.c.0.s8 %v346
        %v603 = vunpack.c.0.s8 %v347
        %v604 = vunpack.c.0.s8 %v348
        %v605 = vunpack.c.0.s8 %v349
        %v606 = vunpack.c.0.s8 %v350
        %v607 = vunpack.c.0.s8 %v351
        %v608 = vunpack.c.0.s8 %v352
        %v609 = vunpack.c.0.s8 %v353
        %v610 = vunpack.c.0.s8 %v354
        %v611 = vunpack.c.0.s8 %v355
        %v612 = vunpack.c.0.s8 %v356
        %v613 = vunpack.c.0.s8 %v357
        %v614 = vunpack.c.0.s8 %v358
        %v615 = vunpack.c.0.s8 %v359
        %v616 = vunpack.c.0.s8 %v360
        %v617 = vunpack.c.0.s8 %v361
        %v618 = vunpack.c.0.s8 %v362
        %v619 = vunpack.c.0.s8 %v363
        %v620 = vunpack.c.0.s8 %v364
        %v621 = vunpack.c.0.s8 %v365
        %v622 = vunpack.c.0.s8 %v366
        %v623 = vunpack.c.0.s8 %v367
        %v624 = vunpack.c.0.s8 %v368
        %v625 = vunpack.c.0.s8 %v369
        %v626 = vunpack.c.0.s8 %v370
        %v627 = vunpack.c.0.s8 %v371
        %v628 = vunpack.c.0.s8 %v372
        %v629 = vunpack.c.0.s8 %v373
        %v630 = vunpack.c.0.s8 %v374
        %v631 = vunpack.c.0.s8 %v375
        %v632 = vunpack.c.0.s8 %v376
        %v633 = vand.u32 %v377, 255
        %v634 = vand.u32 %v378, 255
        %v635 = vand.u32 %v379, 255
        %v636 = vand.u32 %v380, 255
        %v637 = vand.u32 %v381, 255
        %v638 = vand.u32 %v382, 255
        %v639 = vand.u32 %v383, 255
        %v640 = vand.u32 %v384, 255
        %v641 = vand.u32 %v385, 255
        %v642 = vand.u32 %v386, 255
        %v643 = vand.u32 %v387, 255
        %v644 = vand.u32 %v388, 255
        %v645 = vand.u32 %v389, 255
        %v646 = vand.u32 %v390, 255
        %v647 = vand.u32 %v391, 255
        %v648 = vand.u32 %v392, 255
        %v649 = vand.u32 %v393, 255
        %v650 = vand.u32 %v394, 255
        %v651 = vand.u32 %v395, 255
        %v652 = vand.u32 %v396, 255
        %v653 = vand.u32 %v397, 255
        %v654 = vand.u32 %v398, 255
        %v655 = vand.u32 %v399, 255
        %v656 = vand.u32 %v400, 255
        %v657 = vand.u32 %v401, 255
        %v658 = vand.u32 %v402, 255
        %v659 = vand.u32 %v403, 255
        %v660 = vand.u32 %v404, 255
        %v661 = vand.u32 %v405, 255
        %v662 = vand.u32 %v406, 255
        %v663 = vand.u32 %v407, 255
        %v664 = vand.u32 %v408, 255
        %v665 = vand.u32 %v409, 255
        %v666 = vand.u32 %v410, 255
        %v667 = vand.u32 %v411, 255
        %v668 = vand.u32 %v412, 255
        %v669 = vand.u32 %v413, 255
        %v670 = vand.u32 %v414, 255
        %v671 = vand.u32 %v415, 255
        %v672 = vand.u32 %v416, 255
        %v673 = vand.u32 %v417, 255
        %v674 = vand.u32 %v418, 255
        %v675 = vand.u32 %v419, 255
        %v676 = vand.u32 %v420, 255
        %v677 = vand.u32 %v421, 255
        %v678 = vand.u32 %v422, 255
        %v679 = vand.u32 %v423, 255
        %v680 = vand.u32 %v424, 255
        %v681 = vand.u32 %v425, 255
        %v682 = vand.u32 %v426, 255
        %v683 = vand.u32 %v427, 255
        %v684 = vand.u32 %v428, 255
        %v685 = vand.u32 %v429, 255
        %v686 = vand.u32 %v430, 255
        %v687 = vand.u32 %v431, 255
        %v688 = vand.u32 %v432, 255
        %v689 = vand.u32 %v433, 255
        %v690 = vand.u32 %v434, 255
        %v691 = vand.u32 %v435, 255
        %v692 = vand.u32 %v436, 255
        %v693 = vand.u32 %v437, 255
        %v694 = vand.u32 %v438, 255
        %v695 = vand.u32 %v439, 255
        %v696 = vand.u32 %v440, 255
        %v697 = vand.u32 %v441, 255
        %v698 = vand.u32 %v442, 255
        %v699 = vand.u32 %v443, 255
        %v700 = vand.u32 %v444, 255
        %v701 = vand.u32 %v445, 255
        %v702 = vand.u32 %v446, 255
        %v703 = vand.u32 %v447, 255
        %v704 = vand.u32 %v448, 255
        %v705 = vand.u32 %v449, 255
        %v706 = vand.u32 %v450, 255
        %v707 = vand.u32 %v451, 255
        %v708 = vand.u32 %v452, 255
        %v709 = vand.u32 %v453, 255
        %v710 = vand.u32 %v454, 255
        %v711 = vand.u32 %v455, 255
        %v712 = vand.u32 %v456, 255
        %v713 = vand.u32 %v457, 255
        %v714 = vand.u32 %v458, 255
        %v715 = vand.u32 %v459, 255
        %v716 = vand.u32 %v460, 255
        %v717 = vand.u32 %v461, 255
        %v718 = vand.u32 %v462, 255
        %v719 = vand.u32 %v463, 255
        %v720 = vand.u32 %v464, 255
        %v721 = vand.u32 %v465, 255
        %v722 = vand.u32 %v466, 255
        %v723 = vand.u32 %v467, 255
        %v724 = vand.u32 %v468, 255
        %v725 = vand.u32 %v469, 255
        %v726 = vand.u32 %v470, 255
        %v727 = vand.u32 %v471, 255
        %v728 = vand.u32 %v472, 255
        %v729 = vand.u32 %v473, 255
        %v730 = vand.u32 %v474, 255
        %v731 = vand.u32 %v475, 255
        %v732 = vand.u32 %v476, 255
        %v733 = vand.u32 %v477, 255
        %v734 = vand.u32 %v478, 255
        %v735 = vand.u32 %v479, 255
        %v736 = vand.u32 %v480, 255
        %v737 = vand.u32 %v481, 255
        %v738 = vand.u32 %v482, 255
        %v739 = vand.u32 %v483, 255
        %v740 = vand.u32 %v484, 255
        %v741 = vand.u32 %v485, 255
        %v742 = vand.u32 %v486, 255
        %v743 = vand.u32 %v487, 255
        %v744 = vand.u32 %v488, 255
        %v745 = vand.u32 %v489, 255
        %v746 = vand.u32 %v490, 255
        %v747 = vand.u32 %v491, 255
        %v748 = vand.u32 %v492, 255
        %v749 = vand.u32 %v493, 255
        %v750 = vand.u32 %v494, 255
        %v751 = vand.u32 %v495, 255
        %v752 = vand.u32 %v496, 255
        %v753 = vand.u32 %v497, 255
        %v754 = vand.u32 %v498, 255
        %v755 = vand.u32 %v499, 255
        %v756 = vand.u32 %v500, 255
        %v757 = vand.u32 %v501, 255
        %v758 = vand.u32 %v502, 255
        %v759 = vand.u32 %v503, 255
        %v760 = vand.u32 %v504, 255
        %v761 = vand.u32 %v505, 255
        %v762 = vand.u32 %v506, 255
        %v763 = vand.u32 %v507, 255
        %v764 = vand.u32 %v508, 255
        %v765 = vand.u32 %v509, 255
        %v766 = vand.u32 %v510, 255
        %v767 = vand.u32 %v511, 255
        %v768 = vand.u32 %v512, 255
        %v769 = vand.u32 %v513, 255
        %v770 = vand.u32 %v514, 255
        %v771 = vand.u32 %v515, 255
        %v772 = vand.u32 %v516, 255
        %v773 = vand.u32 %v517, 255
        %v774 = vand.u32 %v518, 255
        %v775 = vand.u32 %v519, 255
        %v776 = vand.u32 %v520, 255
        %v777 = vand.u32 %v521, 255
        %v778 = vand.u32 %v522, 255
        %v779 = vand.u32 %v523, 255
        %v780 = vand.u32 %v524, 255
        %v781 = vand.u32 %v525, 255
        %v782 = vand.u32 %v526, 255
        %v783 = vand.u32 %v527, 255
        %v784 = vand.u32 %v528, 255
        %v785 = vand.u32 %v529, 255
        %v786 = vand.u32 %v530, 255
        %v787 = vand.u32 %v531, 255
        %v788 = vand.u32 %v532, 255
        %v789 = vand.u32 %v533, 255
        %v790 = vand.u32 %v534, 255
        %v791 = vand.u32 %v535, 255
        %v792 = vand.u32 %v536, 255
        %v793 = vand.u32 %v537, 255
        %v794 = vand.u32 %v538, 255
        %v795 = vand.u32 %v539, 255
        %v796 = vand.u32 %v540, 255
        %v797 = vand.u32 %v541, 255
        %v798 = vand.u32 %v542, 255
        %v799 = vand.u32 %v543, 255
        %v800 = vand.u32 %v544, 255
        %v801 = vand.u32 %v545, 255
        %v802 = vand.u32 %v546, 255
        %v803 = vand.u32 %v547, 255
        %v804 = vand.u32 %v548, 255
        %v805 = vand.u32 %v549, 255
        %v806 = vand.u32 %v550, 255
        %v807 = vand.u32 %v551, 255
        %v808 = vand.u32 %v552, 255
        %v809 = vand.u32 %v553, 255
        %v810 = vand.u32 %v554, 255
        %v811 = vand.u32 %v555, 255
        %v812 = vand.u32 %v556, 255
        %v813 = vand.u32 %v557, 255
        %v814 = vand.u32 %v558, 255
        %v815 = vand.u32 %v559, 255
        %v816 = vand.u32 %v560, 255
        %v817 = vand.u32 %v561, 255
        %v818 = vand.u32 %v562, 255
        %v819 = vand.u32 %v563, 255
        %v820 = vand.u32 %v564, 255
        %v821 = vand.u32 %v565, 255
        %v822 = vand.u32 %v566, 255
        %v823 = vand.u32 %v567, 255
        %v824 = vand.u32 %v568, 255
        %v825 = vand.u32 %v569, 255
        %v826 = vand.u32 %v570, 255
        %v827 = vand.u32 %v571, 255
        %v828 = vand.u32 %v572, 255
        %v829 = vand.u32 %v573, 255
        %v830 = vand.u32 %v574, 255
        %v831 = vand.u32 %v575, 255
        %v832 = vand.u32 %v576, 255
        %v833 = vand.u32 %v577, 255
        %v834 = vand.u32 %v578, 255
        %v835 = vand.u32 %v579, 255
        %v836 = vand.u32 %v580, 255
        %v837 = vand.u32 %v581, 255
        %v838 = vand.u32 %v582, 255
        %v839 = vand.u32 %v583, 255
        %v840 = vand.u32 %v584, 255
        %v841 = vand.u32 %v585, 255
        %v842 = vand.u32 %v586, 255
        %v843 = vand.u32 %v587, 255
        %v844 = vand.u32 %v588, 255
        %v845 = vand.u32 %v589, 255
        %v846 = vand.u32 %v590, 255
        %v847 = vand.u32 %v591, 255
        %v848 = vand.u32 %v592, 255
        %v849 = vand.u32 %v593, 255
        %v850 = vand.u32 %v594, 255
        %v851 = vand.u32 %v595, 255
        %v852 = vand.u32 %v596, 255
        %v853 = vand.u32 %v597, 255
        %v854 = vand.u32 %v598, 255
        %v855 = vand.u32 %v599, 255
        %v856 = vand.u32 %v600, 255
        %v857 = vand.u32 %v601, 255
        %v858 = vand.u32 %v602, 255
        %v859 = vand.u32 %v603, 255
        %v860 = vand.u32 %v604, 255
        %v861 = vand.u32 %v605, 255
        %v862 = vand.u32 %v606, 255
        %v863 = vand.u32 %v607, 255
        %v864 = vand.u32 %v608, 255
        %v865 = vand.u32 %v609, 255
        %v866 = vand.u32 %v610, 255
        %v867 = vand.u32 %v611, 255
        %v868 = vand.u32 %v612, 255
        %v869 = vand.u32 %v613, 255
        %v870 = vand.u32 %v614, 255
        %v871 = vand.u32 %v615, 255
        %v872 = vand.u32 %v616, 255
        %v873 = vand.u32 %v617, 255
        %v874 = vand.u32 %v618, 255
        %v875 = vand.u32 %v619, 255
        %v876 = vand.u32 %v620, 255
        %v877 = vand.u32 %v621, 255
        %v878 = vand.u32 %v622, 255
        %v879 = vand.u32 %v623, 255
        %v880 = vand.u32 %v624, 255
        %v881 = vand.u32 %v625, 255
        %v882 = vand.u32 %v626, 255
        %v883 = vand.u32 %v627, 255
        %v884 = vand.u32 %v628, 255
        %v885 = vand.u32 %v629, 255
        %v886 = vand.u32 %v630, 255
        %v887 = vand.u32 %v631, 255
        %v888 = vand.u32 %v632, 255
        %v889 = vcvt.s32.f32 %v633
        %v890 = vcvt.s32.f32 %v634
        %v891 = vcvt.s32.f32 %v635
        %v892 = vcvt.s32.f32 %v636
        %v893 = vcvt.s32.f32 %v637
        %v894 = vcvt.s32.f32 %v638
        %v895 = vcvt.s32.f32 %v639
        %v896 = vcvt.s32.f32 %v640
        %v897 = vcvt.s32.f32 %v641
        %v898 = vcvt.s32.f32 %v642
        %v899 = vcvt.s32.f32 %v643
        %v900 = vcvt.s32.f32 %v644
        %v901 = vcvt.s32.f32 %v645
        %v902 = vcvt.s32.f32 %v646
        %v903 = vcvt.s32.f32 %v647
        %v904 = vcvt.s32.f32 %v648
        %v905 = vcvt.s32.f32 %v649
        %v906 = vcvt.s32.f32 %v650
        %v907 = vcvt.s32.f32 %v651
        %v908 = vcvt.s32.f32 %v652
        %v909 = vcvt.s32.f32 %v653
        %v910 = vcvt.s32.f32 %v654
        %v911 = vcvt.s32.f32 %v655
        %v912 = vcvt.s32.f32 %v656
        %v913 = vcvt.s32.f32 %v657
        %v914 = vcvt.s32.f32 %v658
        %v915 = vcvt.s32.f32 %v659
        %v916 = vcvt.s32.f32 %v660
        %v917 = vcvt.s32.f32 %v661
        %v918 = vcvt.s32.f32 %v662
        %v919 = vcvt.s32.f32 %v663
        %v920 = vcvt.s32.f32 %v664
        %v921 = vcvt.s32.f32 %v665
        %v922 = vcvt.s32.f32 %v666
        %v923 = vcvt.s32.f32 %v667
        %v924 = vcvt.s32.f32 %v668
        %v925 = vcvt.s32.f32 %v669
        %v926 = vcvt.s32.f32 %v670
        %v927 = vcvt.s32.f32 %v671
        %v928 = vcvt.s32.f32 %v672
        %v929 = vcvt.s32.f32 %v673
        %v930 = vcvt.s32.f32 %v674
        %v931 = vcvt.s32.f32 %v675
        %v932 = vcvt.s32.f32 %v676
        %v933 = vcvt.s32.f32 %v677
        %v934 = vcvt.s32.f32 %v678
        %v935 = vcvt.s32.f32 %v679
        %v936 = vcvt.s32.f32 %v680
        %v937 = vcvt.s32.f32 %v681
        %v938 = vcvt.s32.f32 %v682
        %v939 = vcvt.s32.f32 %v683
        %v940 = vcvt.s32.f32 %v684
        %v941 = vcvt.s32.f32 %v685
        %v942 = vcvt.s32.f32 %v686
        %v943 = vcvt.s32.f32 %v687
        %v944 = vcvt.s32.f32 %v688
        %v945 = vcvt.s32.f32 %v689
        %v946 = vcvt.s32.f32 %v690
        %v947 = vcvt.s32.f32 %v691
        %v948 = vcvt.s32.f32 %v692
        %v949 = vcvt.s32.f32 %v693
        %v950 = vcvt.s32.f32 %v694
        %v951 = vcvt.s32.f32 %v695
        %v952 = vcvt.s32.f32 %v696
        %v953 = vcvt.s32.f32 %v697
        %v954 = vcvt.s32.f32 %v698
        %v955 = vcvt.s32.f32 %v699
        %v956 = vcvt.s32.f32 %v700
        %v957 = vcvt.s32.f32 %v701
        %v958 = vcvt.s32.f32 %v702
        %v959 = vcvt.s32.f32 %v703
        %v960 = vcvt.s32.f32 %v704
        %v961 = vcvt.s32.f32 %v705
        %v962 = vcvt.s32.f32 %v706
        %v963 = vcvt.s32.f32 %v707
        %v964 = vcvt.s32.f32 %v708
        %v965 = vcvt.s32.f32 %v709
        %v966 = vcvt.s32.f32 %v710
        %v967 = vcvt.s32.f32 %v711
        %v968 = vcvt.s32.f32 %v712
        %v969 = vcvt.s32.f32 %v713
        %v970 = vcvt.s32.f32 %v714
        %v971 = vcvt.s32.f32 %v715
        %v972 = vcvt.s32.f32 %v716
        %v973 = vcvt.s32.f32 %v717
        %v974 = vcvt.s32.f32 %v718
        %v975 = vcvt.s32.f32 %v719
        %v976 = vcvt.s32.f32 %v720
        %v977 = vcvt.s32.f32 %v721
        %v978 = vcvt.s32.f32 %v722
        %v979 = vcvt.s32.f32 %v723
        %v980 = vcvt.s32.f32 %v724
        %v981 = vcvt.s32.f32 %v725
        %v982 = vcvt.s32.f32 %v726
        %v983 = vcvt.s32.f32 %v727
        %v984 = vcvt.s32.f32 %v728
        %v985 = vcvt.s32.f32 %v729
        %v986 = vcvt.s32.f32 %v730
        %v987 = vcvt.s32.f32 %v731
        %v988 = vcvt.s32.f32 %v732
        %v989 = vcvt.s32.f32 %v733
        %v990 = vcvt.s32.f32 %v734
        %v991 = vcvt.s32.f32 %v735
        %v992 = vcvt.s32.f32 %v736
        %v993 = vcvt.s32.f32 %v737
        %v994 = vcvt.s32.f32 %v738
        %v995 = vcvt.s32.f32 %v739
        %v996 = vcvt.s32.f32 %v740
        %v997 = vcvt.s32.f32 %v741
        %v998 = vcvt.s32.f32 %v742
        %v999 = vcvt.s32.f32 %v743
        %v1000 = vcvt.s32.f32 %v744
        %v1001 = vcvt.s32.f32 %v745
        %v1002 = vcvt.s32.f32 %v746
        %v1003 = vcvt.s32.f32 %v747
        %v1004 = vcvt.s32.f32 %v748
        %v1005 = vcvt.s32.f32 %v749
        %v1006 = vcvt.s32.f32 %v750
        %v1007 = vcvt.s32.f32 %v751
        %v1008 = vcvt.s32.f32 %v752
        %v1009 = vcvt.s32.f32 %v753
        %v1010 = vcvt.s32.f32 %v754
        %v1011 = vcvt.s32.f32 %v755
        %v1012 = vcvt.s32.f32 %v756
        %v1013 = vcvt.s32.f32 %v757
        %v1014 = vcvt.s32.f32 %v758
        %v1015 = vcvt.s32.f32 %v759
        %v1016 = vcvt.s32.f32 %v760
        %v1017 = vcvt.s32.f32 %v761
        %v1018 = vcvt.s32.f32 %v762
        %v1019 = vcvt.s32.f32 %v763
        %v1020 = vcvt.s32.f32 %v764
        %v1021 = vcvt.s32.f32 %v765
        %v1022 = vcvt.s32.f32 %v766
        %v1023 = vcvt.s32.f32 %v767
        %v1024 = vcvt.s32.f32 %v768
        %v1025 = vcvt.s32.f32 %v769
        %v1026 = vcvt.s32.f32 %v770
        %v1027 = vcvt.s32.f32 %v771
        %v1028 = vcvt.s32.f32 %v772
        %v1029 = vcvt.s32.f32 %v773
        %v1030 = vcvt.s32.f32 %v774
        %v1031 = vcvt.s32.f32 %v775
        %v1032 = vcvt.s32.f32 %v776
        %v1033 = vcvt.s32.f32 %v777
        %v1034 = vcvt.s32.f32 %v778
        %v1035 = vcvt.s32.f32 %v779
        %v1036 = vcvt.s32.f32 %v780
        %v1037 = vcvt.s32.f32 %v781
        %v1038 = vcvt.s32.f32 %v782
        %v1039 = vcvt.s32.f32 %v783
        %v1040 = vcvt.s32.f32 %v784
        %v1041 = vcvt.s32.f32 %v785
        %v1042 = vcvt.s32.f32 %v786
        %v1043 = vcvt.s32.f32 %v787
        %v1044 = vcvt.s32.f32 %v788
        %v1045 = vcvt.s32.f32 %v789
        %v1046 = vcvt.s32.f32 %v790
        %v1047 = vcvt.s32.f32 %v791
        %v1048 = vcvt.s32.f32 %v792
        %v1049 = vcvt.s32.f32 %v793
        %v1050 = vcvt.s32.f32 %v794
        %v1051 = vcvt.s32.f32 %v795
        %v1052 = vcvt.s32.f32 %v796
        %v1053 = vcvt.s32.f32 %v797
        %v1054 = vcvt.s32.f32 %v798
        %v1055 = vcvt.s32.f32 %v799
        %v1056 = vcvt.s32.f32 %v800
        %v1057 = vcvt.s32.f32 %v801
        %v1058 = vcvt.s32.f32 %v802
        %v1059 = vcvt.s32.f32 %v803
        %v1060 = vcvt.s32.f32 %v804
        %v1061 = vcvt.s32.f32 %v805
        %v1062 = vcvt.s32.f32 %v806
        %v1063 = vcvt.s32.f32 %v807
        %v1064 = vcvt.s32.f32 %v808
        %v1065 = vcvt.s32.f32 %v809
        %v1066 = vcvt.s32.f32 %v810
        %v1067 = vcvt.s32.f32 %v811
        %v1068 = vcvt.s32.f32 %v812
        %v1069 = vcvt.s32.f32 %v813
        %v1070 = vcvt.s32.f32 %v814
        %v1071 = vcvt.s32.f32 %v815
        %v1072 = vcvt.s32.f32 %v816
        %v1073 = vcvt.s32.f32 %v817
        %v1074 = vcvt.s32.f32 %v818
        %v1075 = vcvt.s32.f32 %v819
        %v1076 = vcvt.s32.f32 %v820
        %v1077 = vcvt.s32.f32 %v821
        %v1078 = vcvt.s32.f32 %v822
        %v1079 = vcvt.s32.f32 %v823
        %v1080 = vcvt.s32.f32 %v824
        %v1081 = vcvt.s32.f32 %v825
        %v1082 = vcvt.s32.f32 %v826
        %v1083 = vcvt.s32.f32 %v827
        %v1084 = vcvt.s32.f32 %v828
        %v1085 = vcvt.s32.f32 %v829
        %v1086 = vcvt.s32.f32 %v830
        %v1087 = vcvt.s32.f32 %v831
        %v1088 = vcvt.s32.f32 %v832
        %v1089 = vcvt.s32.f32 %v833
        %v1090 = vcvt.s32.f32 %v834
        %v1091 = vcvt.s32.f32 %v835
        %v1092 = vcvt.s32.f32 %v836
        %v1093 = vcvt.s32.f32 %v837
        %v1094 = vcvt.s32.f32 %v838
        %v1095 = vcvt.s32.f32 %v839
        %v1096 = vcvt.s32.f32 %v840
        %v1097 = vcvt.s32.f32 %v841
        %v1098 = vcvt.s32.f32 %v842
        %v1099 = vcvt.s32.f32 %v843
        %v1100 = vcvt.s32.f32 %v844
        %v1101 = vcvt.s32.f32 %v845
        %v1102 = vcvt.s32.f32 %v846
        %v1103 = vcvt.s32.f32 %v847
        %v1104 = vcvt.s32.f32 %v848
        %v1105 = vcvt.s32.f32 %v849
        %v1106 = vcvt.s32.f32 %v850
        %v1107 = vcvt.s32.f32 %v851
        %v1108 = vcvt.s32.f32 %v852
        %v1109 = vcvt.s32.f32 %v853
        %v1110 = vcvt.s32.f32 %v854
        %v1111 = vcvt.s32.f32 %v855
        %v1112 = vcvt.s32.f32 %v856
        %v1113 = vcvt.s32.f32 %v857
        %v1114 = vcvt.s32.f32 %v858
        %v1115 = vcvt.s32.f32 %v859
        %v1116 = vcvt.s32.f32 %v860
        %v1117 = vcvt.s32.f32 %v861
        %v1118 = vcvt.s32.f32 %v862
        %v1119 = vcvt.s32.f32 %v863
        %v1120 = vcvt.s32.f32 %v864
        %v1121 = vcvt.s32.f32 %v865
        %v1122 = vcvt.s32.f32 %v866
        %v1123 = vcvt.s32.f32 %v867
        %v1124 = vcvt.s32.f32 %v868
        %v1125 = vcvt.s32.f32 %v869
        %v1126 = vcvt.s32.f32 %v870
        %v1127 = vcvt.s32.f32 %v871
        %v1128 = vcvt.s32.f32 %v872
        %v1129 = vcvt.s32.f32 %v873
        %v1130 = vcvt.s32.f32 %v874
        %v1131 = vcvt.s32.f32 %v875
        %v1132 = vcvt.s32.f32 %v876
        %v1133 = vcvt.s32.f32 %v877
        %v1134 = vcvt.s32.f32 %v878
        %v1135 = vcvt.s32.f32 %v879
        %v1136 = vcvt.s32.f32 %v880
        %v1137 = vcvt.s32.f32 %v881
        %v1138 = vcvt.s32.f32 %v882
        %v1139 = vcvt.s32.f32 %v883
        %v1140 = vcvt.s32.f32 %v884
        %v1141 = vcvt.s32.f32 %v885
        %v1142 = vcvt.s32.f32 %v886
        %v1143 = vcvt.s32.f32 %v887
        %v1144 = vcvt.s32.f32 %v888
        %1401 = vset.pattern.permute.xlu0 0
        %1402 = vperm.xlu0 %1401, %v889
        %v1403 = vpop.permute.xlu0 %1402
        %1404 = vset.pattern.permute.xlu0 0
        %1405 = vperm.xlu0 %1404, %v890
        %v1406 = vpop.permute.xlu0 %1405
        %1407 = vset.pattern.permute.xlu0 0
        %1408 = vperm.xlu0 %1407, %v891
        %v1409 = vpop.permute.xlu0 %1408
        %1410 = vset.pattern.permute.xlu0 0
        %1411 = vperm.xlu0 %1410, %v892
        %v1412 = vpop.permute.xlu0 %1411
        %1413 = vset.pattern.permute.xlu0 0
        %1414 = vperm.xlu0 %1413, %v893
        %v1415 = vpop.permute.xlu0 %1414
        %1416 = vset.pattern.permute.xlu0 0
        %1417 = vperm.xlu0 %1416, %v894
        %v1418 = vpop.permute.xlu0 %1417
        %1419 = vset.pattern.permute.xlu0 0
        %1420 = vperm.xlu0 %1419, %v895
        %v1421 = vpop.permute.xlu0 %1420
        %1422 = vset.pattern.permute.xlu0 0
        %1423 = vperm.xlu0 %1422, %v896
        %v1424 = vpop.permute.xlu0 %1423
        %1425 = vset.pattern.permute.xlu0 0
        %1426 = vperm.xlu0 %1425, %v897
        %v1427 = vpop.permute.xlu0 %1426
        %1428 = vset.pattern.permute.xlu0 0
        %1429 = vperm.xlu0 %1428, %v898
        %v1430 = vpop.permute.xlu0 %1429
        %1431 = vset.pattern.permute.xlu0 0
        %1432 = vperm.xlu0 %1431, %v899
        %v1433 = vpop.permute.xlu0 %1432
        %1434 = vset.pattern.permute.xlu0 0
        %1435 = vperm.xlu0 %1434, %v900
        %v1436 = vpop.permute.xlu0 %1435
        %1437 = vset.pattern.permute.xlu0 0
        %1438 = vperm.xlu0 %1437, %v901
        %v1439 = vpop.permute.xlu0 %1438
        %1440 = vset.pattern.permute.xlu0 0
        %1441 = vperm.xlu0 %1440, %v902
        %v1442 = vpop.permute.xlu0 %1441
        %1443 = vset.pattern.permute.xlu0 0
        %1444 = vperm.xlu0 %1443, %v903
        %v1445 = vpop.permute.xlu0 %1444
        %1446 = vset.pattern.permute.xlu0 0
        %1447 = vperm.xlu0 %1446, %v904
        %v1448 = vpop.permute.xlu0 %1447
        %1449 = vset.pattern.permute.xlu0 0
        %1450 = vperm.xlu0 %1449, %v905
        %v1451 = vpop.permute.xlu0 %1450
        %1452 = vset.pattern.permute.xlu0 0
        %1453 = vperm.xlu0 %1452, %v906
        %v1454 = vpop.permute.xlu0 %1453
        %1455 = vset.pattern.permute.xlu0 0
        %1456 = vperm.xlu0 %1455, %v907
        %v1457 = vpop.permute.xlu0 %1456
        %1458 = vset.pattern.permute.xlu0 0
        %1459 = vperm.xlu0 %1458, %v908
        %v1460 = vpop.permute.xlu0 %1459
        %1461 = vset.pattern.permute.xlu0 0
        %1462 = vperm.xlu0 %1461, %v909
        %v1463 = vpop.permute.xlu0 %1462
        %1464 = vset.pattern.permute.xlu0 0
        %1465 = vperm.xlu0 %1464, %v910
        %v1466 = vpop.permute.xlu0 %1465
        %1467 = vset.pattern.permute.xlu0 0
        %1468 = vperm.xlu0 %1467, %v911
        %v1469 = vpop.permute.xlu0 %1468
        %1470 = vset.pattern.permute.xlu0 0
        %1471 = vperm.xlu0 %1470, %v912
        %v1472 = vpop.permute.xlu0 %1471
        %1473 = vset.pattern.permute.xlu0 0
        %1474 = vperm.xlu0 %1473, %v913
        %v1475 = vpop.permute.xlu0 %1474
        %1476 = vset.pattern.permute.xlu0 0
        %1477 = vperm.xlu0 %1476, %v914
        %v1478 = vpop.permute.xlu0 %1477
        %1479 = vset.pattern.permute.xlu0 0
        %1480 = vperm.xlu0 %1479, %v915
        %v1481 = vpop.permute.xlu0 %1480
        %1482 = vset.pattern.permute.xlu0 0
        %1483 = vperm.xlu0 %1482, %v916
        %v1484 = vpop.permute.xlu0 %1483
        %1485 = vset.pattern.permute.xlu0 0
        %1486 = vperm.xlu0 %1485, %v917
        %v1487 = vpop.permute.xlu0 %1486
        %1488 = vset.pattern.permute.xlu0 0
        %1489 = vperm.xlu0 %1488, %v918
        %v1490 = vpop.permute.xlu0 %1489
        %1491 = vset.pattern.permute.xlu0 0
        %1492 = vperm.xlu0 %1491, %v919
        %v1493 = vpop.permute.xlu0 %1492
        %1494 = vset.pattern.permute.xlu0 0
        %1495 = vperm.xlu0 %1494, %v920
        %v1496 = vpop.permute.xlu0 %1495
        %1497 = vset.pattern.permute.xlu0 0
        %1498 = vperm.xlu0 %1497, %v921
        %v1499 = vpop.permute.xlu0 %1498
        %1500 = vset.pattern.permute.xlu0 0
        %1501 = vperm.xlu0 %1500, %v922
        %v1502 = vpop.permute.xlu0 %1501
        %1503 = vset.pattern.permute.xlu0 0
        %1504 = vperm.xlu0 %1503, %v923
        %v1505 = vpop.permute.xlu0 %1504
        %1506 = vset.pattern.permute.xlu0 0
        %1507 = vperm.xlu0 %1506, %v924
        %v1508 = vpop.permute.xlu0 %1507
        %1509 = vset.pattern.permute.xlu0 0
        %1510 = vperm.xlu0 %1509, %v925
        %v1511 = vpop.permute.xlu0 %1510
        %1512 = vset.pattern.permute.xlu0 0
        %1513 = vperm.xlu0 %1512, %v926
        %v1514 = vpop.permute.xlu0 %1513
        %1515 = vset.pattern.permute.xlu0 0
        %1516 = vperm.xlu0 %1515, %v927
        %v1517 = vpop.permute.xlu0 %1516
        %1518 = vset.pattern.permute.xlu0 0
        %1519 = vperm.xlu0 %1518, %v928
        %v1520 = vpop.permute.xlu0 %1519
        %1521 = vset.pattern.permute.xlu0 0
        %1522 = vperm.xlu0 %1521, %v929
        %v1523 = vpop.permute.xlu0 %1522
        %1524 = vset.pattern.permute.xlu0 0
        %1525 = vperm.xlu0 %1524, %v930
        %v1526 = vpop.permute.xlu0 %1525
        %1527 = vset.pattern.permute.xlu0 0
        %1528 = vperm.xlu0 %1527, %v931
        %v1529 = vpop.permute.xlu0 %1528
        %1530 = vset.pattern.permute.xlu0 0
        %1531 = vperm.xlu0 %1530, %v932
        %v1532 = vpop.permute.xlu0 %1531
        %1533 = vset.pattern.permute.xlu0 0
        %1534 = vperm.xlu0 %1533, %v933
        %v1535 = vpop.permute.xlu0 %1534
        %1536 = vset.pattern.permute.xlu0 0
        %1537 = vperm.xlu0 %1536, %v934
        %v1538 = vpop.permute.xlu0 %1537
        %1539 = vset.pattern.permute.xlu0 0
        %1540 = vperm.xlu0 %1539, %v935
        %v1541 = vpop.permute.xlu0 %1540
        %1542 = vset.pattern.permute.xlu0 0
        %1543 = vperm.xlu0 %1542, %v936
        %v1544 = vpop.permute.xlu0 %1543
        %1545 = vset.pattern.permute.xlu0 0
        %1546 = vperm.xlu0 %1545, %v937
        %v1547 = vpop.permute.xlu0 %1546
        %1548 = vset.pattern.permute.xlu0 0
        %1549 = vperm.xlu0 %1548, %v938
        %v1550 = vpop.permute.xlu0 %1549
        %1551 = vset.pattern.permute.xlu0 0
        %1552 = vperm.xlu0 %1551, %v939
        %v1553 = vpop.permute.xlu0 %1552
        %1554 = vset.pattern.permute.xlu0 0
        %1555 = vperm.xlu0 %1554, %v940
        %v1556 = vpop.permute.xlu0 %1555
        %1557 = vset.pattern.permute.xlu0 0
        %1558 = vperm.xlu0 %1557, %v941
        %v1559 = vpop.permute.xlu0 %1558
        %1560 = vset.pattern.permute.xlu0 0
        %1561 = vperm.xlu0 %1560, %v942
        %v1562 = vpop.permute.xlu0 %1561
        %1563 = vset.pattern.permute.xlu0 0
        %1564 = vperm.xlu0 %1563, %v943
        %v1565 = vpop.permute.xlu0 %1564
        %1566 = vset.pattern.permute.xlu0 0
        %1567 = vperm.xlu0 %1566, %v944
        %v1568 = vpop.permute.xlu0 %1567
        %1569 = vset.pattern.permute.xlu0 0
        %1570 = vperm.xlu0 %1569, %v945
        %v1571 = vpop.permute.xlu0 %1570
        %1572 = vset.pattern.permute.xlu0 0
        %1573 = vperm.xlu0 %1572, %v946
        %v1574 = vpop.permute.xlu0 %1573
        %1575 = vset.pattern.permute.xlu0 0
        %1576 = vperm.xlu0 %1575, %v947
        %v1577 = vpop.permute.xlu0 %1576
        %1578 = vset.pattern.permute.xlu0 0
        %1579 = vperm.xlu0 %1578, %v948
        %v1580 = vpop.permute.xlu0 %1579
        %1581 = vset.pattern.permute.xlu0 0
        %1582 = vperm.xlu0 %1581, %v949
        %v1583 = vpop.permute.xlu0 %1582
        %1584 = vset.pattern.permute.xlu0 0
        %1585 = vperm.xlu0 %1584, %v950
        %v1586 = vpop.permute.xlu0 %1585
        %1587 = vset.pattern.permute.xlu0 0
        %1588 = vperm.xlu0 %1587, %v951
        %v1589 = vpop.permute.xlu0 %1588
        %1590 = vset.pattern.permute.xlu0 0
        %1591 = vperm.xlu0 %1590, %v952
        %v1592 = vpop.permute.xlu0 %1591
        %1593 = vset.pattern.permute.xlu0 0
        %1594 = vperm.xlu0 %1593, %v953
        %v1595 = vpop.permute.xlu0 %1594
        %1596 = vset.pattern.permute.xlu0 0
        %1597 = vperm.xlu0 %1596, %v954
        %v1598 = vpop.permute.xlu0 %1597
        %1599 = vset.pattern.permute.xlu0 0
        %1600 = vperm.xlu0 %1599, %v955
        %v1601 = vpop.permute.xlu0 %1600
        %1602 = vset.pattern.permute.xlu0 0
        %1603 = vperm.xlu0 %1602, %v956
        %v1604 = vpop.permute.xlu0 %1603
        %1605 = vset.pattern.permute.xlu0 0
        %1606 = vperm.xlu0 %1605, %v957
        %v1607 = vpop.permute.xlu0 %1606
        %1608 = vset.pattern.permute.xlu0 0
        %1609 = vperm.xlu0 %1608, %v958
        %v1610 = vpop.permute.xlu0 %1609
        %1611 = vset.pattern.permute.xlu0 0
        %1612 = vperm.xlu0 %1611, %v959
        %v1613 = vpop.permute.xlu0 %1612
        %1614 = vset.pattern.permute.xlu0 0
        %1615 = vperm.xlu0 %1614, %v960
        %v1616 = vpop.permute.xlu0 %1615
        %1617 = vset.pattern.permute.xlu0 0
        %1618 = vperm.xlu0 %1617, %v961
        %v1619 = vpop.permute.xlu0 %1618
        %1620 = vset.pattern.permute.xlu0 0
        %1621 = vperm.xlu0 %1620, %v962
        %v1622 = vpop.permute.xlu0 %1621
        %1623 = vset.pattern.permute.xlu0 0
        %1624 = vperm.xlu0 %1623, %v963
        %v1625 = vpop.permute.xlu0 %1624
        %1626 = vset.pattern.permute.xlu0 0
        %1627 = vperm.xlu0 %1626, %v964
        %v1628 = vpop.permute.xlu0 %1627
        %1629 = vset.pattern.permute.xlu0 0
        %1630 = vperm.xlu0 %1629, %v965
        %v1631 = vpop.permute.xlu0 %1630
        %1632 = vset.pattern.permute.xlu0 0
        %1633 = vperm.xlu0 %1632, %v966
        %v1634 = vpop.permute.xlu0 %1633
        %1635 = vset.pattern.permute.xlu0 0
        %1636 = vperm.xlu0 %1635, %v967
        %v1637 = vpop.permute.xlu0 %1636
        %1638 = vset.pattern.permute.xlu0 0
        %1639 = vperm.xlu0 %1638, %v968
        %v1640 = vpop.permute.xlu0 %1639
        %1641 = vset.pattern.permute.xlu0 0
        %1642 = vperm.xlu0 %1641, %v969
        %v1643 = vpop.permute.xlu0 %1642
        %1644 = vset.pattern.permute.xlu0 0
        %1645 = vperm.xlu0 %1644, %v970
        %v1646 = vpop.permute.xlu0 %1645
        %1647 = vset.pattern.permute.xlu0 0
        %1648 = vperm.xlu0 %1647, %v971
        %v1649 = vpop.permute.xlu0 %1648
        %1650 = vset.pattern.permute.xlu0 0
        %1651 = vperm.xlu0 %1650, %v972
        %v1652 = vpop.permute.xlu0 %1651
        %1653 = vset.pattern.permute.xlu0 0
        %1654 = vperm.xlu0 %1653, %v973
        %v1655 = vpop.permute.xlu0 %1654
        %1656 = vset.pattern.permute.xlu0 0
        %1657 = vperm.xlu0 %1656, %v974
        %v1658 = vpop.permute.xlu0 %1657
        %1659 = vset.pattern.permute.xlu0 0
        %1660 = vperm.xlu0 %1659, %v975
        %v1661 = vpop.permute.xlu0 %1660
        %1662 = vset.pattern.permute.xlu0 0
        %1663 = vperm.xlu0 %1662, %v976
        %v1664 = vpop.permute.xlu0 %1663
        %1665 = vset.pattern.permute.xlu0 0
        %1666 = vperm.xlu0 %1665, %v977
        %v1667 = vpop.permute.xlu0 %1666
        %1668 = vset.pattern.permute.xlu0 0
        %1669 = vperm.xlu0 %1668, %v978
        %v1670 = vpop.permute.xlu0 %1669
        %1671 = vset.pattern.permute.xlu0 0
        %1672 = vperm.xlu0 %1671, %v979
        %v1673 = vpop.permute.xlu0 %1672
        %1674 = vset.pattern.permute.xlu0 0
        %1675 = vperm.xlu0 %1674, %v980
        %v1676 = vpop.permute.xlu0 %1675
        %1677 = vset.pattern.permute.xlu0 0
        %1678 = vperm.xlu0 %1677, %v981
        %v1679 = vpop.permute.xlu0 %1678
        %1680 = vset.pattern.permute.xlu0 0
        %1681 = vperm.xlu0 %1680, %v982
        %v1682 = vpop.permute.xlu0 %1681
        %1683 = vset.pattern.permute.xlu0 0
        %1684 = vperm.xlu0 %1683, %v983
        %v1685 = vpop.permute.xlu0 %1684
        %1686 = vset.pattern.permute.xlu0 0
        %1687 = vperm.xlu0 %1686, %v984
        %v1688 = vpop.permute.xlu0 %1687
        %1689 = vset.pattern.permute.xlu0 0
        %1690 = vperm.xlu0 %1689, %v985
        %v1691 = vpop.permute.xlu0 %1690
        %1692 = vset.pattern.permute.xlu0 0
        %1693 = vperm.xlu0 %1692, %v986
        %v1694 = vpop.permute.xlu0 %1693
        %1695 = vset.pattern.permute.xlu0 0
        %1696 = vperm.xlu0 %1695, %v987
        %v1697 = vpop.permute.xlu0 %1696
        %1698 = vset.pattern.permute.xlu0 0
        %1699 = vperm.xlu0 %1698, %v988
        %v1700 = vpop.permute.xlu0 %1699
        %1701 = vset.pattern.permute.xlu0 0
        %1702 = vperm.xlu0 %1701, %v989
        %v1703 = vpop.permute.xlu0 %1702
        %1704 = vset.pattern.permute.xlu0 0
        %1705 = vperm.xlu0 %1704, %v990
        %v1706 = vpop.permute.xlu0 %1705
        %1707 = vset.pattern.permute.xlu0 0
        %1708 = vperm.xlu0 %1707, %v991
        %v1709 = vpop.permute.xlu0 %1708
        %1710 = vset.pattern.permute.xlu0 0
        %1711 = vperm.xlu0 %1710, %v992
        %v1712 = vpop.permute.xlu0 %1711
        %1713 = vset.pattern.permute.xlu0 0
        %1714 = vperm.xlu0 %1713, %v993
        %v1715 = vpop.permute.xlu0 %1714
        %1716 = vset.pattern.permute.xlu0 0
        %1717 = vperm.xlu0 %1716, %v994
        %v1718 = vpop.permute.xlu0 %1717
        %1719 = vset.pattern.permute.xlu0 0
        %1720 = vperm.xlu0 %1719, %v995
        %v1721 = vpop.permute.xlu0 %1720
        %1722 = vset.pattern.permute.xlu0 0
        %1723 = vperm.xlu0 %1722, %v996
        %v1724 = vpop.permute.xlu0 %1723
        %1725 = vset.pattern.permute.xlu0 0
        %1726 = vperm.xlu0 %1725, %v997
        %v1727 = vpop.permute.xlu0 %1726
        %1728 = vset.pattern.permute.xlu0 0
        %1729 = vperm.xlu0 %1728, %v998
        %v1730 = vpop.permute.xlu0 %1729
        %1731 = vset.pattern.permute.xlu0 0
        %1732 = vperm.xlu0 %1731, %v999
        %v1733 = vpop.permute.xlu0 %1732
        %1734 = vset.pattern.permute.xlu0 0
        %1735 = vperm.xlu0 %1734, %v1000
        %v1736 = vpop.permute.xlu0 %1735
        %1737 = vset.pattern.permute.xlu0 0
        %1738 = vperm.xlu0 %1737, %v1001
        %v1739 = vpop.permute.xlu0 %1738
        %1740 = vset.pattern.permute.xlu0 0
        %1741 = vperm.xlu0 %1740, %v1002
        %v1742 = vpop.permute.xlu0 %1741
        %1743 = vset.pattern.permute.xlu0 0
        %1744 = vperm.xlu0 %1743, %v1003
        %v1745 = vpop.permute.xlu0 %1744
        %1746 = vset.pattern.permute.xlu0 0
        %1747 = vperm.xlu0 %1746, %v1004
        %v1748 = vpop.permute.xlu0 %1747
        %1749 = vset.pattern.permute.xlu0 0
        %1750 = vperm.xlu0 %1749, %v1005
        %v1751 = vpop.permute.xlu0 %1750
        %1752 = vset.pattern.permute.xlu0 0
        %1753 = vperm.xlu0 %1752, %v1006
        %v1754 = vpop.permute.xlu0 %1753
        %1755 = vset.pattern.permute.xlu0 0
        %1756 = vperm.xlu0 %1755, %v1007
        %v1757 = vpop.permute.xlu0 %1756
        %1758 = vset.pattern.permute.xlu0 0
        %1759 = vperm.xlu0 %1758, %v1008
        %v1760 = vpop.permute.xlu0 %1759
        %1761 = vset.pattern.permute.xlu0 0
        %1762 = vperm.xlu0 %1761, %v1009
        %v1763 = vpop.permute.xlu0 %1762
        %1764 = vset.pattern.permute.xlu0 0
        %1765 = vperm.xlu0 %1764, %v1010
        %v1766 = vpop.permute.xlu0 %1765
        %1767 = vset.pattern.permute.xlu0 0
        %1768 = vperm.xlu0 %1767, %v1011
        %v1769 = vpop.permute.xlu0 %1768
        %1770 = vset.pattern.permute.xlu0 0
        %1771 = vperm.xlu0 %1770, %v1012
        %v1772 = vpop.permute.xlu0 %1771
        %1773 = vset.pattern.permute.xlu0 0
        %1774 = vperm.xlu0 %1773, %v1013
        %v1775 = vpop.permute.xlu0 %1774
        %1776 = vset.pattern.permute.xlu0 0
        %1777 = vperm.xlu0 %1776, %v1014
        %v1778 = vpop.permute.xlu0 %1777
        %1779 = vset.pattern.permute.xlu0 0
        %1780 = vperm.xlu0 %1779, %v1015
        %v1781 = vpop.permute.xlu0 %1780
        %1782 = vset.pattern.permute.xlu0 0
        %1783 = vperm.xlu0 %1782, %v1016
        %v1784 = vpop.permute.xlu0 %1783
        %1785 = vset.pattern.permute.xlu0 0
        %1786 = vperm.xlu0 %1785, %v1017
        %v1787 = vpop.permute.xlu0 %1786
        %1788 = vset.pattern.permute.xlu0 0
        %1789 = vperm.xlu0 %1788, %v1018
        %v1790 = vpop.permute.xlu0 %1789
        %1791 = vset.pattern.permute.xlu0 0
        %1792 = vperm.xlu0 %1791, %v1019
        %v1793 = vpop.permute.xlu0 %1792
        %1794 = vset.pattern.permute.xlu0 0
        %1795 = vperm.xlu0 %1794, %v1020
        %v1796 = vpop.permute.xlu0 %1795
        %1797 = vset.pattern.permute.xlu0 0
        %1798 = vperm.xlu0 %1797, %v1021
        %v1799 = vpop.permute.xlu0 %1798
        %1800 = vset.pattern.permute.xlu0 0
        %1801 = vperm.xlu0 %1800, %v1022
        %v1802 = vpop.permute.xlu0 %1801
        %1803 = vset.pattern.permute.xlu0 0
        %1804 = vperm.xlu0 %1803, %v1023
        %v1805 = vpop.permute.xlu0 %1804
        %1806 = vset.pattern.permute.xlu0 0
        %1807 = vperm.xlu0 %1806, %v1024
        %v1808 = vpop.permute.xlu0 %1807
        %1809 = vset.pattern.permute.xlu0 0
        %1810 = vperm.xlu0 %1809, %v1025
        %v1811 = vpop.permute.xlu0 %1810
        %1812 = vset.pattern.permute.xlu0 0
        %1813 = vperm.xlu0 %1812, %v1026
        %v1814 = vpop.permute.xlu0 %1813
        %1815 = vset.pattern.permute.xlu0 0
        %1816 = vperm.xlu0 %1815, %v1027
        %v1817 = vpop.permute.xlu0 %1816
        %1818 = vset.pattern.permute.xlu0 0
        %1819 = vperm.xlu0 %1818, %v1028
        %v1820 = vpop.permute.xlu0 %1819
        %1821 = vset.pattern.permute.xlu0 0
        %1822 = vperm.xlu0 %1821, %v1029
        %v1823 = vpop.permute.xlu0 %1822
        %1824 = vset.pattern.permute.xlu0 0
        %1825 = vperm.xlu0 %1824, %v1030
        %v1826 = vpop.permute.xlu0 %1825
        %1827 = vset.pattern.permute.xlu0 0
        %1828 = vperm.xlu0 %1827, %v1031
        %v1829 = vpop.permute.xlu0 %1828
        %1830 = vset.pattern.permute.xlu0 0
        %1831 = vperm.xlu0 %1830, %v1032
        %v1832 = vpop.permute.xlu0 %1831
        %1833 = vset.pattern.permute.xlu0 0
        %1834 = vperm.xlu0 %1833, %v1033
        %v1835 = vpop.permute.xlu0 %1834
        %1836 = vset.pattern.permute.xlu0 0
        %1837 = vperm.xlu0 %1836, %v1034
        %v1838 = vpop.permute.xlu0 %1837
        %1839 = vset.pattern.permute.xlu0 0
        %1840 = vperm.xlu0 %1839, %v1035
        %v1841 = vpop.permute.xlu0 %1840
        %1842 = vset.pattern.permute.xlu0 0
        %1843 = vperm.xlu0 %1842, %v1036
        %v1844 = vpop.permute.xlu0 %1843
        %1845 = vset.pattern.permute.xlu0 0
        %1846 = vperm.xlu0 %1845, %v1037
        %v1847 = vpop.permute.xlu0 %1846
        %1848 = vset.pattern.permute.xlu0 0
        %1849 = vperm.xlu0 %1848, %v1038
        %v1850 = vpop.permute.xlu0 %1849
        %1851 = vset.pattern.permute.xlu0 0
        %1852 = vperm.xlu0 %1851, %v1039
        %v1853 = vpop.permute.xlu0 %1852
        %1854 = vset.pattern.permute.xlu0 0
        %1855 = vperm.xlu0 %1854, %v1040
        %v1856 = vpop.permute.xlu0 %1855
        %1857 = vset.pattern.permute.xlu0 0
        %1858 = vperm.xlu0 %1857, %v1041
        %v1859 = vpop.permute.xlu0 %1858
        %1860 = vset.pattern.permute.xlu0 0
        %1861 = vperm.xlu0 %1860, %v1042
        %v1862 = vpop.permute.xlu0 %1861
        %1863 = vset.pattern.permute.xlu0 0
        %1864 = vperm.xlu0 %1863, %v1043
        %v1865 = vpop.permute.xlu0 %1864
        %1866 = vset.pattern.permute.xlu0 0
        %1867 = vperm.xlu0 %1866, %v1044
        %v1868 = vpop.permute.xlu0 %1867
        %1869 = vset.pattern.permute.xlu0 0
        %1870 = vperm.xlu0 %1869, %v1045
        %v1871 = vpop.permute.xlu0 %1870
        %1872 = vset.pattern.permute.xlu0 0
        %1873 = vperm.xlu0 %1872, %v1046
        %v1874 = vpop.permute.xlu0 %1873
        %1875 = vset.pattern.permute.xlu0 0
        %1876 = vperm.xlu0 %1875, %v1047
        %v1877 = vpop.permute.xlu0 %1876
        %1878 = vset.pattern.permute.xlu0 0
        %1879 = vperm.xlu0 %1878, %v1048
        %v1880 = vpop.permute.xlu0 %1879
        %1881 = vset.pattern.permute.xlu0 0
        %1882 = vperm.xlu0 %1881, %v1049
        %v1883 = vpop.permute.xlu0 %1882
        %1884 = vset.pattern.permute.xlu0 0
        %1885 = vperm.xlu0 %1884, %v1050
        %v1886 = vpop.permute.xlu0 %1885
        %1887 = vset.pattern.permute.xlu0 0
        %1888 = vperm.xlu0 %1887, %v1051
        %v1889 = vpop.permute.xlu0 %1888
        %1890 = vset.pattern.permute.xlu0 0
        %1891 = vperm.xlu0 %1890, %v1052
        %v1892 = vpop.permute.xlu0 %1891
        %1893 = vset.pattern.permute.xlu0 0
        %1894 = vperm.xlu0 %1893, %v1053
        %v1895 = vpop.permute.xlu0 %1894
        %1896 = vset.pattern.permute.xlu0 0
        %1897 = vperm.xlu0 %1896, %v1054
        %v1898 = vpop.permute.xlu0 %1897
        %1899 = vset.pattern.permute.xlu0 0
        %1900 = vperm.xlu0 %1899, %v1055
        %v1901 = vpop.permute.xlu0 %1900
        %1902 = vset.pattern.permute.xlu0 0
        %1903 = vperm.xlu0 %1902, %v1056
        %v1904 = vpop.permute.xlu0 %1903
        %1905 = vset.pattern.permute.xlu0 0
        %1906 = vperm.xlu0 %1905, %v1057
        %v1907 = vpop.permute.xlu0 %1906
        %1908 = vset.pattern.permute.xlu0 0
        %1909 = vperm.xlu0 %1908, %v1058
        %v1910 = vpop.permute.xlu0 %1909
        %1911 = vset.pattern.permute.xlu0 0
        %1912 = vperm.xlu0 %1911, %v1059
        %v1913 = vpop.permute.xlu0 %1912
        %1914 = vset.pattern.permute.xlu0 0
        %1915 = vperm.xlu0 %1914, %v1060
        %v1916 = vpop.permute.xlu0 %1915
        %1917 = vset.pattern.permute.xlu0 0
        %1918 = vperm.xlu0 %1917, %v1061
        %v1919 = vpop.permute.xlu0 %1918
        %1920 = vset.pattern.permute.xlu0 0
        %1921 = vperm.xlu0 %1920, %v1062
        %v1922 = vpop.permute.xlu0 %1921
        %1923 = vset.pattern.permute.xlu0 0
        %1924 = vperm.xlu0 %1923, %v1063
        %v1925 = vpop.permute.xlu0 %1924
        %1926 = vset.pattern.permute.xlu0 0
        %1927 = vperm.xlu0 %1926, %v1064
        %v1928 = vpop.permute.xlu0 %1927
        %1929 = vset.pattern.permute.xlu0 0
        %1930 = vperm.xlu0 %1929, %v1065
        %v1931 = vpop.permute.xlu0 %1930
        %1932 = vset.pattern.permute.xlu0 0
        %1933 = vperm.xlu0 %1932, %v1066
        %v1934 = vpop.permute.xlu0 %1933
        %1935 = vset.pattern.permute.xlu0 0
        %1936 = vperm.xlu0 %1935, %v1067
        %v1937 = vpop.permute.xlu0 %1936
        %1938 = vset.pattern.permute.xlu0 0
        %1939 = vperm.xlu0 %1938, %v1068
        %v1940 = vpop.permute.xlu0 %1939
        %1941 = vset.pattern.permute.xlu0 0
        %1942 = vperm.xlu0 %1941, %v1069
        %v1943 = vpop.permute.xlu0 %1942
        %1944 = vset.pattern.permute.xlu0 0
        %1945 = vperm.xlu0 %1944, %v1070
        %v1946 = vpop.permute.xlu0 %1945
        %1947 = vset.pattern.permute.xlu0 0
        %1948 = vperm.xlu0 %1947, %v1071
        %v1949 = vpop.permute.xlu0 %1948
        %1950 = vset.pattern.permute.xlu0 0
        %1951 = vperm.xlu0 %1950, %v1072
        %v1952 = vpop.permute.xlu0 %1951
        %1953 = vset.pattern.permute.xlu0 0
        %1954 = vperm.xlu0 %1953, %v1073
        %v1955 = vpop.permute.xlu0 %1954
        %1956 = vset.pattern.permute.xlu0 0
        %1957 = vperm.xlu0 %1956, %v1074
        %v1958 = vpop.permute.xlu0 %1957
        %1959 = vset.pattern.permute.xlu0 0
        %1960 = vperm.xlu0 %1959, %v1075
        %v1961 = vpop.permute.xlu0 %1960
        %1962 = vset.pattern.permute.xlu0 0
        %1963 = vperm.xlu0 %1962, %v1076
        %v1964 = vpop.permute.xlu0 %1963
        %1965 = vset.pattern.permute.xlu0 0
        %1966 = vperm.xlu0 %1965, %v1077
        %v1967 = vpop.permute.xlu0 %1966
        %1968 = vset.pattern.permute.xlu0 0
        %1969 = vperm.xlu0 %1968, %v1078
        %v1970 = vpop.permute.xlu0 %1969
        %1971 = vset.pattern.permute.xlu0 0
        %1972 = vperm.xlu0 %1971, %v1079
        %v1973 = vpop.permute.xlu0 %1972
        %1974 = vset.pattern.permute.xlu0 0
        %1975 = vperm.xlu0 %1974, %v1080
        %v1976 = vpop.permute.xlu0 %1975
        %1977 = vset.pattern.permute.xlu0 0
        %1978 = vperm.xlu0 %1977, %v1081
        %v1979 = vpop.permute.xlu0 %1978
        %1980 = vset.pattern.permute.xlu0 0
        %1981 = vperm.xlu0 %1980, %v1082
        %v1982 = vpop.permute.xlu0 %1981
        %1983 = vset.pattern.permute.xlu0 0
        %1984 = vperm.xlu0 %1983, %v1083
        %v1985 = vpop.permute.xlu0 %1984
        %1986 = vset.pattern.permute.xlu0 0
        %1987 = vperm.xlu0 %1986, %v1084
        %v1988 = vpop.permute.xlu0 %1987
        %1989 = vset.pattern.permute.xlu0 0
        %1990 = vperm.xlu0 %1989, %v1085
        %v1991 = vpop.permute.xlu0 %1990
        %1992 = vset.pattern.permute.xlu0 0
        %1993 = vperm.xlu0 %1992, %v1086
        %v1994 = vpop.permute.xlu0 %1993
        %1995 = vset.pattern.permute.xlu0 0
        %1996 = vperm.xlu0 %1995, %v1087
        %v1997 = vpop.permute.xlu0 %1996
        %1998 = vset.pattern.permute.xlu0 0
        %1999 = vperm.xlu0 %1998, %v1088
        %v2000 = vpop.permute.xlu0 %1999
        %2001 = vset.pattern.permute.xlu0 0
        %2002 = vperm.xlu0 %2001, %v1089
        %v2003 = vpop.permute.xlu0 %2002
        %2004 = vset.pattern.permute.xlu0 0
        %2005 = vperm.xlu0 %2004, %v1090
        %v2006 = vpop.permute.xlu0 %2005
        %2007 = vset.pattern.permute.xlu0 0
        %2008 = vperm.xlu0 %2007, %v1091
        %v2009 = vpop.permute.xlu0 %2008
        %2010 = vset.pattern.permute.xlu0 0
        %2011 = vperm.xlu0 %2010, %v1092
        %v2012 = vpop.permute.xlu0 %2011
        %2013 = vset.pattern.permute.xlu0 0
        %2014 = vperm.xlu0 %2013, %v1093
        %v2015 = vpop.permute.xlu0 %2014
        %2016 = vset.pattern.permute.xlu0 0
        %2017 = vperm.xlu0 %2016, %v1094
        %v2018 = vpop.permute.xlu0 %2017
        %2019 = vset.pattern.permute.xlu0 0
        %2020 = vperm.xlu0 %2019, %v1095
        %v2021 = vpop.permute.xlu0 %2020
        %2022 = vset.pattern.permute.xlu0 0
        %2023 = vperm.xlu0 %2022, %v1096
        %v2024 = vpop.permute.xlu0 %2023
        %2025 = vset.pattern.permute.xlu0 0
        %2026 = vperm.xlu0 %2025, %v1097
        %v2027 = vpop.permute.xlu0 %2026
        %2028 = vset.pattern.permute.xlu0 0
        %2029 = vperm.xlu0 %2028, %v1098
        %v2030 = vpop.permute.xlu0 %2029
        %2031 = vset.pattern.permute.xlu0 0
        %2032 = vperm.xlu0 %2031, %v1099
        %v2033 = vpop.permute.xlu0 %2032
        %2034 = vset.pattern.permute.xlu0 0
        %2035 = vperm.xlu0 %2034, %v1100
        %v2036 = vpop.permute.xlu0 %2035
        %2037 = vset.pattern.permute.xlu0 0
        %2038 = vperm.xlu0 %2037, %v1101
        %v2039 = vpop.permute.xlu0 %2038
        %2040 = vset.pattern.permute.xlu0 0
        %2041 = vperm.xlu0 %2040, %v1102
        %v2042 = vpop.permute.xlu0 %2041
        %2043 = vset.pattern.permute.xlu0 0
        %2044 = vperm.xlu0 %2043, %v1103
        %v2045 = vpop.permute.xlu0 %2044
        %2046 = vset.pattern.permute.xlu0 0
        %2047 = vperm.xlu0 %2046, %v1104
        %v2048 = vpop.permute.xlu0 %2047
        %2049 = vset.pattern.permute.xlu0 0
        %2050 = vperm.xlu0 %2049, %v1105
        %v2051 = vpop.permute.xlu0 %2050
        %2052 = vset.pattern.permute.xlu0 0
        %2053 = vperm.xlu0 %2052, %v1106
        %v2054 = vpop.permute.xlu0 %2053
        %2055 = vset.pattern.permute.xlu0 0
        %2056 = vperm.xlu0 %2055, %v1107
        %v2057 = vpop.permute.xlu0 %2056
        %2058 = vset.pattern.permute.xlu0 0
        %2059 = vperm.xlu0 %2058, %v1108
        %v2060 = vpop.permute.xlu0 %2059
        %2061 = vset.pattern.permute.xlu0 0
        %2062 = vperm.xlu0 %2061, %v1109
        %v2063 = vpop.permute.xlu0 %2062
        %2064 = vset.pattern.permute.xlu0 0
        %2065 = vperm.xlu0 %2064, %v1110
        %v2066 = vpop.permute.xlu0 %2065
        %2067 = vset.pattern.permute.xlu0 0
        %2068 = vperm.xlu0 %2067, %v1111
        %v2069 = vpop.permute.xlu0 %2068
        %2070 = vset.pattern.permute.xlu0 0
        %2071 = vperm.xlu0 %2070, %v1112
        %v2072 = vpop.permute.xlu0 %2071
        %2073 = vset.pattern.permute.xlu0 0
        %2074 = vperm.xlu0 %2073, %v1113
        %v2075 = vpop.permute.xlu0 %2074
        %2076 = vset.pattern.permute.xlu0 0
        %2077 = vperm.xlu0 %2076, %v1114
        %v2078 = vpop.permute.xlu0 %2077
        %2079 = vset.pattern.permute.xlu0 0
        %2080 = vperm.xlu0 %2079, %v1115
        %v2081 = vpop.permute.xlu0 %2080
        %2082 = vset.pattern.permute.xlu0 0
        %2083 = vperm.xlu0 %2082, %v1116
        %v2084 = vpop.permute.xlu0 %2083
        %2085 = vset.pattern.permute.xlu0 0
        %2086 = vperm.xlu0 %2085, %v1117
        %v2087 = vpop.permute.xlu0 %2086
        %2088 = vset.pattern.permute.xlu0 0
        %2089 = vperm.xlu0 %2088, %v1118
        %v2090 = vpop.permute.xlu0 %2089
        %2091 = vset.pattern.permute.xlu0 0
        %2092 = vperm.xlu0 %2091, %v1119
        %v2093 = vpop.permute.xlu0 %2092
        %2094 = vset.pattern.permute.xlu0 0
        %2095 = vperm.xlu0 %2094, %v1120
        %v2096 = vpop.permute.xlu0 %2095
        %2097 = vset.pattern.permute.xlu0 0
        %2098 = vperm.xlu0 %2097, %v1121
        %v2099 = vpop.permute.xlu0 %2098
        %2100 = vset.pattern.permute.xlu0 0
        %2101 = vperm.xlu0 %2100, %v1122
        %v2102 = vpop.permute.xlu0 %2101
        %2103 = vset.pattern.permute.xlu0 0
        %2104 = vperm.xlu0 %2103, %v1123
        %v2105 = vpop.permute.xlu0 %2104
        %2106 = vset.pattern.permute.xlu0 0
        %2107 = vperm.xlu0 %2106, %v1124
        %v2108 = vpop.permute.xlu0 %2107
        %2109 = vset.pattern.permute.xlu0 0
        %2110 = vperm.xlu0 %2109, %v1125
        %v2111 = vpop.permute.xlu0 %2110
        %2112 = vset.pattern.permute.xlu0 0
        %2113 = vperm.xlu0 %2112, %v1126
        %v2114 = vpop.permute.xlu0 %2113
        %2115 = vset.pattern.permute.xlu0 0
        %2116 = vperm.xlu0 %2115, %v1127
        %v2117 = vpop.permute.xlu0 %2116
        %2118 = vset.pattern.permute.xlu0 0
        %2119 = vperm.xlu0 %2118, %v1128
        %v2120 = vpop.permute.xlu0 %2119
        %2121 = vset.pattern.permute.xlu0 0
        %2122 = vperm.xlu0 %2121, %v1129
        %v2123 = vpop.permute.xlu0 %2122
        %2124 = vset.pattern.permute.xlu0 0
        %2125 = vperm.xlu0 %2124, %v1130
        %v2126 = vpop.permute.xlu0 %2125
        %2127 = vset.pattern.permute.xlu0 0
        %2128 = vperm.xlu0 %2127, %v1131
        %v2129 = vpop.permute.xlu0 %2128
        %2130 = vset.pattern.permute.xlu0 0
        %2131 = vperm.xlu0 %2130, %v1132
        %v2132 = vpop.permute.xlu0 %2131
        %2133 = vset.pattern.permute.xlu0 0
        %2134 = vperm.xlu0 %2133, %v1133
        %v2135 = vpop.permute.xlu0 %2134
        %2136 = vset.pattern.permute.xlu0 0
        %2137 = vperm.xlu0 %2136, %v1134
        %v2138 = vpop.permute.xlu0 %2137
        %2139 = vset.pattern.permute.xlu0 0
        %2140 = vperm.xlu0 %2139, %v1135
        %v2141 = vpop.permute.xlu0 %2140
        %2142 = vset.pattern.permute.xlu0 0
        %2143 = vperm.xlu0 %2142, %v1136
        %v2144 = vpop.permute.xlu0 %2143
        %2145 = vset.pattern.permute.xlu0 0
        %2146 = vperm.xlu0 %2145, %v1137
        %v2147 = vpop.permute.xlu0 %2146
        %2148 = vset.pattern.permute.xlu0 0
        %2149 = vperm.xlu0 %2148, %v1138
        %v2150 = vpop.permute.xlu0 %2149
        %2151 = vset.pattern.permute.xlu0 0
        %2152 = vperm.xlu0 %2151, %v1139
        %v2153 = vpop.permute.xlu0 %2152
        %2154 = vset.pattern.permute.xlu0 0
        %2155 = vperm.xlu0 %2154, %v1140
        %v2156 = vpop.permute.xlu0 %2155
        %2157 = vset.pattern.permute.xlu0 0
        %2158 = vperm.xlu0 %2157, %v1141
        %v2159 = vpop.permute.xlu0 %2158
        %2160 = vset.pattern.permute.xlu0 0
        %2161 = vperm.xlu0 %2160, %v1142
        %v2162 = vpop.permute.xlu0 %2161
        %2163 = vset.pattern.permute.xlu0 0
        %2164 = vperm.xlu0 %2163, %v1143
        %v2165 = vpop.permute.xlu0 %2164
        %2166 = vset.pattern.permute.xlu0 0
        %2167 = vperm.xlu0 %2166, %v1144
        %v2168 = vpop.permute.xlu0 %2167
        %v2169 = vlaneseq
        %v2170 = vand.u32 %v2169, 127
        %v2171 = vlaneseq
        %v2172 = vshrl.u32 %v2171, 7
        %v2173 = vsub.s32 %v2170, %v2172
        %v2174 = vrot.slane %v1403, %v2173
        %v2175 = vadd.s32 %v2170, 4294967288
        %v2176 = vlaneseq
        %v2177 = vshrl.u32 %v2176, 7
        %v2178 = vsub.s32 %v2175, %v2177
        %v2179 = vrot.slane %v1406, %v2178
        %vm2180 = vcmask 130112
        %v2181 = vsel %vm2180, %v2179, %v2174
        %v2182 = vadd.s32 %v2170, 4294967280
        %v2183 = vlaneseq
        %v2184 = vshrl.u32 %v2183, 7
        %v2185 = vsub.s32 %v2182, %v2184
        %v2186 = vrot.slane %v1409, %v2185
        %vm2187 = vcmask 195712
        %v2188 = vsel %vm2187, %v2186, %v2181
        %v2189 = vadd.s32 %v2170, 4294967272
        %v2190 = vlaneseq
        %v2191 = vshrl.u32 %v2190, 7
        %v2192 = vsub.s32 %v2189, %v2191
        %v2193 = vrot.slane %v1412, %v2192
        %vm2194 = vcmask 261312
        %v2195 = vsel %vm2194, %v2193, %v2188
        %v2196 = vadd.s32 %v2170, 4294967264
        %v2197 = vlaneseq
        %v2198 = vshrl.u32 %v2197, 7
        %v2199 = vsub.s32 %v2196, %v2198
        %v2200 = vrot.slane %v1415, %v2199
        %vm2201 = vcmask 326912
        %v2202 = vsel %vm2201, %v2200, %v2195
        %v2203 = vadd.s32 %v2170, 4294967256
        %v2204 = vlaneseq
        %v2205 = vshrl.u32 %v2204, 7
        %v2206 = vsub.s32 %v2203, %v2205
        %v2207 = vrot.slane %v1418, %v2206
        %vm2208 = vcmask 392512
        %v2209 = vsel %vm2208, %v2207, %v2202
        %v2210 = vadd.s32 %v2170, 4294967248
        %v2211 = vlaneseq
        %v2212 = vshrl.u32 %v2211, 7
        %v2213 = vsub.s32 %v2210, %v2212
        %v2214 = vrot.slane %v1421, %v2213
        %vm2215 = vcmask 458112
        %v2216 = vsel %vm2215, %v2214, %v2209
        %v2217 = vadd.s32 %v2170, 4294967240
        %v2218 = vlaneseq
        %v2219 = vshrl.u32 %v2218, 7
        %v2220 = vsub.s32 %v2217, %v2219
        %v2221 = vrot.slane %v1424, %v2220
        %vm2222 = vcmask 523712
        %v2223 = vsel %vm2222, %v2221, %v2216
        %v2224 = vadd.s32 %v2170, 4294967232
        %v2225 = vlaneseq
        %v2226 = vshrl.u32 %v2225, 7
        %v2227 = vsub.s32 %v2224, %v2226
        %v2228 = vrot.slane %v1427, %v2227
        %vm2229 = vcmask 589312
        %v2230 = vsel %vm2229, %v2228, %v2223
        %v2231 = vadd.s32 %v2170, 4294967224
        %v2232 = vlaneseq
        %v2233 = vshrl.u32 %v2232, 7
        %v2234 = vsub.s32 %v2231, %v2233
        %v2235 = vrot.slane %v1430, %v2234
        %vm2236 = vcmask 654912
        %v2237 = vsel %vm2236, %v2235, %v2230
        %v2238 = vadd.s32 %v2170, 4294967216
        %v2239 = vlaneseq
        %v2240 = vshrl.u32 %v2239, 7
        %v2241 = vsub.s32 %v2238, %v2240
        %v2242 = vrot.slane %v1433, %v2241
        %vm2243 = vcmask 720512
        %v2244 = vsel %vm2243, %v2242, %v2237
        %v2245 = vadd.s32 %v2170, 4294967208
        %v2246 = vlaneseq
        %v2247 = vshrl.u32 %v2246, 7
        %v2248 = vsub.s32 %v2245, %v2247
        %v2249 = vrot.slane %v1436, %v2248
        %vm2250 = vcmask 786112
        %v2251 = vsel %vm2250, %v2249, %v2244
        %v2252 = vadd.s32 %v2170, 4294967200
        %v2253 = vlaneseq
        %v2254 = vshrl.u32 %v2253, 7
        %v2255 = vsub.s32 %v2252, %v2254
        %v2256 = vrot.slane %v1439, %v2255
        %vm2257 = vcmask 851712
        %v2258 = vsel %vm2257, %v2256, %v2251
        %v2259 = vadd.s32 %v2170, 4294967192
        %v2260 = vlaneseq
        %v2261 = vshrl.u32 %v2260, 7
        %v2262 = vsub.s32 %v2259, %v2261
        %v2263 = vrot.slane %v1442, %v2262
        %vm2264 = vcmask 917312
        %v2265 = vsel %vm2264, %v2263, %v2258
        %v2266 = vadd.s32 %v2170, 4294967184
        %v2267 = vlaneseq
        %v2268 = vshrl.u32 %v2267, 7
        %v2269 = vsub.s32 %v2266, %v2268
        %v2270 = vrot.slane %v1445, %v2269
        %vm2271 = vcmask 982912
        %v2272 = vsel %vm2271, %v2270, %v2265
        %v2273 = vadd.s32 %v2170, 4294967176
        %v2274 = vlaneseq
        %v2275 = vshrl.u32 %v2274, 7
        %v2276 = vsub.s32 %v2273, %v2275
        %v2277 = vrot.slane %v1448, %v2276
        %vm2278 = vcmask 1048512
        %v2279 = vsel %vm2278, %v2277, %v2272
        %v2280 = vlaneseq
        %v2281 = vshrl.u32 %v2280, 7
        %v2282 = vsub.s32 %v2170, %v2281
        %v2283 = vrot.slane %v1451, %v2282
        %v2284 = vlaneseq
        %v2285 = vshrl.u32 %v2284, 7
        %v2286 = vsub.s32 %v2175, %v2285
        %v2287 = vrot.slane %v1454, %v2286
        %v2288 = vsel %vm2180, %v2287, %v2283
        %v2289 = vlaneseq
        %v2290 = vshrl.u32 %v2289, 7
        %v2291 = vsub.s32 %v2182, %v2290
        %v2292 = vrot.slane %v1457, %v2291
        %v2293 = vsel %vm2187, %v2292, %v2288
        %v2294 = vlaneseq
        %v2295 = vshrl.u32 %v2294, 7
        %v2296 = vsub.s32 %v2189, %v2295
        %v2297 = vrot.slane %v1460, %v2296
        %v2298 = vsel %vm2194, %v2297, %v2293
        %v2299 = vlaneseq
        %v2300 = vshrl.u32 %v2299, 7
        %v2301 = vsub.s32 %v2196, %v2300
        %v2302 = vrot.slane %v1463, %v2301
        %v2303 = vsel %vm2201, %v2302, %v2298
        %v2304 = vlaneseq
        %v2305 = vshrl.u32 %v2304, 7
        %v2306 = vsub.s32 %v2203, %v2305
        %v2307 = vrot.slane %v1466, %v2306
        %v2308 = vsel %vm2208, %v2307, %v2303
        %v2309 = vlaneseq
        %v2310 = vshrl.u32 %v2309, 7
        %v2311 = vsub.s32 %v2210, %v2310
        %v2312 = vrot.slane %v1469, %v2311
        %v2313 = vsel %vm2215, %v2312, %v2308
        %v2314 = vlaneseq
        %v2315 = vshrl.u32 %v2314, 7
        %v2316 = vsub.s32 %v2217, %v2315
        %v2317 = vrot.slane %v1472, %v2316
        %v2318 = vsel %vm2222, %v2317, %v2313
        %v2319 = vlaneseq
        %v2320 = vshrl.u32 %v2319, 7
        %v2321 = vsub.s32 %v2224, %v2320
        %v2322 = vrot.slane %v1475, %v2321
        %v2323 = vsel %vm2229, %v2322, %v2318
        %v2324 = vlaneseq
        %v2325 = vshrl.u32 %v2324, 7
        %v2326 = vsub.s32 %v2231, %v2325
        %v2327 = vrot.slane %v1478, %v2326
        %v2328 = vsel %vm2236, %v2327, %v2323
        %v2329 = vlaneseq
        %v2330 = vshrl.u32 %v2329, 7
        %v2331 = vsub.s32 %v2238, %v2330
        %v2332 = vrot.slane %v1481, %v2331
        %v2333 = vsel %vm2243, %v2332, %v2328
        %v2334 = vlaneseq
        %v2335 = vshrl.u32 %v2334, 7
        %v2336 = vsub.s32 %v2245, %v2335
        %v2337 = vrot.slane %v1484, %v2336
        %v2338 = vsel %vm2250, %v2337, %v2333
        %v2339 = vlaneseq
        %v2340 = vshrl.u32 %v2339, 7
        %v2341 = vsub.s32 %v2252, %v2340
        %v2342 = vrot.slane %v1487, %v2341
        %v2343 = vsel %vm2257, %v2342, %v2338
        %v2344 = vlaneseq
        %v2345 = vshrl.u32 %v2344, 7
        %v2346 = vsub.s32 %v2259, %v2345
        %v2347 = vrot.slane %v1490, %v2346
        %v2348 = vsel %vm2264, %v2347, %v2343
        %v2349 = vlaneseq
        %v2350 = vshrl.u32 %v2349, 7
        %v2351 = vsub.s32 %v2266, %v2350
        %v2352 = vrot.slane %v1493, %v2351
        %v2353 = vsel %vm2271, %v2352, %v2348
        %v2354 = vlaneseq
        %v2355 = vshrl.u32 %v2354, 7
        %v2356 = vsub.s32 %v2273, %v2355
        %v2357 = vrot.slane %v1496, %v2356
        %v2358 = vsel %vm2278, %v2357, %v2353
        %v2359 = vlaneseq
        %v2360 = vshrl.u32 %v2359, 7
        %v2361 = vsub.s32 %v2170, %v2360
        %v2362 = vrot.slane %v1499, %v2361
        %v2363 = vlaneseq
        %v2364 = vshrl.u32 %v2363, 7
        %v2365 = vsub.s32 %v2175, %v2364
        %v2366 = vrot.slane %v1502, %v2365
        %v2367 = vsel %vm2180, %v2366, %v2362
        %v2368 = vlaneseq
        %v2369 = vshrl.u32 %v2368, 7
        %v2370 = vsub.s32 %v2182, %v2369
        %v2371 = vrot.slane %v1505, %v2370
        %v2372 = vsel %vm2187, %v2371, %v2367
        %v2373 = vlaneseq
        %v2374 = vshrl.u32 %v2373, 7
        %v2375 = vsub.s32 %v2189, %v2374
        %v2376 = vrot.slane %v1508, %v2375
        %v2377 = vsel %vm2194, %v2376, %v2372
        %v2378 = vlaneseq
        %v2379 = vshrl.u32 %v2378, 7
        %v2380 = vsub.s32 %v2196, %v2379
        %v2381 = vrot.slane %v1511, %v2380
        %v2382 = vsel %vm2201, %v2381, %v2377
        %v2383 = vlaneseq
        %v2384 = vshrl.u32 %v2383, 7
        %v2385 = vsub.s32 %v2203, %v2384
        %v2386 = vrot.slane %v1514, %v2385
        %v2387 = vsel %vm2208, %v2386, %v2382
        %v2388 = vlaneseq
        %v2389 = vshrl.u32 %v2388, 7
        %v2390 = vsub.s32 %v2210, %v2389
        %v2391 = vrot.slane %v1517, %v2390
        %v2392 = vsel %vm2215, %v2391, %v2387
        %v2393 = vlaneseq
        %v2394 = vshrl.u32 %v2393, 7
        %v2395 = vsub.s32 %v2217, %v2394
        %v2396 = vrot.slane %v1520, %v2395
        %v2397 = vsel %vm2222, %v2396, %v2392
        %v2398 = vlaneseq
        %v2399 = vshrl.u32 %v2398, 7
        %v2400 = vsub.s32 %v2224, %v2399
        %v2401 = vrot.slane %v1523, %v2400
        %v2402 = vsel %vm2229, %v2401, %v2397
        %v2403 = vlaneseq
        %v2404 = vshrl.u32 %v2403, 7
        %v2405 = vsub.s32 %v2231, %v2404
        %v2406 = vrot.slane %v1526, %v2405
        %v2407 = vsel %vm2236, %v2406, %v2402
        %v2408 = vlaneseq
        %v2409 = vshrl.u32 %v2408, 7
        %v2410 = vsub.s32 %v2238, %v2409
        %v2411 = vrot.slane %v1529, %v2410
        %v2412 = vsel %vm2243, %v2411, %v2407
        %v2413 = vlaneseq
        %v2414 = vshrl.u32 %v2413, 7
        %v2415 = vsub.s32 %v2245, %v2414
        %v2416 = vrot.slane %v1532, %v2415
        %v2417 = vsel %vm2250, %v2416, %v2412
        %v2418 = vlaneseq
        %v2419 = vshrl.u32 %v2418, 7
        %v2420 = vsub.s32 %v2252, %v2419
        %v2421 = vrot.slane %v1535, %v2420
        %v2422 = vsel %vm2257, %v2421, %v2417
        %v2423 = vlaneseq
        %v2424 = vshrl.u32 %v2423, 7
        %v2425 = vsub.s32 %v2259, %v2424
        %v2426 = vrot.slane %v1538, %v2425
        %v2427 = vsel %vm2264, %v2426, %v2422
        %v2428 = vlaneseq
        %v2429 = vshrl.u32 %v2428, 7
        %v2430 = vsub.s32 %v2266, %v2429
        %v2431 = vrot.slane %v1541, %v2430
        %v2432 = vsel %vm2271, %v2431, %v2427
        %v2433 = vlaneseq
        %v2434 = vshrl.u32 %v2433, 7
        %v2435 = vsub.s32 %v2273, %v2434
        %v2436 = vrot.slane %v1544, %v2435
        %v2437 = vsel %vm2278, %v2436, %v2432
        %v2438 = vlaneseq
        %v2439 = vshrl.u32 %v2438, 7
        %v2440 = vsub.s32 %v2170, %v2439
        %v2441 = vrot.slane %v1547, %v2440
        %v2442 = vlaneseq
        %v2443 = vshrl.u32 %v2442, 7
        %v2444 = vsub.s32 %v2175, %v2443
        %v2445 = vrot.slane %v1550, %v2444
        %v2446 = vsel %vm2180, %v2445, %v2441
        %v2447 = vlaneseq
        %v2448 = vshrl.u32 %v2447, 7
        %v2449 = vsub.s32 %v2182, %v2448
        %v2450 = vrot.slane %v1553, %v2449
        %v2451 = vsel %vm2187, %v2450, %v2446
        %v2452 = vlaneseq
        %v2453 = vshrl.u32 %v2452, 7
        %v2454 = vsub.s32 %v2189, %v2453
        %v2455 = vrot.slane %v1556, %v2454
        %v2456 = vsel %vm2194, %v2455, %v2451
        %v2457 = vlaneseq
        %v2458 = vshrl.u32 %v2457, 7
        %v2459 = vsub.s32 %v2196, %v2458
        %v2460 = vrot.slane %v1559, %v2459
        %v2461 = vsel %vm2201, %v2460, %v2456
        %v2462 = vlaneseq
        %v2463 = vshrl.u32 %v2462, 7
        %v2464 = vsub.s32 %v2203, %v2463
        %v2465 = vrot.slane %v1562, %v2464
        %v2466 = vsel %vm2208, %v2465, %v2461
        %v2467 = vlaneseq
        %v2468 = vshrl.u32 %v2467, 7
        %v2469 = vsub.s32 %v2210, %v2468
        %v2470 = vrot.slane %v1565, %v2469
        %v2471 = vsel %vm2215, %v2470, %v2466
        %v2472 = vlaneseq
        %v2473 = vshrl.u32 %v2472, 7
        %v2474 = vsub.s32 %v2217, %v2473
        %v2475 = vrot.slane %v1568, %v2474
        %v2476 = vsel %vm2222, %v2475, %v2471
        %v2477 = vlaneseq
        %v2478 = vshrl.u32 %v2477, 7
        %v2479 = vsub.s32 %v2224, %v2478
        %v2480 = vrot.slane %v1571, %v2479
        %v2481 = vsel %vm2229, %v2480, %v2476
        %v2482 = vlaneseq
        %v2483 = vshrl.u32 %v2482, 7
        %v2484 = vsub.s32 %v2231, %v2483
        %v2485 = vrot.slane %v1574, %v2484
        %v2486 = vsel %vm2236, %v2485, %v2481
        %v2487 = vlaneseq
        %v2488 = vshrl.u32 %v2487, 7
        %v2489 = vsub.s32 %v2238, %v2488
        %v2490 = vrot.slane %v1577, %v2489
        %v2491 = vsel %vm2243, %v2490, %v2486
        %v2492 = vlaneseq
        %v2493 = vshrl.u32 %v2492, 7
        %v2494 = vsub.s32 %v2245, %v2493
        %v2495 = vrot.slane %v1580, %v2494
        %v2496 = vsel %vm2250, %v2495, %v2491
        %v2497 = vlaneseq
        %v2498 = vshrl.u32 %v2497, 7
        %v2499 = vsub.s32 %v2252, %v2498
        %v2500 = vrot.slane %v1583, %v2499
        %v2501 = vsel %vm2257, %v2500, %v2496
        %v2502 = vlaneseq
        %v2503 = vshrl.u32 %v2502, 7
        %v2504 = vsub.s32 %v2259, %v2503
        %v2505 = vrot.slane %v1586, %v2504
        %v2506 = vsel %vm2264, %v2505, %v2501
        %v2507 = vlaneseq
        %v2508 = vshrl.u32 %v2507, 7
        %v2509 = vsub.s32 %v2266, %v2508
        %v2510 = vrot.slane %v1589, %v2509
        %v2511 = vsel %vm2271, %v2510, %v2506
        %v2512 = vlaneseq
        %v2513 = vshrl.u32 %v2512, 7
        %v2514 = vsub.s32 %v2273, %v2513
        %v2515 = vrot.slane %v1592, %v2514
        %v2516 = vsel %vm2278, %v2515, %v2511
        %v2517 = vlaneseq
        %v2518 = vshrl.u32 %v2517, 7
        %v2519 = vsub.s32 %v2170, %v2518
        %v2520 = vrot.slane %v1595, %v2519
        %v2521 = vlaneseq
        %v2522 = vshrl.u32 %v2521, 7
        %v2523 = vsub.s32 %v2175, %v2522
        %v2524 = vrot.slane %v1598, %v2523
        %v2525 = vsel %vm2180, %v2524, %v2520
        %v2526 = vlaneseq
        %v2527 = vshrl.u32 %v2526, 7
        %v2528 = vsub.s32 %v2182, %v2527
        %v2529 = vrot.slane %v1601, %v2528
        %v2530 = vsel %vm2187, %v2529, %v2525
        %v2531 = vlaneseq
        %v2532 = vshrl.u32 %v2531, 7
        %v2533 = vsub.s32 %v2189, %v2532
        %v2534 = vrot.slane %v1604, %v2533
        %v2535 = vsel %vm2194, %v2534, %v2530
        %v2536 = vlaneseq
        %v2537 = vshrl.u32 %v2536, 7
        %v2538 = vsub.s32 %v2196, %v2537
        %v2539 = vrot.slane %v1607, %v2538
        %v2540 = vsel %vm2201, %v2539, %v2535
        %v2541 = vlaneseq
        %v2542 = vshrl.u32 %v2541, 7
        %v2543 = vsub.s32 %v2203, %v2542
        %v2544 = vrot.slane %v1610, %v2543
        %v2545 = vsel %vm2208, %v2544, %v2540
        %v2546 = vlaneseq
        %v2547 = vshrl.u32 %v2546, 7
        %v2548 = vsub.s32 %v2210, %v2547
        %v2549 = vrot.slane %v1613, %v2548
        %v2550 = vsel %vm2215, %v2549, %v2545
        %v2551 = vlaneseq
        %v2552 = vshrl.u32 %v2551, 7
        %v2553 = vsub.s32 %v2217, %v2552
        %v2554 = vrot.slane %v1616, %v2553
        %v2555 = vsel %vm2222, %v2554, %v2550
        %v2556 = vlaneseq
        %v2557 = vshrl.u32 %v2556, 7
        %v2558 = vsub.s32 %v2224, %v2557
        %v2559 = vrot.slane %v1619, %v2558
        %v2560 = vsel %vm2229, %v2559, %v2555
        %v2561 = vlaneseq
        %v2562 = vshrl.u32 %v2561, 7
        %v2563 = vsub.s32 %v2231, %v2562
        %v2564 = vrot.slane %v1622, %v2563
        %v2565 = vsel %vm2236, %v2564, %v2560
        %v2566 = vlaneseq
        %v2567 = vshrl.u32 %v2566, 7
        %v2568 = vsub.s32 %v2238, %v2567
        %v2569 = vrot.slane %v1625, %v2568
        %v2570 = vsel %vm2243, %v2569, %v2565
        %v2571 = vlaneseq
        %v2572 = vshrl.u32 %v2571, 7
        %v2573 = vsub.s32 %v2245, %v2572
        %v2574 = vrot.slane %v1628, %v2573
        %v2575 = vsel %vm2250, %v2574, %v2570
        %v2576 = vlaneseq
        %v2577 = vshrl.u32 %v2576, 7
        %v2578 = vsub.s32 %v2252, %v2577
        %v2579 = vrot.slane %v1631, %v2578
        %v2580 = vsel %vm2257, %v2579, %v2575
        %v2581 = vlaneseq
        %v2582 = vshrl.u32 %v2581, 7
        %v2583 = vsub.s32 %v2259, %v2582
        %v2584 = vrot.slane %v1634, %v2583
        %v2585 = vsel %vm2264, %v2584, %v2580
        %v2586 = vlaneseq
        %v2587 = vshrl.u32 %v2586, 7
        %v2588 = vsub.s32 %v2266, %v2587
        %v2589 = vrot.slane %v1637, %v2588
        %v2590 = vsel %vm2271, %v2589, %v2585
        %v2591 = vlaneseq
        %v2592 = vshrl.u32 %v2591, 7
        %v2593 = vsub.s32 %v2273, %v2592
        %v2594 = vrot.slane %v1640, %v2593
        %v2595 = vsel %vm2278, %v2594, %v2590
        %v2596 = vlaneseq
        %v2597 = vshrl.u32 %v2596, 7
        %v2598 = vsub.s32 %v2170, %v2597
        %v2599 = vrot.slane %v1643, %v2598
        %v2600 = vlaneseq
        %v2601 = vshrl.u32 %v2600, 7
        %v2602 = vsub.s32 %v2175, %v2601
        %v2603 = vrot.slane %v1646, %v2602
        %v2604 = vsel %vm2180, %v2603, %v2599
        %v2605 = vlaneseq
        %v2606 = vshrl.u32 %v2605, 7
        %v2607 = vsub.s32 %v2182, %v2606
        %v2608 = vrot.slane %v1649, %v2607
        %v2609 = vsel %vm2187, %v2608, %v2604
        %v2610 = vlaneseq
        %v2611 = vshrl.u32 %v2610, 7
        %v2612 = vsub.s32 %v2189, %v2611
        %v2613 = vrot.slane %v1652, %v2612
        %v2614 = vsel %vm2194, %v2613, %v2609
        %v2615 = vlaneseq
        %v2616 = vshrl.u32 %v2615, 7
        %v2617 = vsub.s32 %v2196, %v2616
        %v2618 = vrot.slane %v1655, %v2617
        %v2619 = vsel %vm2201, %v2618, %v2614
        %v2620 = vlaneseq
        %v2621 = vshrl.u32 %v2620, 7
        %v2622 = vsub.s32 %v2203, %v2621
        %v2623 = vrot.slane %v1658, %v2622
        %v2624 = vsel %vm2208, %v2623, %v2619
        %v2625 = vlaneseq
        %v2626 = vshrl.u32 %v2625, 7
        %v2627 = vsub.s32 %v2210, %v2626
        %v2628 = vrot.slane %v1661, %v2627
        %v2629 = vsel %vm2215, %v2628, %v2624
        %v2630 = vlaneseq
        %v2631 = vshrl.u32 %v2630, 7
        %v2632 = vsub.s32 %v2217, %v2631
        %v2633 = vrot.slane %v1664, %v2632
        %v2634 = vsel %vm2222, %v2633, %v2629
        %v2635 = vlaneseq
        %v2636 = vshrl.u32 %v2635, 7
        %v2637 = vsub.s32 %v2224, %v2636
        %v2638 = vrot.slane %v1667, %v2637
        %v2639 = vsel %vm2229, %v2638, %v2634
        %v2640 = vlaneseq
        %v2641 = vshrl.u32 %v2640, 7
        %v2642 = vsub.s32 %v2231, %v2641
        %v2643 = vrot.slane %v1670, %v2642
        %v2644 = vsel %vm2236, %v2643, %v2639
        %v2645 = vlaneseq
        %v2646 = vshrl.u32 %v2645, 7
        %v2647 = vsub.s32 %v2238, %v2646
        %v2648 = vrot.slane %v1673, %v2647
        %v2649 = vsel %vm2243, %v2648, %v2644
        %v2650 = vlaneseq
        %v2651 = vshrl.u32 %v2650, 7
        %v2652 = vsub.s32 %v2245, %v2651
        %v2653 = vrot.slane %v1676, %v2652
        %v2654 = vsel %vm2250, %v2653, %v2649
        %v2655 = vlaneseq
        %v2656 = vshrl.u32 %v2655, 7
        %v2657 = vsub.s32 %v2252, %v2656
        %v2658 = vrot.slane %v1679, %v2657
        %v2659 = vsel %vm2257, %v2658, %v2654
        %v2660 = vlaneseq
        %v2661 = vshrl.u32 %v2660, 7
        %v2662 = vsub.s32 %v2259, %v2661
        %v2663 = vrot.slane %v1682, %v2662
        %v2664 = vsel %vm2264, %v2663, %v2659
        %v2665 = vlaneseq
        %v2666 = vshrl.u32 %v2665, 7
        %v2667 = vsub.s32 %v2266, %v2666
        %v2668 = vrot.slane %v1685, %v2667
        %v2669 = vsel %vm2271, %v2668, %v2664
        %v2670 = vlaneseq
        %v2671 = vshrl.u32 %v2670, 7
        %v2672 = vsub.s32 %v2273, %v2671
        %v2673 = vrot.slane %v1688, %v2672
        %v2674 = vsel %vm2278, %v2673, %v2669
        %v2675 = vlaneseq
        %v2676 = vshrl.u32 %v2675, 7
        %v2677 = vsub.s32 %v2170, %v2676
        %v2678 = vrot.slane %v1691, %v2677
        %v2679 = vlaneseq
        %v2680 = vshrl.u32 %v2679, 7
        %v2681 = vsub.s32 %v2175, %v2680
        %v2682 = vrot.slane %v1694, %v2681
        %v2683 = vsel %vm2180, %v2682, %v2678
        %v2684 = vlaneseq
        %v2685 = vshrl.u32 %v2684, 7
        %v2686 = vsub.s32 %v2182, %v2685
        %v2687 = vrot.slane %v1697, %v2686
        %v2688 = vsel %vm2187, %v2687, %v2683
        %v2689 = vlaneseq
        %v2690 = vshrl.u32 %v2689, 7
        %v2691 = vsub.s32 %v2189, %v2690
        %v2692 = vrot.slane %v1700, %v2691
        %v2693 = vsel %vm2194, %v2692, %v2688
        %v2694 = vlaneseq
        %v2695 = vshrl.u32 %v2694, 7
        %v2696 = vsub.s32 %v2196, %v2695
        %v2697 = vrot.slane %v1703, %v2696
        %v2698 = vsel %vm2201, %v2697, %v2693
        %v2699 = vlaneseq
        %v2700 = vshrl.u32 %v2699, 7
        %v2701 = vsub.s32 %v2203, %v2700
        %v2702 = vrot.slane %v1706, %v2701
        %v2703 = vsel %vm2208, %v2702, %v2698
        %v2704 = vlaneseq
        %v2705 = vshrl.u32 %v2704, 7
        %v2706 = vsub.s32 %v2210, %v2705
        %v2707 = vrot.slane %v1709, %v2706
        %v2708 = vsel %vm2215, %v2707, %v2703
        %v2709 = vlaneseq
        %v2710 = vshrl.u32 %v2709, 7
        %v2711 = vsub.s32 %v2217, %v2710
        %v2712 = vrot.slane %v1712, %v2711
        %v2713 = vsel %vm2222, %v2712, %v2708
        %v2714 = vlaneseq
        %v2715 = vshrl.u32 %v2714, 7
        %v2716 = vsub.s32 %v2224, %v2715
        %v2717 = vrot.slane %v1715, %v2716
        %v2718 = vsel %vm2229, %v2717, %v2713
        %v2719 = vlaneseq
        %v2720 = vshrl.u32 %v2719, 7
        %v2721 = vsub.s32 %v2231, %v2720
        %v2722 = vrot.slane %v1718, %v2721
        %v2723 = vsel %vm2236, %v2722, %v2718
        %v2724 = vlaneseq
        %v2725 = vshrl.u32 %v2724, 7
        %v2726 = vsub.s32 %v2238, %v2725
        %v2727 = vrot.slane %v1721, %v2726
        %v2728 = vsel %vm2243, %v2727, %v2723
        %v2729 = vlaneseq
        %v2730 = vshrl.u32 %v2729, 7
        %v2731 = vsub.s32 %v2245, %v2730
        %v2732 = vrot.slane %v1724, %v2731
        %v2733 = vsel %vm2250, %v2732, %v2728
        %v2734 = vlaneseq
        %v2735 = vshrl.u32 %v2734, 7
        %v2736 = vsub.s32 %v2252, %v2735
        %v2737 = vrot.slane %v1727, %v2736
        %v2738 = vsel %vm2257, %v2737, %v2733
        %v2739 = vlaneseq
        %v2740 = vshrl.u32 %v2739, 7
        %v2741 = vsub.s32 %v2259, %v2740
        %v2742 = vrot.slane %v1730, %v2741
        %v2743 = vsel %vm2264, %v2742, %v2738
        %v2744 = vlaneseq
        %v2745 = vshrl.u32 %v2744, 7
        %v2746 = vsub.s32 %v2266, %v2745
        %v2747 = vrot.slane %v1733, %v2746
        %v2748 = vsel %vm2271, %v2747, %v2743
        %v2749 = vlaneseq
        %v2750 = vshrl.u32 %v2749, 7
        %v2751 = vsub.s32 %v2273, %v2750
        %v2752 = vrot.slane %v1736, %v2751
        %v2753 = vsel %vm2278, %v2752, %v2748
        %v2754 = vlaneseq
        %v2755 = vshrl.u32 %v2754, 7
        %v2756 = vsub.s32 %v2170, %v2755
        %v2757 = vrot.slane %v1739, %v2756
        %v2758 = vlaneseq
        %v2759 = vshrl.u32 %v2758, 7
        %v2760 = vsub.s32 %v2175, %v2759
        %v2761 = vrot.slane %v1742, %v2760
        %v2762 = vsel %vm2180, %v2761, %v2757
        %v2763 = vlaneseq
        %v2764 = vshrl.u32 %v2763, 7
        %v2765 = vsub.s32 %v2182, %v2764
        %v2766 = vrot.slane %v1745, %v2765
        %v2767 = vsel %vm2187, %v2766, %v2762
        %v2768 = vlaneseq
        %v2769 = vshrl.u32 %v2768, 7
        %v2770 = vsub.s32 %v2189, %v2769
        %v2771 = vrot.slane %v1748, %v2770
        %v2772 = vsel %vm2194, %v2771, %v2767
        %v2773 = vlaneseq
        %v2774 = vshrl.u32 %v2773, 7
        %v2775 = vsub.s32 %v2196, %v2774
        %v2776 = vrot.slane %v1751, %v2775
        %v2777 = vsel %vm2201, %v2776, %v2772
        %v2778 = vlaneseq
        %v2779 = vshrl.u32 %v2778, 7
        %v2780 = vsub.s32 %v2203, %v2779
        %v2781 = vrot.slane %v1754, %v2780
        %v2782 = vsel %vm2208, %v2781, %v2777
        %v2783 = vlaneseq
        %v2784 = vshrl.u32 %v2783, 7
        %v2785 = vsub.s32 %v2210, %v2784
        %v2786 = vrot.slane %v1757, %v2785
        %v2787 = vsel %vm2215, %v2786, %v2782
        %v2788 = vlaneseq
        %v2789 = vshrl.u32 %v2788, 7
        %v2790 = vsub.s32 %v2217, %v2789
        %v2791 = vrot.slane %v1760, %v2790
        %v2792 = vsel %vm2222, %v2791, %v2787
        %v2793 = vlaneseq
        %v2794 = vshrl.u32 %v2793, 7
        %v2795 = vsub.s32 %v2224, %v2794
        %v2796 = vrot.slane %v1763, %v2795
        %v2797 = vsel %vm2229, %v2796, %v2792
        %v2798 = vlaneseq
        %v2799 = vshrl.u32 %v2798, 7
        %v2800 = vsub.s32 %v2231, %v2799
        %v2801 = vrot.slane %v1766, %v2800
        %v2802 = vsel %vm2236, %v2801, %v2797
        %v2803 = vlaneseq
        %v2804 = vshrl.u32 %v2803, 7
        %v2805 = vsub.s32 %v2238, %v2804
        %v2806 = vrot.slane %v1769, %v2805
        %v2807 = vsel %vm2243, %v2806, %v2802
        %v2808 = vlaneseq
        %v2809 = vshrl.u32 %v2808, 7
        %v2810 = vsub.s32 %v2245, %v2809
        %v2811 = vrot.slane %v1772, %v2810
        %v2812 = vsel %vm2250, %v2811, %v2807
        %v2813 = vlaneseq
        %v2814 = vshrl.u32 %v2813, 7
        %v2815 = vsub.s32 %v2252, %v2814
        %v2816 = vrot.slane %v1775, %v2815
        %v2817 = vsel %vm2257, %v2816, %v2812
        %v2818 = vlaneseq
        %v2819 = vshrl.u32 %v2818, 7
        %v2820 = vsub.s32 %v2259, %v2819
        %v2821 = vrot.slane %v1778, %v2820
        %v2822 = vsel %vm2264, %v2821, %v2817
        %v2823 = vlaneseq
        %v2824 = vshrl.u32 %v2823, 7
        %v2825 = vsub.s32 %v2266, %v2824
        %v2826 = vrot.slane %v1781, %v2825
        %v2827 = vsel %vm2271, %v2826, %v2822
        %v2828 = vlaneseq
        %v2829 = vshrl.u32 %v2828, 7
        %v2830 = vsub.s32 %v2273, %v2829
        %v2831 = vrot.slane %v1784, %v2830
        %v2832 = vsel %vm2278, %v2831, %v2827
        %v2833 = vlaneseq
        %v2834 = vshrl.u32 %v2833, 7
        %v2835 = vsub.s32 %v2170, %v2834
        %v2836 = vrot.slane %v1787, %v2835
        %v2837 = vlaneseq
        %v2838 = vshrl.u32 %v2837, 7
        %v2839 = vsub.s32 %v2175, %v2838
        %v2840 = vrot.slane %v1790, %v2839
        %v2841 = vsel %vm2180, %v2840, %v2836
        %v2842 = vlaneseq
        %v2843 = vshrl.u32 %v2842, 7
        %v2844 = vsub.s32 %v2182, %v2843
        %v2845 = vrot.slane %v1793, %v2844
        %v2846 = vsel %vm2187, %v2845, %v2841
        %v2847 = vlaneseq
        %v2848 = vshrl.u32 %v2847, 7
        %v2849 = vsub.s32 %v2189, %v2848
        %v2850 = vrot.slane %v1796, %v2849
        %v2851 = vsel %vm2194, %v2850, %v2846
        %v2852 = vlaneseq
        %v2853 = vshrl.u32 %v2852, 7
        %v2854 = vsub.s32 %v2196, %v2853
        %v2855 = vrot.slane %v1799, %v2854
        %v2856 = vsel %vm2201, %v2855, %v2851
        %v2857 = vlaneseq
        %v2858 = vshrl.u32 %v2857, 7
        %v2859 = vsub.s32 %v2203, %v2858
        %v2860 = vrot.slane %v1802, %v2859
        %v2861 = vsel %vm2208, %v2860, %v2856
        %v2862 = vlaneseq
        %v2863 = vshrl.u32 %v2862, 7
        %v2864 = vsub.s32 %v2210, %v2863
        %v2865 = vrot.slane %v1805, %v2864
        %v2866 = vsel %vm2215, %v2865, %v2861
        %v2867 = vlaneseq
        %v2868 = vshrl.u32 %v2867, 7
        %v2869 = vsub.s32 %v2217, %v2868
        %v2870 = vrot.slane %v1808, %v2869
        %v2871 = vsel %vm2222, %v2870, %v2866
        %v2872 = vlaneseq
        %v2873 = vshrl.u32 %v2872, 7
        %v2874 = vsub.s32 %v2224, %v2873
        %v2875 = vrot.slane %v1811, %v2874
        %v2876 = vsel %vm2229, %v2875, %v2871
        %v2877 = vlaneseq
        %v2878 = vshrl.u32 %v2877, 7
        %v2879 = vsub.s32 %v2231, %v2878
        %v2880 = vrot.slane %v1814, %v2879
        %v2881 = vsel %vm2236, %v2880, %v2876
        %v2882 = vlaneseq
        %v2883 = vshrl.u32 %v2882, 7
        %v2884 = vsub.s32 %v2238, %v2883
        %v2885 = vrot.slane %v1817, %v2884
        %v2886 = vsel %vm2243, %v2885, %v2881
        %v2887 = vlaneseq
        %v2888 = vshrl.u32 %v2887, 7
        %v2889 = vsub.s32 %v2245, %v2888
        %v2890 = vrot.slane %v1820, %v2889
        %v2891 = vsel %vm2250, %v2890, %v2886
        %v2892 = vlaneseq
        %v2893 = vshrl.u32 %v2892, 7
        %v2894 = vsub.s32 %v2252, %v2893
        %v2895 = vrot.slane %v1823, %v2894
        %v2896 = vsel %vm2257, %v2895, %v2891
        %v2897 = vlaneseq
        %v2898 = vshrl.u32 %v2897, 7
        %v2899 = vsub.s32 %v2259, %v2898
        %v2900 = vrot.slane %v1826, %v2899
        %v2901 = vsel %vm2264, %v2900, %v2896
        %v2902 = vlaneseq
        %v2903 = vshrl.u32 %v2902, 7
        %v2904 = vsub.s32 %v2266, %v2903
        %v2905 = vrot.slane %v1829, %v2904
        %v2906 = vsel %vm2271, %v2905, %v2901
        %v2907 = vlaneseq
        %v2908 = vshrl.u32 %v2907, 7
        %v2909 = vsub.s32 %v2273, %v2908
        %v2910 = vrot.slane %v1832, %v2909
        %v2911 = vsel %vm2278, %v2910, %v2906
        %v2912 = vlaneseq
        %v2913 = vshrl.u32 %v2912, 7
        %v2914 = vsub.s32 %v2170, %v2913
        %v2915 = vrot.slane %v1835, %v2914
        %v2916 = vlaneseq
        %v2917 = vshrl.u32 %v2916, 7
        %v2918 = vsub.s32 %v2175, %v2917
        %v2919 = vrot.slane %v1838, %v2918
        %v2920 = vsel %vm2180, %v2919, %v2915
        %v2921 = vlaneseq
        %v2922 = vshrl.u32 %v2921, 7
        %v2923 = vsub.s32 %v2182, %v2922
        %v2924 = vrot.slane %v1841, %v2923
        %v2925 = vsel %vm2187, %v2924, %v2920
        %v2926 = vlaneseq
        %v2927 = vshrl.u32 %v2926, 7
        %v2928 = vsub.s32 %v2189, %v2927
        %v2929 = vrot.slane %v1844, %v2928
        %v2930 = vsel %vm2194, %v2929, %v2925
        %v2931 = vlaneseq
        %v2932 = vshrl.u32 %v2931, 7
        %v2933 = vsub.s32 %v2196, %v2932
        %v2934 = vrot.slane %v1847, %v2933
        %v2935 = vsel %vm2201, %v2934, %v2930
        %v2936 = vlaneseq
        %v2937 = vshrl.u32 %v2936, 7
        %v2938 = vsub.s32 %v2203, %v2937
        %v2939 = vrot.slane %v1850, %v2938
        %v2940 = vsel %vm2208, %v2939, %v2935
        %v2941 = vlaneseq
        %v2942 = vshrl.u32 %v2941, 7
        %v2943 = vsub.s32 %v2210, %v2942
        %v2944 = vrot.slane %v1853, %v2943
        %v2945 = vsel %vm2215, %v2944, %v2940
        %v2946 = vlaneseq
        %v2947 = vshrl.u32 %v2946, 7
        %v2948 = vsub.s32 %v2217, %v2947
        %v2949 = vrot.slane %v1856, %v2948
        %v2950 = vsel %vm2222, %v2949, %v2945
        %v2951 = vlaneseq
        %v2952 = vshrl.u32 %v2951, 7
        %v2953 = vsub.s32 %v2224, %v2952
        %v2954 = vrot.slane %v1859, %v2953
        %v2955 = vsel %vm2229, %v2954, %v2950
        %v2956 = vlaneseq
        %v2957 = vshrl.u32 %v2956, 7
        %v2958 = vsub.s32 %v2231, %v2957
        %v2959 = vrot.slane %v1862, %v2958
        %v2960 = vsel %vm2236, %v2959, %v2955
        %v2961 = vlaneseq
        %v2962 = vshrl.u32 %v2961, 7
        %v2963 = vsub.s32 %v2238, %v2962
        %v2964 = vrot.slane %v1865, %v2963
        %v2965 = vsel %vm2243, %v2964, %v2960
        %v2966 = vlaneseq
        %v2967 = vshrl.u32 %v2966, 7
        %v2968 = vsub.s32 %v2245, %v2967
        %v2969 = vrot.slane %v1868, %v2968
        %v2970 = vsel %vm2250, %v2969, %v2965
        %v2971 = vlaneseq
        %v2972 = vshrl.u32 %v2971, 7
        %v2973 = vsub.s32 %v2252, %v2972
        %v2974 = vrot.slane %v1871, %v2973
        %v2975 = vsel %vm2257, %v2974, %v2970
        %v2976 = vlaneseq
        %v2977 = vshrl.u32 %v2976, 7
        %v2978 = vsub.s32 %v2259, %v2977
        %v2979 = vrot.slane %v1874, %v2978
        %v2980 = vsel %vm2264, %v2979, %v2975
        %v2981 = vlaneseq
        %v2982 = vshrl.u32 %v2981, 7
        %v2983 = vsub.s32 %v2266, %v2982
        %v2984 = vrot.slane %v1877, %v2983
        %v2985 = vsel %vm2271, %v2984, %v2980
        %v2986 = vlaneseq
        %v2987 = vshrl.u32 %v2986, 7
        %v2988 = vsub.s32 %v2273, %v2987
        %v2989 = vrot.slane %v1880, %v2988
        %v2990 = vsel %vm2278, %v2989, %v2985
        %v2991 = vlaneseq
        %v2992 = vshrl.u32 %v2991, 7
        %v2993 = vsub.s32 %v2170, %v2992
        %v2994 = vrot.slane %v1883, %v2993
        %v2995 = vlaneseq
        %v2996 = vshrl.u32 %v2995, 7
        %v2997 = vsub.s32 %v2175, %v2996
        %v2998 = vrot.slane %v1886, %v2997
        %v2999 = vsel %vm2180, %v2998, %v2994
        %v3000 = vlaneseq
        %v3001 = vshrl.u32 %v3000, 7
        %v3002 = vsub.s32 %v2182, %v3001
        %v3003 = vrot.slane %v1889, %v3002
        %v3004 = vsel %vm2187, %v3003, %v2999
        %v3005 = vlaneseq
        %v3006 = vshrl.u32 %v3005, 7
        %v3007 = vsub.s32 %v2189, %v3006
        %v3008 = vrot.slane %v1892, %v3007
        %v3009 = vsel %vm2194, %v3008, %v3004
        %v3010 = vlaneseq
        %v3011 = vshrl.u32 %v3010, 7
        %v3012 = vsub.s32 %v2196, %v3011
        %v3013 = vrot.slane %v1895, %v3012
        %v3014 = vsel %vm2201, %v3013, %v3009
        %v3015 = vlaneseq
        %v3016 = vshrl.u32 %v3015, 7
        %v3017 = vsub.s32 %v2203, %v3016
        %v3018 = vrot.slane %v1898, %v3017
        %v3019 = vsel %vm2208, %v3018, %v3014
        %v3020 = vlaneseq
        %v3021 = vshrl.u32 %v3020, 7
        %v3022 = vsub.s32 %v2210, %v3021
        %v3023 = vrot.slane %v1901, %v3022
        %v3024 = vsel %vm2215, %v3023, %v3019
        %v3025 = vlaneseq
        %v3026 = vshrl.u32 %v3025, 7
        %v3027 = vsub.s32 %v2217, %v3026
        %v3028 = vrot.slane %v1904, %v3027
        %v3029 = vsel %vm2222, %v3028, %v3024
        %v3030 = vlaneseq
        %v3031 = vshrl.u32 %v3030, 7
        %v3032 = vsub.s32 %v2224, %v3031
        %v3033 = vrot.slane %v1907, %v3032
        %v3034 = vsel %vm2229, %v3033, %v3029
        %v3035 = vlaneseq
        %v3036 = vshrl.u32 %v3035, 7
        %v3037 = vsub.s32 %v2231, %v3036
        %v3038 = vrot.slane %v1910, %v3037
        %v3039 = vsel %vm2236, %v3038, %v3034
        %v3040 = vlaneseq
        %v3041 = vshrl.u32 %v3040, 7
        %v3042 = vsub.s32 %v2238, %v3041
        %v3043 = vrot.slane %v1913, %v3042
        %v3044 = vsel %vm2243, %v3043, %v3039
        %v3045 = vlaneseq
        %v3046 = vshrl.u32 %v3045, 7
        %v3047 = vsub.s32 %v2245, %v3046
        %v3048 = vrot.slane %v1916, %v3047
        %v3049 = vsel %vm2250, %v3048, %v3044
        %v3050 = vlaneseq
        %v3051 = vshrl.u32 %v3050, 7
        %v3052 = vsub.s32 %v2252, %v3051
        %v3053 = vrot.slane %v1919, %v3052
        %v3054 = vsel %vm2257, %v3053, %v3049
        %v3055 = vlaneseq
        %v3056 = vshrl.u32 %v3055, 7
        %v3057 = vsub.s32 %v2259, %v3056
        %v3058 = vrot.slane %v1922, %v3057
        %v3059 = vsel %vm2264, %v3058, %v3054
        %v3060 = vlaneseq
        %v3061 = vshrl.u32 %v3060, 7
        %v3062 = vsub.s32 %v2266, %v3061
        %v3063 = vrot.slane %v1925, %v3062
        %v3064 = vsel %vm2271, %v3063, %v3059
        %v3065 = vlaneseq
        %v3066 = vshrl.u32 %v3065, 7
        %v3067 = vsub.s32 %v2273, %v3066
        %v3068 = vrot.slane %v1928, %v3067
        %v3069 = vsel %vm2278, %v3068, %v3064
        %v3070 = vlaneseq
        %v3071 = vshrl.u32 %v3070, 7
        %v3072 = vsub.s32 %v2170, %v3071
        %v3073 = vrot.slane %v1931, %v3072
        %v3074 = vlaneseq
        %v3075 = vshrl.u32 %v3074, 7
        %v3076 = vsub.s32 %v2175, %v3075
        %v3077 = vrot.slane %v1934, %v3076
        %v3078 = vsel %vm2180, %v3077, %v3073
        %v3079 = vlaneseq
        %v3080 = vshrl.u32 %v3079, 7
        %v3081 = vsub.s32 %v2182, %v3080
        %v3082 = vrot.slane %v1937, %v3081
        %v3083 = vsel %vm2187, %v3082, %v3078
        %v3084 = vlaneseq
        %v3085 = vshrl.u32 %v3084, 7
        %v3086 = vsub.s32 %v2189, %v3085
        %v3087 = vrot.slane %v1940, %v3086
        %v3088 = vsel %vm2194, %v3087, %v3083
        %v3089 = vlaneseq
        %v3090 = vshrl.u32 %v3089, 7
        %v3091 = vsub.s32 %v2196, %v3090
        %v3092 = vrot.slane %v1943, %v3091
        %v3093 = vsel %vm2201, %v3092, %v3088
        %v3094 = vlaneseq
        %v3095 = vshrl.u32 %v3094, 7
        %v3096 = vsub.s32 %v2203, %v3095
        %v3097 = vrot.slane %v1946, %v3096
        %v3098 = vsel %vm2208, %v3097, %v3093
        %v3099 = vlaneseq
        %v3100 = vshrl.u32 %v3099, 7
        %v3101 = vsub.s32 %v2210, %v3100
        %v3102 = vrot.slane %v1949, %v3101
        %v3103 = vsel %vm2215, %v3102, %v3098
        %v3104 = vlaneseq
        %v3105 = vshrl.u32 %v3104, 7
        %v3106 = vsub.s32 %v2217, %v3105
        %v3107 = vrot.slane %v1952, %v3106
        %v3108 = vsel %vm2222, %v3107, %v3103
        %v3109 = vlaneseq
        %v3110 = vshrl.u32 %v3109, 7
        %v3111 = vsub.s32 %v2224, %v3110
        %v3112 = vrot.slane %v1955, %v3111
        %v3113 = vsel %vm2229, %v3112, %v3108
        %v3114 = vlaneseq
        %v3115 = vshrl.u32 %v3114, 7
        %v3116 = vsub.s32 %v2231, %v3115
        %v3117 = vrot.slane %v1958, %v3116
        %v3118 = vsel %vm2236, %v3117, %v3113
        %v3119 = vlaneseq
        %v3120 = vshrl.u32 %v3119, 7
        %v3121 = vsub.s32 %v2238, %v3120
        %v3122 = vrot.slane %v1961, %v3121
        %v3123 = vsel %vm2243, %v3122, %v3118
        %v3124 = vlaneseq
        %v3125 = vshrl.u32 %v3124, 7
        %v3126 = vsub.s32 %v2245, %v3125
        %v3127 = vrot.slane %v1964, %v3126
        %v3128 = vsel %vm2250, %v3127, %v3123
        %v3129 = vlaneseq
        %v3130 = vshrl.u32 %v3129, 7
        %v3131 = vsub.s32 %v2252, %v3130
        %v3132 = vrot.slane %v1967, %v3131
        %v3133 = vsel %vm2257, %v3132, %v3128
        %v3134 = vlaneseq
        %v3135 = vshrl.u32 %v3134, 7
        %v3136 = vsub.s32 %v2259, %v3135
        %v3137 = vrot.slane %v1970, %v3136
        %v3138 = vsel %vm2264, %v3137, %v3133
        %v3139 = vlaneseq
        %v3140 = vshrl.u32 %v3139, 7
        %v3141 = vsub.s32 %v2266, %v3140
        %v3142 = vrot.slane %v1973, %v3141
        %v3143 = vsel %vm2271, %v3142, %v3138
        %v3144 = vlaneseq
        %v3145 = vshrl.u32 %v3144, 7
        %v3146 = vsub.s32 %v2273, %v3145
        %v3147 = vrot.slane %v1976, %v3146
        %v3148 = vsel %vm2278, %v3147, %v3143
        %v3149 = vlaneseq
        %v3150 = vshrl.u32 %v3149, 7
        %v3151 = vsub.s32 %v2170, %v3150
        %v3152 = vrot.slane %v1979, %v3151
        %v3153 = vlaneseq
        %v3154 = vshrl.u32 %v3153, 7
        %v3155 = vsub.s32 %v2175, %v3154
        %v3156 = vrot.slane %v1982, %v3155
        %v3157 = vsel %vm2180, %v3156, %v3152
        %v3158 = vlaneseq
        %v3159 = vshrl.u32 %v3158, 7
        %v3160 = vsub.s32 %v2182, %v3159
        %v3161 = vrot.slane %v1985, %v3160
        %v3162 = vsel %vm2187, %v3161, %v3157
        %v3163 = vlaneseq
        %v3164 = vshrl.u32 %v3163, 7
        %v3165 = vsub.s32 %v2189, %v3164
        %v3166 = vrot.slane %v1988, %v3165
        %v3167 = vsel %vm2194, %v3166, %v3162
        %v3168 = vlaneseq
        %v3169 = vshrl.u32 %v3168, 7
        %v3170 = vsub.s32 %v2196, %v3169
        %v3171 = vrot.slane %v1991, %v3170
        %v3172 = vsel %vm2201, %v3171, %v3167
        %v3173 = vlaneseq
        %v3174 = vshrl.u32 %v3173, 7
        %v3175 = vsub.s32 %v2203, %v3174
        %v3176 = vrot.slane %v1994, %v3175
        %v3177 = vsel %vm2208, %v3176, %v3172
        %v3178 = vlaneseq
        %v3179 = vshrl.u32 %v3178, 7
        %v3180 = vsub.s32 %v2210, %v3179
        %v3181 = vrot.slane %v1997, %v3180
        %v3182 = vsel %vm2215, %v3181, %v3177
        %v3183 = vlaneseq
        %v3184 = vshrl.u32 %v3183, 7
        %v3185 = vsub.s32 %v2217, %v3184
        %v3186 = vrot.slane %v2000, %v3185
        %v3187 = vsel %vm2222, %v3186, %v3182
        %v3188 = vlaneseq
        %v3189 = vshrl.u32 %v3188, 7
        %v3190 = vsub.s32 %v2224, %v3189
        %v3191 = vrot.slane %v2003, %v3190
        %v3192 = vsel %vm2229, %v3191, %v3187
        %v3193 = vlaneseq
        %v3194 = vshrl.u32 %v3193, 7
        %v3195 = vsub.s32 %v2231, %v3194
        %v3196 = vrot.slane %v2006, %v3195
        %v3197 = vsel %vm2236, %v3196, %v3192
        %v3198 = vlaneseq
        %v3199 = vshrl.u32 %v3198, 7
        %v3200 = vsub.s32 %v2238, %v3199
        %v3201 = vrot.slane %v2009, %v3200
        %v3202 = vsel %vm2243, %v3201, %v3197
        %v3203 = vlaneseq
        %v3204 = vshrl.u32 %v3203, 7
        %v3205 = vsub.s32 %v2245, %v3204
        %v3206 = vrot.slane %v2012, %v3205
        %v3207 = vsel %vm2250, %v3206, %v3202
        %v3208 = vlaneseq
        %v3209 = vshrl.u32 %v3208, 7
        %v3210 = vsub.s32 %v2252, %v3209
        %v3211 = vrot.slane %v2015, %v3210
        %v3212 = vsel %vm2257, %v3211, %v3207
        %v3213 = vlaneseq
        %v3214 = vshrl.u32 %v3213, 7
        %v3215 = vsub.s32 %v2259, %v3214
        %v3216 = vrot.slane %v2018, %v3215
        %v3217 = vsel %vm2264, %v3216, %v3212
        %v3218 = vlaneseq
        %v3219 = vshrl.u32 %v3218, 7
        %v3220 = vsub.s32 %v2266, %v3219
        %v3221 = vrot.slane %v2021, %v3220
        %v3222 = vsel %vm2271, %v3221, %v3217
        %v3223 = vlaneseq
        %v3224 = vshrl.u32 %v3223, 7
        %v3225 = vsub.s32 %v2273, %v3224
        %v3226 = vrot.slane %v2024, %v3225
        %v3227 = vsel %vm2278, %v3226, %v3222
        %v3228 = vlaneseq
        %v3229 = vshrl.u32 %v3228, 7
        %v3230 = vsub.s32 %v2170, %v3229
        %v3231 = vrot.slane %v2027, %v3230
        %v3232 = vlaneseq
        %v3233 = vshrl.u32 %v3232, 7
        %v3234 = vsub.s32 %v2175, %v3233
        %v3235 = vrot.slane %v2030, %v3234
        %v3236 = vsel %vm2180, %v3235, %v3231
        %v3237 = vlaneseq
        %v3238 = vshrl.u32 %v3237, 7
        %v3239 = vsub.s32 %v2182, %v3238
        %v3240 = vrot.slane %v2033, %v3239
        %v3241 = vsel %vm2187, %v3240, %v3236
        %v3242 = vlaneseq
        %v3243 = vshrl.u32 %v3242, 7
        %v3244 = vsub.s32 %v2189, %v3243
        %v3245 = vrot.slane %v2036, %v3244
        %v3246 = vsel %vm2194, %v3245, %v3241
        %v3247 = vlaneseq
        %v3248 = vshrl.u32 %v3247, 7
        %v3249 = vsub.s32 %v2196, %v3248
        %v3250 = vrot.slane %v2039, %v3249
        %v3251 = vsel %vm2201, %v3250, %v3246
        %v3252 = vlaneseq
        %v3253 = vshrl.u32 %v3252, 7
        %v3254 = vsub.s32 %v2203, %v3253
        %v3255 = vrot.slane %v2042, %v3254
        %v3256 = vsel %vm2208, %v3255, %v3251
        %v3257 = vlaneseq
        %v3258 = vshrl.u32 %v3257, 7
        %v3259 = vsub.s32 %v2210, %v3258
        %v3260 = vrot.slane %v2045, %v3259
        %v3261 = vsel %vm2215, %v3260, %v3256
        %v3262 = vlaneseq
        %v3263 = vshrl.u32 %v3262, 7
        %v3264 = vsub.s32 %v2217, %v3263
        %v3265 = vrot.slane %v2048, %v3264
        %v3266 = vsel %vm2222, %v3265, %v3261
        %v3267 = vlaneseq
        %v3268 = vshrl.u32 %v3267, 7
        %v3269 = vsub.s32 %v2224, %v3268
        %v3270 = vrot.slane %v2051, %v3269
        %v3271 = vsel %vm2229, %v3270, %v3266
        %v3272 = vlaneseq
        %v3273 = vshrl.u32 %v3272, 7
        %v3274 = vsub.s32 %v2231, %v3273
        %v3275 = vrot.slane %v2054, %v3274
        %v3276 = vsel %vm2236, %v3275, %v3271
        %v3277 = vlaneseq
        %v3278 = vshrl.u32 %v3277, 7
        %v3279 = vsub.s32 %v2238, %v3278
        %v3280 = vrot.slane %v2057, %v3279
        %v3281 = vsel %vm2243, %v3280, %v3276
        %v3282 = vlaneseq
        %v3283 = vshrl.u32 %v3282, 7
        %v3284 = vsub.s32 %v2245, %v3283
        %v3285 = vrot.slane %v2060, %v3284
        %v3286 = vsel %vm2250, %v3285, %v3281
        %v3287 = vlaneseq
        %v3288 = vshrl.u32 %v3287, 7
        %v3289 = vsub.s32 %v2252, %v3288
        %v3290 = vrot.slane %v2063, %v3289
        %v3291 = vsel %vm2257, %v3290, %v3286
        %v3292 = vlaneseq
        %v3293 = vshrl.u32 %v3292, 7
        %v3294 = vsub.s32 %v2259, %v3293
        %v3295 = vrot.slane %v2066, %v3294
        %v3296 = vsel %vm2264, %v3295, %v3291
        %v3297 = vlaneseq
        %v3298 = vshrl.u32 %v3297, 7
        %v3299 = vsub.s32 %v2266, %v3298
        %v3300 = vrot.slane %v2069, %v3299
        %v3301 = vsel %vm2271, %v3300, %v3296
        %v3302 = vlaneseq
        %v3303 = vshrl.u32 %v3302, 7
        %v3304 = vsub.s32 %v2273, %v3303
        %v3305 = vrot.slane %v2072, %v3304
        %v3306 = vsel %vm2278, %v3305, %v3301
        %v3307 = vlaneseq
        %v3308 = vshrl.u32 %v3307, 7
        %v3309 = vsub.s32 %v2170, %v3308
        %v3310 = vrot.slane %v2075, %v3309
        %v3311 = vlaneseq
        %v3312 = vshrl.u32 %v3311, 7
        %v3313 = vsub.s32 %v2175, %v3312
        %v3314 = vrot.slane %v2078, %v3313
        %v3315 = vsel %vm2180, %v3314, %v3310
        %v3316 = vlaneseq
        %v3317 = vshrl.u32 %v3316, 7
        %v3318 = vsub.s32 %v2182, %v3317
        %v3319 = vrot.slane %v2081, %v3318
        %v3320 = vsel %vm2187, %v3319, %v3315
        %v3321 = vlaneseq
        %v3322 = vshrl.u32 %v3321, 7
        %v3323 = vsub.s32 %v2189, %v3322
        %v3324 = vrot.slane %v2084, %v3323
        %v3325 = vsel %vm2194, %v3324, %v3320
        %v3326 = vlaneseq
        %v3327 = vshrl.u32 %v3326, 7
        %v3328 = vsub.s32 %v2196, %v3327
        %v3329 = vrot.slane %v2087, %v3328
        %v3330 = vsel %vm2201, %v3329, %v3325
        %v3331 = vlaneseq
        %v3332 = vshrl.u32 %v3331, 7
        %v3333 = vsub.s32 %v2203, %v3332
        %v3334 = vrot.slane %v2090, %v3333
        %v3335 = vsel %vm2208, %v3334, %v3330
        %v3336 = vlaneseq
        %v3337 = vshrl.u32 %v3336, 7
        %v3338 = vsub.s32 %v2210, %v3337
        %v3339 = vrot.slane %v2093, %v3338
        %v3340 = vsel %vm2215, %v3339, %v3335
        %v3341 = vlaneseq
        %v3342 = vshrl.u32 %v3341, 7
        %v3343 = vsub.s32 %v2217, %v3342
        %v3344 = vrot.slane %v2096, %v3343
        %v3345 = vsel %vm2222, %v3344, %v3340
        %v3346 = vlaneseq
        %v3347 = vshrl.u32 %v3346, 7
        %v3348 = vsub.s32 %v2224, %v3347
        %v3349 = vrot.slane %v2099, %v3348
        %v3350 = vsel %vm2229, %v3349, %v3345
        %v3351 = vlaneseq
        %v3352 = vshrl.u32 %v3351, 7
        %v3353 = vsub.s32 %v2231, %v3352
        %v3354 = vrot.slane %v2102, %v3353
        %v3355 = vsel %vm2236, %v3354, %v3350
        %v3356 = vlaneseq
        %v3357 = vshrl.u32 %v3356, 7
        %v3358 = vsub.s32 %v2238, %v3357
        %v3359 = vrot.slane %v2105, %v3358
        %v3360 = vsel %vm2243, %v3359, %v3355
        %v3361 = vlaneseq
        %v3362 = vshrl.u32 %v3361, 7
        %v3363 = vsub.s32 %v2245, %v3362
        %v3364 = vrot.slane %v2108, %v3363
        %v3365 = vsel %vm2250, %v3364, %v3360
        %v3366 = vlaneseq
        %v3367 = vshrl.u32 %v3366, 7
        %v3368 = vsub.s32 %v2252, %v3367
        %v3369 = vrot.slane %v2111, %v3368
        %v3370 = vsel %vm2257, %v3369, %v3365
        %v3371 = vlaneseq
        %v3372 = vshrl.u32 %v3371, 7
        %v3373 = vsub.s32 %v2259, %v3372
        %v3374 = vrot.slane %v2114, %v3373
        %v3375 = vsel %vm2264, %v3374, %v3370
        %v3376 = vlaneseq
        %v3377 = vshrl.u32 %v3376, 7
        %v3378 = vsub.s32 %v2266, %v3377
        %v3379 = vrot.slane %v2117, %v3378
        %v3380 = vsel %vm2271, %v3379, %v3375
        %v3381 = vlaneseq
        %v3382 = vshrl.u32 %v3381, 7
        %v3383 = vsub.s32 %v2273, %v3382
        %v3384 = vrot.slane %v2120, %v3383
        %v3385 = vsel %vm2278, %v3384, %v3380
        %v3386 = vlaneseq
        %v3387 = vshrl.u32 %v3386, 7
        %v3388 = vsub.s32 %v2170, %v3387
        %v3389 = vrot.slane %v2123, %v3388
        %v3390 = vlaneseq
        %v3391 = vshrl.u32 %v3390, 7
        %v3392 = vsub.s32 %v2175, %v3391
        %v3393 = vrot.slane %v2126, %v3392
        %v3394 = vsel %vm2180, %v3393, %v3389
        %v3395 = vlaneseq
        %v3396 = vshrl.u32 %v3395, 7
        %v3397 = vsub.s32 %v2182, %v3396
        %v3398 = vrot.slane %v2129, %v3397
        %v3399 = vsel %vm2187, %v3398, %v3394
        %v3400 = vlaneseq
        %v3401 = vshrl.u32 %v3400, 7
        %v3402 = vsub.s32 %v2189, %v3401
        %v3403 = vrot.slane %v2132, %v3402
        %v3404 = vsel %vm2194, %v3403, %v3399
        %v3405 = vlaneseq
        %v3406 = vshrl.u32 %v3405, 7
        %v3407 = vsub.s32 %v2196, %v3406
        %v3408 = vrot.slane %v2135, %v3407
        %v3409 = vsel %vm2201, %v3408, %v3404
        %v3410 = vlaneseq
        %v3411 = vshrl.u32 %v3410, 7
        %v3412 = vsub.s32 %v2203, %v3411
        %v3413 = vrot.slane %v2138, %v3412
        %v3414 = vsel %vm2208, %v3413, %v3409
        %v3415 = vlaneseq
        %v3416 = vshrl.u32 %v3415, 7
        %v3417 = vsub.s32 %v2210, %v3416
        %v3418 = vrot.slane %v2141, %v3417
        %v3419 = vsel %vm2215, %v3418, %v3414
        %v3420 = vlaneseq
        %v3421 = vshrl.u32 %v3420, 7
        %v3422 = vsub.s32 %v2217, %v3421
        %v3423 = vrot.slane %v2144, %v3422
        %v3424 = vsel %vm2222, %v3423, %v3419
        %v3425 = vlaneseq
        %v3426 = vshrl.u32 %v3425, 7
        %v3427 = vsub.s32 %v2224, %v3426
        %v3428 = vrot.slane %v2147, %v3427
        %v3429 = vsel %vm2229, %v3428, %v3424
        %v3430 = vlaneseq
        %v3431 = vshrl.u32 %v3430, 7
        %v3432 = vsub.s32 %v2231, %v3431
        %v3433 = vrot.slane %v2150, %v3432
        %v3434 = vsel %vm2236, %v3433, %v3429
        %v3435 = vlaneseq
        %v3436 = vshrl.u32 %v3435, 7
        %v3437 = vsub.s32 %v2238, %v3436
        %v3438 = vrot.slane %v2153, %v3437
        %v3439 = vsel %vm2243, %v3438, %v3434
        %v3440 = vlaneseq
        %v3441 = vshrl.u32 %v3440, 7
        %v3442 = vsub.s32 %v2245, %v3441
        %v3443 = vrot.slane %v2156, %v3442
        %v3444 = vsel %vm2250, %v3443, %v3439
        %v3445 = vlaneseq
        %v3446 = vshrl.u32 %v3445, 7
        %v3447 = vsub.s32 %v2252, %v3446
        %v3448 = vrot.slane %v2159, %v3447
        %v3449 = vsel %vm2257, %v3448, %v3444
        %v3450 = vlaneseq
        %v3451 = vshrl.u32 %v3450, 7
        %v3452 = vsub.s32 %v2259, %v3451
        %v3453 = vrot.slane %v2162, %v3452
        %v3454 = vsel %vm2264, %v3453, %v3449
        %v3455 = vlaneseq
        %v3456 = vshrl.u32 %v3455, 7
        %v3457 = vsub.s32 %v2266, %v3456
        %v3458 = vrot.slane %v2165, %v3457
        %v3459 = vsel %vm2271, %v3458, %v3454
        %v3460 = vlaneseq
        %v3461 = vshrl.u32 %v3460, 7
        %v3462 = vsub.s32 %v2273, %v3461
        %v3463 = vrot.slane %v2168, %v3462
        %v3464 = vsel %vm2278, %v3463, %v3459
        %vm3465 = vcmask 1041409
        %v3466 = vsel %vm3465, %v2358, %v2279
        %vm3467 = vcmask 1042434
        %v3468 = vsel %vm3467, %v2437, %v3466
        %vm3469 = vcmask 1043459
        %v3470 = vsel %vm3469, %v2516, %v3468
        %vm3471 = vcmask 1044484
        %v3472 = vsel %vm3471, %v2595, %v3470
        %vm3473 = vcmask 1045509
        %v3474 = vsel %vm3473, %v2674, %v3472
        %vm3475 = vcmask 1046534
        %v3476 = vsel %vm3475, %v2753, %v3474
        %vm3477 = vcmask 1047559
        %v3478 = vsel %vm3477, %v2832, %v3476
        %v3479 = vsel %vm3465, %v2990, %v2911
        %v3480 = vsel %vm3467, %v3069, %v3479
        %v3481 = vsel %vm3469, %v3148, %v3480
        %v3482 = vsel %vm3471, %v3227, %v3481
        %v3483 = vsel %vm3473, %v3306, %v3482
        %v3484 = vsel %vm3475, %v3385, %v3483
        %v3485 = vsel %vm3477, %v3464, %v3484
        %3488 = vst [vmem:[%s112] sm:$0xff] %v3478
        %3489 = vst [vmem:[%s112 + $0x8] sm:$0xff] %v3485
        %v3490 = vld [vmem:[%s118] sm:$0x3]
        %v3491 = vld [vmem:[%s118 + $0x2] sm:$0x3]
        %v3492 = vld [vmem:[%s118 + $0x4] sm:$0x3]
        %v3493 = vld [vmem:[%s118 + $0x6] sm:$0x3]
        %v3494 = vld [vmem:[%s118 + $0x8] sm:$0x3]
        %v3495 = vld [vmem:[%s118 + $0xa] sm:$0x3]
        %v3496 = vld [vmem:[%s118 + $0xc] sm:$0x3]
        %v3497 = vld [vmem:[%s118 + $0xe] sm:$0x3]
        %v3498 = vld [vmem:[%s118 + $0x10] sm:$0x3]
        %v3499 = vld [vmem:[%s118 + $0x12] sm:$0x3]
        %v3500 = vld [vmem:[%s118 + $0x14] sm:$0x3]
        %v3501 = vld [vmem:[%s118 + $0x16] sm:$0x3]
        %v3502 = vld [vmem:[%s118 + $0x18] sm:$0x3]
        %v3503 = vld [vmem:[%s118 + $0x1a] sm:$0x3]
        %v3504 = vld [vmem:[%s118 + $0x1c] sm:$0x3]
        %v3505 = vld [vmem:[%s118 + $0x1e] sm:$0x3]
        %v3506 = vld [vmem:[%s118 + $0x20] sm:$0x3]
        %v3507 = vld [vmem:[%s118 + $0x22] sm:$0x3]
        %v3508 = vld [vmem:[%s118 + $0x24] sm:$0x3]
        %v3509 = vld [vmem:[%s118 + $0x26] sm:$0x3]
        %v3510 = vld [vmem:[%s118 + $0x28] sm:$0x3]
        %v3511 = vld [vmem:[%s118 + $0x2a] sm:$0x3]
        %v3512 = vld [vmem:[%s118 + $0x2c] sm:$0x3]
        %v3513 = vld [vmem:[%s118 + $0x2e] sm:$0x3]
        %v3514 = vld [vmem:[%s118 + $0x30] sm:$0x3]
        %v3515 = vld [vmem:[%s118 + $0x32] sm:$0x3]
        %v3516 = vld [vmem:[%s118 + $0x34] sm:$0x3]
        %v3517 = vld [vmem:[%s118 + $0x36] sm:$0x3]
        %v3518 = vld [vmem:[%s118 + $0x38] sm:$0x3]
        %v3519 = vld [vmem:[%s118 + $0x3a] sm:$0x3]
        %v3520 = vld [vmem:[%s118 + $0x3c] sm:$0x3]
        %v3521 = vld [vmem:[%s118 + $0x3e] sm:$0x3]
        %v3522 = vld [vmem:[%s118 + $0x40] sm:$0x3]
        %v3523 = vld [vmem:[%s118 + $0x42] sm:$0x3]
        %v3524 = vld [vmem:[%s118 + $0x44] sm:$0x3]
        %v3525 = vld [vmem:[%s118 + $0x46] sm:$0x3]
        %v3526 = vld [vmem:[%s118 + $0x48] sm:$0x3]
        %v3527 = vld [vmem:[%s118 + $0x4a] sm:$0x3]
        %v3528 = vld [vmem:[%s118 + $0x4c] sm:$0x3]
        %v3529 = vld [vmem:[%s118 + $0x4e] sm:$0x3]
        %v3530 = vld [vmem:[%s118 + $0x50] sm:$0x3]
        %v3531 = vld [vmem:[%s118 + $0x52] sm:$0x3]
        %v3532 = vld [vmem:[%s118 + $0x54] sm:$0x3]
        %v3533 = vld [vmem:[%s118 + $0x56] sm:$0x3]
        %v3534 = vld [vmem:[%s118 + $0x58] sm:$0x3]
        %v3535 = vld [vmem:[%s118 + $0x5a] sm:$0x3]
        %v3536 = vld [vmem:[%s118 + $0x5c] sm:$0x3]
        %v3537 = vld [vmem:[%s118 + $0x5e] sm:$0x3]
        %v3538 = vld [vmem:[%s118 + $0x60] sm:$0x3]
        %v3539 = vld [vmem:[%s118 + $0x62] sm:$0x3]
        %v3540 = vld [vmem:[%s118 + $0x64] sm:$0x3]
        %v3541 = vld [vmem:[%s118 + $0x66] sm:$0x3]
        %v3542 = vld [vmem:[%s118 + $0x68] sm:$0x3]
        %v3543 = vld [vmem:[%s118 + $0x6a] sm:$0x3]
        %v3544 = vld [vmem:[%s118 + $0x6c] sm:$0x3]
        %v3545 = vld [vmem:[%s118 + $0x6e] sm:$0x3]
        %v3546 = vld [vmem:[%s118 + $0x70] sm:$0x3]
        %v3547 = vld [vmem:[%s118 + $0x72] sm:$0x3]
        %v3548 = vld [vmem:[%s118 + $0x74] sm:$0x3]
        %v3549 = vld [vmem:[%s118 + $0x76] sm:$0x3]
        %v3550 = vld [vmem:[%s118 + $0x78] sm:$0x3]
        %v3551 = vld [vmem:[%s118 + $0x7a] sm:$0x3]
        %v3552 = vld [vmem:[%s118 + $0x7c] sm:$0x3]
        %v3553 = vld [vmem:[%s118 + $0x7e] sm:$0x3]
        %v3554 = vld [vmem:[%s118 + $0x80] sm:$0x3]
        %v3555 = vld [vmem:[%s118 + $0x82] sm:$0x3]
        %v3556 = vld [vmem:[%s118 + $0x84] sm:$0x3]
        %v3557 = vld [vmem:[%s118 + $0x86] sm:$0x3]
        %v3558 = vld [vmem:[%s118 + $0x88] sm:$0x3]
        %v3559 = vld [vmem:[%s118 + $0x8a] sm:$0x3]
        %v3560 = vld [vmem:[%s118 + $0x8c] sm:$0x3]
        %v3561 = vld [vmem:[%s118 + $0x8e] sm:$0x3]
        %v3562 = vld [vmem:[%s118 + $0x90] sm:$0x3]
        %v3563 = vld [vmem:[%s118 + $0x92] sm:$0x3]
        %v3564 = vld [vmem:[%s118 + $0x94] sm:$0x3]
        %v3565 = vld [vmem:[%s118 + $0x96] sm:$0x3]
        %v3566 = vld [vmem:[%s118 + $0x98] sm:$0x3]
        %v3567 = vld [vmem:[%s118 + $0x9a] sm:$0x3]
        %v3568 = vld [vmem:[%s118 + $0x9c] sm:$0x3]
        %v3569 = vld [vmem:[%s118 + $0x9e] sm:$0x3]
        %v3570 = vld [vmem:[%s118 + $0xa0] sm:$0x3]
        %v3571 = vld [vmem:[%s118 + $0xa2] sm:$0x3]
        %v3572 = vld [vmem:[%s118 + $0xa4] sm:$0x3]
        %v3573 = vld [vmem:[%s118 + $0xa6] sm:$0x3]
        %v3574 = vld [vmem:[%s118 + $0xa8] sm:$0x3]
        %v3575 = vld [vmem:[%s118 + $0xaa] sm:$0x3]
        %v3576 = vld [vmem:[%s118 + $0xac] sm:$0x3]
        %v3577 = vld [vmem:[%s118 + $0xae] sm:$0x3]
        %v3578 = vld [vmem:[%s118 + $0xb0] sm:$0x3]
        %v3579 = vld [vmem:[%s118 + $0xb2] sm:$0x3]
        %v3580 = vld [vmem:[%s118 + $0xb4] sm:$0x3]
        %v3581 = vld [vmem:[%s118 + $0xb6] sm:$0x3]
        %v3582 = vld [vmem:[%s118 + $0xb8] sm:$0x3]
        %v3583 = vld [vmem:[%s118 + $0xba] sm:$0x3]
        %v3584 = vld [vmem:[%s118 + $0xbc] sm:$0x3]
        %v3585 = vld [vmem:[%s118 + $0xbe] sm:$0x3]
        %v3586 = vld [vmem:[%s118 + $0xc0] sm:$0x3]
        %v3587 = vld [vmem:[%s118 + $0xc2] sm:$0x3]
        %v3588 = vld [vmem:[%s118 + $0xc4] sm:$0x3]
        %v3589 = vld [vmem:[%s118 + $0xc6] sm:$0x3]
        %v3590 = vld [vmem:[%s118 + $0xc8] sm:$0x3]
        %v3591 = vld [vmem:[%s118 + $0xca] sm:$0x3]
        %v3592 = vld [vmem:[%s118 + $0xcc] sm:$0x3]
        %v3593 = vld [vmem:[%s118 + $0xce] sm:$0x3]
        %v3594 = vld [vmem:[%s118 + $0xd0] sm:$0x3]
        %v3595 = vld [vmem:[%s118 + $0xd2] sm:$0x3]
        %v3596 = vld [vmem:[%s118 + $0xd4] sm:$0x3]
        %v3597 = vld [vmem:[%s118 + $0xd6] sm:$0x3]
        %v3598 = vld [vmem:[%s118 + $0xd8] sm:$0x3]
        %v3599 = vld [vmem:[%s118 + $0xda] sm:$0x3]
        %v3600 = vld [vmem:[%s118 + $0xdc] sm:$0x3]
        %v3601 = vld [vmem:[%s118 + $0xde] sm:$0x3]
        %v3602 = vld [vmem:[%s118 + $0xe0] sm:$0x3]
        %v3603 = vld [vmem:[%s118 + $0xe2] sm:$0x3]
        %v3604 = vld [vmem:[%s118 + $0xe4] sm:$0x3]
        %v3605 = vld [vmem:[%s118 + $0xe6] sm:$0x3]
        %v3606 = vld [vmem:[%s118 + $0xe8] sm:$0x3]
        %v3607 = vld [vmem:[%s118 + $0xea] sm:$0x3]
        %v3608 = vld [vmem:[%s118 + $0xec] sm:$0x3]
        %v3609 = vld [vmem:[%s118 + $0xee] sm:$0x3]
        %v3610 = vld [vmem:[%s118 + $0xf0] sm:$0x3]
        %v3611 = vld [vmem:[%s118 + $0xf2] sm:$0x3]
        %v3612 = vld [vmem:[%s118 + $0xf4] sm:$0x3]
        %v3613 = vld [vmem:[%s118 + $0xf6] sm:$0x3]
        %v3614 = vld [vmem:[%s118 + $0xf8] sm:$0x3]
        %v3615 = vld [vmem:[%s118 + $0xfa] sm:$0x3]
        %v3616 = vld [vmem:[%s118 + $0xfc] sm:$0x3]
        %v3617 = vld [vmem:[%s118 + $0xfe] sm:$0x3]
        %v3618 = vld [vmem:[%s118 + $0x100] sm:$0x3]
        %v3619 = vld [vmem:[%s118 + $0x102] sm:$0x3]
        %v3620 = vld [vmem:[%s118 + $0x104] sm:$0x3]
        %v3621 = vld [vmem:[%s118 + $0x106] sm:$0x3]
        %v3622 = vld [vmem:[%s118 + $0x108] sm:$0x3]
        %v3623 = vld [vmem:[%s118 + $0x10a] sm:$0x3]
        %v3624 = vld [vmem:[%s118 + $0x10c] sm:$0x3]
        %v3625 = vld [vmem:[%s118 + $0x10e] sm:$0x3]
        %v3626 = vld [vmem:[%s118 + $0x110] sm:$0x3]
        %v3627 = vld [vmem:[%s118 + $0x112] sm:$0x3]
        %v3628 = vld [vmem:[%s118 + $0x114] sm:$0x3]
        %v3629 = vld [vmem:[%s118 + $0x116] sm:$0x3]
        %v3630 = vld [vmem:[%s118 + $0x118] sm:$0x3]
        %v3631 = vld [vmem:[%s118 + $0x11a] sm:$0x3]
        %v3632 = vld [vmem:[%s118 + $0x11c] sm:$0x3]
        %v3633 = vld [vmem:[%s118 + $0x11e] sm:$0x3]
        %v3634 = vld [vmem:[%s118 + $0x120] sm:$0x3]
        %v3635 = vld [vmem:[%s118 + $0x122] sm:$0x3]
        %v3636 = vld [vmem:[%s118 + $0x124] sm:$0x3]
        %v3637 = vld [vmem:[%s118 + $0x126] sm:$0x3]
        %v3638 = vld [vmem:[%s118 + $0x128] sm:$0x3]
        %v3639 = vld [vmem:[%s118 + $0x12a] sm:$0x3]
        %v3640 = vld [vmem:[%s118 + $0x12c] sm:$0x3]
        %v3641 = vld [vmem:[%s118 + $0x12e] sm:$0x3]
        %v3642 = vld [vmem:[%s118 + $0x130] sm:$0x3]
        %v3643 = vld [vmem:[%s118 + $0x132] sm:$0x3]
        %v3644 = vld [vmem:[%s118 + $0x134] sm:$0x3]
        %v3645 = vld [vmem:[%s118 + $0x136] sm:$0x3]
        %v3646 = vld [vmem:[%s118 + $0x138] sm:$0x3]
        %v3647 = vld [vmem:[%s118 + $0x13a] sm:$0x3]
        %v3648 = vld [vmem:[%s118 + $0x13c] sm:$0x3]
        %v3649 = vld [vmem:[%s118 + $0x13e] sm:$0x3]
        %v3650 = vld [vmem:[%s118 + $0x140] sm:$0x3]
        %v3651 = vld [vmem:[%s118 + $0x142] sm:$0x3]
        %v3652 = vld [vmem:[%s118 + $0x144] sm:$0x3]
        %v3653 = vld [vmem:[%s118 + $0x146] sm:$0x3]
        %v3654 = vld [vmem:[%s118 + $0x148] sm:$0x3]
        %v3655 = vld [vmem:[%s118 + $0x14a] sm:$0x3]
        %v3656 = vld [vmem:[%s118 + $0x14c] sm:$0x3]
        %v3657 = vld [vmem:[%s118 + $0x14e] sm:$0x3]
        %v3658 = vld [vmem:[%s118 + $0x150] sm:$0x3]
        %v3659 = vld [vmem:[%s118 + $0x152] sm:$0x3]
        %v3660 = vld [vmem:[%s118 + $0x154] sm:$0x3]
        %v3661 = vld [vmem:[%s118 + $0x156] sm:$0x3]
        %v3662 = vld [vmem:[%s118 + $0x158] sm:$0x3]
        %v3663 = vld [vmem:[%s118 + $0x15a] sm:$0x3]
        %v3664 = vld [vmem:[%s118 + $0x15c] sm:$0x3]
        %v3665 = vld [vmem:[%s118 + $0x15e] sm:$0x3]
        %v3666 = vld [vmem:[%s118 + $0x160] sm:$0x3]
        %v3667 = vld [vmem:[%s118 + $0x162] sm:$0x3]
        %v3668 = vld [vmem:[%s118 + $0x164] sm:$0x3]
        %v3669 = vld [vmem:[%s118 + $0x166] sm:$0x3]
        %v3670 = vld [vmem:[%s118 + $0x168] sm:$0x3]
        %v3671 = vld [vmem:[%s118 + $0x16a] sm:$0x3]
        %v3672 = vld [vmem:[%s118 + $0x16c] sm:$0x3]
        %v3673 = vld [vmem:[%s118 + $0x16e] sm:$0x3]
        %v3674 = vld [vmem:[%s118 + $0x170] sm:$0x3]
        %v3675 = vld [vmem:[%s118 + $0x172] sm:$0x3]
        %v3676 = vld [vmem:[%s118 + $0x174] sm:$0x3]
        %v3677 = vld [vmem:[%s118 + $0x176] sm:$0x3]
        %v3678 = vld [vmem:[%s118 + $0x178] sm:$0x3]
        %v3679 = vld [vmem:[%s118 + $0x17a] sm:$0x3]
        %v3680 = vld [vmem:[%s118 + $0x17c] sm:$0x3]
        %v3681 = vld [vmem:[%s118 + $0x17e] sm:$0x3]
        %v3682 = vld [vmem:[%s118 + $0x180] sm:$0x3]
        %v3683 = vld [vmem:[%s118 + $0x182] sm:$0x3]
        %v3684 = vld [vmem:[%s118 + $0x184] sm:$0x3]
        %v3685 = vld [vmem:[%s118 + $0x186] sm:$0x3]
        %v3686 = vld [vmem:[%s118 + $0x188] sm:$0x3]
        %v3687 = vld [vmem:[%s118 + $0x18a] sm:$0x3]
        %v3688 = vld [vmem:[%s118 + $0x18c] sm:$0x3]
        %v3689 = vld [vmem:[%s118 + $0x18e] sm:$0x3]
        %v3690 = vld [vmem:[%s118 + $0x190] sm:$0x3]
        %v3691 = vld [vmem:[%s118 + $0x192] sm:$0x3]
        %v3692 = vld [vmem:[%s118 + $0x194] sm:$0x3]
        %v3693 = vld [vmem:[%s118 + $0x196] sm:$0x3]
        %v3694 = vld [vmem:[%s118 + $0x198] sm:$0x3]
        %v3695 = vld [vmem:[%s118 + $0x19a] sm:$0x3]
        %v3696 = vld [vmem:[%s118 + $0x19c] sm:$0x3]
        %v3697 = vld [vmem:[%s118 + $0x19e] sm:$0x3]
        %v3698 = vld [vmem:[%s118 + $0x1a0] sm:$0x3]
        %v3699 = vld [vmem:[%s118 + $0x1a2] sm:$0x3]
        %v3700 = vld [vmem:[%s118 + $0x1a4] sm:$0x3]
        %v3701 = vld [vmem:[%s118 + $0x1a6] sm:$0x3]
        %v3702 = vld [vmem:[%s118 + $0x1a8] sm:$0x3]
        %v3703 = vld [vmem:[%s118 + $0x1aa] sm:$0x3]
        %v3704 = vld [vmem:[%s118 + $0x1ac] sm:$0x3]
        %v3705 = vld [vmem:[%s118 + $0x1ae] sm:$0x3]
        %v3706 = vld [vmem:[%s118 + $0x1b0] sm:$0x3]
        %v3707 = vld [vmem:[%s118 + $0x1b2] sm:$0x3]
        %v3708 = vld [vmem:[%s118 + $0x1b4] sm:$0x3]
        %v3709 = vld [vmem:[%s118 + $0x1b6] sm:$0x3]
        %v3710 = vld [vmem:[%s118 + $0x1b8] sm:$0x3]
        %v3711 = vld [vmem:[%s118 + $0x1ba] sm:$0x3]
        %v3712 = vld [vmem:[%s118 + $0x1bc] sm:$0x3]
        %v3713 = vld [vmem:[%s118 + $0x1be] sm:$0x3]
        %v3714 = vld [vmem:[%s118 + $0x1c0] sm:$0x3]
        %v3715 = vld [vmem:[%s118 + $0x1c2] sm:$0x3]
        %v3716 = vld [vmem:[%s118 + $0x1c4] sm:$0x3]
        %v3717 = vld [vmem:[%s118 + $0x1c6] sm:$0x3]
        %v3718 = vld [vmem:[%s118 + $0x1c8] sm:$0x3]
        %v3719 = vld [vmem:[%s118 + $0x1ca] sm:$0x3]
        %v3720 = vld [vmem:[%s118 + $0x1cc] sm:$0x3]
        %v3721 = vld [vmem:[%s118 + $0x1ce] sm:$0x3]
        %v3722 = vld [vmem:[%s118 + $0x1d0] sm:$0x3]
        %v3723 = vld [vmem:[%s118 + $0x1d2] sm:$0x3]
        %v3724 = vld [vmem:[%s118 + $0x1d4] sm:$0x3]
        %v3725 = vld [vmem:[%s118 + $0x1d6] sm:$0x3]
        %v3726 = vld [vmem:[%s118 + $0x1d8] sm:$0x3]
        %v3727 = vld [vmem:[%s118 + $0x1da] sm:$0x3]
        %v3728 = vld [vmem:[%s118 + $0x1dc] sm:$0x3]
        %v3729 = vld [vmem:[%s118 + $0x1de] sm:$0x3]
        %v3730 = vld [vmem:[%s118 + $0x1e0] sm:$0x3]
        %v3731 = vld [vmem:[%s118 + $0x1e2] sm:$0x3]
        %v3732 = vld [vmem:[%s118 + $0x1e4] sm:$0x3]
        %v3733 = vld [vmem:[%s118 + $0x1e6] sm:$0x3]
        %v3734 = vld [vmem:[%s118 + $0x1e8] sm:$0x3]
        %v3735 = vld [vmem:[%s118 + $0x1ea] sm:$0x3]
        %v3736 = vld [vmem:[%s118 + $0x1ec] sm:$0x3]
        %v3737 = vld [vmem:[%s118 + $0x1ee] sm:$0x3]
        %v3738 = vld [vmem:[%s118 + $0x1f0] sm:$0x3]
        %v3739 = vld [vmem:[%s118 + $0x1f2] sm:$0x3]
        %v3740 = vld [vmem:[%s118 + $0x1f4] sm:$0x3]
        %v3741 = vld [vmem:[%s118 + $0x1f6] sm:$0x3]
        %v3742 = vld [vmem:[%s118 + $0x1f8] sm:$0x3]
        %v3743 = vld [vmem:[%s118 + $0x1fa] sm:$0x3]
        %v3744 = vld [vmem:[%s118 + $0x1fc] sm:$0x3]
        %v3745 = vld [vmem:[%s118 + $0x1fe] sm:$0x3]
        %v3746 = vunpack.c.0.s8 %v3490
        %v3747 = vunpack.c.0.s8 %v3491
        %v3748 = vunpack.c.0.s8 %v3492
        %v3749 = vunpack.c.0.s8 %v3493
        %v3750 = vunpack.c.0.s8 %v3494
        %v3751 = vunpack.c.0.s8 %v3495
        %v3752 = vunpack.c.0.s8 %v3496
        %v3753 = vunpack.c.0.s8 %v3497
        %v3754 = vunpack.c.0.s8 %v3498
        %v3755 = vunpack.c.0.s8 %v3499
        %v3756 = vunpack.c.0.s8 %v3500
        %v3757 = vunpack.c.0.s8 %v3501
        %v3758 = vunpack.c.0.s8 %v3502
        %v3759 = vunpack.c.0.s8 %v3503
        %v3760 = vunpack.c.0.s8 %v3504
        %v3761 = vunpack.c.0.s8 %v3505
        %v3762 = vunpack.c.0.s8 %v3506
        %v3763 = vunpack.c.0.s8 %v3507
        %v3764 = vunpack.c.0.s8 %v3508
        %v3765 = vunpack.c.0.s8 %v3509
        %v3766 = vunpack.c.0.s8 %v3510
        %v3767 = vunpack.c.0.s8 %v3511
        %v3768 = vunpack.c.0.s8 %v3512
        %v3769 = vunpack.c.0.s8 %v3513
        %v3770 = vunpack.c.0.s8 %v3514
        %v3771 = vunpack.c.0.s8 %v3515
        %v3772 = vunpack.c.0.s8 %v3516
        %v3773 = vunpack.c.0.s8 %v3517
        %v3774 = vunpack.c.0.s8 %v3518
        %v3775 = vunpack.c.0.s8 %v3519
        %v3776 = vunpack.c.0.s8 %v3520
        %v3777 = vunpack.c.0.s8 %v3521
        %v3778 = vunpack.c.0.s8 %v3522
        %v3779 = vunpack.c.0.s8 %v3523
        %v3780 = vunpack.c.0.s8 %v3524
        %v3781 = vunpack.c.0.s8 %v3525
        %v3782 = vunpack.c.0.s8 %v3526
        %v3783 = vunpack.c.0.s8 %v3527
        %v3784 = vunpack.c.0.s8 %v3528
        %v3785 = vunpack.c.0.s8 %v3529
        %v3786 = vunpack.c.0.s8 %v3530
        %v3787 = vunpack.c.0.s8 %v3531
        %v3788 = vunpack.c.0.s8 %v3532
        %v3789 = vunpack.c.0.s8 %v3533
        %v3790 = vunpack.c.0.s8 %v3534
        %v3791 = vunpack.c.0.s8 %v3535
        %v3792 = vunpack.c.0.s8 %v3536
        %v3793 = vunpack.c.0.s8 %v3537
        %v3794 = vunpack.c.0.s8 %v3538
        %v3795 = vunpack.c.0.s8 %v3539
        %v3796 = vunpack.c.0.s8 %v3540
        %v3797 = vunpack.c.0.s8 %v3541
        %v3798 = vunpack.c.0.s8 %v3542
        %v3799 = vunpack.c.0.s8 %v3543
        %v3800 = vunpack.c.0.s8 %v3544
        %v3801 = vunpack.c.0.s8 %v3545
        %v3802 = vunpack.c.0.s8 %v3546
        %v3803 = vunpack.c.0.s8 %v3547
        %v3804 = vunpack.c.0.s8 %v3548
        %v3805 = vunpack.c.0.s8 %v3549
        %v3806 = vunpack.c.0.s8 %v3550
        %v3807 = vunpack.c.0.s8 %v3551
        %v3808 = vunpack.c.0.s8 %v3552
        %v3809 = vunpack.c.0.s8 %v3553
        %v3810 = vunpack.c.0.s8 %v3554
        %v3811 = vunpack.c.0.s8 %v3555
        %v3812 = vunpack.c.0.s8 %v3556
        %v3813 = vunpack.c.0.s8 %v3557
        %v3814 = vunpack.c.0.s8 %v3558
        %v3815 = vunpack.c.0.s8 %v3559
        %v3816 = vunpack.c.0.s8 %v3560
        %v3817 = vunpack.c.0.s8 %v3561
        %v3818 = vunpack.c.0.s8 %v3562
        %v3819 = vunpack.c.0.s8 %v3563
        %v3820 = vunpack.c.0.s8 %v3564
        %v3821 = vunpack.c.0.s8 %v3565
        %v3822 = vunpack.c.0.s8 %v3566
        %v3823 = vunpack.c.0.s8 %v3567
        %v3824 = vunpack.c.0.s8 %v3568
        %v3825 = vunpack.c.0.s8 %v3569
        %v3826 = vunpack.c.0.s8 %v3570
        %v3827 = vunpack.c.0.s8 %v3571
        %v3828 = vunpack.c.0.s8 %v3572
        %v3829 = vunpack.c.0.s8 %v3573
        %v3830 = vunpack.c.0.s8 %v3574
        %v3831 = vunpack.c.0.s8 %v3575
        %v3832 = vunpack.c.0.s8 %v3576
        %v3833 = vunpack.c.0.s8 %v3577
        %v3834 = vunpack.c.0.s8 %v3578
        %v3835 = vunpack.c.0.s8 %v3579
        %v3836 = vunpack.c.0.s8 %v3580
        %v3837 = vunpack.c.0.s8 %v3581
        %v3838 = vunpack.c.0.s8 %v3582
        %v3839 = vunpack.c.0.s8 %v3583
        %v3840 = vunpack.c.0.s8 %v3584
        %v3841 = vunpack.c.0.s8 %v3585
        %v3842 = vunpack.c.0.s8 %v3586
        %v3843 = vunpack.c.0.s8 %v3587
        %v3844 = vunpack.c.0.s8 %v3588
        %v3845 = vunpack.c.0.s8 %v3589
        %v3846 = vunpack.c.0.s8 %v3590
        %v3847 = vunpack.c.0.s8 %v3591
        %v3848 = vunpack.c.0.s8 %v3592
        %v3849 = vunpack.c.0.s8 %v3593
        %v3850 = vunpack.c.0.s8 %v3594
        %v3851 = vunpack.c.0.s8 %v3595
        %v3852 = vunpack.c.0.s8 %v3596
        %v3853 = vunpack.c.0.s8 %v3597
        %v3854 = vunpack.c.0.s8 %v3598
        %v3855 = vunpack.c.0.s8 %v3599
        %v3856 = vunpack.c.0.s8 %v3600
        %v3857 = vunpack.c.0.s8 %v3601
        %v3858 = vunpack.c.0.s8 %v3602
        %v3859 = vunpack.c.0.s8 %v3603
        %v3860 = vunpack.c.0.s8 %v3604
        %v3861 = vunpack.c.0.s8 %v3605
        %v3862 = vunpack.c.0.s8 %v3606
        %v3863 = vunpack.c.0.s8 %v3607
        %v3864 = vunpack.c.0.s8 %v3608
        %v3865 = vunpack.c.0.s8 %v3609
        %v3866 = vunpack.c.0.s8 %v3610
        %v3867 = vunpack.c.0.s8 %v3611
        %v3868 = vunpack.c.0.s8 %v3612
        %v3869 = vunpack.c.0.s8 %v3613
        %v3870 = vunpack.c.0.s8 %v3614
        %v3871 = vunpack.c.0.s8 %v3615
        %v3872 = vunpack.c.0.s8 %v3616
        %v3873 = vunpack.c.0.s8 %v3617
        %v3874 = vunpack.c.0.s8 %v3618
        %v3875 = vunpack.c.0.s8 %v3619
        %v3876 = vunpack.c.0.s8 %v3620
        %v3877 = vunpack.c.0.s8 %v3621
        %v3878 = vunpack.c.0.s8 %v3622
        %v3879 = vunpack.c.0.s8 %v3623
        %v3880 = vunpack.c.0.s8 %v3624
        %v3881 = vunpack.c.0.s8 %v3625
        %v3882 = vunpack.c.0.s8 %v3626
        %v3883 = vunpack.c.0.s8 %v3627
        %v3884 = vunpack.c.0.s8 %v3628
        %v3885 = vunpack.c.0.s8 %v3629
        %v3886 = vunpack.c.0.s8 %v3630
        %v3887 = vunpack.c.0.s8 %v3631
        %v3888 = vunpack.c.0.s8 %v3632
        %v3889 = vunpack.c.0.s8 %v3633
        %v3890 = vunpack.c.0.s8 %v3634
        %v3891 = vunpack.c.0.s8 %v3635
        %v3892 = vunpack.c.0.s8 %v3636
        %v3893 = vunpack.c.0.s8 %v3637
        %v3894 = vunpack.c.0.s8 %v3638
        %v3895 = vunpack.c.0.s8 %v3639
        %v3896 = vunpack.c.0.s8 %v3640
        %v3897 = vunpack.c.0.s8 %v3641
        %v3898 = vunpack.c.0.s8 %v3642
        %v3899 = vunpack.c.0.s8 %v3643
        %v3900 = vunpack.c.0.s8 %v3644
        %v3901 = vunpack.c.0.s8 %v3645
        %v3902 = vunpack.c.0.s8 %v3646
        %v3903 = vunpack.c.0.s8 %v3647
        %v3904 = vunpack.c.0.s8 %v3648
        %v3905 = vunpack.c.0.s8 %v3649
        %v3906 = vunpack.c.0.s8 %v3650
        %v3907 = vunpack.c.0.s8 %v3651
        %v3908 = vunpack.c.0.s8 %v3652
        %v3909 = vunpack.c.0.s8 %v3653
        %v3910 = vunpack.c.0.s8 %v3654
        %v3911 = vunpack.c.0.s8 %v3655
        %v3912 = vunpack.c.0.s8 %v3656
        %v3913 = vunpack.c.0.s8 %v3657
        %v3914 = vunpack.c.0.s8 %v3658
        %v3915 = vunpack.c.0.s8 %v3659
        %v3916 = vunpack.c.0.s8 %v3660
        %v3917 = vunpack.c.0.s8 %v3661
        %v3918 = vunpack.c.0.s8 %v3662
        %v3919 = vunpack.c.0.s8 %v3663
        %v3920 = vunpack.c.0.s8 %v3664
        %v3921 = vunpack.c.0.s8 %v3665
        %v3922 = vunpack.c.0.s8 %v3666
        %v3923 = vunpack.c.0.s8 %v3667
        %v3924 = vunpack.c.0.s8 %v3668
        %v3925 = vunpack.c.0.s8 %v3669
        %v3926 = vunpack.c.0.s8 %v3670
        %v3927 = vunpack.c.0.s8 %v3671
        %v3928 = vunpack.c.0.s8 %v3672
        %v3929 = vunpack.c.0.s8 %v3673
        %v3930 = vunpack.c.0.s8 %v3674
        %v3931 = vunpack.c.0.s8 %v3675
        %v3932 = vunpack.c.0.s8 %v3676
        %v3933 = vunpack.c.0.s8 %v3677
        %v3934 = vunpack.c.0.s8 %v3678
        %v3935 = vunpack.c.0.s8 %v3679
        %v3936 = vunpack.c.0.s8 %v3680
        %v3937 = vunpack.c.0.s8 %v3681
        %v3938 = vunpack.c.0.s8 %v3682
        %v3939 = vunpack.c.0.s8 %v3683
        %v3940 = vunpack.c.0.s8 %v3684
        %v3941 = vunpack.c.0.s8 %v3685
        %v3942 = vunpack.c.0.s8 %v3686
        %v3943 = vunpack.c.0.s8 %v3687
        %v3944 = vunpack.c.0.s8 %v3688
        %v3945 = vunpack.c.0.s8 %v3689
        %v3946 = vunpack.c.0.s8 %v3690
        %v3947 = vunpack.c.0.s8 %v3691
        %v3948 = vunpack.c.0.s8 %v3692
        %v3949 = vunpack.c.0.s8 %v3693
        %v3950 = vunpack.c.0.s8 %v3694
        %v3951 = vunpack.c.0.s8 %v3695
        %v3952 = vunpack.c.0.s8 %v3696
        %v3953 = vunpack.c.0.s8 %v3697
        %v3954 = vunpack.c.0.s8 %v3698
        %v3955 = vunpack.c.0.s8 %v3699
        %v3956 = vunpack.c.0.s8 %v3700
        %v3957 = vunpack.c.0.s8 %v3701
        %v3958 = vunpack.c.0.s8 %v3702
        %v3959 = vunpack.c.0.s8 %v3703
        %v3960 = vunpack.c.0.s8 %v3704
        %v3961 = vunpack.c.0.s8 %v3705
        %v3962 = vunpack.c.0.s8 %v3706
        %v3963 = vunpack.c.0.s8 %v3707
        %v3964 = vunpack.c.0.s8 %v3708
        %v3965 = vunpack.c.0.s8 %v3709
        %v3966 = vunpack.c.0.s8 %v3710
        %v3967 = vunpack.c.0.s8 %v3711
        %v3968 = vunpack.c.0.s8 %v3712
        %v3969 = vunpack.c.0.s8 %v3713
        %v3970 = vunpack.c.0.s8 %v3714
        %v3971 = vunpack.c.0.s8 %v3715
        %v3972 = vunpack.c.0.s8 %v3716
        %v3973 = vunpack.c.0.s8 %v3717
        %v3974 = vunpack.c.0.s8 %v3718
        %v3975 = vunpack.c.0.s8 %v3719
        %v3976 = vunpack.c.0.s8 %v3720
        %v3977 = vunpack.c.0.s8 %v3721
        %v3978 = vunpack.c.0.s8 %v3722
        %v3979 = vunpack.c.0.s8 %v3723
        %v3980 = vunpack.c.0.s8 %v3724
        %v3981 = vunpack.c.0.s8 %v3725
        %v3982 = vunpack.c.0.s8 %v3726
        %v3983 = vunpack.c.0.s8 %v3727
        %v3984 = vunpack.c.0.s8 %v3728
        %v3985 = vunpack.c.0.s8 %v3729
        %v3986 = vunpack.c.0.s8 %v3730
        %v3987 = vunpack.c.0.s8 %v3731
        %v3988 = vunpack.c.0.s8 %v3732
        %v3989 = vunpack.c.0.s8 %v3733
        %v3990 = vunpack.c.0.s8 %v3734
        %v3991 = vunpack.c.0.s8 %v3735
        %v3992 = vunpack.c.0.s8 %v3736
        %v3993 = vunpack.c.0.s8 %v3737
        %v3994 = vunpack.c.0.s8 %v3738
        %v3995 = vunpack.c.0.s8 %v3739
        %v3996 = vunpack.c.0.s8 %v3740
        %v3997 = vunpack.c.0.s8 %v3741
        %v3998 = vunpack.c.0.s8 %v3742
        %v3999 = vunpack.c.0.s8 %v3743
        %v4000 = vunpack.c.0.s8 %v3744
        %v4001 = vunpack.c.0.s8 %v3745
        %v4002 = vand.u32 %v3746, 255
        %v4003 = vand.u32 %v3747, 255
        %v4004 = vand.u32 %v3748, 255
        %v4005 = vand.u32 %v3749, 255
        %v4006 = vand.u32 %v3750, 255
        %v4007 = vand.u32 %v3751, 255
        %v4008 = vand.u32 %v3752, 255
        %v4009 = vand.u32 %v3753, 255
        %v4010 = vand.u32 %v3754, 255
        %v4011 = vand.u32 %v3755, 255
        %v4012 = vand.u32 %v3756, 255
        %v4013 = vand.u32 %v3757, 255
        %v4014 = vand.u32 %v3758, 255
        %v4015 = vand.u32 %v3759, 255
        %v4016 = vand.u32 %v3760, 255
        %v4017 = vand.u32 %v3761, 255
        %v4018 = vand.u32 %v3762, 255
        %v4019 = vand.u32 %v3763, 255
        %v4020 = vand.u32 %v3764, 255
        %v4021 = vand.u32 %v3765, 255
        %v4022 = vand.u32 %v3766, 255
        %v4023 = vand.u32 %v3767, 255
        %v4024 = vand.u32 %v3768, 255
        %v4025 = vand.u32 %v3769, 255
        %v4026 = vand.u32 %v3770, 255
        %v4027 = vand.u32 %v3771, 255
        %v4028 = vand.u32 %v3772, 255
        %v4029 = vand.u32 %v3773, 255
        %v4030 = vand.u32 %v3774, 255
        %v4031 = vand.u32 %v3775, 255
        %v4032 = vand.u32 %v3776, 255
        %v4033 = vand.u32 %v3777, 255
        %v4034 = vand.u32 %v3778, 255
        %v4035 = vand.u32 %v3779, 255
        %v4036 = vand.u32 %v3780, 255
        %v4037 = vand.u32 %v3781, 255
        %v4038 = vand.u32 %v3782, 255
        %v4039 = vand.u32 %v3783, 255
        %v4040 = vand.u32 %v3784, 255
        %v4041 = vand.u32 %v3785, 255
        %v4042 = vand.u32 %v3786, 255
        %v4043 = vand.u32 %v3787, 255
        %v4044 = vand.u32 %v3788, 255
        %v4045 = vand.u32 %v3789, 255
        %v4046 = vand.u32 %v3790, 255
        %v4047 = vand.u32 %v3791, 255
        %v4048 = vand.u32 %v3792, 255
        %v4049 = vand.u32 %v3793, 255
        %v4050 = vand.u32 %v3794, 255
        %v4051 = vand.u32 %v3795, 255
        %v4052 = vand.u32 %v3796, 255
        %v4053 = vand.u32 %v3797, 255
        %v4054 = vand.u32 %v3798, 255
        %v4055 = vand.u32 %v3799, 255
        %v4056 = vand.u32 %v3800, 255
        %v4057 = vand.u32 %v3801, 255
        %v4058 = vand.u32 %v3802, 255
        %v4059 = vand.u32 %v3803, 255
        %v4060 = vand.u32 %v3804, 255
        %v4061 = vand.u32 %v3805, 255
        %v4062 = vand.u32 %v3806, 255
        %v4063 = vand.u32 %v3807, 255
        %v4064 = vand.u32 %v3808, 255
        %v4065 = vand.u32 %v3809, 255
        %v4066 = vand.u32 %v3810, 255
        %v4067 = vand.u32 %v3811, 255
        %v4068 = vand.u32 %v3812, 255
        %v4069 = vand.u32 %v3813, 255
        %v4070 = vand.u32 %v3814, 255
        %v4071 = vand.u32 %v3815, 255
        %v4072 = vand.u32 %v3816, 255
        %v4073 = vand.u32 %v3817, 255
        %v4074 = vand.u32 %v3818, 255
        %v4075 = vand.u32 %v3819, 255
        %v4076 = vand.u32 %v3820, 255
        %v4077 = vand.u32 %v3821, 255
        %v4078 = vand.u32 %v3822, 255
        %v4079 = vand.u32 %v3823, 255
        %v4080 = vand.u32 %v3824, 255
        %v4081 = vand.u32 %v3825, 255
        %v4082 = vand.u32 %v3826, 255
        %v4083 = vand.u32 %v3827, 255
        %v4084 = vand.u32 %v3828, 255
        %v4085 = vand.u32 %v3829, 255
        %v4086 = vand.u32 %v3830, 255
        %v4087 = vand.u32 %v3831, 255
        %v4088 = vand.u32 %v3832, 255
        %v4089 = vand.u32 %v3833, 255
        %v4090 = vand.u32 %v3834, 255
        %v4091 = vand.u32 %v3835, 255
        %v4092 = vand.u32 %v3836, 255
        %v4093 = vand.u32 %v3837, 255
        %v4094 = vand.u32 %v3838, 255
        %v4095 = vand.u32 %v3839, 255
        %v4096 = vand.u32 %v3840, 255
        %v4097 = vand.u32 %v3841, 255
        %v4098 = vand.u32 %v3842, 255
        %v4099 = vand.u32 %v3843, 255
        %v4100 = vand.u32 %v3844, 255
        %v4101 = vand.u32 %v3845, 255
        %v4102 = vand.u32 %v3846, 255
        %v4103 = vand.u32 %v3847, 255
        %v4104 = vand.u32 %v3848, 255
        %v4105 = vand.u32 %v3849, 255
        %v4106 = vand.u32 %v3850, 255
        %v4107 = vand.u32 %v3851, 255
        %v4108 = vand.u32 %v3852, 255
        %v4109 = vand.u32 %v3853, 255
        %v4110 = vand.u32 %v3854, 255
        %v4111 = vand.u32 %v3855, 255
        %v4112 = vand.u32 %v3856, 255
        %v4113 = vand.u32 %v3857, 255
        %v4114 = vand.u32 %v3858, 255
        %v4115 = vand.u32 %v3859, 255
        %v4116 = vand.u32 %v3860, 255
        %v4117 = vand.u32 %v3861, 255
        %v4118 = vand.u32 %v3862, 255
        %v4119 = vand.u32 %v3863, 255
        %v4120 = vand.u32 %v3864, 255
        %v4121 = vand.u32 %v3865, 255
        %v4122 = vand.u32 %v3866, 255
        %v4123 = vand.u32 %v3867, 255
        %v4124 = vand.u32 %v3868, 255
        %v4125 = vand.u32 %v3869, 255
        %v4126 = vand.u32 %v3870, 255
        %v4127 = vand.u32 %v3871, 255
        %v4128 = vand.u32 %v3872, 255
        %v4129 = vand.u32 %v3873, 255
        %v4130 = vand.u32 %v3874, 255
        %v4131 = vand.u32 %v3875, 255
        %v4132 = vand.u32 %v3876, 255
        %v4133 = vand.u32 %v3877, 255
        %v4134 = vand.u32 %v3878, 255
        %v4135 = vand.u32 %v3879, 255
        %v4136 = vand.u32 %v3880, 255
        %v4137 = vand.u32 %v3881, 255
        %v4138 = vand.u32 %v3882, 255
        %v4139 = vand.u32 %v3883, 255
        %v4140 = vand.u32 %v3884, 255
        %v4141 = vand.u32 %v3885, 255
        %v4142 = vand.u32 %v3886, 255
        %v4143 = vand.u32 %v3887, 255
        %v4144 = vand.u32 %v3888, 255
        %v4145 = vand.u32 %v3889, 255
        %v4146 = vand.u32 %v3890, 255
        %v4147 = vand.u32 %v3891, 255
        %v4148 = vand.u32 %v3892, 255
        %v4149 = vand.u32 %v3893, 255
        %v4150 = vand.u32 %v3894, 255
        %v4151 = vand.u32 %v3895, 255
        %v4152 = vand.u32 %v3896, 255
        %v4153 = vand.u32 %v3897, 255
        %v4154 = vand.u32 %v3898, 255
        %v4155 = vand.u32 %v3899, 255
        %v4156 = vand.u32 %v3900, 255
        %v4157 = vand.u32 %v3901, 255
        %v4158 = vand.u32 %v3902, 255
        %v4159 = vand.u32 %v3903, 255
        %v4160 = vand.u32 %v3904, 255
        %v4161 = vand.u32 %v3905, 255
        %v4162 = vand.u32 %v3906, 255
        %v4163 = vand.u32 %v3907, 255
        %v4164 = vand.u32 %v3908, 255
        %v4165 = vand.u32 %v3909, 255
        %v4166 = vand.u32 %v3910, 255
        %v4167 = vand.u32 %v3911, 255
        %v4168 = vand.u32 %v3912, 255
        %v4169 = vand.u32 %v3913, 255
        %v4170 = vand.u32 %v3914, 255
        %v4171 = vand.u32 %v3915, 255
        %v4172 = vand.u32 %v3916, 255
        %v4173 = vand.u32 %v3917, 255
        %v4174 = vand.u32 %v3918, 255
        %v4175 = vand.u32 %v3919, 255
        %v4176 = vand.u32 %v3920, 255
        %v4177 = vand.u32 %v3921, 255
        %v4178 = vand.u32 %v3922, 255
        %v4179 = vand.u32 %v3923, 255
        %v4180 = vand.u32 %v3924, 255
        %v4181 = vand.u32 %v3925, 255
        %v4182 = vand.u32 %v3926, 255
        %v4183 = vand.u32 %v3927, 255
        %v4184 = vand.u32 %v3928, 255
        %v4185 = vand.u32 %v3929, 255
        %v4186 = vand.u32 %v3930, 255
        %v4187 = vand.u32 %v3931, 255
        %v4188 = vand.u32 %v3932, 255
        %v4189 = vand.u32 %v3933, 255
        %v4190 = vand.u32 %v3934, 255
        %v4191 = vand.u32 %v3935, 255
        %v4192 = vand.u32 %v3936, 255
        %v4193 = vand.u32 %v3937, 255
        %v4194 = vand.u32 %v3938, 255
        %v4195 = vand.u32 %v3939, 255
        %v4196 = vand.u32 %v3940, 255
        %v4197 = vand.u32 %v3941, 255
        %v4198 = vand.u32 %v3942, 255
        %v4199 = vand.u32 %v3943, 255
        %v4200 = vand.u32 %v3944, 255
        %v4201 = vand.u32 %v3945, 255
        %v4202 = vand.u32 %v3946, 255
        %v4203 = vand.u32 %v3947, 255
        %v4204 = vand.u32 %v3948, 255
        %v4205 = vand.u32 %v3949, 255
        %v4206 = vand.u32 %v3950, 255
        %v4207 = vand.u32 %v3951, 255
        %v4208 = vand.u32 %v3952, 255
        %v4209 = vand.u32 %v3953, 255
        %v4210 = vand.u32 %v3954, 255
        %v4211 = vand.u32 %v3955, 255
        %v4212 = vand.u32 %v3956, 255
        %v4213 = vand.u32 %v3957, 255
        %v4214 = vand.u32 %v3958, 255
        %v4215 = vand.u32 %v3959, 255
        %v4216 = vand.u32 %v3960, 255
        %v4217 = vand.u32 %v3961, 255
        %v4218 = vand.u32 %v3962, 255
        %v4219 = vand.u32 %v3963, 255
        %v4220 = vand.u32 %v3964, 255
        %v4221 = vand.u32 %v3965, 255
        %v4222 = vand.u32 %v3966, 255
        %v4223 = vand.u32 %v3967, 255
        %v4224 = vand.u32 %v3968, 255
        %v4225 = vand.u32 %v3969, 255
        %v4226 = vand.u32 %v3970, 255
        %v4227 = vand.u32 %v3971, 255
        %v4228 = vand.u32 %v3972, 255
        %v4229 = vand.u32 %v3973, 255
        %v4230 = vand.u32 %v3974, 255
        %v4231 = vand.u32 %v3975, 255
        %v4232 = vand.u32 %v3976, 255
        %v4233 = vand.u32 %v3977, 255
        %v4234 = vand.u32 %v3978, 255
        %v4235 = vand.u32 %v3979, 255
        %v4236 = vand.u32 %v3980, 255
        %v4237 = vand.u32 %v3981, 255
        %v4238 = vand.u32 %v3982, 255
        %v4239 = vand.u32 %v3983, 255
        %v4240 = vand.u32 %v3984, 255
        %v4241 = vand.u32 %v3985, 255
        %v4242 = vand.u32 %v3986, 255
        %v4243 = vand.u32 %v3987, 255
        %v4244 = vand.u32 %v3988, 255
        %v4245 = vand.u32 %v3989, 255
        %v4246 = vand.u32 %v3990, 255
        %v4247 = vand.u32 %v3991, 255
        %v4248 = vand.u32 %v3992, 255
        %v4249 = vand.u32 %v3993, 255
        %v4250 = vand.u32 %v3994, 255
        %v4251 = vand.u32 %v3995, 255
        %v4252 = vand.u32 %v3996, 255
        %v4253 = vand.u32 %v3997, 255
        %v4254 = vand.u32 %v3998, 255
        %v4255 = vand.u32 %v3999, 255
        %v4256 = vand.u32 %v4000, 255
        %v4257 = vand.u32 %v4001, 255
        %v4258 = vcvt.s32.f32 %v4002
        %v4259 = vcvt.s32.f32 %v4003
        %v4260 = vcvt.s32.f32 %v4004
        %v4261 = vcvt.s32.f32 %v4005
        %v4262 = vcvt.s32.f32 %v4006
        %v4263 = vcvt.s32.f32 %v4007
        %v4264 = vcvt.s32.f32 %v4008
        %v4265 = vcvt.s32.f32 %v4009
        %v4266 = vcvt.s32.f32 %v4010
        %v4267 = vcvt.s32.f32 %v4011
        %v4268 = vcvt.s32.f32 %v4012
        %v4269 = vcvt.s32.f32 %v4013
        %v4270 = vcvt.s32.f32 %v4014
        %v4271 = vcvt.s32.f32 %v4015
        %v4272 = vcvt.s32.f32 %v4016
        %v4273 = vcvt.s32.f32 %v4017
        %v4274 = vcvt.s32.f32 %v4018
        %v4275 = vcvt.s32.f32 %v4019
        %v4276 = vcvt.s32.f32 %v4020
        %v4277 = vcvt.s32.f32 %v4021
        %v4278 = vcvt.s32.f32 %v4022
        %v4279 = vcvt.s32.f32 %v4023
        %v4280 = vcvt.s32.f32 %v4024
        %v4281 = vcvt.s32.f32 %v4025
        %v4282 = vcvt.s32.f32 %v4026
        %v4283 = vcvt.s32.f32 %v4027
        %v4284 = vcvt.s32.f32 %v4028
        %v4285 = vcvt.s32.f32 %v4029
        %v4286 = vcvt.s32.f32 %v4030
        %v4287 = vcvt.s32.f32 %v4031
        %v4288 = vcvt.s32.f32 %v4032
        %v4289 = vcvt.s32.f32 %v4033
        %v4290 = vcvt.s32.f32 %v4034
        %v4291 = vcvt.s32.f32 %v4035
        %v4292 = vcvt.s32.f32 %v4036
        %v4293 = vcvt.s32.f32 %v4037
        %v4294 = vcvt.s32.f32 %v4038
        %v4295 = vcvt.s32.f32 %v4039
        %v4296 = vcvt.s32.f32 %v4040
        %v4297 = vcvt.s32.f32 %v4041
        %v4298 = vcvt.s32.f32 %v4042
        %v4299 = vcvt.s32.f32 %v4043
        %v4300 = vcvt.s32.f32 %v4044
        %v4301 = vcvt.s32.f32 %v4045
        %v4302 = vcvt.s32.f32 %v4046
        %v4303 = vcvt.s32.f32 %v4047
        %v4304 = vcvt.s32.f32 %v4048
        %v4305 = vcvt.s32.f32 %v4049
        %v4306 = vcvt.s32.f32 %v4050
        %v4307 = vcvt.s32.f32 %v4051
        %v4308 = vcvt.s32.f32 %v4052
        %v4309 = vcvt.s32.f32 %v4053
        %v4310 = vcvt.s32.f32 %v4054
        %v4311 = vcvt.s32.f32 %v4055
        %v4312 = vcvt.s32.f32 %v4056
        %v4313 = vcvt.s32.f32 %v4057
        %v4314 = vcvt.s32.f32 %v4058
        %v4315 = vcvt.s32.f32 %v4059
        %v4316 = vcvt.s32.f32 %v4060
        %v4317 = vcvt.s32.f32 %v4061
        %v4318 = vcvt.s32.f32 %v4062
        %v4319 = vcvt.s32.f32 %v4063
        %v4320 = vcvt.s32.f32 %v4064
        %v4321 = vcvt.s32.f32 %v4065
        %v4322 = vcvt.s32.f32 %v4066
        %v4323 = vcvt.s32.f32 %v4067
        %v4324 = vcvt.s32.f32 %v4068
        %v4325 = vcvt.s32.f32 %v4069
        %v4326 = vcvt.s32.f32 %v4070
        %v4327 = vcvt.s32.f32 %v4071
        %v4328 = vcvt.s32.f32 %v4072
        %v4329 = vcvt.s32.f32 %v4073
        %v4330 = vcvt.s32.f32 %v4074
        %v4331 = vcvt.s32.f32 %v4075
        %v4332 = vcvt.s32.f32 %v4076
        %v4333 = vcvt.s32.f32 %v4077
        %v4334 = vcvt.s32.f32 %v4078
        %v4335 = vcvt.s32.f32 %v4079
        %v4336 = vcvt.s32.f32 %v4080
        %v4337 = vcvt.s32.f32 %v4081
        %v4338 = vcvt.s32.f32 %v4082
        %v4339 = vcvt.s32.f32 %v4083
        %v4340 = vcvt.s32.f32 %v4084
        %v4341 = vcvt.s32.f32 %v4085
        %v4342 = vcvt.s32.f32 %v4086
        %v4343 = vcvt.s32.f32 %v4087
        %v4344 = vcvt.s32.f32 %v4088
        %v4345 = vcvt.s32.f32 %v4089
        %v4346 = vcvt.s32.f32 %v4090
        %v4347 = vcvt.s32.f32 %v4091
        %v4348 = vcvt.s32.f32 %v4092
        %v4349 = vcvt.s32.f32 %v4093
        %v4350 = vcvt.s32.f32 %v4094
        %v4351 = vcvt.s32.f32 %v4095
        %v4352 = vcvt.s32.f32 %v4096
        %v4353 = vcvt.s32.f32 %v4097
        %v4354 = vcvt.s32.f32 %v4098
        %v4355 = vcvt.s32.f32 %v4099
        %v4356 = vcvt.s32.f32 %v4100
        %v4357 = vcvt.s32.f32 %v4101
        %v4358 = vcvt.s32.f32 %v4102
        %v4359 = vcvt.s32.f32 %v4103
        %v4360 = vcvt.s32.f32 %v4104
        %v4361 = vcvt.s32.f32 %v4105
        %v4362 = vcvt.s32.f32 %v4106
        %v4363 = vcvt.s32.f32 %v4107
        %v4364 = vcvt.s32.f32 %v4108
        %v4365 = vcvt.s32.f32 %v4109
        %v4366 = vcvt.s32.f32 %v4110
        %v4367 = vcvt.s32.f32 %v4111
        %v4368 = vcvt.s32.f32 %v4112
        %v4369 = vcvt.s32.f32 %v4113
        %v4370 = vcvt.s32.f32 %v4114
        %v4371 = vcvt.s32.f32 %v4115
        %v4372 = vcvt.s32.f32 %v4116
        %v4373 = vcvt.s32.f32 %v4117
        %v4374 = vcvt.s32.f32 %v4118
        %v4375 = vcvt.s32.f32 %v4119
        %v4376 = vcvt.s32.f32 %v4120
        %v4377 = vcvt.s32.f32 %v4121
        %v4378 = vcvt.s32.f32 %v4122
        %v4379 = vcvt.s32.f32 %v4123
        %v4380 = vcvt.s32.f32 %v4124
        %v4381 = vcvt.s32.f32 %v4125
        %v4382 = vcvt.s32.f32 %v4126
        %v4383 = vcvt.s32.f32 %v4127
        %v4384 = vcvt.s32.f32 %v4128
        %v4385 = vcvt.s32.f32 %v4129
        %v4386 = vcvt.s32.f32 %v4130
        %v4387 = vcvt.s32.f32 %v4131
        %v4388 = vcvt.s32.f32 %v4132
        %v4389 = vcvt.s32.f32 %v4133
        %v4390 = vcvt.s32.f32 %v4134
        %v4391 = vcvt.s32.f32 %v4135
        %v4392 = vcvt.s32.f32 %v4136
        %v4393 = vcvt.s32.f32 %v4137
        %v4394 = vcvt.s32.f32 %v4138
        %v4395 = vcvt.s32.f32 %v4139
        %v4396 = vcvt.s32.f32 %v4140
        %v4397 = vcvt.s32.f32 %v4141
        %v4398 = vcvt.s32.f32 %v4142
        %v4399 = vcvt.s32.f32 %v4143
        %v4400 = vcvt.s32.f32 %v4144
        %v4401 = vcvt.s32.f32 %v4145
        %v4402 = vcvt.s32.f32 %v4146
        %v4403 = vcvt.s32.f32 %v4147
        %v4404 = vcvt.s32.f32 %v4148
        %v4405 = vcvt.s32.f32 %v4149
        %v4406 = vcvt.s32.f32 %v4150
        %v4407 = vcvt.s32.f32 %v4151
        %v4408 = vcvt.s32.f32 %v4152
        %v4409 = vcvt.s32.f32 %v4153
        %v4410 = vcvt.s32.f32 %v4154
        %v4411 = vcvt.s32.f32 %v4155
        %v4412 = vcvt.s32.f32 %v4156
        %v4413 = vcvt.s32.f32 %v4157
        %v4414 = vcvt.s32.f32 %v4158
        %v4415 = vcvt.s32.f32 %v4159
        %v4416 = vcvt.s32.f32 %v4160
        %v4417 = vcvt.s32.f32 %v4161
        %v4418 = vcvt.s32.f32 %v4162
        %v4419 = vcvt.s32.f32 %v4163
        %v4420 = vcvt.s32.f32 %v4164
        %v4421 = vcvt.s32.f32 %v4165
        %v4422 = vcvt.s32.f32 %v4166
        %v4423 = vcvt.s32.f32 %v4167
        %v4424 = vcvt.s32.f32 %v4168
        %v4425 = vcvt.s32.f32 %v4169
        %v4426 = vcvt.s32.f32 %v4170
        %v4427 = vcvt.s32.f32 %v4171
        %v4428 = vcvt.s32.f32 %v4172
        %v4429 = vcvt.s32.f32 %v4173
        %v4430 = vcvt.s32.f32 %v4174
        %v4431 = vcvt.s32.f32 %v4175
        %v4432 = vcvt.s32.f32 %v4176
        %v4433 = vcvt.s32.f32 %v4177
        %v4434 = vcvt.s32.f32 %v4178
        %v4435 = vcvt.s32.f32 %v4179
        %v4436 = vcvt.s32.f32 %v4180
        %v4437 = vcvt.s32.f32 %v4181
        %v4438 = vcvt.s32.f32 %v4182
        %v4439 = vcvt.s32.f32 %v4183
        %v4440 = vcvt.s32.f32 %v4184
        %v4441 = vcvt.s32.f32 %v4185
        %v4442 = vcvt.s32.f32 %v4186
        %v4443 = vcvt.s32.f32 %v4187
        %v4444 = vcvt.s32.f32 %v4188
        %v4445 = vcvt.s32.f32 %v4189
        %v4446 = vcvt.s32.f32 %v4190
        %v4447 = vcvt.s32.f32 %v4191
        %v4448 = vcvt.s32.f32 %v4192
        %v4449 = vcvt.s32.f32 %v4193
        %v4450 = vcvt.s32.f32 %v4194
        %v4451 = vcvt.s32.f32 %v4195
        %v4452 = vcvt.s32.f32 %v4196
        %v4453 = vcvt.s32.f32 %v4197
        %v4454 = vcvt.s32.f32 %v4198
        %v4455 = vcvt.s32.f32 %v4199
        %v4456 = vcvt.s32.f32 %v4200
        %v4457 = vcvt.s32.f32 %v4201
        %v4458 = vcvt.s32.f32 %v4202
        %v4459 = vcvt.s32.f32 %v4203
        %v4460 = vcvt.s32.f32 %v4204
        %v4461 = vcvt.s32.f32 %v4205
        %v4462 = vcvt.s32.f32 %v4206
        %v4463 = vcvt.s32.f32 %v4207
        %v4464 = vcvt.s32.f32 %v4208
        %v4465 = vcvt.s32.f32 %v4209
        %v4466 = vcvt.s32.f32 %v4210
        %v4467 = vcvt.s32.f32 %v4211
        %v4468 = vcvt.s32.f32 %v4212
        %v4469 = vcvt.s32.f32 %v4213
        %v4470 = vcvt.s32.f32 %v4214
        %v4471 = vcvt.s32.f32 %v4215
        %v4472 = vcvt.s32.f32 %v4216
        %v4473 = vcvt.s32.f32 %v4217
        %v4474 = vcvt.s32.f32 %v4218
        %v4475 = vcvt.s32.f32 %v4219
        %v4476 = vcvt.s32.f32 %v4220
        %v4477 = vcvt.s32.f32 %v4221
        %v4478 = vcvt.s32.f32 %v4222
        %v4479 = vcvt.s32.f32 %v4223
        %v4480 = vcvt.s32.f32 %v4224
        %v4481 = vcvt.s32.f32 %v4225
        %v4482 = vcvt.s32.f32 %v4226
        %v4483 = vcvt.s32.f32 %v4227
        %v4484 = vcvt.s32.f32 %v4228
        %v4485 = vcvt.s32.f32 %v4229
        %v4486 = vcvt.s32.f32 %v4230
        %v4487 = vcvt.s32.f32 %v4231
        %v4488 = vcvt.s32.f32 %v4232
        %v4489 = vcvt.s32.f32 %v4233
        %v4490 = vcvt.s32.f32 %v4234
        %v4491 = vcvt.s32.f32 %v4235
        %v4492 = vcvt.s32.f32 %v4236
        %v4493 = vcvt.s32.f32 %v4237
        %v4494 = vcvt.s32.f32 %v4238
        %v4495 = vcvt.s32.f32 %v4239
        %v4496 = vcvt.s32.f32 %v4240
        %v4497 = vcvt.s32.f32 %v4241
        %v4498 = vcvt.s32.f32 %v4242
        %v4499 = vcvt.s32.f32 %v4243
        %v4500 = vcvt.s32.f32 %v4244
        %v4501 = vcvt.s32.f32 %v4245
        %v4502 = vcvt.s32.f32 %v4246
        %v4503 = vcvt.s32.f32 %v4247
        %v4504 = vcvt.s32.f32 %v4248
        %v4505 = vcvt.s32.f32 %v4249
        %v4506 = vcvt.s32.f32 %v4250
        %v4507 = vcvt.s32.f32 %v4251
        %v4508 = vcvt.s32.f32 %v4252
        %v4509 = vcvt.s32.f32 %v4253
        %v4510 = vcvt.s32.f32 %v4254
        %v4511 = vcvt.s32.f32 %v4255
        %v4512 = vcvt.s32.f32 %v4256
        %v4513 = vcvt.s32.f32 %v4257
        %4770 = vset.pattern.permute.xlu0 1
        %4771 = vperm.xlu0 %4770, %v4258
        %v4772 = vpop.permute.xlu0 %4771
        %4773 = vset.pattern.permute.xlu0 1
        %4774 = vperm.xlu0 %4773, %v4259
        %v4775 = vpop.permute.xlu0 %4774
        %4776 = vset.pattern.permute.xlu0 1
        %4777 = vperm.xlu0 %4776, %v4260
        %v4778 = vpop.permute.xlu0 %4777
        %4779 = vset.pattern.permute.xlu0 1
        %4780 = vperm.xlu0 %4779, %v4261
        %v4781 = vpop.permute.xlu0 %4780
        %4782 = vset.pattern.permute.xlu0 1
        %4783 = vperm.xlu0 %4782, %v4262
        %v4784 = vpop.permute.xlu0 %4783
        %4785 = vset.pattern.permute.xlu0 1
        %4786 = vperm.xlu0 %4785, %v4263
        %v4787 = vpop.permute.xlu0 %4786
        %4788 = vset.pattern.permute.xlu0 1
        %4789 = vperm.xlu0 %4788, %v4264
        %v4790 = vpop.permute.xlu0 %4789
        %4791 = vset.pattern.permute.xlu0 1
        %4792 = vperm.xlu0 %4791, %v4265
        %v4793 = vpop.permute.xlu0 %4792
        %4794 = vset.pattern.permute.xlu0 1
        %4795 = vperm.xlu0 %4794, %v4266
        %v4796 = vpop.permute.xlu0 %4795
        %4797 = vset.pattern.permute.xlu0 1
        %4798 = vperm.xlu0 %4797, %v4267
        %v4799 = vpop.permute.xlu0 %4798
        %4800 = vset.pattern.permute.xlu0 1
        %4801 = vperm.xlu0 %4800, %v4268
        %v4802 = vpop.permute.xlu0 %4801
        %4803 = vset.pattern.permute.xlu0 1
        %4804 = vperm.xlu0 %4803, %v4269
        %v4805 = vpop.permute.xlu0 %4804
        %4806 = vset.pattern.permute.xlu0 1
        %4807 = vperm.xlu0 %4806, %v4270
        %v4808 = vpop.permute.xlu0 %4807
        %4809 = vset.pattern.permute.xlu0 1
        %4810 = vperm.xlu0 %4809, %v4271
        %v4811 = vpop.permute.xlu0 %4810
        %4812 = vset.pattern.permute.xlu0 1
        %4813 = vperm.xlu0 %4812, %v4272
        %v4814 = vpop.permute.xlu0 %4813
        %4815 = vset.pattern.permute.xlu0 1
        %4816 = vperm.xlu0 %4815, %v4273
        %v4817 = vpop.permute.xlu0 %4816
        %4818 = vset.pattern.permute.xlu0 1
        %4819 = vperm.xlu0 %4818, %v4274
        %v4820 = vpop.permute.xlu0 %4819
        %4821 = vset.pattern.permute.xlu0 1
        %4822 = vperm.xlu0 %4821, %v4275
        %v4823 = vpop.permute.xlu0 %4822
        %4824 = vset.pattern.permute.xlu0 1
        %4825 = vperm.xlu0 %4824, %v4276
        %v4826 = vpop.permute.xlu0 %4825
        %4827 = vset.pattern.permute.xlu0 1
        %4828 = vperm.xlu0 %4827, %v4277
        %v4829 = vpop.permute.xlu0 %4828
        %4830 = vset.pattern.permute.xlu0 1
        %4831 = vperm.xlu0 %4830, %v4278
        %v4832 = vpop.permute.xlu0 %4831
        %4833 = vset.pattern.permute.xlu0 1
        %4834 = vperm.xlu0 %4833, %v4279
        %v4835 = vpop.permute.xlu0 %4834
        %4836 = vset.pattern.permute.xlu0 1
        %4837 = vperm.xlu0 %4836, %v4280
        %v4838 = vpop.permute.xlu0 %4837
        %4839 = vset.pattern.permute.xlu0 1
        %4840 = vperm.xlu0 %4839, %v4281
        %v4841 = vpop.permute.xlu0 %4840
        %4842 = vset.pattern.permute.xlu0 1
        %4843 = vperm.xlu0 %4842, %v4282
        %v4844 = vpop.permute.xlu0 %4843
        %4845 = vset.pattern.permute.xlu0 1
        %4846 = vperm.xlu0 %4845, %v4283
        %v4847 = vpop.permute.xlu0 %4846
        %4848 = vset.pattern.permute.xlu0 1
        %4849 = vperm.xlu0 %4848, %v4284
        %v4850 = vpop.permute.xlu0 %4849
        %4851 = vset.pattern.permute.xlu0 1
        %4852 = vperm.xlu0 %4851, %v4285
        %v4853 = vpop.permute.xlu0 %4852
        %4854 = vset.pattern.permute.xlu0 1
        %4855 = vperm.xlu0 %4854, %v4286
        %v4856 = vpop.permute.xlu0 %4855
        %4857 = vset.pattern.permute.xlu0 1
        %4858 = vperm.xlu0 %4857, %v4287
        %v4859 = vpop.permute.xlu0 %4858
        %4860 = vset.pattern.permute.xlu0 1
        %4861 = vperm.xlu0 %4860, %v4288
        %v4862 = vpop.permute.xlu0 %4861
        %4863 = vset.pattern.permute.xlu0 1
        %4864 = vperm.xlu0 %4863, %v4289
        %v4865 = vpop.permute.xlu0 %4864
        %4866 = vset.pattern.permute.xlu0 1
        %4867 = vperm.xlu0 %4866, %v4290
        %v4868 = vpop.permute.xlu0 %4867
        %4869 = vset.pattern.permute.xlu0 1
        %4870 = vperm.xlu0 %4869, %v4291
        %v4871 = vpop.permute.xlu0 %4870
        %4872 = vset.pattern.permute.xlu0 1
        %4873 = vperm.xlu0 %4872, %v4292
        %v4874 = vpop.permute.xlu0 %4873
        %4875 = vset.pattern.permute.xlu0 1
        %4876 = vperm.xlu0 %4875, %v4293
        %v4877 = vpop.permute.xlu0 %4876
        %4878 = vset.pattern.permute.xlu0 1
        %4879 = vperm.xlu0 %4878, %v4294
        %v4880 = vpop.permute.xlu0 %4879
        %4881 = vset.pattern.permute.xlu0 1
        %4882 = vperm.xlu0 %4881, %v4295
        %v4883 = vpop.permute.xlu0 %4882
        %4884 = vset.pattern.permute.xlu0 1
        %4885 = vperm.xlu0 %4884, %v4296
        %v4886 = vpop.permute.xlu0 %4885
        %4887 = vset.pattern.permute.xlu0 1
        %4888 = vperm.xlu0 %4887, %v4297
        %v4889 = vpop.permute.xlu0 %4888
        %4890 = vset.pattern.permute.xlu0 1
        %4891 = vperm.xlu0 %4890, %v4298
        %v4892 = vpop.permute.xlu0 %4891
        %4893 = vset.pattern.permute.xlu0 1
        %4894 = vperm.xlu0 %4893, %v4299
        %v4895 = vpop.permute.xlu0 %4894
        %4896 = vset.pattern.permute.xlu0 1
        %4897 = vperm.xlu0 %4896, %v4300
        %v4898 = vpop.permute.xlu0 %4897
        %4899 = vset.pattern.permute.xlu0 1
        %4900 = vperm.xlu0 %4899, %v4301
        %v4901 = vpop.permute.xlu0 %4900
        %4902 = vset.pattern.permute.xlu0 1
        %4903 = vperm.xlu0 %4902, %v4302
        %v4904 = vpop.permute.xlu0 %4903
        %4905 = vset.pattern.permute.xlu0 1
        %4906 = vperm.xlu0 %4905, %v4303
        %v4907 = vpop.permute.xlu0 %4906
        %4908 = vset.pattern.permute.xlu0 1
        %4909 = vperm.xlu0 %4908, %v4304
        %v4910 = vpop.permute.xlu0 %4909
        %4911 = vset.pattern.permute.xlu0 1
        %4912 = vperm.xlu0 %4911, %v4305
        %v4913 = vpop.permute.xlu0 %4912
        %4914 = vset.pattern.permute.xlu0 1
        %4915 = vperm.xlu0 %4914, %v4306
        %v4916 = vpop.permute.xlu0 %4915
        %4917 = vset.pattern.permute.xlu0 1
        %4918 = vperm.xlu0 %4917, %v4307
        %v4919 = vpop.permute.xlu0 %4918
        %4920 = vset.pattern.permute.xlu0 1
        %4921 = vperm.xlu0 %4920, %v4308
        %v4922 = vpop.permute.xlu0 %4921
        %4923 = vset.pattern.permute.xlu0 1
        %4924 = vperm.xlu0 %4923, %v4309
        %v4925 = vpop.permute.xlu0 %4924
        %4926 = vset.pattern.permute.xlu0 1
        %4927 = vperm.xlu0 %4926, %v4310
        %v4928 = vpop.permute.xlu0 %4927
        %4929 = vset.pattern.permute.xlu0 1
        %4930 = vperm.xlu0 %4929, %v4311
        %v4931 = vpop.permute.xlu0 %4930
        %4932 = vset.pattern.permute.xlu0 1
        %4933 = vperm.xlu0 %4932, %v4312
        %v4934 = vpop.permute.xlu0 %4933
        %4935 = vset.pattern.permute.xlu0 1
        %4936 = vperm.xlu0 %4935, %v4313
        %v4937 = vpop.permute.xlu0 %4936
        %4938 = vset.pattern.permute.xlu0 1
        %4939 = vperm.xlu0 %4938, %v4314
        %v4940 = vpop.permute.xlu0 %4939
        %4941 = vset.pattern.permute.xlu0 1
        %4942 = vperm.xlu0 %4941, %v4315
        %v4943 = vpop.permute.xlu0 %4942
        %4944 = vset.pattern.permute.xlu0 1
        %4945 = vperm.xlu0 %4944, %v4316
        %v4946 = vpop.permute.xlu0 %4945
        %4947 = vset.pattern.permute.xlu0 1
        %4948 = vperm.xlu0 %4947, %v4317
        %v4949 = vpop.permute.xlu0 %4948
        %4950 = vset.pattern.permute.xlu0 1
        %4951 = vperm.xlu0 %4950, %v4318
        %v4952 = vpop.permute.xlu0 %4951
        %4953 = vset.pattern.permute.xlu0 1
        %4954 = vperm.xlu0 %4953, %v4319
        %v4955 = vpop.permute.xlu0 %4954
        %4956 = vset.pattern.permute.xlu0 1
        %4957 = vperm.xlu0 %4956, %v4320
        %v4958 = vpop.permute.xlu0 %4957
        %4959 = vset.pattern.permute.xlu0 1
        %4960 = vperm.xlu0 %4959, %v4321
        %v4961 = vpop.permute.xlu0 %4960
        %4962 = vset.pattern.permute.xlu0 1
        %4963 = vperm.xlu0 %4962, %v4322
        %v4964 = vpop.permute.xlu0 %4963
        %4965 = vset.pattern.permute.xlu0 1
        %4966 = vperm.xlu0 %4965, %v4323
        %v4967 = vpop.permute.xlu0 %4966
        %4968 = vset.pattern.permute.xlu0 1
        %4969 = vperm.xlu0 %4968, %v4324
        %v4970 = vpop.permute.xlu0 %4969
        %4971 = vset.pattern.permute.xlu0 1
        %4972 = vperm.xlu0 %4971, %v4325
        %v4973 = vpop.permute.xlu0 %4972
        %4974 = vset.pattern.permute.xlu0 1
        %4975 = vperm.xlu0 %4974, %v4326
        %v4976 = vpop.permute.xlu0 %4975
        %4977 = vset.pattern.permute.xlu0 1
        %4978 = vperm.xlu0 %4977, %v4327
        %v4979 = vpop.permute.xlu0 %4978
        %4980 = vset.pattern.permute.xlu0 1
        %4981 = vperm.xlu0 %4980, %v4328
        %v4982 = vpop.permute.xlu0 %4981
        %4983 = vset.pattern.permute.xlu0 1
        %4984 = vperm.xlu0 %4983, %v4329
        %v4985 = vpop.permute.xlu0 %4984
        %4986 = vset.pattern.permute.xlu0 1
        %4987 = vperm.xlu0 %4986, %v4330
        %v4988 = vpop.permute.xlu0 %4987
        %4989 = vset.pattern.permute.xlu0 1
        %4990 = vperm.xlu0 %4989, %v4331
        %v4991 = vpop.permute.xlu0 %4990
        %4992 = vset.pattern.permute.xlu0 1
        %4993 = vperm.xlu0 %4992, %v4332
        %v4994 = vpop.permute.xlu0 %4993
        %4995 = vset.pattern.permute.xlu0 1
        %4996 = vperm.xlu0 %4995, %v4333
        %v4997 = vpop.permute.xlu0 %4996
        %4998 = vset.pattern.permute.xlu0 1
        %4999 = vperm.xlu0 %4998, %v4334
        %v5000 = vpop.permute.xlu0 %4999
        %5001 = vset.pattern.permute.xlu0 1
        %5002 = vperm.xlu0 %5001, %v4335
        %v5003 = vpop.permute.xlu0 %5002
        %5004 = vset.pattern.permute.xlu0 1
        %5005 = vperm.xlu0 %5004, %v4336
        %v5006 = vpop.permute.xlu0 %5005
        %5007 = vset.pattern.permute.xlu0 1
        %5008 = vperm.xlu0 %5007, %v4337
        %v5009 = vpop.permute.xlu0 %5008
        %5010 = vset.pattern.permute.xlu0 1
        %5011 = vperm.xlu0 %5010, %v4338
        %v5012 = vpop.permute.xlu0 %5011
        %5013 = vset.pattern.permute.xlu0 1
        %5014 = vperm.xlu0 %5013, %v4339
        %v5015 = vpop.permute.xlu0 %5014
        %5016 = vset.pattern.permute.xlu0 1
        %5017 = vperm.xlu0 %5016, %v4340
        %v5018 = vpop.permute.xlu0 %5017
        %5019 = vset.pattern.permute.xlu0 1
        %5020 = vperm.xlu0 %5019, %v4341
        %v5021 = vpop.permute.xlu0 %5020
        %5022 = vset.pattern.permute.xlu0 1
        %5023 = vperm.xlu0 %5022, %v4342
        %v5024 = vpop.permute.xlu0 %5023
        %5025 = vset.pattern.permute.xlu0 1
        %5026 = vperm.xlu0 %5025, %v4343
        %v5027 = vpop.permute.xlu0 %5026
        %5028 = vset.pattern.permute.xlu0 1
        %5029 = vperm.xlu0 %5028, %v4344
        %v5030 = vpop.permute.xlu0 %5029
        %5031 = vset.pattern.permute.xlu0 1
        %5032 = vperm.xlu0 %5031, %v4345
        %v5033 = vpop.permute.xlu0 %5032
        %5034 = vset.pattern.permute.xlu0 1
        %5035 = vperm.xlu0 %5034, %v4346
        %v5036 = vpop.permute.xlu0 %5035
        %5037 = vset.pattern.permute.xlu0 1
        %5038 = vperm.xlu0 %5037, %v4347
        %v5039 = vpop.permute.xlu0 %5038
        %5040 = vset.pattern.permute.xlu0 1
        %5041 = vperm.xlu0 %5040, %v4348
        %v5042 = vpop.permute.xlu0 %5041
        %5043 = vset.pattern.permute.xlu0 1
        %5044 = vperm.xlu0 %5043, %v4349
        %v5045 = vpop.permute.xlu0 %5044
        %5046 = vset.pattern.permute.xlu0 1
        %5047 = vperm.xlu0 %5046, %v4350
        %v5048 = vpop.permute.xlu0 %5047
        %5049 = vset.pattern.permute.xlu0 1
        %5050 = vperm.xlu0 %5049, %v4351
        %v5051 = vpop.permute.xlu0 %5050
        %5052 = vset.pattern.permute.xlu0 1
        %5053 = vperm.xlu0 %5052, %v4352
        %v5054 = vpop.permute.xlu0 %5053
        %5055 = vset.pattern.permute.xlu0 1
        %5056 = vperm.xlu0 %5055, %v4353
        %v5057 = vpop.permute.xlu0 %5056
        %5058 = vset.pattern.permute.xlu0 1
        %5059 = vperm.xlu0 %5058, %v4354
        %v5060 = vpop.permute.xlu0 %5059
        %5061 = vset.pattern.permute.xlu0 1
        %5062 = vperm.xlu0 %5061, %v4355
        %v5063 = vpop.permute.xlu0 %5062
        %5064 = vset.pattern.permute.xlu0 1
        %5065 = vperm.xlu0 %5064, %v4356
        %v5066 = vpop.permute.xlu0 %5065
        %5067 = vset.pattern.permute.xlu0 1
        %5068 = vperm.xlu0 %5067, %v4357
        %v5069 = vpop.permute.xlu0 %5068
        %5070 = vset.pattern.permute.xlu0 1
        %5071 = vperm.xlu0 %5070, %v4358
        %v5072 = vpop.permute.xlu0 %5071
        %5073 = vset.pattern.permute.xlu0 1
        %5074 = vperm.xlu0 %5073, %v4359
        %v5075 = vpop.permute.xlu0 %5074
        %5076 = vset.pattern.permute.xlu0 1
        %5077 = vperm.xlu0 %5076, %v4360
        %v5078 = vpop.permute.xlu0 %5077
        %5079 = vset.pattern.permute.xlu0 1
        %5080 = vperm.xlu0 %5079, %v4361
        %v5081 = vpop.permute.xlu0 %5080
        %5082 = vset.pattern.permute.xlu0 1
        %5083 = vperm.xlu0 %5082, %v4362
        %v5084 = vpop.permute.xlu0 %5083
        %5085 = vset.pattern.permute.xlu0 1
        %5086 = vperm.xlu0 %5085, %v4363
        %v5087 = vpop.permute.xlu0 %5086
        %5088 = vset.pattern.permute.xlu0 1
        %5089 = vperm.xlu0 %5088, %v4364
        %v5090 = vpop.permute.xlu0 %5089
        %5091 = vset.pattern.permute.xlu0 1
        %5092 = vperm.xlu0 %5091, %v4365
        %v5093 = vpop.permute.xlu0 %5092
        %5094 = vset.pattern.permute.xlu0 1
        %5095 = vperm.xlu0 %5094, %v4366
        %v5096 = vpop.permute.xlu0 %5095
        %5097 = vset.pattern.permute.xlu0 1
        %5098 = vperm.xlu0 %5097, %v4367
        %v5099 = vpop.permute.xlu0 %5098
        %5100 = vset.pattern.permute.xlu0 1
        %5101 = vperm.xlu0 %5100, %v4368
        %v5102 = vpop.permute.xlu0 %5101
        %5103 = vset.pattern.permute.xlu0 1
        %5104 = vperm.xlu0 %5103, %v4369
        %v5105 = vpop.permute.xlu0 %5104
        %5106 = vset.pattern.permute.xlu0 1
        %5107 = vperm.xlu0 %5106, %v4370
        %v5108 = vpop.permute.xlu0 %5107
        %5109 = vset.pattern.permute.xlu0 1
        %5110 = vperm.xlu0 %5109, %v4371
        %v5111 = vpop.permute.xlu0 %5110
        %5112 = vset.pattern.permute.xlu0 1
        %5113 = vperm.xlu0 %5112, %v4372
        %v5114 = vpop.permute.xlu0 %5113
        %5115 = vset.pattern.permute.xlu0 1
        %5116 = vperm.xlu0 %5115, %v4373
        %v5117 = vpop.permute.xlu0 %5116
        %5118 = vset.pattern.permute.xlu0 1
        %5119 = vperm.xlu0 %5118, %v4374
        %v5120 = vpop.permute.xlu0 %5119
        %5121 = vset.pattern.permute.xlu0 1
        %5122 = vperm.xlu0 %5121, %v4375
        %v5123 = vpop.permute.xlu0 %5122
        %5124 = vset.pattern.permute.xlu0 1
        %5125 = vperm.xlu0 %5124, %v4376
        %v5126 = vpop.permute.xlu0 %5125
        %5127 = vset.pattern.permute.xlu0 1
        %5128 = vperm.xlu0 %5127, %v4377
        %v5129 = vpop.permute.xlu0 %5128
        %5130 = vset.pattern.permute.xlu0 1
        %5131 = vperm.xlu0 %5130, %v4378
        %v5132 = vpop.permute.xlu0 %5131
        %5133 = vset.pattern.permute.xlu0 1
        %5134 = vperm.xlu0 %5133, %v4379
        %v5135 = vpop.permute.xlu0 %5134
        %5136 = vset.pattern.permute.xlu0 1
        %5137 = vperm.xlu0 %5136, %v4380
        %v5138 = vpop.permute.xlu0 %5137
        %5139 = vset.pattern.permute.xlu0 1
        %5140 = vperm.xlu0 %5139, %v4381
        %v5141 = vpop.permute.xlu0 %5140
        %5142 = vset.pattern.permute.xlu0 1
        %5143 = vperm.xlu0 %5142, %v4382
        %v5144 = vpop.permute.xlu0 %5143
        %5145 = vset.pattern.permute.xlu0 1
        %5146 = vperm.xlu0 %5145, %v4383
        %v5147 = vpop.permute.xlu0 %5146
        %5148 = vset.pattern.permute.xlu0 1
        %5149 = vperm.xlu0 %5148, %v4384
        %v5150 = vpop.permute.xlu0 %5149
        %5151 = vset.pattern.permute.xlu0 1
        %5152 = vperm.xlu0 %5151, %v4385
        %v5153 = vpop.permute.xlu0 %5152
        %5154 = vset.pattern.permute.xlu0 1
        %5155 = vperm.xlu0 %5154, %v4386
        %v5156 = vpop.permute.xlu0 %5155
        %5157 = vset.pattern.permute.xlu0 1
        %5158 = vperm.xlu0 %5157, %v4387
        %v5159 = vpop.permute.xlu0 %5158
        %5160 = vset.pattern.permute.xlu0 1
        %5161 = vperm.xlu0 %5160, %v4388
        %v5162 = vpop.permute.xlu0 %5161
        %5163 = vset.pattern.permute.xlu0 1
        %5164 = vperm.xlu0 %5163, %v4389
        %v5165 = vpop.permute.xlu0 %5164
        %5166 = vset.pattern.permute.xlu0 1
        %5167 = vperm.xlu0 %5166, %v4390
        %v5168 = vpop.permute.xlu0 %5167
        %5169 = vset.pattern.permute.xlu0 1
        %5170 = vperm.xlu0 %5169, %v4391
        %v5171 = vpop.permute.xlu0 %5170
        %5172 = vset.pattern.permute.xlu0 1
        %5173 = vperm.xlu0 %5172, %v4392
        %v5174 = vpop.permute.xlu0 %5173
        %5175 = vset.pattern.permute.xlu0 1
        %5176 = vperm.xlu0 %5175, %v4393
        %v5177 = vpop.permute.xlu0 %5176
        %5178 = vset.pattern.permute.xlu0 1
        %5179 = vperm.xlu0 %5178, %v4394
        %v5180 = vpop.permute.xlu0 %5179
        %5181 = vset.pattern.permute.xlu0 1
        %5182 = vperm.xlu0 %5181, %v4395
        %v5183 = vpop.permute.xlu0 %5182
        %5184 = vset.pattern.permute.xlu0 1
        %5185 = vperm.xlu0 %5184, %v4396
        %v5186 = vpop.permute.xlu0 %5185
        %5187 = vset.pattern.permute.xlu0 1
        %5188 = vperm.xlu0 %5187, %v4397
        %v5189 = vpop.permute.xlu0 %5188
        %5190 = vset.pattern.permute.xlu0 1
        %5191 = vperm.xlu0 %5190, %v4398
        %v5192 = vpop.permute.xlu0 %5191
        %5193 = vset.pattern.permute.xlu0 1
        %5194 = vperm.xlu0 %5193, %v4399
        %v5195 = vpop.permute.xlu0 %5194
        %5196 = vset.pattern.permute.xlu0 1
        %5197 = vperm.xlu0 %5196, %v4400
        %v5198 = vpop.permute.xlu0 %5197
        %5199 = vset.pattern.permute.xlu0 1
        %5200 = vperm.xlu0 %5199, %v4401
        %v5201 = vpop.permute.xlu0 %5200
        %5202 = vset.pattern.permute.xlu0 1
        %5203 = vperm.xlu0 %5202, %v4402
        %v5204 = vpop.permute.xlu0 %5203
        %5205 = vset.pattern.permute.xlu0 1
        %5206 = vperm.xlu0 %5205, %v4403
        %v5207 = vpop.permute.xlu0 %5206
        %5208 = vset.pattern.permute.xlu0 1
        %5209 = vperm.xlu0 %5208, %v4404
        %v5210 = vpop.permute.xlu0 %5209
        %5211 = vset.pattern.permute.xlu0 1
        %5212 = vperm.xlu0 %5211, %v4405
        %v5213 = vpop.permute.xlu0 %5212
        %5214 = vset.pattern.permute.xlu0 1
        %5215 = vperm.xlu0 %5214, %v4406
        %v5216 = vpop.permute.xlu0 %5215
        %5217 = vset.pattern.permute.xlu0 1
        %5218 = vperm.xlu0 %5217, %v4407
        %v5219 = vpop.permute.xlu0 %5218
        %5220 = vset.pattern.permute.xlu0 1
        %5221 = vperm.xlu0 %5220, %v4408
        %v5222 = vpop.permute.xlu0 %5221
        %5223 = vset.pattern.permute.xlu0 1
        %5224 = vperm.xlu0 %5223, %v4409
        %v5225 = vpop.permute.xlu0 %5224
        %5226 = vset.pattern.permute.xlu0 1
        %5227 = vperm.xlu0 %5226, %v4410
        %v5228 = vpop.permute.xlu0 %5227
        %5229 = vset.pattern.permute.xlu0 1
        %5230 = vperm.xlu0 %5229, %v4411
        %v5231 = vpop.permute.xlu0 %5230
        %5232 = vset.pattern.permute.xlu0 1
        %5233 = vperm.xlu0 %5232, %v4412
        %v5234 = vpop.permute.xlu0 %5233
        %5235 = vset.pattern.permute.xlu0 1
        %5236 = vperm.xlu0 %5235, %v4413
        %v5237 = vpop.permute.xlu0 %5236
        %5238 = vset.pattern.permute.xlu0 1
        %5239 = vperm.xlu0 %5238, %v4414
        %v5240 = vpop.permute.xlu0 %5239
        %5241 = vset.pattern.permute.xlu0 1
        %5242 = vperm.xlu0 %5241, %v4415
        %v5243 = vpop.permute.xlu0 %5242
        %5244 = vset.pattern.permute.xlu0 1
        %5245 = vperm.xlu0 %5244, %v4416
        %v5246 = vpop.permute.xlu0 %5245
        %5247 = vset.pattern.permute.xlu0 1
        %5248 = vperm.xlu0 %5247, %v4417
        %v5249 = vpop.permute.xlu0 %5248
        %5250 = vset.pattern.permute.xlu0 1
        %5251 = vperm.xlu0 %5250, %v4418
        %v5252 = vpop.permute.xlu0 %5251
        %5253 = vset.pattern.permute.xlu0 1
        %5254 = vperm.xlu0 %5253, %v4419
        %v5255 = vpop.permute.xlu0 %5254
        %5256 = vset.pattern.permute.xlu0 1
        %5257 = vperm.xlu0 %5256, %v4420
        %v5258 = vpop.permute.xlu0 %5257
        %5259 = vset.pattern.permute.xlu0 1
        %5260 = vperm.xlu0 %5259, %v4421
        %v5261 = vpop.permute.xlu0 %5260
        %5262 = vset.pattern.permute.xlu0 1
        %5263 = vperm.xlu0 %5262, %v4422
        %v5264 = vpop.permute.xlu0 %5263
        %5265 = vset.pattern.permute.xlu0 1
        %5266 = vperm.xlu0 %5265, %v4423
        %v5267 = vpop.permute.xlu0 %5266
        %5268 = vset.pattern.permute.xlu0 1
        %5269 = vperm.xlu0 %5268, %v4424
        %v5270 = vpop.permute.xlu0 %5269
        %5271 = vset.pattern.permute.xlu0 1
        %5272 = vperm.xlu0 %5271, %v4425
        %v5273 = vpop.permute.xlu0 %5272
        %5274 = vset.pattern.permute.xlu0 1
        %5275 = vperm.xlu0 %5274, %v4426
        %v5276 = vpop.permute.xlu0 %5275
        %5277 = vset.pattern.permute.xlu0 1
        %5278 = vperm.xlu0 %5277, %v4427
        %v5279 = vpop.permute.xlu0 %5278
        %5280 = vset.pattern.permute.xlu0 1
        %5281 = vperm.xlu0 %5280, %v4428
        %v5282 = vpop.permute.xlu0 %5281
        %5283 = vset.pattern.permute.xlu0 1
        %5284 = vperm.xlu0 %5283, %v4429
        %v5285 = vpop.permute.xlu0 %5284
        %5286 = vset.pattern.permute.xlu0 1
        %5287 = vperm.xlu0 %5286, %v4430
        %v5288 = vpop.permute.xlu0 %5287
        %5289 = vset.pattern.permute.xlu0 1
        %5290 = vperm.xlu0 %5289, %v4431
        %v5291 = vpop.permute.xlu0 %5290
        %5292 = vset.pattern.permute.xlu0 1
        %5293 = vperm.xlu0 %5292, %v4432
        %v5294 = vpop.permute.xlu0 %5293
        %5295 = vset.pattern.permute.xlu0 1
        %5296 = vperm.xlu0 %5295, %v4433
        %v5297 = vpop.permute.xlu0 %5296
        %5298 = vset.pattern.permute.xlu0 1
        %5299 = vperm.xlu0 %5298, %v4434
        %v5300 = vpop.permute.xlu0 %5299
        %5301 = vset.pattern.permute.xlu0 1
        %5302 = vperm.xlu0 %5301, %v4435
        %v5303 = vpop.permute.xlu0 %5302
        %5304 = vset.pattern.permute.xlu0 1
        %5305 = vperm.xlu0 %5304, %v4436
        %v5306 = vpop.permute.xlu0 %5305
        %5307 = vset.pattern.permute.xlu0 1
        %5308 = vperm.xlu0 %5307, %v4437
        %v5309 = vpop.permute.xlu0 %5308
        %5310 = vset.pattern.permute.xlu0 1
        %5311 = vperm.xlu0 %5310, %v4438
        %v5312 = vpop.permute.xlu0 %5311
        %5313 = vset.pattern.permute.xlu0 1
        %5314 = vperm.xlu0 %5313, %v4439
        %v5315 = vpop.permute.xlu0 %5314
        %5316 = vset.pattern.permute.xlu0 1
        %5317 = vperm.xlu0 %5316, %v4440
        %v5318 = vpop.permute.xlu0 %5317
        %5319 = vset.pattern.permute.xlu0 1
        %5320 = vperm.xlu0 %5319, %v4441
        %v5321 = vpop.permute.xlu0 %5320
        %5322 = vset.pattern.permute.xlu0 1
        %5323 = vperm.xlu0 %5322, %v4442
        %v5324 = vpop.permute.xlu0 %5323
        %5325 = vset.pattern.permute.xlu0 1
        %5326 = vperm.xlu0 %5325, %v4443
        %v5327 = vpop.permute.xlu0 %5326
        %5328 = vset.pattern.permute.xlu0 1
        %5329 = vperm.xlu0 %5328, %v4444
        %v5330 = vpop.permute.xlu0 %5329
        %5331 = vset.pattern.permute.xlu0 1
        %5332 = vperm.xlu0 %5331, %v4445
        %v5333 = vpop.permute.xlu0 %5332
        %5334 = vset.pattern.permute.xlu0 1
        %5335 = vperm.xlu0 %5334, %v4446
        %v5336 = vpop.permute.xlu0 %5335
        %5337 = vset.pattern.permute.xlu0 1
        %5338 = vperm.xlu0 %5337, %v4447
        %v5339 = vpop.permute.xlu0 %5338
        %5340 = vset.pattern.permute.xlu0 1
        %5341 = vperm.xlu0 %5340, %v4448
        %v5342 = vpop.permute.xlu0 %5341
        %5343 = vset.pattern.permute.xlu0 1
        %5344 = vperm.xlu0 %5343, %v4449
        %v5345 = vpop.permute.xlu0 %5344
        %5346 = vset.pattern.permute.xlu0 1
        %5347 = vperm.xlu0 %5346, %v4450
        %v5348 = vpop.permute.xlu0 %5347
        %5349 = vset.pattern.permute.xlu0 1
        %5350 = vperm.xlu0 %5349, %v4451
        %v5351 = vpop.permute.xlu0 %5350
        %5352 = vset.pattern.permute.xlu0 1
        %5353 = vperm.xlu0 %5352, %v4452
        %v5354 = vpop.permute.xlu0 %5353
        %5355 = vset.pattern.permute.xlu0 1
        %5356 = vperm.xlu0 %5355, %v4453
        %v5357 = vpop.permute.xlu0 %5356
        %5358 = vset.pattern.permute.xlu0 1
        %5359 = vperm.xlu0 %5358, %v4454
        %v5360 = vpop.permute.xlu0 %5359
        %5361 = vset.pattern.permute.xlu0 1
        %5362 = vperm.xlu0 %5361, %v4455
        %v5363 = vpop.permute.xlu0 %5362
        %5364 = vset.pattern.permute.xlu0 1
        %5365 = vperm.xlu0 %5364, %v4456
        %v5366 = vpop.permute.xlu0 %5365
        %5367 = vset.pattern.permute.xlu0 1
        %5368 = vperm.xlu0 %5367, %v4457
        %v5369 = vpop.permute.xlu0 %5368
        %5370 = vset.pattern.permute.xlu0 1
        %5371 = vperm.xlu0 %5370, %v4458
        %v5372 = vpop.permute.xlu0 %5371
        %5373 = vset.pattern.permute.xlu0 1
        %5374 = vperm.xlu0 %5373, %v4459
        %v5375 = vpop.permute.xlu0 %5374
        %5376 = vset.pattern.permute.xlu0 1
        %5377 = vperm.xlu0 %5376, %v4460
        %v5378 = vpop.permute.xlu0 %5377
        %5379 = vset.pattern.permute.xlu0 1
        %5380 = vperm.xlu0 %5379, %v4461
        %v5381 = vpop.permute.xlu0 %5380
        %5382 = vset.pattern.permute.xlu0 1
        %5383 = vperm.xlu0 %5382, %v4462
        %v5384 = vpop.permute.xlu0 %5383
        %5385 = vset.pattern.permute.xlu0 1
        %5386 = vperm.xlu0 %5385, %v4463
        %v5387 = vpop.permute.xlu0 %5386
        %5388 = vset.pattern.permute.xlu0 1
        %5389 = vperm.xlu0 %5388, %v4464
        %v5390 = vpop.permute.xlu0 %5389
        %5391 = vset.pattern.permute.xlu0 1
        %5392 = vperm.xlu0 %5391, %v4465
        %v5393 = vpop.permute.xlu0 %5392
        %5394 = vset.pattern.permute.xlu0 1
        %5395 = vperm.xlu0 %5394, %v4466
        %v5396 = vpop.permute.xlu0 %5395
        %5397 = vset.pattern.permute.xlu0 1
        %5398 = vperm.xlu0 %5397, %v4467
        %v5399 = vpop.permute.xlu0 %5398
        %5400 = vset.pattern.permute.xlu0 1
        %5401 = vperm.xlu0 %5400, %v4468
        %v5402 = vpop.permute.xlu0 %5401
        %5403 = vset.pattern.permute.xlu0 1
        %5404 = vperm.xlu0 %5403, %v4469
        %v5405 = vpop.permute.xlu0 %5404
        %5406 = vset.pattern.permute.xlu0 1
        %5407 = vperm.xlu0 %5406, %v4470
        %v5408 = vpop.permute.xlu0 %5407
        %5409 = vset.pattern.permute.xlu0 1
        %5410 = vperm.xlu0 %5409, %v4471
        %v5411 = vpop.permute.xlu0 %5410
        %5412 = vset.pattern.permute.xlu0 1
        %5413 = vperm.xlu0 %5412, %v4472
        %v5414 = vpop.permute.xlu0 %5413
        %5415 = vset.pattern.permute.xlu0 1
        %5416 = vperm.xlu0 %5415, %v4473
        %v5417 = vpop.permute.xlu0 %5416
        %5418 = vset.pattern.permute.xlu0 1
        %5419 = vperm.xlu0 %5418, %v4474
        %v5420 = vpop.permute.xlu0 %5419
        %5421 = vset.pattern.permute.xlu0 1
        %5422 = vperm.xlu0 %5421, %v4475
        %v5423 = vpop.permute.xlu0 %5422
        %5424 = vset.pattern.permute.xlu0 1
        %5425 = vperm.xlu0 %5424, %v4476
        %v5426 = vpop.permute.xlu0 %5425
        %5427 = vset.pattern.permute.xlu0 1
        %5428 = vperm.xlu0 %5427, %v4477
        %v5429 = vpop.permute.xlu0 %5428
        %5430 = vset.pattern.permute.xlu0 1
        %5431 = vperm.xlu0 %5430, %v4478
        %v5432 = vpop.permute.xlu0 %5431
        %5433 = vset.pattern.permute.xlu0 1
        %5434 = vperm.xlu0 %5433, %v4479
        %v5435 = vpop.permute.xlu0 %5434
        %5436 = vset.pattern.permute.xlu0 1
        %5437 = vperm.xlu0 %5436, %v4480
        %v5438 = vpop.permute.xlu0 %5437
        %5439 = vset.pattern.permute.xlu0 1
        %5440 = vperm.xlu0 %5439, %v4481
        %v5441 = vpop.permute.xlu0 %5440
        %5442 = vset.pattern.permute.xlu0 1
        %5443 = vperm.xlu0 %5442, %v4482
        %v5444 = vpop.permute.xlu0 %5443
        %5445 = vset.pattern.permute.xlu0 1
        %5446 = vperm.xlu0 %5445, %v4483
        %v5447 = vpop.permute.xlu0 %5446
        %5448 = vset.pattern.permute.xlu0 1
        %5449 = vperm.xlu0 %5448, %v4484
        %v5450 = vpop.permute.xlu0 %5449
        %5451 = vset.pattern.permute.xlu0 1
        %5452 = vperm.xlu0 %5451, %v4485
        %v5453 = vpop.permute.xlu0 %5452
        %5454 = vset.pattern.permute.xlu0 1
        %5455 = vperm.xlu0 %5454, %v4486
        %v5456 = vpop.permute.xlu0 %5455
        %5457 = vset.pattern.permute.xlu0 1
        %5458 = vperm.xlu0 %5457, %v4487
        %v5459 = vpop.permute.xlu0 %5458
        %5460 = vset.pattern.permute.xlu0 1
        %5461 = vperm.xlu0 %5460, %v4488
        %v5462 = vpop.permute.xlu0 %5461
        %5463 = vset.pattern.permute.xlu0 1
        %5464 = vperm.xlu0 %5463, %v4489
        %v5465 = vpop.permute.xlu0 %5464
        %5466 = vset.pattern.permute.xlu0 1
        %5467 = vperm.xlu0 %5466, %v4490
        %v5468 = vpop.permute.xlu0 %5467
        %5469 = vset.pattern.permute.xlu0 1
        %5470 = vperm.xlu0 %5469, %v4491
        %v5471 = vpop.permute.xlu0 %5470
        %5472 = vset.pattern.permute.xlu0 1
        %5473 = vperm.xlu0 %5472, %v4492
        %v5474 = vpop.permute.xlu0 %5473
        %5475 = vset.pattern.permute.xlu0 1
        %5476 = vperm.xlu0 %5475, %v4493
        %v5477 = vpop.permute.xlu0 %5476
        %5478 = vset.pattern.permute.xlu0 1
        %5479 = vperm.xlu0 %5478, %v4494
        %v5480 = vpop.permute.xlu0 %5479
        %5481 = vset.pattern.permute.xlu0 1
        %5482 = vperm.xlu0 %5481, %v4495
        %v5483 = vpop.permute.xlu0 %5482
        %5484 = vset.pattern.permute.xlu0 1
        %5485 = vperm.xlu0 %5484, %v4496
        %v5486 = vpop.permute.xlu0 %5485
        %5487 = vset.pattern.permute.xlu0 1
        %5488 = vperm.xlu0 %5487, %v4497
        %v5489 = vpop.permute.xlu0 %5488
        %5490 = vset.pattern.permute.xlu0 1
        %5491 = vperm.xlu0 %5490, %v4498
        %v5492 = vpop.permute.xlu0 %5491
        %5493 = vset.pattern.permute.xlu0 1
        %5494 = vperm.xlu0 %5493, %v4499
        %v5495 = vpop.permute.xlu0 %5494
        %5496 = vset.pattern.permute.xlu0 1
        %5497 = vperm.xlu0 %5496, %v4500
        %v5498 = vpop.permute.xlu0 %5497
        %5499 = vset.pattern.permute.xlu0 1
        %5500 = vperm.xlu0 %5499, %v4501
        %v5501 = vpop.permute.xlu0 %5500
        %5502 = vset.pattern.permute.xlu0 1
        %5503 = vperm.xlu0 %5502, %v4502
        %v5504 = vpop.permute.xlu0 %5503
        %5505 = vset.pattern.permute.xlu0 1
        %5506 = vperm.xlu0 %5505, %v4503
        %v5507 = vpop.permute.xlu0 %5506
        %5508 = vset.pattern.permute.xlu0 1
        %5509 = vperm.xlu0 %5508, %v4504
        %v5510 = vpop.permute.xlu0 %5509
        %5511 = vset.pattern.permute.xlu0 1
        %5512 = vperm.xlu0 %5511, %v4505
        %v5513 = vpop.permute.xlu0 %5512
        %5514 = vset.pattern.permute.xlu0 1
        %5515 = vperm.xlu0 %5514, %v4506
        %v5516 = vpop.permute.xlu0 %5515
        %5517 = vset.pattern.permute.xlu0 1
        %5518 = vperm.xlu0 %5517, %v4507
        %v5519 = vpop.permute.xlu0 %5518
        %5520 = vset.pattern.permute.xlu0 1
        %5521 = vperm.xlu0 %5520, %v4508
        %v5522 = vpop.permute.xlu0 %5521
        %5523 = vset.pattern.permute.xlu0 1
        %5524 = vperm.xlu0 %5523, %v4509
        %v5525 = vpop.permute.xlu0 %5524
        %5526 = vset.pattern.permute.xlu0 1
        %5527 = vperm.xlu0 %5526, %v4510
        %v5528 = vpop.permute.xlu0 %5527
        %5529 = vset.pattern.permute.xlu0 1
        %5530 = vperm.xlu0 %5529, %v4511
        %v5531 = vpop.permute.xlu0 %5530
        %5532 = vset.pattern.permute.xlu0 1
        %5533 = vperm.xlu0 %5532, %v4512
        %v5534 = vpop.permute.xlu0 %5533
        %5535 = vset.pattern.permute.xlu0 1
        %5536 = vperm.xlu0 %5535, %v4513
        %v5537 = vpop.permute.xlu0 %5536
        %v5538 = vlaneseq
        %v5539 = vshrl.u32 %v5538, 7
        %v5540 = vsub.s32 %v2170, %v5539
        %v5541 = vrot.slane %v4772, %v5540
        %v5542 = vlaneseq
        %v5543 = vshrl.u32 %v5542, 7
        %v5544 = vsub.s32 %v2175, %v5543
        %v5545 = vrot.slane %v4775, %v5544
        %v5546 = vsel %vm2180, %v5545, %v5541
        %v5547 = vlaneseq
        %v5548 = vshrl.u32 %v5547, 7
        %v5549 = vsub.s32 %v2182, %v5548
        %v5550 = vrot.slane %v4778, %v5549
        %v5551 = vsel %vm2187, %v5550, %v5546
        %v5552 = vlaneseq
        %v5553 = vshrl.u32 %v5552, 7
        %v5554 = vsub.s32 %v2189, %v5553
        %v5555 = vrot.slane %v4781, %v5554
        %v5556 = vsel %vm2194, %v5555, %v5551
        %v5557 = vlaneseq
        %v5558 = vshrl.u32 %v5557, 7
        %v5559 = vsub.s32 %v2196, %v5558
        %v5560 = vrot.slane %v4784, %v5559
        %v5561 = vsel %vm2201, %v5560, %v5556
        %v5562 = vlaneseq
        %v5563 = vshrl.u32 %v5562, 7
        %v5564 = vsub.s32 %v2203, %v5563
        %v5565 = vrot.slane %v4787, %v5564
        %v5566 = vsel %vm2208, %v5565, %v5561
        %v5567 = vlaneseq
        %v5568 = vshrl.u32 %v5567, 7
        %v5569 = vsub.s32 %v2210, %v5568
        %v5570 = vrot.slane %v4790, %v5569
        %v5571 = vsel %vm2215, %v5570, %v5566
        %v5572 = vlaneseq
        %v5573 = vshrl.u32 %v5572, 7
        %v5574 = vsub.s32 %v2217, %v5573
        %v5575 = vrot.slane %v4793, %v5574
        %v5576 = vsel %vm2222, %v5575, %v5571
        %v5577 = vlaneseq
        %v5578 = vshrl.u32 %v5577, 7
        %v5579 = vsub.s32 %v2224, %v5578
        %v5580 = vrot.slane %v4796, %v5579
        %v5581 = vsel %vm2229, %v5580, %v5576
        %v5582 = vlaneseq
        %v5583 = vshrl.u32 %v5582, 7
        %v5584 = vsub.s32 %v2231, %v5583
        %v5585 = vrot.slane %v4799, %v5584
        %v5586 = vsel %vm2236, %v5585, %v5581
        %v5587 = vlaneseq
        %v5588 = vshrl.u32 %v5587, 7
        %v5589 = vsub.s32 %v2238, %v5588
        %v5590 = vrot.slane %v4802, %v5589
        %v5591 = vsel %vm2243, %v5590, %v5586
        %v5592 = vlaneseq
        %v5593 = vshrl.u32 %v5592, 7
        %v5594 = vsub.s32 %v2245, %v5593
        %v5595 = vrot.slane %v4805, %v5594
        %v5596 = vsel %vm2250, %v5595, %v5591
        %v5597 = vlaneseq
        %v5598 = vshrl.u32 %v5597, 7
        %v5599 = vsub.s32 %v2252, %v5598
        %v5600 = vrot.slane %v4808, %v5599
        %v5601 = vsel %vm2257, %v5600, %v5596
        %v5602 = vlaneseq
        %v5603 = vshrl.u32 %v5602, 7
        %v5604 = vsub.s32 %v2259, %v5603
        %v5605 = vrot.slane %v4811, %v5604
        %v5606 = vsel %vm2264, %v5605, %v5601
        %v5607 = vlaneseq
        %v5608 = vshrl.u32 %v5607, 7
        %v5609 = vsub.s32 %v2266, %v5608
        %v5610 = vrot.slane %v4814, %v5609
        %v5611 = vsel %vm2271, %v5610, %v5606
        %v5612 = vlaneseq
        %v5613 = vshrl.u32 %v5612, 7
        %v5614 = vsub.s32 %v2273, %v5613
        %v5615 = vrot.slane %v4817, %v5614
        %v5616 = vsel %vm2278, %v5615, %v5611
        %v5617 = vlaneseq
        %v5618 = vshrl.u32 %v5617, 7
        %v5619 = vsub.s32 %v2170, %v5618
        %v5620 = vrot.slane %v4820, %v5619
        %v5621 = vlaneseq
        %v5622 = vshrl.u32 %v5621, 7
        %v5623 = vsub.s32 %v2175, %v5622
        %v5624 = vrot.slane %v4823, %v5623
        %v5625 = vsel %vm2180, %v5624, %v5620
        %v5626 = vlaneseq
        %v5627 = vshrl.u32 %v5626, 7
        %v5628 = vsub.s32 %v2182, %v5627
        %v5629 = vrot.slane %v4826, %v5628
        %v5630 = vsel %vm2187, %v5629, %v5625
        %v5631 = vlaneseq
        %v5632 = vshrl.u32 %v5631, 7
        %v5633 = vsub.s32 %v2189, %v5632
        %v5634 = vrot.slane %v4829, %v5633
        %v5635 = vsel %vm2194, %v5634, %v5630
        %v5636 = vlaneseq
        %v5637 = vshrl.u32 %v5636, 7
        %v5638 = vsub.s32 %v2196, %v5637
        %v5639 = vrot.slane %v4832, %v5638
        %v5640 = vsel %vm2201, %v5639, %v5635
        %v5641 = vlaneseq
        %v5642 = vshrl.u32 %v5641, 7
        %v5643 = vsub.s32 %v2203, %v5642
        %v5644 = vrot.slane %v4835, %v5643
        %v5645 = vsel %vm2208, %v5644, %v5640
        %v5646 = vlaneseq
        %v5647 = vshrl.u32 %v5646, 7
        %v5648 = vsub.s32 %v2210, %v5647
        %v5649 = vrot.slane %v4838, %v5648
        %v5650 = vsel %vm2215, %v5649, %v5645
        %v5651 = vlaneseq
        %v5652 = vshrl.u32 %v5651, 7
        %v5653 = vsub.s32 %v2217, %v5652
        %v5654 = vrot.slane %v4841, %v5653
        %v5655 = vsel %vm2222, %v5654, %v5650
        %v5656 = vlaneseq
        %v5657 = vshrl.u32 %v5656, 7
        %v5658 = vsub.s32 %v2224, %v5657
        %v5659 = vrot.slane %v4844, %v5658
        %v5660 = vsel %vm2229, %v5659, %v5655
        %v5661 = vlaneseq
        %v5662 = vshrl.u32 %v5661, 7
        %v5663 = vsub.s32 %v2231, %v5662
        %v5664 = vrot.slane %v4847, %v5663
        %v5665 = vsel %vm2236, %v5664, %v5660
        %v5666 = vlaneseq
        %v5667 = vshrl.u32 %v5666, 7
        %v5668 = vsub.s32 %v2238, %v5667
        %v5669 = vrot.slane %v4850, %v5668
        %v5670 = vsel %vm2243, %v5669, %v5665
        %v5671 = vlaneseq
        %v5672 = vshrl.u32 %v5671, 7
        %v5673 = vsub.s32 %v2245, %v5672
        %v5674 = vrot.slane %v4853, %v5673
        %v5675 = vsel %vm2250, %v5674, %v5670
        %v5676 = vlaneseq
        %v5677 = vshrl.u32 %v5676, 7
        %v5678 = vsub.s32 %v2252, %v5677
        %v5679 = vrot.slane %v4856, %v5678
        %v5680 = vsel %vm2257, %v5679, %v5675
        %v5681 = vlaneseq
        %v5682 = vshrl.u32 %v5681, 7
        %v5683 = vsub.s32 %v2259, %v5682
        %v5684 = vrot.slane %v4859, %v5683
        %v5685 = vsel %vm2264, %v5684, %v5680
        %v5686 = vlaneseq
        %v5687 = vshrl.u32 %v5686, 7
        %v5688 = vsub.s32 %v2266, %v5687
        %v5689 = vrot.slane %v4862, %v5688
        %v5690 = vsel %vm2271, %v5689, %v5685
        %v5691 = vlaneseq
        %v5692 = vshrl.u32 %v5691, 7
        %v5693 = vsub.s32 %v2273, %v5692
        %v5694 = vrot.slane %v4865, %v5693
        %v5695 = vsel %vm2278, %v5694, %v5690
        %v5696 = vlaneseq
        %v5697 = vshrl.u32 %v5696, 7
        %v5698 = vsub.s32 %v2170, %v5697
        %v5699 = vrot.slane %v4868, %v5698
        %v5700 = vlaneseq
        %v5701 = vshrl.u32 %v5700, 7
        %v5702 = vsub.s32 %v2175, %v5701
        %v5703 = vrot.slane %v4871, %v5702
        %v5704 = vsel %vm2180, %v5703, %v5699
        %v5705 = vlaneseq
        %v5706 = vshrl.u32 %v5705, 7
        %v5707 = vsub.s32 %v2182, %v5706
        %v5708 = vrot.slane %v4874, %v5707
        %v5709 = vsel %vm2187, %v5708, %v5704
        %v5710 = vlaneseq
        %v5711 = vshrl.u32 %v5710, 7
        %v5712 = vsub.s32 %v2189, %v5711
        %v5713 = vrot.slane %v4877, %v5712
        %v5714 = vsel %vm2194, %v5713, %v5709
        %v5715 = vlaneseq
        %v5716 = vshrl.u32 %v5715, 7
        %v5717 = vsub.s32 %v2196, %v5716
        %v5718 = vrot.slane %v4880, %v5717
        %v5719 = vsel %vm2201, %v5718, %v5714
        %v5720 = vlaneseq
        %v5721 = vshrl.u32 %v5720, 7
        %v5722 = vsub.s32 %v2203, %v5721
        %v5723 = vrot.slane %v4883, %v5722
        %v5724 = vsel %vm2208, %v5723, %v5719
        %v5725 = vlaneseq
        %v5726 = vshrl.u32 %v5725, 7
        %v5727 = vsub.s32 %v2210, %v5726
        %v5728 = vrot.slane %v4886, %v5727
        %v5729 = vsel %vm2215, %v5728, %v5724
        %v5730 = vlaneseq
        %v5731 = vshrl.u32 %v5730, 7
        %v5732 = vsub.s32 %v2217, %v5731
        %v5733 = vrot.slane %v4889, %v5732
        %v5734 = vsel %vm2222, %v5733, %v5729
        %v5735 = vlaneseq
        %v5736 = vshrl.u32 %v5735, 7
        %v5737 = vsub.s32 %v2224, %v5736
        %v5738 = vrot.slane %v4892, %v5737
        %v5739 = vsel %vm2229, %v5738, %v5734
        %v5740 = vlaneseq
        %v5741 = vshrl.u32 %v5740, 7
        %v5742 = vsub.s32 %v2231, %v5741
        %v5743 = vrot.slane %v4895, %v5742
        %v5744 = vsel %vm2236, %v5743, %v5739
        %v5745 = vlaneseq
        %v5746 = vshrl.u32 %v5745, 7
        %v5747 = vsub.s32 %v2238, %v5746
        %v5748 = vrot.slane %v4898, %v5747
        %v5749 = vsel %vm2243, %v5748, %v5744
        %v5750 = vlaneseq
        %v5751 = vshrl.u32 %v5750, 7
        %v5752 = vsub.s32 %v2245, %v5751
        %v5753 = vrot.slane %v4901, %v5752
        %v5754 = vsel %vm2250, %v5753, %v5749
        %v5755 = vlaneseq
        %v5756 = vshrl.u32 %v5755, 7
        %v5757 = vsub.s32 %v2252, %v5756
        %v5758 = vrot.slane %v4904, %v5757
        %v5759 = vsel %vm2257, %v5758, %v5754
        %v5760 = vlaneseq
        %v5761 = vshrl.u32 %v5760, 7
        %v5762 = vsub.s32 %v2259, %v5761
        %v5763 = vrot.slane %v4907, %v5762
        %v5764 = vsel %vm2264, %v5763, %v5759
        %v5765 = vlaneseq
        %v5766 = vshrl.u32 %v5765, 7
        %v5767 = vsub.s32 %v2266, %v5766
        %v5768 = vrot.slane %v4910, %v5767
        %v5769 = vsel %vm2271, %v5768, %v5764
        %v5770 = vlaneseq
        %v5771 = vshrl.u32 %v5770, 7
        %v5772 = vsub.s32 %v2273, %v5771
        %v5773 = vrot.slane %v4913, %v5772
        %v5774 = vsel %vm2278, %v5773, %v5769
        %v5775 = vlaneseq
        %v5776 = vshrl.u32 %v5775, 7
        %v5777 = vsub.s32 %v2170, %v5776
        %v5778 = vrot.slane %v4916, %v5777
        %v5779 = vlaneseq
        %v5780 = vshrl.u32 %v5779, 7
        %v5781 = vsub.s32 %v2175, %v5780
        %v5782 = vrot.slane %v4919, %v5781
        %v5783 = vsel %vm2180, %v5782, %v5778
        %v5784 = vlaneseq
        %v5785 = vshrl.u32 %v5784, 7
        %v5786 = vsub.s32 %v2182, %v5785
        %v5787 = vrot.slane %v4922, %v5786
        %v5788 = vsel %vm2187, %v5787, %v5783
        %v5789 = vlaneseq
        %v5790 = vshrl.u32 %v5789, 7
        %v5791 = vsub.s32 %v2189, %v5790
        %v5792 = vrot.slane %v4925, %v5791
        %v5793 = vsel %vm2194, %v5792, %v5788
        %v5794 = vlaneseq
        %v5795 = vshrl.u32 %v5794, 7
        %v5796 = vsub.s32 %v2196, %v5795
        %v5797 = vrot.slane %v4928, %v5796
        %v5798 = vsel %vm2201, %v5797, %v5793
        %v5799 = vlaneseq
        %v5800 = vshrl.u32 %v5799, 7
        %v5801 = vsub.s32 %v2203, %v5800
        %v5802 = vrot.slane %v4931, %v5801
        %v5803 = vsel %vm2208, %v5802, %v5798
        %v5804 = vlaneseq
        %v5805 = vshrl.u32 %v5804, 7
        %v5806 = vsub.s32 %v2210, %v5805
        %v5807 = vrot.slane %v4934, %v5806
        %v5808 = vsel %vm2215, %v5807, %v5803
        %v5809 = vlaneseq
        %v5810 = vshrl.u32 %v5809, 7
        %v5811 = vsub.s32 %v2217, %v5810
        %v5812 = vrot.slane %v4937, %v5811
        %v5813 = vsel %vm2222, %v5812, %v5808
        %v5814 = vlaneseq
        %v5815 = vshrl.u32 %v5814, 7
        %v5816 = vsub.s32 %v2224, %v5815
        %v5817 = vrot.slane %v4940, %v5816
        %v5818 = vsel %vm2229, %v5817, %v5813
        %v5819 = vlaneseq
        %v5820 = vshrl.u32 %v5819, 7
        %v5821 = vsub.s32 %v2231, %v5820
        %v5822 = vrot.slane %v4943, %v5821
        %v5823 = vsel %vm2236, %v5822, %v5818
        %v5824 = vlaneseq
        %v5825 = vshrl.u32 %v5824, 7
        %v5826 = vsub.s32 %v2238, %v5825
        %v5827 = vrot.slane %v4946, %v5826
        %v5828 = vsel %vm2243, %v5827, %v5823
        %v5829 = vlaneseq
        %v5830 = vshrl.u32 %v5829, 7
        %v5831 = vsub.s32 %v2245, %v5830
        %v5832 = vrot.slane %v4949, %v5831
        %v5833 = vsel %vm2250, %v5832, %v5828
        %v5834 = vlaneseq
        %v5835 = vshrl.u32 %v5834, 7
        %v5836 = vsub.s32 %v2252, %v5835
        %v5837 = vrot.slane %v4952, %v5836
        %v5838 = vsel %vm2257, %v5837, %v5833
        %v5839 = vlaneseq
        %v5840 = vshrl.u32 %v5839, 7
        %v5841 = vsub.s32 %v2259, %v5840
        %v5842 = vrot.slane %v4955, %v5841
        %v5843 = vsel %vm2264, %v5842, %v5838
        %v5844 = vlaneseq
        %v5845 = vshrl.u32 %v5844, 7
        %v5846 = vsub.s32 %v2266, %v5845
        %v5847 = vrot.slane %v4958, %v5846
        %v5848 = vsel %vm2271, %v5847, %v5843
        %v5849 = vlaneseq
        %v5850 = vshrl.u32 %v5849, 7
        %v5851 = vsub.s32 %v2273, %v5850
        %v5852 = vrot.slane %v4961, %v5851
        %v5853 = vsel %vm2278, %v5852, %v5848
        %v5854 = vlaneseq
        %v5855 = vshrl.u32 %v5854, 7
        %v5856 = vsub.s32 %v2170, %v5855
        %v5857 = vrot.slane %v4964, %v5856
        %v5858 = vlaneseq
        %v5859 = vshrl.u32 %v5858, 7
        %v5860 = vsub.s32 %v2175, %v5859
        %v5861 = vrot.slane %v4967, %v5860
        %v5862 = vsel %vm2180, %v5861, %v5857
        %v5863 = vlaneseq
        %v5864 = vshrl.u32 %v5863, 7
        %v5865 = vsub.s32 %v2182, %v5864
        %v5866 = vrot.slane %v4970, %v5865
        %v5867 = vsel %vm2187, %v5866, %v5862
        %v5868 = vlaneseq
        %v5869 = vshrl.u32 %v5868, 7
        %v5870 = vsub.s32 %v2189, %v5869
        %v5871 = vrot.slane %v4973, %v5870
        %v5872 = vsel %vm2194, %v5871, %v5867
        %v5873 = vlaneseq
        %v5874 = vshrl.u32 %v5873, 7
        %v5875 = vsub.s32 %v2196, %v5874
        %v5876 = vrot.slane %v4976, %v5875
        %v5877 = vsel %vm2201, %v5876, %v5872
        %v5878 = vlaneseq
        %v5879 = vshrl.u32 %v5878, 7
        %v5880 = vsub.s32 %v2203, %v5879
        %v5881 = vrot.slane %v4979, %v5880
        %v5882 = vsel %vm2208, %v5881, %v5877
        %v5883 = vlaneseq
        %v5884 = vshrl.u32 %v5883, 7
        %v5885 = vsub.s32 %v2210, %v5884
        %v5886 = vrot.slane %v4982, %v5885
        %v5887 = vsel %vm2215, %v5886, %v5882
        %v5888 = vlaneseq
        %v5889 = vshrl.u32 %v5888, 7
        %v5890 = vsub.s32 %v2217, %v5889
        %v5891 = vrot.slane %v4985, %v5890
        %v5892 = vsel %vm2222, %v5891, %v5887
        %v5893 = vlaneseq
        %v5894 = vshrl.u32 %v5893, 7
        %v5895 = vsub.s32 %v2224, %v5894
        %v5896 = vrot.slane %v4988, %v5895
        %v5897 = vsel %vm2229, %v5896, %v5892
        %v5898 = vlaneseq
        %v5899 = vshrl.u32 %v5898, 7
        %v5900 = vsub.s32 %v2231, %v5899
        %v5901 = vrot.slane %v4991, %v5900
        %v5902 = vsel %vm2236, %v5901, %v5897
        %v5903 = vlaneseq
        %v5904 = vshrl.u32 %v5903, 7
        %v5905 = vsub.s32 %v2238, %v5904
        %v5906 = vrot.slane %v4994, %v5905
        %v5907 = vsel %vm2243, %v5906, %v5902
        %v5908 = vlaneseq
        %v5909 = vshrl.u32 %v5908, 7
        %v5910 = vsub.s32 %v2245, %v5909
        %v5911 = vrot.slane %v4997, %v5910
        %v5912 = vsel %vm2250, %v5911, %v5907
        %v5913 = vlaneseq
        %v5914 = vshrl.u32 %v5913, 7
        %v5915 = vsub.s32 %v2252, %v5914
        %v5916 = vrot.slane %v5000, %v5915
        %v5917 = vsel %vm2257, %v5916, %v5912
        %v5918 = vlaneseq
        %v5919 = vshrl.u32 %v5918, 7
        %v5920 = vsub.s32 %v2259, %v5919
        %v5921 = vrot.slane %v5003, %v5920
        %v5922 = vsel %vm2264, %v5921, %v5917
        %v5923 = vlaneseq
        %v5924 = vshrl.u32 %v5923, 7
        %v5925 = vsub.s32 %v2266, %v5924
        %v5926 = vrot.slane %v5006, %v5925
        %v5927 = vsel %vm2271, %v5926, %v5922
        %v5928 = vlaneseq
        %v5929 = vshrl.u32 %v5928, 7
        %v5930 = vsub.s32 %v2273, %v5929
        %v5931 = vrot.slane %v5009, %v5930
        %v5932 = vsel %vm2278, %v5931, %v5927
        %v5933 = vlaneseq
        %v5934 = vshrl.u32 %v5933, 7
        %v5935 = vsub.s32 %v2170, %v5934
        %v5936 = vrot.slane %v5012, %v5935
        %v5937 = vlaneseq
        %v5938 = vshrl.u32 %v5937, 7
        %v5939 = vsub.s32 %v2175, %v5938
        %v5940 = vrot.slane %v5015, %v5939
        %v5941 = vsel %vm2180, %v5940, %v5936
        %v5942 = vlaneseq
        %v5943 = vshrl.u32 %v5942, 7
        %v5944 = vsub.s32 %v2182, %v5943
        %v5945 = vrot.slane %v5018, %v5944
        %v5946 = vsel %vm2187, %v5945, %v5941
        %v5947 = vlaneseq
        %v5948 = vshrl.u32 %v5947, 7
        %v5949 = vsub.s32 %v2189, %v5948
        %v5950 = vrot.slane %v5021, %v5949
        %v5951 = vsel %vm2194, %v5950, %v5946
        %v5952 = vlaneseq
        %v5953 = vshrl.u32 %v5952, 7
        %v5954 = vsub.s32 %v2196, %v5953
        %v5955 = vrot.slane %v5024, %v5954
        %v5956 = vsel %vm2201, %v5955, %v5951
        %v5957 = vlaneseq
        %v5958 = vshrl.u32 %v5957, 7
        %v5959 = vsub.s32 %v2203, %v5958
        %v5960 = vrot.slane %v5027, %v5959
        %v5961 = vsel %vm2208, %v5960, %v5956
        %v5962 = vlaneseq
        %v5963 = vshrl.u32 %v5962, 7
        %v5964 = vsub.s32 %v2210, %v5963
        %v5965 = vrot.slane %v5030, %v5964
        %v5966 = vsel %vm2215, %v5965, %v5961
        %v5967 = vlaneseq
        %v5968 = vshrl.u32 %v5967, 7
        %v5969 = vsub.s32 %v2217, %v5968
        %v5970 = vrot.slane %v5033, %v5969
        %v5971 = vsel %vm2222, %v5970, %v5966
        %v5972 = vlaneseq
        %v5973 = vshrl.u32 %v5972, 7
        %v5974 = vsub.s32 %v2224, %v5973
        %v5975 = vrot.slane %v5036, %v5974
        %v5976 = vsel %vm2229, %v5975, %v5971
        %v5977 = vlaneseq
        %v5978 = vshrl.u32 %v5977, 7
        %v5979 = vsub.s32 %v2231, %v5978
        %v5980 = vrot.slane %v5039, %v5979
        %v5981 = vsel %vm2236, %v5980, %v5976
        %v5982 = vlaneseq
        %v5983 = vshrl.u32 %v5982, 7
        %v5984 = vsub.s32 %v2238, %v5983
        %v5985 = vrot.slane %v5042, %v5984
        %v5986 = vsel %vm2243, %v5985, %v5981
        %v5987 = vlaneseq
        %v5988 = vshrl.u32 %v5987, 7
        %v5989 = vsub.s32 %v2245, %v5988
        %v5990 = vrot.slane %v5045, %v5989
        %v5991 = vsel %vm2250, %v5990, %v5986
        %v5992 = vlaneseq
        %v5993 = vshrl.u32 %v5992, 7
        %v5994 = vsub.s32 %v2252, %v5993
        %v5995 = vrot.slane %v5048, %v5994
        %v5996 = vsel %vm2257, %v5995, %v5991
        %v5997 = vlaneseq
        %v5998 = vshrl.u32 %v5997, 7
        %v5999 = vsub.s32 %v2259, %v5998
        %v6000 = vrot.slane %v5051, %v5999
        %v6001 = vsel %vm2264, %v6000, %v5996
        %v6002 = vlaneseq
        %v6003 = vshrl.u32 %v6002, 7
        %v6004 = vsub.s32 %v2266, %v6003
        %v6005 = vrot.slane %v5054, %v6004
        %v6006 = vsel %vm2271, %v6005, %v6001
        %v6007 = vlaneseq
        %v6008 = vshrl.u32 %v6007, 7
        %v6009 = vsub.s32 %v2273, %v6008
        %v6010 = vrot.slane %v5057, %v6009
        %v6011 = vsel %vm2278, %v6010, %v6006
        %v6012 = vlaneseq
        %v6013 = vshrl.u32 %v6012, 7
        %v6014 = vsub.s32 %v2170, %v6013
        %v6015 = vrot.slane %v5060, %v6014
        %v6016 = vlaneseq
        %v6017 = vshrl.u32 %v6016, 7
        %v6018 = vsub.s32 %v2175, %v6017
        %v6019 = vrot.slane %v5063, %v6018
        %v6020 = vsel %vm2180, %v6019, %v6015
        %v6021 = vlaneseq
        %v6022 = vshrl.u32 %v6021, 7
        %v6023 = vsub.s32 %v2182, %v6022
        %v6024 = vrot.slane %v5066, %v6023
        %v6025 = vsel %vm2187, %v6024, %v6020
        %v6026 = vlaneseq
        %v6027 = vshrl.u32 %v6026, 7
        %v6028 = vsub.s32 %v2189, %v6027
        %v6029 = vrot.slane %v5069, %v6028
        %v6030 = vsel %vm2194, %v6029, %v6025
        %v6031 = vlaneseq
        %v6032 = vshrl.u32 %v6031, 7
        %v6033 = vsub.s32 %v2196, %v6032
        %v6034 = vrot.slane %v5072, %v6033
        %v6035 = vsel %vm2201, %v6034, %v6030
        %v6036 = vlaneseq
        %v6037 = vshrl.u32 %v6036, 7
        %v6038 = vsub.s32 %v2203, %v6037
        %v6039 = vrot.slane %v5075, %v6038
        %v6040 = vsel %vm2208, %v6039, %v6035
        %v6041 = vlaneseq
        %v6042 = vshrl.u32 %v6041, 7
        %v6043 = vsub.s32 %v2210, %v6042
        %v6044 = vrot.slane %v5078, %v6043
        %v6045 = vsel %vm2215, %v6044, %v6040
        %v6046 = vlaneseq
        %v6047 = vshrl.u32 %v6046, 7
        %v6048 = vsub.s32 %v2217, %v6047
        %v6049 = vrot.slane %v5081, %v6048
        %v6050 = vsel %vm2222, %v6049, %v6045
        %v6051 = vlaneseq
        %v6052 = vshrl.u32 %v6051, 7
        %v6053 = vsub.s32 %v2224, %v6052
        %v6054 = vrot.slane %v5084, %v6053
        %v6055 = vsel %vm2229, %v6054, %v6050
        %v6056 = vlaneseq
        %v6057 = vshrl.u32 %v6056, 7
        %v6058 = vsub.s32 %v2231, %v6057
        %v6059 = vrot.slane %v5087, %v6058
        %v6060 = vsel %vm2236, %v6059, %v6055
        %v6061 = vlaneseq
        %v6062 = vshrl.u32 %v6061, 7
        %v6063 = vsub.s32 %v2238, %v6062
        %v6064 = vrot.slane %v5090, %v6063
        %v6065 = vsel %vm2243, %v6064, %v6060
        %v6066 = vlaneseq
        %v6067 = vshrl.u32 %v6066, 7
        %v6068 = vsub.s32 %v2245, %v6067
        %v6069 = vrot.slane %v5093, %v6068
        %v6070 = vsel %vm2250, %v6069, %v6065
        %v6071 = vlaneseq
        %v6072 = vshrl.u32 %v6071, 7
        %v6073 = vsub.s32 %v2252, %v6072
        %v6074 = vrot.slane %v5096, %v6073
        %v6075 = vsel %vm2257, %v6074, %v6070
        %v6076 = vlaneseq
        %v6077 = vshrl.u32 %v6076, 7
        %v6078 = vsub.s32 %v2259, %v6077
        %v6079 = vrot.slane %v5099, %v6078
        %v6080 = vsel %vm2264, %v6079, %v6075
        %v6081 = vlaneseq
        %v6082 = vshrl.u32 %v6081, 7
        %v6083 = vsub.s32 %v2266, %v6082
        %v6084 = vrot.slane %v5102, %v6083
        %v6085 = vsel %vm2271, %v6084, %v6080
        %v6086 = vlaneseq
        %v6087 = vshrl.u32 %v6086, 7
        %v6088 = vsub.s32 %v2273, %v6087
        %v6089 = vrot.slane %v5105, %v6088
        %v6090 = vsel %vm2278, %v6089, %v6085
        %v6091 = vlaneseq
        %v6092 = vshrl.u32 %v6091, 7
        %v6093 = vsub.s32 %v2170, %v6092
        %v6094 = vrot.slane %v5108, %v6093
        %v6095 = vlaneseq
        %v6096 = vshrl.u32 %v6095, 7
        %v6097 = vsub.s32 %v2175, %v6096
        %v6098 = vrot.slane %v5111, %v6097
        %v6099 = vsel %vm2180, %v6098, %v6094
        %v6100 = vlaneseq
        %v6101 = vshrl.u32 %v6100, 7
        %v6102 = vsub.s32 %v2182, %v6101
        %v6103 = vrot.slane %v5114, %v6102
        %v6104 = vsel %vm2187, %v6103, %v6099
        %v6105 = vlaneseq
        %v6106 = vshrl.u32 %v6105, 7
        %v6107 = vsub.s32 %v2189, %v6106
        %v6108 = vrot.slane %v5117, %v6107
        %v6109 = vsel %vm2194, %v6108, %v6104
        %v6110 = vlaneseq
        %v6111 = vshrl.u32 %v6110, 7
        %v6112 = vsub.s32 %v2196, %v6111
        %v6113 = vrot.slane %v5120, %v6112
        %v6114 = vsel %vm2201, %v6113, %v6109
        %v6115 = vlaneseq
        %v6116 = vshrl.u32 %v6115, 7
        %v6117 = vsub.s32 %v2203, %v6116
        %v6118 = vrot.slane %v5123, %v6117
        %v6119 = vsel %vm2208, %v6118, %v6114
        %v6120 = vlaneseq
        %v6121 = vshrl.u32 %v6120, 7
        %v6122 = vsub.s32 %v2210, %v6121
        %v6123 = vrot.slane %v5126, %v6122
        %v6124 = vsel %vm2215, %v6123, %v6119
        %v6125 = vlaneseq
        %v6126 = vshrl.u32 %v6125, 7
        %v6127 = vsub.s32 %v2217, %v6126
        %v6128 = vrot.slane %v5129, %v6127
        %v6129 = vsel %vm2222, %v6128, %v6124
        %v6130 = vlaneseq
        %v6131 = vshrl.u32 %v6130, 7
        %v6132 = vsub.s32 %v2224, %v6131
        %v6133 = vrot.slane %v5132, %v6132
        %v6134 = vsel %vm2229, %v6133, %v6129
        %v6135 = vlaneseq
        %v6136 = vshrl.u32 %v6135, 7
        %v6137 = vsub.s32 %v2231, %v6136
        %v6138 = vrot.slane %v5135, %v6137
        %v6139 = vsel %vm2236, %v6138, %v6134
        %v6140 = vlaneseq
        %v6141 = vshrl.u32 %v6140, 7
        %v6142 = vsub.s32 %v2238, %v6141
        %v6143 = vrot.slane %v5138, %v6142
        %v6144 = vsel %vm2243, %v6143, %v6139
        %v6145 = vlaneseq
        %v6146 = vshrl.u32 %v6145, 7
        %v6147 = vsub.s32 %v2245, %v6146
        %v6148 = vrot.slane %v5141, %v6147
        %v6149 = vsel %vm2250, %v6148, %v6144
        %v6150 = vlaneseq
        %v6151 = vshrl.u32 %v6150, 7
        %v6152 = vsub.s32 %v2252, %v6151
        %v6153 = vrot.slane %v5144, %v6152
        %v6154 = vsel %vm2257, %v6153, %v6149
        %v6155 = vlaneseq
        %v6156 = vshrl.u32 %v6155, 7
        %v6157 = vsub.s32 %v2259, %v6156
        %v6158 = vrot.slane %v5147, %v6157
        %v6159 = vsel %vm2264, %v6158, %v6154
        %v6160 = vlaneseq
        %v6161 = vshrl.u32 %v6160, 7
        %v6162 = vsub.s32 %v2266, %v6161
        %v6163 = vrot.slane %v5150, %v6162
        %v6164 = vsel %vm2271, %v6163, %v6159
        %v6165 = vlaneseq
        %v6166 = vshrl.u32 %v6165, 7
        %v6167 = vsub.s32 %v2273, %v6166
        %v6168 = vrot.slane %v5153, %v6167
        %v6169 = vsel %vm2278, %v6168, %v6164
        %v6170 = vlaneseq
        %v6171 = vshrl.u32 %v6170, 7
        %v6172 = vsub.s32 %v2170, %v6171
        %v6173 = vrot.slane %v5156, %v6172
        %v6174 = vlaneseq
        %v6175 = vshrl.u32 %v6174, 7
        %v6176 = vsub.s32 %v2175, %v6175
        %v6177 = vrot.slane %v5159, %v6176
        %v6178 = vsel %vm2180, %v6177, %v6173
        %v6179 = vlaneseq
        %v6180 = vshrl.u32 %v6179, 7
        %v6181 = vsub.s32 %v2182, %v6180
        %v6182 = vrot.slane %v5162, %v6181
        %v6183 = vsel %vm2187, %v6182, %v6178
        %v6184 = vlaneseq
        %v6185 = vshrl.u32 %v6184, 7
        %v6186 = vsub.s32 %v2189, %v6185
        %v6187 = vrot.slane %v5165, %v6186
        %v6188 = vsel %vm2194, %v6187, %v6183
        %v6189 = vlaneseq
        %v6190 = vshrl.u32 %v6189, 7
        %v6191 = vsub.s32 %v2196, %v6190
        %v6192 = vrot.slane %v5168, %v6191
        %v6193 = vsel %vm2201, %v6192, %v6188
        %v6194 = vlaneseq
        %v6195 = vshrl.u32 %v6194, 7
        %v6196 = vsub.s32 %v2203, %v6195
        %v6197 = vrot.slane %v5171, %v6196
        %v6198 = vsel %vm2208, %v6197, %v6193
        %v6199 = vlaneseq
        %v6200 = vshrl.u32 %v6199, 7
        %v6201 = vsub.s32 %v2210, %v6200
        %v6202 = vrot.slane %v5174, %v6201
        %v6203 = vsel %vm2215, %v6202, %v6198
        %v6204 = vlaneseq
        %v6205 = vshrl.u32 %v6204, 7
        %v6206 = vsub.s32 %v2217, %v6205
        %v6207 = vrot.slane %v5177, %v6206
        %v6208 = vsel %vm2222, %v6207, %v6203
        %v6209 = vlaneseq
        %v6210 = vshrl.u32 %v6209, 7
        %v6211 = vsub.s32 %v2224, %v6210
        %v6212 = vrot.slane %v5180, %v6211
        %v6213 = vsel %vm2229, %v6212, %v6208
        %v6214 = vlaneseq
        %v6215 = vshrl.u32 %v6214, 7
        %v6216 = vsub.s32 %v2231, %v6215
        %v6217 = vrot.slane %v5183, %v6216
        %v6218 = vsel %vm2236, %v6217, %v6213
        %v6219 = vlaneseq
        %v6220 = vshrl.u32 %v6219, 7
        %v6221 = vsub.s32 %v2238, %v6220
        %v6222 = vrot.slane %v5186, %v6221
        %v6223 = vsel %vm2243, %v6222, %v6218
        %v6224 = vlaneseq
        %v6225 = vshrl.u32 %v6224, 7
        %v6226 = vsub.s32 %v2245, %v6225
        %v6227 = vrot.slane %v5189, %v6226
        %v6228 = vsel %vm2250, %v6227, %v6223
        %v6229 = vlaneseq
        %v6230 = vshrl.u32 %v6229, 7
        %v6231 = vsub.s32 %v2252, %v6230
        %v6232 = vrot.slane %v5192, %v6231
        %v6233 = vsel %vm2257, %v6232, %v6228
        %v6234 = vlaneseq
        %v6235 = vshrl.u32 %v6234, 7
        %v6236 = vsub.s32 %v2259, %v6235
        %v6237 = vrot.slane %v5195, %v6236
        %v6238 = vsel %vm2264, %v6237, %v6233
        %v6239 = vlaneseq
        %v6240 = vshrl.u32 %v6239, 7
        %v6241 = vsub.s32 %v2266, %v6240
        %v6242 = vrot.slane %v5198, %v6241
        %v6243 = vsel %vm2271, %v6242, %v6238
        %v6244 = vlaneseq
        %v6245 = vshrl.u32 %v6244, 7
        %v6246 = vsub.s32 %v2273, %v6245
        %v6247 = vrot.slane %v5201, %v6246
        %v6248 = vsel %vm2278, %v6247, %v6243
        %v6249 = vlaneseq
        %v6250 = vshrl.u32 %v6249, 7
        %v6251 = vsub.s32 %v2170, %v6250
        %v6252 = vrot.slane %v5204, %v6251
        %v6253 = vlaneseq
        %v6254 = vshrl.u32 %v6253, 7
        %v6255 = vsub.s32 %v2175, %v6254
        %v6256 = vrot.slane %v5207, %v6255
        %v6257 = vsel %vm2180, %v6256, %v6252
        %v6258 = vlaneseq
        %v6259 = vshrl.u32 %v6258, 7
        %v6260 = vsub.s32 %v2182, %v6259
        %v6261 = vrot.slane %v5210, %v6260
        %v6262 = vsel %vm2187, %v6261, %v6257
        %v6263 = vlaneseq
        %v6264 = vshrl.u32 %v6263, 7
        %v6265 = vsub.s32 %v2189, %v6264
        %v6266 = vrot.slane %v5213, %v6265
        %v6267 = vsel %vm2194, %v6266, %v6262
        %v6268 = vlaneseq
        %v6269 = vshrl.u32 %v6268, 7
        %v6270 = vsub.s32 %v2196, %v6269
        %v6271 = vrot.slane %v5216, %v6270
        %v6272 = vsel %vm2201, %v6271, %v6267
        %v6273 = vlaneseq
        %v6274 = vshrl.u32 %v6273, 7
        %v6275 = vsub.s32 %v2203, %v6274
        %v6276 = vrot.slane %v5219, %v6275
        %v6277 = vsel %vm2208, %v6276, %v6272
        %v6278 = vlaneseq
        %v6279 = vshrl.u32 %v6278, 7
        %v6280 = vsub.s32 %v2210, %v6279
        %v6281 = vrot.slane %v5222, %v6280
        %v6282 = vsel %vm2215, %v6281, %v6277
        %v6283 = vlaneseq
        %v6284 = vshrl.u32 %v6283, 7
        %v6285 = vsub.s32 %v2217, %v6284
        %v6286 = vrot.slane %v5225, %v6285
        %v6287 = vsel %vm2222, %v6286, %v6282
        %v6288 = vlaneseq
        %v6289 = vshrl.u32 %v6288, 7
        %v6290 = vsub.s32 %v2224, %v6289
        %v6291 = vrot.slane %v5228, %v6290
        %v6292 = vsel %vm2229, %v6291, %v6287
        %v6293 = vlaneseq
        %v6294 = vshrl.u32 %v6293, 7
        %v6295 = vsub.s32 %v2231, %v6294
        %v6296 = vrot.slane %v5231, %v6295
        %v6297 = vsel %vm2236, %v6296, %v6292
        %v6298 = vlaneseq
        %v6299 = vshrl.u32 %v6298, 7
        %v6300 = vsub.s32 %v2238, %v6299
        %v6301 = vrot.slane %v5234, %v6300
        %v6302 = vsel %vm2243, %v6301, %v6297
        %v6303 = vlaneseq
        %v6304 = vshrl.u32 %v6303, 7
        %v6305 = vsub.s32 %v2245, %v6304
        %v6306 = vrot.slane %v5237, %v6305
        %v6307 = vsel %vm2250, %v6306, %v6302
        %v6308 = vlaneseq
        %v6309 = vshrl.u32 %v6308, 7
        %v6310 = vsub.s32 %v2252, %v6309
        %v6311 = vrot.slane %v5240, %v6310
        %v6312 = vsel %vm2257, %v6311, %v6307
        %v6313 = vlaneseq
        %v6314 = vshrl.u32 %v6313, 7
        %v6315 = vsub.s32 %v2259, %v6314
        %v6316 = vrot.slane %v5243, %v6315
        %v6317 = vsel %vm2264, %v6316, %v6312
        %v6318 = vlaneseq
        %v6319 = vshrl.u32 %v6318, 7
        %v6320 = vsub.s32 %v2266, %v6319
        %v6321 = vrot.slane %v5246, %v6320
        %v6322 = vsel %vm2271, %v6321, %v6317
        %v6323 = vlaneseq
        %v6324 = vshrl.u32 %v6323, 7
        %v6325 = vsub.s32 %v2273, %v6324
        %v6326 = vrot.slane %v5249, %v6325
        %v6327 = vsel %vm2278, %v6326, %v6322
        %v6328 = vlaneseq
        %v6329 = vshrl.u32 %v6328, 7
        %v6330 = vsub.s32 %v2170, %v6329
        %v6331 = vrot.slane %v5252, %v6330
        %v6332 = vlaneseq
        %v6333 = vshrl.u32 %v6332, 7
        %v6334 = vsub.s32 %v2175, %v6333
        %v6335 = vrot.slane %v5255, %v6334
        %v6336 = vsel %vm2180, %v6335, %v6331
        %v6337 = vlaneseq
        %v6338 = vshrl.u32 %v6337, 7
        %v6339 = vsub.s32 %v2182, %v6338
        %v6340 = vrot.slane %v5258, %v6339
        %v6341 = vsel %vm2187, %v6340, %v6336
        %v6342 = vlaneseq
        %v6343 = vshrl.u32 %v6342, 7
        %v6344 = vsub.s32 %v2189, %v6343
        %v6345 = vrot.slane %v5261, %v6344
        %v6346 = vsel %vm2194, %v6345, %v6341
        %v6347 = vlaneseq
        %v6348 = vshrl.u32 %v6347, 7
        %v6349 = vsub.s32 %v2196, %v6348
        %v6350 = vrot.slane %v5264, %v6349
        %v6351 = vsel %vm2201, %v6350, %v6346
        %v6352 = vlaneseq
        %v6353 = vshrl.u32 %v6352, 7
        %v6354 = vsub.s32 %v2203, %v6353
        %v6355 = vrot.slane %v5267, %v6354
        %v6356 = vsel %vm2208, %v6355, %v6351
        %v6357 = vlaneseq
        %v6358 = vshrl.u32 %v6357, 7
        %v6359 = vsub.s32 %v2210, %v6358
        %v6360 = vrot.slane %v5270, %v6359
        %v6361 = vsel %vm2215, %v6360, %v6356
        %v6362 = vlaneseq
        %v6363 = vshrl.u32 %v6362, 7
        %v6364 = vsub.s32 %v2217, %v6363
        %v6365 = vrot.slane %v5273, %v6364
        %v6366 = vsel %vm2222, %v6365, %v6361
        %v6367 = vlaneseq
        %v6368 = vshrl.u32 %v6367, 7
        %v6369 = vsub.s32 %v2224, %v6368
        %v6370 = vrot.slane %v5276, %v6369
        %v6371 = vsel %vm2229, %v6370, %v6366
        %v6372 = vlaneseq
        %v6373 = vshrl.u32 %v6372, 7
        %v6374 = vsub.s32 %v2231, %v6373
        %v6375 = vrot.slane %v5279, %v6374
        %v6376 = vsel %vm2236, %v6375, %v6371
        %v6377 = vlaneseq
        %v6378 = vshrl.u32 %v6377, 7
        %v6379 = vsub.s32 %v2238, %v6378
        %v6380 = vrot.slane %v5282, %v6379
        %v6381 = vsel %vm2243, %v6380, %v6376
        %v6382 = vlaneseq
        %v6383 = vshrl.u32 %v6382, 7
        %v6384 = vsub.s32 %v2245, %v6383
        %v6385 = vrot.slane %v5285, %v6384
        %v6386 = vsel %vm2250, %v6385, %v6381
        %v6387 = vlaneseq
        %v6388 = vshrl.u32 %v6387, 7
        %v6389 = vsub.s32 %v2252, %v6388
        %v6390 = vrot.slane %v5288, %v6389
        %v6391 = vsel %vm2257, %v6390, %v6386
        %v6392 = vlaneseq
        %v6393 = vshrl.u32 %v6392, 7
        %v6394 = vsub.s32 %v2259, %v6393
        %v6395 = vrot.slane %v5291, %v6394
        %v6396 = vsel %vm2264, %v6395, %v6391
        %v6397 = vlaneseq
        %v6398 = vshrl.u32 %v6397, 7
        %v6399 = vsub.s32 %v2266, %v6398
        %v6400 = vrot.slane %v5294, %v6399
        %v6401 = vsel %vm2271, %v6400, %v6396
        %v6402 = vlaneseq
        %v6403 = vshrl.u32 %v6402, 7
        %v6404 = vsub.s32 %v2273, %v6403
        %v6405 = vrot.slane %v5297, %v6404
        %v6406 = vsel %vm2278, %v6405, %v6401
        %v6407 = vlaneseq
        %v6408 = vshrl.u32 %v6407, 7
        %v6409 = vsub.s32 %v2170, %v6408
        %v6410 = vrot.slane %v5300, %v6409
        %v6411 = vlaneseq
        %v6412 = vshrl.u32 %v6411, 7
        %v6413 = vsub.s32 %v2175, %v6412
        %v6414 = vrot.slane %v5303, %v6413
        %v6415 = vsel %vm2180, %v6414, %v6410
        %v6416 = vlaneseq
        %v6417 = vshrl.u32 %v6416, 7
        %v6418 = vsub.s32 %v2182, %v6417
        %v6419 = vrot.slane %v5306, %v6418
        %v6420 = vsel %vm2187, %v6419, %v6415
        %v6421 = vlaneseq
        %v6422 = vshrl.u32 %v6421, 7
        %v6423 = vsub.s32 %v2189, %v6422
        %v6424 = vrot.slane %v5309, %v6423
        %v6425 = vsel %vm2194, %v6424, %v6420
        %v6426 = vlaneseq
        %v6427 = vshrl.u32 %v6426, 7
        %v6428 = vsub.s32 %v2196, %v6427
        %v6429 = vrot.slane %v5312, %v6428
        %v6430 = vsel %vm2201, %v6429, %v6425
        %v6431 = vlaneseq
        %v6432 = vshrl.u32 %v6431, 7
        %v6433 = vsub.s32 %v2203, %v6432
        %v6434 = vrot.slane %v5315, %v6433
        %v6435 = vsel %vm2208, %v6434, %v6430
        %v6436 = vlaneseq
        %v6437 = vshrl.u32 %v6436, 7
        %v6438 = vsub.s32 %v2210, %v6437
        %v6439 = vrot.slane %v5318, %v6438
        %v6440 = vsel %vm2215, %v6439, %v6435
        %v6441 = vlaneseq
        %v6442 = vshrl.u32 %v6441, 7
        %v6443 = vsub.s32 %v2217, %v6442
        %v6444 = vrot.slane %v5321, %v6443
        %v6445 = vsel %vm2222, %v6444, %v6440
        %v6446 = vlaneseq
        %v6447 = vshrl.u32 %v6446, 7
        %v6448 = vsub.s32 %v2224, %v6447
        %v6449 = vrot.slane %v5324, %v6448
        %v6450 = vsel %vm2229, %v6449, %v6445
        %v6451 = vlaneseq
        %v6452 = vshrl.u32 %v6451, 7
        %v6453 = vsub.s32 %v2231, %v6452
        %v6454 = vrot.slane %v5327, %v6453
        %v6455 = vsel %vm2236, %v6454, %v6450
        %v6456 = vlaneseq
        %v6457 = vshrl.u32 %v6456, 7
        %v6458 = vsub.s32 %v2238, %v6457
        %v6459 = vrot.slane %v5330, %v6458
        %v6460 = vsel %vm2243, %v6459, %v6455
        %v6461 = vlaneseq
        %v6462 = vshrl.u32 %v6461, 7
        %v6463 = vsub.s32 %v2245, %v6462
        %v6464 = vrot.slane %v5333, %v6463
        %v6465 = vsel %vm2250, %v6464, %v6460
        %v6466 = vlaneseq
        %v6467 = vshrl.u32 %v6466, 7
        %v6468 = vsub.s32 %v2252, %v6467
        %v6469 = vrot.slane %v5336, %v6468
        %v6470 = vsel %vm2257, %v6469, %v6465
        %v6471 = vlaneseq
        %v6472 = vshrl.u32 %v6471, 7
        %v6473 = vsub.s32 %v2259, %v6472
        %v6474 = vrot.slane %v5339, %v6473
        %v6475 = vsel %vm2264, %v6474, %v6470
        %v6476 = vlaneseq
        %v6477 = vshrl.u32 %v6476, 7
        %v6478 = vsub.s32 %v2266, %v6477
        %v6479 = vrot.slane %v5342, %v6478
        %v6480 = vsel %vm2271, %v6479, %v6475
        %v6481 = vlaneseq
        %v6482 = vshrl.u32 %v6481, 7
        %v6483 = vsub.s32 %v2273, %v6482
        %v6484 = vrot.slane %v5345, %v6483
        %v6485 = vsel %vm2278, %v6484, %v6480
        %v6486 = vlaneseq
        %v6487 = vshrl.u32 %v6486, 7
        %v6488 = vsub.s32 %v2170, %v6487
        %v6489 = vrot.slane %v5348, %v6488
        %v6490 = vlaneseq
        %v6491 = vshrl.u32 %v6490, 7
        %v6492 = vsub.s32 %v2175, %v6491
        %v6493 = vrot.slane %v5351, %v6492
        %v6494 = vsel %vm2180, %v6493, %v6489
        %v6495 = vlaneseq
        %v6496 = vshrl.u32 %v6495, 7
        %v6497 = vsub.s32 %v2182, %v6496
        %v6498 = vrot.slane %v5354, %v6497
        %v6499 = vsel %vm2187, %v6498, %v6494
        %v6500 = vlaneseq
        %v6501 = vshrl.u32 %v6500, 7
        %v6502 = vsub.s32 %v2189, %v6501
        %v6503 = vrot.slane %v5357, %v6502
        %v6504 = vsel %vm2194, %v6503, %v6499
        %v6505 = vlaneseq
        %v6506 = vshrl.u32 %v6505, 7
        %v6507 = vsub.s32 %v2196, %v6506
        %v6508 = vrot.slane %v5360, %v6507
        %v6509 = vsel %vm2201, %v6508, %v6504
        %v6510 = vlaneseq
        %v6511 = vshrl.u32 %v6510, 7
        %v6512 = vsub.s32 %v2203, %v6511
        %v6513 = vrot.slane %v5363, %v6512
        %v6514 = vsel %vm2208, %v6513, %v6509
        %v6515 = vlaneseq
        %v6516 = vshrl.u32 %v6515, 7
        %v6517 = vsub.s32 %v2210, %v6516
        %v6518 = vrot.slane %v5366, %v6517
        %v6519 = vsel %vm2215, %v6518, %v6514
        %v6520 = vlaneseq
        %v6521 = vshrl.u32 %v6520, 7
        %v6522 = vsub.s32 %v2217, %v6521
        %v6523 = vrot.slane %v5369, %v6522
        %v6524 = vsel %vm2222, %v6523, %v6519
        %v6525 = vlaneseq
        %v6526 = vshrl.u32 %v6525, 7
        %v6527 = vsub.s32 %v2224, %v6526
        %v6528 = vrot.slane %v5372, %v6527
        %v6529 = vsel %vm2229, %v6528, %v6524
        %v6530 = vlaneseq
        %v6531 = vshrl.u32 %v6530, 7
        %v6532 = vsub.s32 %v2231, %v6531
        %v6533 = vrot.slane %v5375, %v6532
        %v6534 = vsel %vm2236, %v6533, %v6529
        %v6535 = vlaneseq
        %v6536 = vshrl.u32 %v6535, 7
        %v6537 = vsub.s32 %v2238, %v6536
        %v6538 = vrot.slane %v5378, %v6537
        %v6539 = vsel %vm2243, %v6538, %v6534
        %v6540 = vlaneseq
        %v6541 = vshrl.u32 %v6540, 7
        %v6542 = vsub.s32 %v2245, %v6541
        %v6543 = vrot.slane %v5381, %v6542
        %v6544 = vsel %vm2250, %v6543, %v6539
        %v6545 = vlaneseq
        %v6546 = vshrl.u32 %v6545, 7
        %v6547 = vsub.s32 %v2252, %v6546
        %v6548 = vrot.slane %v5384, %v6547
        %v6549 = vsel %vm2257, %v6548, %v6544
        %v6550 = vlaneseq
        %v6551 = vshrl.u32 %v6550, 7
        %v6552 = vsub.s32 %v2259, %v6551
        %v6553 = vrot.slane %v5387, %v6552
        %v6554 = vsel %vm2264, %v6553, %v6549
        %v6555 = vlaneseq
        %v6556 = vshrl.u32 %v6555, 7
        %v6557 = vsub.s32 %v2266, %v6556
        %v6558 = vrot.slane %v5390, %v6557
        %v6559 = vsel %vm2271, %v6558, %v6554
        %v6560 = vlaneseq
        %v6561 = vshrl.u32 %v6560, 7
        %v6562 = vsub.s32 %v2273, %v6561
        %v6563 = vrot.slane %v5393, %v6562
        %v6564 = vsel %vm2278, %v6563, %v6559
        %v6565 = vlaneseq
        %v6566 = vshrl.u32 %v6565, 7
        %v6567 = vsub.s32 %v2170, %v6566
        %v6568 = vrot.slane %v5396, %v6567
        %v6569 = vlaneseq
        %v6570 = vshrl.u32 %v6569, 7
        %v6571 = vsub.s32 %v2175, %v6570
        %v6572 = vrot.slane %v5399, %v6571
        %v6573 = vsel %vm2180, %v6572, %v6568
        %v6574 = vlaneseq
        %v6575 = vshrl.u32 %v6574, 7
        %v6576 = vsub.s32 %v2182, %v6575
        %v6577 = vrot.slane %v5402, %v6576
        %v6578 = vsel %vm2187, %v6577, %v6573
        %v6579 = vlaneseq
        %v6580 = vshrl.u32 %v6579, 7
        %v6581 = vsub.s32 %v2189, %v6580
        %v6582 = vrot.slane %v5405, %v6581
        %v6583 = vsel %vm2194, %v6582, %v6578
        %v6584 = vlaneseq
        %v6585 = vshrl.u32 %v6584, 7
        %v6586 = vsub.s32 %v2196, %v6585
        %v6587 = vrot.slane %v5408, %v6586
        %v6588 = vsel %vm2201, %v6587, %v6583
        %v6589 = vlaneseq
        %v6590 = vshrl.u32 %v6589, 7
        %v6591 = vsub.s32 %v2203, %v6590
        %v6592 = vrot.slane %v5411, %v6591
        %v6593 = vsel %vm2208, %v6592, %v6588
        %v6594 = vlaneseq
        %v6595 = vshrl.u32 %v6594, 7
        %v6596 = vsub.s32 %v2210, %v6595
        %v6597 = vrot.slane %v5414, %v6596
        %v6598 = vsel %vm2215, %v6597, %v6593
        %v6599 = vlaneseq
        %v6600 = vshrl.u32 %v6599, 7
        %v6601 = vsub.s32 %v2217, %v6600
        %v6602 = vrot.slane %v5417, %v6601
        %v6603 = vsel %vm2222, %v6602, %v6598
        %v6604 = vlaneseq
        %v6605 = vshrl.u32 %v6604, 7
        %v6606 = vsub.s32 %v2224, %v6605
        %v6607 = vrot.slane %v5420, %v6606
        %v6608 = vsel %vm2229, %v6607, %v6603
        %v6609 = vlaneseq
        %v6610 = vshrl.u32 %v6609, 7
        %v6611 = vsub.s32 %v2231, %v6610
        %v6612 = vrot.slane %v5423, %v6611
        %v6613 = vsel %vm2236, %v6612, %v6608
        %v6614 = vlaneseq
        %v6615 = vshrl.u32 %v6614, 7
        %v6616 = vsub.s32 %v2238, %v6615
        %v6617 = vrot.slane %v5426, %v6616
        %v6618 = vsel %vm2243, %v6617, %v6613
        %v6619 = vlaneseq
        %v6620 = vshrl.u32 %v6619, 7
        %v6621 = vsub.s32 %v2245, %v6620
        %v6622 = vrot.slane %v5429, %v6621
        %v6623 = vsel %vm2250, %v6622, %v6618
        %v6624 = vlaneseq
        %v6625 = vshrl.u32 %v6624, 7
        %v6626 = vsub.s32 %v2252, %v6625
        %v6627 = vrot.slane %v5432, %v6626
        %v6628 = vsel %vm2257, %v6627, %v6623
        %v6629 = vlaneseq
        %v6630 = vshrl.u32 %v6629, 7
        %v6631 = vsub.s32 %v2259, %v6630
        %v6632 = vrot.slane %v5435, %v6631
        %v6633 = vsel %vm2264, %v6632, %v6628
        %v6634 = vlaneseq
        %v6635 = vshrl.u32 %v6634, 7
        %v6636 = vsub.s32 %v2266, %v6635
        %v6637 = vrot.slane %v5438, %v6636
        %v6638 = vsel %vm2271, %v6637, %v6633
        %v6639 = vlaneseq
        %v6640 = vshrl.u32 %v6639, 7
        %v6641 = vsub.s32 %v2273, %v6640
        %v6642 = vrot.slane %v5441, %v6641
        %v6643 = vsel %vm2278, %v6642, %v6638
        %v6644 = vlaneseq
        %v6645 = vshrl.u32 %v6644, 7
        %v6646 = vsub.s32 %v2170, %v6645
        %v6647 = vrot.slane %v5444, %v6646
        %v6648 = vlaneseq
        %v6649 = vshrl.u32 %v6648, 7
        %v6650 = vsub.s32 %v2175, %v6649
        %v6651 = vrot.slane %v5447, %v6650
        %v6652 = vsel %vm2180, %v6651, %v6647
        %v6653 = vlaneseq
        %v6654 = vshrl.u32 %v6653, 7
        %v6655 = vsub.s32 %v2182, %v6654
        %v6656 = vrot.slane %v5450, %v6655
        %v6657 = vsel %vm2187, %v6656, %v6652
        %v6658 = vlaneseq
        %v6659 = vshrl.u32 %v6658, 7
        %v6660 = vsub.s32 %v2189, %v6659
        %v6661 = vrot.slane %v5453, %v6660
        %v6662 = vsel %vm2194, %v6661, %v6657
        %v6663 = vlaneseq
        %v6664 = vshrl.u32 %v6663, 7
        %v6665 = vsub.s32 %v2196, %v6664
        %v6666 = vrot.slane %v5456, %v6665
        %v6667 = vsel %vm2201, %v6666, %v6662
        %v6668 = vlaneseq
        %v6669 = vshrl.u32 %v6668, 7
        %v6670 = vsub.s32 %v2203, %v6669
        %v6671 = vrot.slane %v5459, %v6670
        %v6672 = vsel %vm2208, %v6671, %v6667
        %v6673 = vlaneseq
        %v6674 = vshrl.u32 %v6673, 7
        %v6675 = vsub.s32 %v2210, %v6674
        %v6676 = vrot.slane %v5462, %v6675
        %v6677 = vsel %vm2215, %v6676, %v6672
        %v6678 = vlaneseq
        %v6679 = vshrl.u32 %v6678, 7
        %v6680 = vsub.s32 %v2217, %v6679
        %v6681 = vrot.slane %v5465, %v6680
        %v6682 = vsel %vm2222, %v6681, %v6677
        %v6683 = vlaneseq
        %v6684 = vshrl.u32 %v6683, 7
        %v6685 = vsub.s32 %v2224, %v6684
        %v6686 = vrot.slane %v5468, %v6685
        %v6687 = vsel %vm2229, %v6686, %v6682
        %v6688 = vlaneseq
        %v6689 = vshrl.u32 %v6688, 7
        %v6690 = vsub.s32 %v2231, %v6689
        %v6691 = vrot.slane %v5471, %v6690
        %v6692 = vsel %vm2236, %v6691, %v6687
        %v6693 = vlaneseq
        %v6694 = vshrl.u32 %v6693, 7
        %v6695 = vsub.s32 %v2238, %v6694
        %v6696 = vrot.slane %v5474, %v6695
        %v6697 = vsel %vm2243, %v6696, %v6692
        %v6698 = vlaneseq
        %v6699 = vshrl.u32 %v6698, 7
        %v6700 = vsub.s32 %v2245, %v6699
        %v6701 = vrot.slane %v5477, %v6700
        %v6702 = vsel %vm2250, %v6701, %v6697
        %v6703 = vlaneseq
        %v6704 = vshrl.u32 %v6703, 7
        %v6705 = vsub.s32 %v2252, %v6704
        %v6706 = vrot.slane %v5480, %v6705
        %v6707 = vsel %vm2257, %v6706, %v6702
        %v6708 = vlaneseq
        %v6709 = vshrl.u32 %v6708, 7
        %v6710 = vsub.s32 %v2259, %v6709
        %v6711 = vrot.slane %v5483, %v6710
        %v6712 = vsel %vm2264, %v6711, %v6707
        %v6713 = vlaneseq
        %v6714 = vshrl.u32 %v6713, 7
        %v6715 = vsub.s32 %v2266, %v6714
        %v6716 = vrot.slane %v5486, %v6715
        %v6717 = vsel %vm2271, %v6716, %v6712
        %v6718 = vlaneseq
        %v6719 = vshrl.u32 %v6718, 7
        %v6720 = vsub.s32 %v2273, %v6719
        %v6721 = vrot.slane %v5489, %v6720
        %v6722 = vsel %vm2278, %v6721, %v6717
        %v6723 = vlaneseq
        %v6724 = vshrl.u32 %v6723, 7
        %v6725 = vsub.s32 %v2170, %v6724
        %v6726 = vrot.slane %v5492, %v6725
        %v6727 = vlaneseq
        %v6728 = vshrl.u32 %v6727, 7
        %v6729 = vsub.s32 %v2175, %v6728
        %v6730 = vrot.slane %v5495, %v6729
        %v6731 = vsel %vm2180, %v6730, %v6726
        %v6732 = vlaneseq
        %v6733 = vshrl.u32 %v6732, 7
        %v6734 = vsub.s32 %v2182, %v6733
        %v6735 = vrot.slane %v5498, %v6734
        %v6736 = vsel %vm2187, %v6735, %v6731
        %v6737 = vlaneseq
        %v6738 = vshrl.u32 %v6737, 7
        %v6739 = vsub.s32 %v2189, %v6738
        %v6740 = vrot.slane %v5501, %v6739
        %v6741 = vsel %vm2194, %v6740, %v6736
        %v6742 = vlaneseq
        %v6743 = vshrl.u32 %v6742, 7
        %v6744 = vsub.s32 %v2196, %v6743
        %v6745 = vrot.slane %v5504, %v6744
        %v6746 = vsel %vm2201, %v6745, %v6741
        %v6747 = vlaneseq
        %v6748 = vshrl.u32 %v6747, 7
        %v6749 = vsub.s32 %v2203, %v6748
        %v6750 = vrot.slane %v5507, %v6749
        %v6751 = vsel %vm2208, %v6750, %v6746
        %v6752 = vlaneseq
        %v6753 = vshrl.u32 %v6752, 7
        %v6754 = vsub.s32 %v2210, %v6753
        %v6755 = vrot.slane %v5510, %v6754
        %v6756 = vsel %vm2215, %v6755, %v6751
        %v6757 = vlaneseq
        %v6758 = vshrl.u32 %v6757, 7
        %v6759 = vsub.s32 %v2217, %v6758
        %v6760 = vrot.slane %v5513, %v6759
        %v6761 = vsel %vm2222, %v6760, %v6756
        %v6762 = vlaneseq
        %v6763 = vshrl.u32 %v6762, 7
        %v6764 = vsub.s32 %v2224, %v6763
        %v6765 = vrot.slane %v5516, %v6764
        %v6766 = vsel %vm2229, %v6765, %v6761
        %v6767 = vlaneseq
        %v6768 = vshrl.u32 %v6767, 7
        %v6769 = vsub.s32 %v2231, %v6768
        %v6770 = vrot.slane %v5519, %v6769
        %v6771 = vsel %vm2236, %v6770, %v6766
        %v6772 = vlaneseq
        %v6773 = vshrl.u32 %v6772, 7
        %v6774 = vsub.s32 %v2238, %v6773
        %v6775 = vrot.slane %v5522, %v6774
        %v6776 = vsel %vm2243, %v6775, %v6771
        %v6777 = vlaneseq
        %v6778 = vshrl.u32 %v6777, 7
        %v6779 = vsub.s32 %v2245, %v6778
        %v6780 = vrot.slane %v5525, %v6779
        %v6781 = vsel %vm2250, %v6780, %v6776
        %v6782 = vlaneseq
        %v6783 = vshrl.u32 %v6782, 7
        %v6784 = vsub.s32 %v2252, %v6783
        %v6785 = vrot.slane %v5528, %v6784
        %v6786 = vsel %vm2257, %v6785, %v6781
        %v6787 = vlaneseq
        %v6788 = vshrl.u32 %v6787, 7
        %v6789 = vsub.s32 %v2259, %v6788
        %v6790 = vrot.slane %v5531, %v6789
        %v6791 = vsel %vm2264, %v6790, %v6786
        %v6792 = vlaneseq
        %v6793 = vshrl.u32 %v6792, 7
        %v6794 = vsub.s32 %v2266, %v6793
        %v6795 = vrot.slane %v5534, %v6794
        %v6796 = vsel %vm2271, %v6795, %v6791
        %v6797 = vlaneseq
        %v6798 = vshrl.u32 %v6797, 7
        %v6799 = vsub.s32 %v2273, %v6798
        %v6800 = vrot.slane %v5537, %v6799
        %v6801 = vsel %vm2278, %v6800, %v6796
        %v6802 = vsel %vm3465, %v5695, %v5616
        %v6803 = vsel %vm3467, %v5774, %v6802
        %v6804 = vsel %vm3469, %v5853, %v6803
        %v6805 = vsel %vm3471, %v5932, %v6804
        %v6806 = vsel %vm3473, %v6011, %v6805
        %v6807 = vsel %vm3475, %v6090, %v6806
        %v6808 = vsel %vm3477, %v6169, %v6807
        %v6809 = vsel %vm3465, %v6327, %v6248
        %v6810 = vsel %vm3467, %v6406, %v6809
        %v6811 = vsel %vm3469, %v6485, %v6810
        %v6812 = vsel %vm3471, %v6564, %v6811
        %v6813 = vsel %vm3473, %v6643, %v6812
        %v6814 = vsel %vm3475, %v6722, %v6813
        %v6815 = vsel %vm3477, %v6801, %v6814
        %s6818 = scalar_lea.vmem %s112, 16 [#allocation2]
        %6819 = vst [vmem:[%s6818] sm:$0xff] %v6808
        %6820 = vst [vmem:[%s6818 + $0x8] sm:$0xff] %v6815
        %v6821 = vld [vmem:[%s118] sm:$0x3]
        %v6822 = vld [vmem:[%s118 + $0x2] sm:$0x3]
        %v6823 = vld [vmem:[%s118 + $0x4] sm:$0x3]
        %v6824 = vld [vmem:[%s118 + $0x6] sm:$0x3]
        %v6825 = vld [vmem:[%s118 + $0x8] sm:$0x3]
        %v6826 = vld [vmem:[%s118 + $0xa] sm:$0x3]
        %v6827 = vld [vmem:[%s118 + $0xc] sm:$0x3]
        %v6828 = vld [vmem:[%s118 + $0xe] sm:$0x3]
        %v6829 = vld [vmem:[%s118 + $0x10] sm:$0x3]
        %v6830 = vld [vmem:[%s118 + $0x12] sm:$0x3]
        %v6831 = vld [vmem:[%s118 + $0x14] sm:$0x3]
        %v6832 = vld [vmem:[%s118 + $0x16] sm:$0x3]
        %v6833 = vld [vmem:[%s118 + $0x18] sm:$0x3]
        %v6834 = vld [vmem:[%s118 + $0x1a] sm:$0x3]
        %v6835 = vld [vmem:[%s118 + $0x1c] sm:$0x3]
        %v6836 = vld [vmem:[%s118 + $0x1e] sm:$0x3]
        %v6837 = vld [vmem:[%s118 + $0x20] sm:$0x3]
        %v6838 = vld [vmem:[%s118 + $0x22] sm:$0x3]
        %v6839 = vld [vmem:[%s118 + $0x24] sm:$0x3]
        %v6840 = vld [vmem:[%s118 + $0x26] sm:$0x3]
        %v6841 = vld [vmem:[%s118 + $0x28] sm:$0x3]
        %v6842 = vld [vmem:[%s118 + $0x2a] sm:$0x3]
        %v6843 = vld [vmem:[%s118 + $0x2c] sm:$0x3]
        %v6844 = vld [vmem:[%s118 + $0x2e] sm:$0x3]
        %v6845 = vld [vmem:[%s118 + $0x30] sm:$0x3]
        %v6846 = vld [vmem:[%s118 + $0x32] sm:$0x3]
        %v6847 = vld [vmem:[%s118 + $0x34] sm:$0x3]
        %v6848 = vld [vmem:[%s118 + $0x36] sm:$0x3]
        %v6849 = vld [vmem:[%s118 + $0x38] sm:$0x3]
        %v6850 = vld [vmem:[%s118 + $0x3a] sm:$0x3]
        %v6851 = vld [vmem:[%s118 + $0x3c] sm:$0x3]
        %v6852 = vld [vmem:[%s118 + $0x3e] sm:$0x3]
        %v6853 = vld [vmem:[%s118 + $0x40] sm:$0x3]
        %v6854 = vld [vmem:[%s118 + $0x42] sm:$0x3]
        %v6855 = vld [vmem:[%s118 + $0x44] sm:$0x3]
        %v6856 = vld [vmem:[%s118 + $0x46] sm:$0x3]
        %v6857 = vld [vmem:[%s118 + $0x48] sm:$0x3]
        %v6858 = vld [vmem:[%s118 + $0x4a] sm:$0x3]
        %v6859 = vld [vmem:[%s118 + $0x4c] sm:$0x3]
        %v6860 = vld [vmem:[%s118 + $0x4e] sm:$0x3]
        %v6861 = vld [vmem:[%s118 + $0x50] sm:$0x3]
        %v6862 = vld [vmem:[%s118 + $0x52] sm:$0x3]
        %v6863 = vld [vmem:[%s118 + $0x54] sm:$0x3]
        %v6864 = vld [vmem:[%s118 + $0x56] sm:$0x3]
        %v6865 = vld [vmem:[%s118 + $0x58] sm:$0x3]
        %v6866 = vld [vmem:[%s118 + $0x5a] sm:$0x3]
        %v6867 = vld [vmem:[%s118 + $0x5c] sm:$0x3]
        %v6868 = vld [vmem:[%s118 + $0x5e] sm:$0x3]
        %v6869 = vld [vmem:[%s118 + $0x60] sm:$0x3]
        %v6870 = vld [vmem:[%s118 + $0x62] sm:$0x3]
        %v6871 = vld [vmem:[%s118 + $0x64] sm:$0x3]
        %v6872 = vld [vmem:[%s118 + $0x66] sm:$0x3]
        %v6873 = vld [vmem:[%s118 + $0x68] sm:$0x3]
        %v6874 = vld [vmem:[%s118 + $0x6a] sm:$0x3]
        %v6875 = vld [vmem:[%s118 + $0x6c] sm:$0x3]
        %v6876 = vld [vmem:[%s118 + $0x6e] sm:$0x3]
        %v6877 = vld [vmem:[%s118 + $0x70] sm:$0x3]
        %v6878 = vld [vmem:[%s118 + $0x72] sm:$0x3]
        %v6879 = vld [vmem:[%s118 + $0x74] sm:$0x3]
        %v6880 = vld [vmem:[%s118 + $0x76] sm:$0x3]
        %v6881 = vld [vmem:[%s118 + $0x78] sm:$0x3]
        %v6882 = vld [vmem:[%s118 + $0x7a] sm:$0x3]
        %v6883 = vld [vmem:[%s118 + $0x7c] sm:$0x3]
        %v6884 = vld [vmem:[%s118 + $0x7e] sm:$0x3]
        %v6885 = vld [vmem:[%s118 + $0x80] sm:$0x3]
        %v6886 = vld [vmem:[%s118 + $0x82] sm:$0x3]
        %v6887 = vld [vmem:[%s118 + $0x84] sm:$0x3]
        %v6888 = vld [vmem:[%s118 + $0x86] sm:$0x3]
        %v6889 = vld [vmem:[%s118 + $0x88] sm:$0x3]
        %v6890 = vld [vmem:[%s118 + $0x8a] sm:$0x3]
        %v6891 = vld [vmem:[%s118 + $0x8c] sm:$0x3]
        %v6892 = vld [vmem:[%s118 + $0x8e] sm:$0x3]
        %v6893 = vld [vmem:[%s118 + $0x90] sm:$0x3]
        %v6894 = vld [vmem:[%s118 + $0x92] sm:$0x3]
        %v6895 = vld [vmem:[%s118 + $0x94] sm:$0x3]
        %v6896 = vld [vmem:[%s118 + $0x96] sm:$0x3]
        %v6897 = vld [vmem:[%s118 + $0x98] sm:$0x3]
        %v6898 = vld [vmem:[%s118 + $0x9a] sm:$0x3]
        %v6899 = vld [vmem:[%s118 + $0x9c] sm:$0x3]
        %v6900 = vld [vmem:[%s118 + $0x9e] sm:$0x3]
        %v6901 = vld [vmem:[%s118 + $0xa0] sm:$0x3]
        %v6902 = vld [vmem:[%s118 + $0xa2] sm:$0x3]
        %v6903 = vld [vmem:[%s118 + $0xa4] sm:$0x3]
        %v6904 = vld [vmem:[%s118 + $0xa6] sm:$0x3]
        %v6905 = vld [vmem:[%s118 + $0xa8] sm:$0x3]
        %v6906 = vld [vmem:[%s118 + $0xaa] sm:$0x3]
        %v6907 = vld [vmem:[%s118 + $0xac] sm:$0x3]
        %v6908 = vld [vmem:[%s118 + $0xae] sm:$0x3]
        %v6909 = vld [vmem:[%s118 + $0xb0] sm:$0x3]
        %v6910 = vld [vmem:[%s118 + $0xb2] sm:$0x3]
        %v6911 = vld [vmem:[%s118 + $0xb4] sm:$0x3]
        %v6912 = vld [vmem:[%s118 + $0xb6] sm:$0x3]
        %v6913 = vld [vmem:[%s118 + $0xb8] sm:$0x3]
        %v6914 = vld [vmem:[%s118 + $0xba] sm:$0x3]
        %v6915 = vld [vmem:[%s118 + $0xbc] sm:$0x3]
        %v6916 = vld [vmem:[%s118 + $0xbe] sm:$0x3]
        %v6917 = vld [vmem:[%s118 + $0xc0] sm:$0x3]
        %v6918 = vld [vmem:[%s118 + $0xc2] sm:$0x3]
        %v6919 = vld [vmem:[%s118 + $0xc4] sm:$0x3]
        %v6920 = vld [vmem:[%s118 + $0xc6] sm:$0x3]
        %v6921 = vld [vmem:[%s118 + $0xc8] sm:$0x3]
        %v6922 = vld [vmem:[%s118 + $0xca] sm:$0x3]
        %v6923 = vld [vmem:[%s118 + $0xcc] sm:$0x3]
        %v6924 = vld [vmem:[%s118 + $0xce] sm:$0x3]
        %v6925 = vld [vmem:[%s118 + $0xd0] sm:$0x3]
        %v6926 = vld [vmem:[%s118 + $0xd2] sm:$0x3]
        %v6927 = vld [vmem:[%s118 + $0xd4] sm:$0x3]
        %v6928 = vld [vmem:[%s118 + $0xd6] sm:$0x3]
        %v6929 = vld [vmem:[%s118 + $0xd8] sm:$0x3]
        %v6930 = vld [vmem:[%s118 + $0xda] sm:$0x3]
        %v6931 = vld [vmem:[%s118 + $0xdc] sm:$0x3]
        %v6932 = vld [vmem:[%s118 + $0xde] sm:$0x3]
        %v6933 = vld [vmem:[%s118 + $0xe0] sm:$0x3]
        %v6934 = vld [vmem:[%s118 + $0xe2] sm:$0x3]
        %v6935 = vld [vmem:[%s118 + $0xe4] sm:$0x3]
        %v6936 = vld [vmem:[%s118 + $0xe6] sm:$0x3]
        %v6937 = vld [vmem:[%s118 + $0xe8] sm:$0x3]
        %v6938 = vld [vmem:[%s118 + $0xea] sm:$0x3]
        %v6939 = vld [vmem:[%s118 + $0xec] sm:$0x3]
        %v6940 = vld [vmem:[%s118 + $0xee] sm:$0x3]
        %v6941 = vld [vmem:[%s118 + $0xf0] sm:$0x3]
        %v6942 = vld [vmem:[%s118 + $0xf2] sm:$0x3]
        %v6943 = vld [vmem:[%s118 + $0xf4] sm:$0x3]
        %v6944 = vld [vmem:[%s118 + $0xf6] sm:$0x3]
        %v6945 = vld [vmem:[%s118 + $0xf8] sm:$0x3]
        %v6946 = vld [vmem:[%s118 + $0xfa] sm:$0x3]
        %v6947 = vld [vmem:[%s118 + $0xfc] sm:$0x3]
        %v6948 = vld [vmem:[%s118 + $0xfe] sm:$0x3]
        %v6949 = vld [vmem:[%s118 + $0x100] sm:$0x3]
        %v6950 = vld [vmem:[%s118 + $0x102] sm:$0x3]
        %v6951 = vld [vmem:[%s118 + $0x104] sm:$0x3]
        %v6952 = vld [vmem:[%s118 + $0x106] sm:$0x3]
        %v6953 = vld [vmem:[%s118 + $0x108] sm:$0x3]
        %v6954 = vld [vmem:[%s118 + $0x10a] sm:$0x3]
        %v6955 = vld [vmem:[%s118 + $0x10c] sm:$0x3]
        %v6956 = vld [vmem:[%s118 + $0x10e] sm:$0x3]
        %v6957 = vld [vmem:[%s118 + $0x110] sm:$0x3]
        %v6958 = vld [vmem:[%s118 + $0x112] sm:$0x3]
        %v6959 = vld [vmem:[%s118 + $0x114] sm:$0x3]
        %v6960 = vld [vmem:[%s118 + $0x116] sm:$0x3]
        %v6961 = vld [vmem:[%s118 + $0x118] sm:$0x3]
        %v6962 = vld [vmem:[%s118 + $0x11a] sm:$0x3]
        %v6963 = vld [vmem:[%s118 + $0x11c] sm:$0x3]
        %v6964 = vld [vmem:[%s118 + $0x11e] sm:$0x3]
        %v6965 = vld [vmem:[%s118 + $0x120] sm:$0x3]
        %v6966 = vld [vmem:[%s118 + $0x122] sm:$0x3]
        %v6967 = vld [vmem:[%s118 + $0x124] sm:$0x3]
        %v6968 = vld [vmem:[%s118 + $0x126] sm:$0x3]
        %v6969 = vld [vmem:[%s118 + $0x128] sm:$0x3]
        %v6970 = vld [vmem:[%s118 + $0x12a] sm:$0x3]
        %v6971 = vld [vmem:[%s118 + $0x12c] sm:$0x3]
        %v6972 = vld [vmem:[%s118 + $0x12e] sm:$0x3]
        %v6973 = vld [vmem:[%s118 + $0x130] sm:$0x3]
        %v6974 = vld [vmem:[%s118 + $0x132] sm:$0x3]
        %v6975 = vld [vmem:[%s118 + $0x134] sm:$0x3]
        %v6976 = vld [vmem:[%s118 + $0x136] sm:$0x3]
        %v6977 = vld [vmem:[%s118 + $0x138] sm:$0x3]
        %v6978 = vld [vmem:[%s118 + $0x13a] sm:$0x3]
        %v6979 = vld [vmem:[%s118 + $0x13c] sm:$0x3]
        %v6980 = vld [vmem:[%s118 + $0x13e] sm:$0x3]
        %v6981 = vld [vmem:[%s118 + $0x140] sm:$0x3]
        %v6982 = vld [vmem:[%s118 + $0x142] sm:$0x3]
        %v6983 = vld [vmem:[%s118 + $0x144] sm:$0x3]
        %v6984 = vld [vmem:[%s118 + $0x146] sm:$0x3]
        %v6985 = vld [vmem:[%s118 + $0x148] sm:$0x3]
        %v6986 = vld [vmem:[%s118 + $0x14a] sm:$0x3]
        %v6987 = vld [vmem:[%s118 + $0x14c] sm:$0x3]
        %v6988 = vld [vmem:[%s118 + $0x14e] sm:$0x3]
        %v6989 = vld [vmem:[%s118 + $0x150] sm:$0x3]
        %v6990 = vld [vmem:[%s118 + $0x152] sm:$0x3]
        %v6991 = vld [vmem:[%s118 + $0x154] sm:$0x3]
        %v6992 = vld [vmem:[%s118 + $0x156] sm:$0x3]
        %v6993 = vld [vmem:[%s118 + $0x158] sm:$0x3]
        %v6994 = vld [vmem:[%s118 + $0x15a] sm:$0x3]
        %v6995 = vld [vmem:[%s118 + $0x15c] sm:$0x3]
        %v6996 = vld [vmem:[%s118 + $0x15e] sm:$0x3]
        %v6997 = vld [vmem:[%s118 + $0x160] sm:$0x3]
        %v6998 = vld [vmem:[%s118 + $0x162] sm:$0x3]
        %v6999 = vld [vmem:[%s118 + $0x164] sm:$0x3]
        %v7000 = vld [vmem:[%s118 + $0x166] sm:$0x3]
        %v7001 = vld [vmem:[%s118 + $0x168] sm:$0x3]
        %v7002 = vld [vmem:[%s118 + $0x16a] sm:$0x3]
        %v7003 = vld [vmem:[%s118 + $0x16c] sm:$0x3]
        %v7004 = vld [vmem:[%s118 + $0x16e] sm:$0x3]
        %v7005 = vld [vmem:[%s118 + $0x170] sm:$0x3]
        %v7006 = vld [vmem:[%s118 + $0x172] sm:$0x3]
        %v7007 = vld [vmem:[%s118 + $0x174] sm:$0x3]
        %v7008 = vld [vmem:[%s118 + $0x176] sm:$0x3]
        %v7009 = vld [vmem:[%s118 + $0x178] sm:$0x3]
        %v7010 = vld [vmem:[%s118 + $0x17a] sm:$0x3]
        %v7011 = vld [vmem:[%s118 + $0x17c] sm:$0x3]
        %v7012 = vld [vmem:[%s118 + $0x17e] sm:$0x3]
        %v7013 = vld [vmem:[%s118 + $0x180] sm:$0x3]
        %v7014 = vld [vmem:[%s118 + $0x182] sm:$0x3]
        %v7015 = vld [vmem:[%s118 + $0x184] sm:$0x3]
        %v7016 = vld [vmem:[%s118 + $0x186] sm:$0x3]
        %v7017 = vld [vmem:[%s118 + $0x188] sm:$0x3]
        %v7018 = vld [vmem:[%s118 + $0x18a] sm:$0x3]
        %v7019 = vld [vmem:[%s118 + $0x18c] sm:$0x3]
        %v7020 = vld [vmem:[%s118 + $0x18e] sm:$0x3]
        %v7021 = vld [vmem:[%s118 + $0x190] sm:$0x3]
        %v7022 = vld [vmem:[%s118 + $0x192] sm:$0x3]
        %v7023 = vld [vmem:[%s118 + $0x194] sm:$0x3]
        %v7024 = vld [vmem:[%s118 + $0x196] sm:$0x3]
        %v7025 = vld [vmem:[%s118 + $0x198] sm:$0x3]
        %v7026 = vld [vmem:[%s118 + $0x19a] sm:$0x3]
        %v7027 = vld [vmem:[%s118 + $0x19c] sm:$0x3]
        %v7028 = vld [vmem:[%s118 + $0x19e] sm:$0x3]
        %v7029 = vld [vmem:[%s118 + $0x1a0] sm:$0x3]
        %v7030 = vld [vmem:[%s118 + $0x1a2] sm:$0x3]
        %v7031 = vld [vmem:[%s118 + $0x1a4] sm:$0x3]
        %v7032 = vld [vmem:[%s118 + $0x1a6] sm:$0x3]
        %v7033 = vld [vmem:[%s118 + $0x1a8] sm:$0x3]
        %v7034 = vld [vmem:[%s118 + $0x1aa] sm:$0x3]
        %v7035 = vld [vmem:[%s118 + $0x1ac] sm:$0x3]
        %v7036 = vld [vmem:[%s118 + $0x1ae] sm:$0x3]
        %v7037 = vld [vmem:[%s118 + $0x1b0] sm:$0x3]
        %v7038 = vld [vmem:[%s118 + $0x1b2] sm:$0x3]
        %v7039 = vld [vmem:[%s118 + $0x1b4] sm:$0x3]
        %v7040 = vld [vmem:[%s118 + $0x1b6] sm:$0x3]
        %v7041 = vld [vmem:[%s118 + $0x1b8] sm:$0x3]
        %v7042 = vld [vmem:[%s118 + $0x1ba] sm:$0x3]
        %v7043 = vld [vmem:[%s118 + $0x1bc] sm:$0x3]
        %v7044 = vld [vmem:[%s118 + $0x1be] sm:$0x3]
        %v7045 = vld [vmem:[%s118 + $0x1c0] sm:$0x3]
        %v7046 = vld [vmem:[%s118 + $0x1c2] sm:$0x3]
        %v7047 = vld [vmem:[%s118 + $0x1c4] sm:$0x3]
        %v7048 = vld [vmem:[%s118 + $0x1c6] sm:$0x3]
        %v7049 = vld [vmem:[%s118 + $0x1c8] sm:$0x3]
        %v7050 = vld [vmem:[%s118 + $0x1ca] sm:$0x3]
        %v7051 = vld [vmem:[%s118 + $0x1cc] sm:$0x3]
        %v7052 = vld [vmem:[%s118 + $0x1ce] sm:$0x3]
        %v7053 = vld [vmem:[%s118 + $0x1d0] sm:$0x3]
        %v7054 = vld [vmem:[%s118 + $0x1d2] sm:$0x3]
        %v7055 = vld [vmem:[%s118 + $0x1d4] sm:$0x3]
        %v7056 = vld [vmem:[%s118 + $0x1d6] sm:$0x3]
        %v7057 = vld [vmem:[%s118 + $0x1d8] sm:$0x3]
        %v7058 = vld [vmem:[%s118 + $0x1da] sm:$0x3]
        %v7059 = vld [vmem:[%s118 + $0x1dc] sm:$0x3]
        %v7060 = vld [vmem:[%s118 + $0x1de] sm:$0x3]
        %v7061 = vld [vmem:[%s118 + $0x1e0] sm:$0x3]
        %v7062 = vld [vmem:[%s118 + $0x1e2] sm:$0x3]
        %v7063 = vld [vmem:[%s118 + $0x1e4] sm:$0x3]
        %v7064 = vld [vmem:[%s118 + $0x1e6] sm:$0x3]
        %v7065 = vld [vmem:[%s118 + $0x1e8] sm:$0x3]
        %v7066 = vld [vmem:[%s118 + $0x1ea] sm:$0x3]
        %v7067 = vld [vmem:[%s118 + $0x1ec] sm:$0x3]
        %v7068 = vld [vmem:[%s118 + $0x1ee] sm:$0x3]
        %v7069 = vld [vmem:[%s118 + $0x1f0] sm:$0x3]
        %v7070 = vld [vmem:[%s118 + $0x1f2] sm:$0x3]
        %v7071 = vld [vmem:[%s118 + $0x1f4] sm:$0x3]
        %v7072 = vld [vmem:[%s118 + $0x1f6] sm:$0x3]
        %v7073 = vld [vmem:[%s118 + $0x1f8] sm:$0x3]
        %v7074 = vld [vmem:[%s118 + $0x1fa] sm:$0x3]
        %v7075 = vld [vmem:[%s118 + $0x1fc] sm:$0x3]
        %v7076 = vld [vmem:[%s118 + $0x1fe] sm:$0x3]
        %v7077 = vunpack.c.0.s8 %v6821
        %v7078 = vunpack.c.0.s8 %v6822
        %v7079 = vunpack.c.0.s8 %v6823
        %v7080 = vunpack.c.0.s8 %v6824
        %v7081 = vunpack.c.0.s8 %v6825
        %v7082 = vunpack.c.0.s8 %v6826
        %v7083 = vunpack.c.0.s8 %v6827
        %v7084 = vunpack.c.0.s8 %v6828
        %v7085 = vunpack.c.0.s8 %v6829
        %v7086 = vunpack.c.0.s8 %v6830
        %v7087 = vunpack.c.0.s8 %v6831
        %v7088 = vunpack.c.0.s8 %v6832
        %v7089 = vunpack.c.0.s8 %v6833
        %v7090 = vunpack.c.0.s8 %v6834
        %v7091 = vunpack.c.0.s8 %v6835
        %v7092 = vunpack.c.0.s8 %v6836
        %v7093 = vunpack.c.0.s8 %v6837
        %v7094 = vunpack.c.0.s8 %v6838
        %v7095 = vunpack.c.0.s8 %v6839
        %v7096 = vunpack.c.0.s8 %v6840
        %v7097 = vunpack.c.0.s8 %v6841
        %v7098 = vunpack.c.0.s8 %v6842
        %v7099 = vunpack.c.0.s8 %v6843
        %v7100 = vunpack.c.0.s8 %v6844
        %v7101 = vunpack.c.0.s8 %v6845
        %v7102 = vunpack.c.0.s8 %v6846
        %v7103 = vunpack.c.0.s8 %v6847
        %v7104 = vunpack.c.0.s8 %v6848
        %v7105 = vunpack.c.0.s8 %v6849
        %v7106 = vunpack.c.0.s8 %v6850
        %v7107 = vunpack.c.0.s8 %v6851
        %v7108 = vunpack.c.0.s8 %v6852
        %v7109 = vunpack.c.0.s8 %v6853
        %v7110 = vunpack.c.0.s8 %v6854
        %v7111 = vunpack.c.0.s8 %v6855
        %v7112 = vunpack.c.0.s8 %v6856
        %v7113 = vunpack.c.0.s8 %v6857
        %v7114 = vunpack.c.0.s8 %v6858
        %v7115 = vunpack.c.0.s8 %v6859
        %v7116 = vunpack.c.0.s8 %v6860
        %v7117 = vunpack.c.0.s8 %v6861
        %v7118 = vunpack.c.0.s8 %v6862
        %v7119 = vunpack.c.0.s8 %v6863
        %v7120 = vunpack.c.0.s8 %v6864
        %v7121 = vunpack.c.0.s8 %v6865
        %v7122 = vunpack.c.0.s8 %v6866
        %v7123 = vunpack.c.0.s8 %v6867
        %v7124 = vunpack.c.0.s8 %v6868
        %v7125 = vunpack.c.0.s8 %v6869
        %v7126 = vunpack.c.0.s8 %v6870
        %v7127 = vunpack.c.0.s8 %v6871
        %v7128 = vunpack.c.0.s8 %v6872
        %v7129 = vunpack.c.0.s8 %v6873
        %v7130 = vunpack.c.0.s8 %v6874
        %v7131 = vunpack.c.0.s8 %v6875
        %v7132 = vunpack.c.0.s8 %v6876
        %v7133 = vunpack.c.0.s8 %v6877
        %v7134 = vunpack.c.0.s8 %v6878
        %v7135 = vunpack.c.0.s8 %v6879
        %v7136 = vunpack.c.0.s8 %v6880
        %v7137 = vunpack.c.0.s8 %v6881
        %v7138 = vunpack.c.0.s8 %v6882
        %v7139 = vunpack.c.0.s8 %v6883
        %v7140 = vunpack.c.0.s8 %v6884
        %v7141 = vunpack.c.0.s8 %v6885
        %v7142 = vunpack.c.0.s8 %v6886
        %v7143 = vunpack.c.0.s8 %v6887
        %v7144 = vunpack.c.0.s8 %v6888
        %v7145 = vunpack.c.0.s8 %v6889
        %v7146 = vunpack.c.0.s8 %v6890
        %v7147 = vunpack.c.0.s8 %v6891
        %v7148 = vunpack.c.0.s8 %v6892
        %v7149 = vunpack.c.0.s8 %v6893
        %v7150 = vunpack.c.0.s8 %v6894
        %v7151 = vunpack.c.0.s8 %v6895
        %v7152 = vunpack.c.0.s8 %v6896
        %v7153 = vunpack.c.0.s8 %v6897
        %v7154 = vunpack.c.0.s8 %v6898
        %v7155 = vunpack.c.0.s8 %v6899
        %v7156 = vunpack.c.0.s8 %v6900
        %v7157 = vunpack.c.0.s8 %v6901
        %v7158 = vunpack.c.0.s8 %v6902
        %v7159 = vunpack.c.0.s8 %v6903
        %v7160 = vunpack.c.0.s8 %v6904
        %v7161 = vunpack.c.0.s8 %v6905
        %v7162 = vunpack.c.0.s8 %v6906
        %v7163 = vunpack.c.0.s8 %v6907
        %v7164 = vunpack.c.0.s8 %v6908
        %v7165 = vunpack.c.0.s8 %v6909
        %v7166 = vunpack.c.0.s8 %v6910
        %v7167 = vunpack.c.0.s8 %v6911
        %v7168 = vunpack.c.0.s8 %v6912
        %v7169 = vunpack.c.0.s8 %v6913
        %v7170 = vunpack.c.0.s8 %v6914
        %v7171 = vunpack.c.0.s8 %v6915
        %v7172 = vunpack.c.0.s8 %v6916
        %v7173 = vunpack.c.0.s8 %v6917
        %v7174 = vunpack.c.0.s8 %v6918
        %v7175 = vunpack.c.0.s8 %v6919
        %v7176 = vunpack.c.0.s8 %v6920
        %v7177 = vunpack.c.0.s8 %v6921
        %v7178 = vunpack.c.0.s8 %v6922
        %v7179 = vunpack.c.0.s8 %v6923
        %v7180 = vunpack.c.0.s8 %v6924
        %v7181 = vunpack.c.0.s8 %v6925
        %v7182 = vunpack.c.0.s8 %v6926
        %v7183 = vunpack.c.0.s8 %v6927
        %v7184 = vunpack.c.0.s8 %v6928
        %v7185 = vunpack.c.0.s8 %v6929
        %v7186 = vunpack.c.0.s8 %v6930
        %v7187 = vunpack.c.0.s8 %v6931
        %v7188 = vunpack.c.0.s8 %v6932
        %v7189 = vunpack.c.0.s8 %v6933
        %v7190 = vunpack.c.0.s8 %v6934
        %v7191 = vunpack.c.0.s8 %v6935
        %v7192 = vunpack.c.0.s8 %v6936
        %v7193 = vunpack.c.0.s8 %v6937
        %v7194 = vunpack.c.0.s8 %v6938
        %v7195 = vunpack.c.0.s8 %v6939
        %v7196 = vunpack.c.0.s8 %v6940
        %v7197 = vunpack.c.0.s8 %v6941
        %v7198 = vunpack.c.0.s8 %v6942
        %v7199 = vunpack.c.0.s8 %v6943
        %v7200 = vunpack.c.0.s8 %v6944
        %v7201 = vunpack.c.0.s8 %v6945
        %v7202 = vunpack.c.0.s8 %v6946
        %v7203 = vunpack.c.0.s8 %v6947
        %v7204 = vunpack.c.0.s8 %v6948
        %v7205 = vunpack.c.0.s8 %v6949
        %v7206 = vunpack.c.0.s8 %v6950
        %v7207 = vunpack.c.0.s8 %v6951
        %v7208 = vunpack.c.0.s8 %v6952
        %v7209 = vunpack.c.0.s8 %v6953
        %v7210 = vunpack.c.0.s8 %v6954
        %v7211 = vunpack.c.0.s8 %v6955
        %v7212 = vunpack.c.0.s8 %v6956
        %v7213 = vunpack.c.0.s8 %v6957
        %v7214 = vunpack.c.0.s8 %v6958
        %v7215 = vunpack.c.0.s8 %v6959
        %v7216 = vunpack.c.0.s8 %v6960
        %v7217 = vunpack.c.0.s8 %v6961
        %v7218 = vunpack.c.0.s8 %v6962
        %v7219 = vunpack.c.0.s8 %v6963
        %v7220 = vunpack.c.0.s8 %v6964
        %v7221 = vunpack.c.0.s8 %v6965
        %v7222 = vunpack.c.0.s8 %v6966
        %v7223 = vunpack.c.0.s8 %v6967
        %v7224 = vunpack.c.0.s8 %v6968
        %v7225 = vunpack.c.0.s8 %v6969
        %v7226 = vunpack.c.0.s8 %v6970
        %v7227 = vunpack.c.0.s8 %v6971
        %v7228 = vunpack.c.0.s8 %v6972
        %v7229 = vunpack.c.0.s8 %v6973
        %v7230 = vunpack.c.0.s8 %v6974
        %v7231 = vunpack.c.0.s8 %v6975
        %v7232 = vunpack.c.0.s8 %v6976
        %v7233 = vunpack.c.0.s8 %v6977
        %v7234 = vunpack.c.0.s8 %v6978
        %v7235 = vunpack.c.0.s8 %v6979
        %v7236 = vunpack.c.0.s8 %v6980
        %v7237 = vunpack.c.0.s8 %v6981
        %v7238 = vunpack.c.0.s8 %v6982
        %v7239 = vunpack.c.0.s8 %v6983
        %v7240 = vunpack.c.0.s8 %v6984
        %v7241 = vunpack.c.0.s8 %v6985
        %v7242 = vunpack.c.0.s8 %v6986
        %v7243 = vunpack.c.0.s8 %v6987
        %v7244 = vunpack.c.0.s8 %v6988
        %v7245 = vunpack.c.0.s8 %v6989
        %v7246 = vunpack.c.0.s8 %v6990
        %v7247 = vunpack.c.0.s8 %v6991
        %v7248 = vunpack.c.0.s8 %v6992
        %v7249 = vunpack.c.0.s8 %v6993
        %v7250 = vunpack.c.0.s8 %v6994
        %v7251 = vunpack.c.0.s8 %v6995
        %v7252 = vunpack.c.0.s8 %v6996
        %v7253 = vunpack.c.0.s8 %v6997
        %v7254 = vunpack.c.0.s8 %v6998
        %v7255 = vunpack.c.0.s8 %v6999
        %v7256 = vunpack.c.0.s8 %v7000
        %v7257 = vunpack.c.0.s8 %v7001
        %v7258 = vunpack.c.0.s8 %v7002
        %v7259 = vunpack.c.0.s8 %v7003
        %v7260 = vunpack.c.0.s8 %v7004
        %v7261 = vunpack.c.0.s8 %v7005
        %v7262 = vunpack.c.0.s8 %v7006
        %v7263 = vunpack.c.0.s8 %v7007
        %v7264 = vunpack.c.0.s8 %v7008
        %v7265 = vunpack.c.0.s8 %v7009
        %v7266 = vunpack.c.0.s8 %v7010
        %v7267 = vunpack.c.0.s8 %v7011
        %v7268 = vunpack.c.0.s8 %v7012
        %v7269 = vunpack.c.0.s8 %v7013
        %v7270 = vunpack.c.0.s8 %v7014
        %v7271 = vunpack.c.0.s8 %v7015
        %v7272 = vunpack.c.0.s8 %v7016
        %v7273 = vunpack.c.0.s8 %v7017
        %v7274 = vunpack.c.0.s8 %v7018
        %v7275 = vunpack.c.0.s8 %v7019
        %v7276 = vunpack.c.0.s8 %v7020
        %v7277 = vunpack.c.0.s8 %v7021
        %v7278 = vunpack.c.0.s8 %v7022
        %v7279 = vunpack.c.0.s8 %v7023
        %v7280 = vunpack.c.0.s8 %v7024
        %v7281 = vunpack.c.0.s8 %v7025
        %v7282 = vunpack.c.0.s8 %v7026
        %v7283 = vunpack.c.0.s8 %v7027
        %v7284 = vunpack.c.0.s8 %v7028
        %v7285 = vunpack.c.0.s8 %v7029
        %v7286 = vunpack.c.0.s8 %v7030
        %v7287 = vunpack.c.0.s8 %v7031
        %v7288 = vunpack.c.0.s8 %v7032
        %v7289 = vunpack.c.0.s8 %v7033
        %v7290 = vunpack.c.0.s8 %v7034
        %v7291 = vunpack.c.0.s8 %v7035
        %v7292 = vunpack.c.0.s8 %v7036
        %v7293 = vunpack.c.0.s8 %v7037
        %v7294 = vunpack.c.0.s8 %v7038
        %v7295 = vunpack.c.0.s8 %v7039
        %v7296 = vunpack.c.0.s8 %v7040
        %v7297 = vunpack.c.0.s8 %v7041
        %v7298 = vunpack.c.0.s8 %v7042
        %v7299 = vunpack.c.0.s8 %v7043
        %v7300 = vunpack.c.0.s8 %v7044
        %v7301 = vunpack.c.0.s8 %v7045
        %v7302 = vunpack.c.0.s8 %v7046
        %v7303 = vunpack.c.0.s8 %v7047
        %v7304 = vunpack.c.0.s8 %v7048
        %v7305 = vunpack.c.0.s8 %v7049
        %v7306 = vunpack.c.0.s8 %v7050
        %v7307 = vunpack.c.0.s8 %v7051
        %v7308 = vunpack.c.0.s8 %v7052
        %v7309 = vunpack.c.0.s8 %v7053
        %v7310 = vunpack.c.0.s8 %v7054
        %v7311 = vunpack.c.0.s8 %v7055
        %v7312 = vunpack.c.0.s8 %v7056
        %v7313 = vunpack.c.0.s8 %v7057
        %v7314 = vunpack.c.0.s8 %v7058
        %v7315 = vunpack.c.0.s8 %v7059
        %v7316 = vunpack.c.0.s8 %v7060
        %v7317 = vunpack.c.0.s8 %v7061
        %v7318 = vunpack.c.0.s8 %v7062
        %v7319 = vunpack.c.0.s8 %v7063
        %v7320 = vunpack.c.0.s8 %v7064
        %v7321 = vunpack.c.0.s8 %v7065
        %v7322 = vunpack.c.0.s8 %v7066
        %v7323 = vunpack.c.0.s8 %v7067
        %v7324 = vunpack.c.0.s8 %v7068
        %v7325 = vunpack.c.0.s8 %v7069
        %v7326 = vunpack.c.0.s8 %v7070
        %v7327 = vunpack.c.0.s8 %v7071
        %v7328 = vunpack.c.0.s8 %v7072
        %v7329 = vunpack.c.0.s8 %v7073
        %v7330 = vunpack.c.0.s8 %v7074
        %v7331 = vunpack.c.0.s8 %v7075
        %v7332 = vunpack.c.0.s8 %v7076
        %v7333 = vand.u32 %v7077, 255
        %v7334 = vand.u32 %v7078, 255
        %v7335 = vand.u32 %v7079, 255
        %v7336 = vand.u32 %v7080, 255
        %v7337 = vand.u32 %v7081, 255
        %v7338 = vand.u32 %v7082, 255
        %v7339 = vand.u32 %v7083, 255
        %v7340 = vand.u32 %v7084, 255
        %v7341 = vand.u32 %v7085, 255
        %v7342 = vand.u32 %v7086, 255
        %v7343 = vand.u32 %v7087, 255
        %v7344 = vand.u32 %v7088, 255
        %v7345 = vand.u32 %v7089, 255
        %v7346 = vand.u32 %v7090, 255
        %v7347 = vand.u32 %v7091, 255
        %v7348 = vand.u32 %v7092, 255
        %v7349 = vand.u32 %v7093, 255
        %v7350 = vand.u32 %v7094, 255
        %v7351 = vand.u32 %v7095, 255
        %v7352 = vand.u32 %v7096, 255
        %v7353 = vand.u32 %v7097, 255
        %v7354 = vand.u32 %v7098, 255
        %v7355 = vand.u32 %v7099, 255
        %v7356 = vand.u32 %v7100, 255
        %v7357 = vand.u32 %v7101, 255
        %v7358 = vand.u32 %v7102, 255
        %v7359 = vand.u32 %v7103, 255
        %v7360 = vand.u32 %v7104, 255
        %v7361 = vand.u32 %v7105, 255
        %v7362 = vand.u32 %v7106, 255
        %v7363 = vand.u32 %v7107, 255
        %v7364 = vand.u32 %v7108, 255
        %v7365 = vand.u32 %v7109, 255
        %v7366 = vand.u32 %v7110, 255
        %v7367 = vand.u32 %v7111, 255
        %v7368 = vand.u32 %v7112, 255
        %v7369 = vand.u32 %v7113, 255
        %v7370 = vand.u32 %v7114, 255
        %v7371 = vand.u32 %v7115, 255
        %v7372 = vand.u32 %v7116, 255
        %v7373 = vand.u32 %v7117, 255
        %v7374 = vand.u32 %v7118, 255
        %v7375 = vand.u32 %v7119, 255
        %v7376 = vand.u32 %v7120, 255
        %v7377 = vand.u32 %v7121, 255
        %v7378 = vand.u32 %v7122, 255
        %v7379 = vand.u32 %v7123, 255
        %v7380 = vand.u32 %v7124, 255
        %v7381 = vand.u32 %v7125, 255
        %v7382 = vand.u32 %v7126, 255
        %v7383 = vand.u32 %v7127, 255
        %v7384 = vand.u32 %v7128, 255
        %v7385 = vand.u32 %v7129, 255
        %v7386 = vand.u32 %v7130, 255
        %v7387 = vand.u32 %v7131, 255
        %v7388 = vand.u32 %v7132, 255
        %v7389 = vand.u32 %v7133, 255
        %v7390 = vand.u32 %v7134, 255
        %v7391 = vand.u32 %v7135, 255
        %v7392 = vand.u32 %v7136, 255
        %v7393 = vand.u32 %v7137, 255
        %v7394 = vand.u32 %v7138, 255
        %v7395 = vand.u32 %v7139, 255
        %v7396 = vand.u32 %v7140, 255
        %v7397 = vand.u32 %v7141, 255
        %v7398 = vand.u32 %v7142, 255
        %v7399 = vand.u32 %v7143, 255
        %v7400 = vand.u32 %v7144, 255
        %v7401 = vand.u32 %v7145, 255
        %v7402 = vand.u32 %v7146, 255
        %v7403 = vand.u32 %v7147, 255
        %v7404 = vand.u32 %v7148, 255
        %v7405 = vand.u32 %v7149, 255
        %v7406 = vand.u32 %v7150, 255
        %v7407 = vand.u32 %v7151, 255
        %v7408 = vand.u32 %v7152, 255
        %v7409 = vand.u32 %v7153, 255
        %v7410 = vand.u32 %v7154, 255
        %v7411 = vand.u32 %v7155, 255
        %v7412 = vand.u32 %v7156, 255
        %v7413 = vand.u32 %v7157, 255
        %v7414 = vand.u32 %v7158, 255
        %v7415 = vand.u32 %v7159, 255
        %v7416 = vand.u32 %v7160, 255
        %v7417 = vand.u32 %v7161, 255
        %v7418 = vand.u32 %v7162, 255
        %v7419 = vand.u32 %v7163, 255
        %v7420 = vand.u32 %v7164, 255
        %v7421 = vand.u32 %v7165, 255
        %v7422 = vand.u32 %v7166, 255
        %v7423 = vand.u32 %v7167, 255
        %v7424 = vand.u32 %v7168, 255
        %v7425 = vand.u32 %v7169, 255
        %v7426 = vand.u32 %v7170, 255
        %v7427 = vand.u32 %v7171, 255
        %v7428 = vand.u32 %v7172, 255
        %v7429 = vand.u32 %v7173, 255
        %v7430 = vand.u32 %v7174, 255
        %v7431 = vand.u32 %v7175, 255
        %v7432 = vand.u32 %v7176, 255
        %v7433 = vand.u32 %v7177, 255
        %v7434 = vand.u32 %v7178, 255
        %v7435 = vand.u32 %v7179, 255
        %v7436 = vand.u32 %v7180, 255
        %v7437 = vand.u32 %v7181, 255
        %v7438 = vand.u32 %v7182, 255
        %v7439 = vand.u32 %v7183, 255
        %v7440 = vand.u32 %v7184, 255
        %v7441 = vand.u32 %v7185, 255
        %v7442 = vand.u32 %v7186, 255
        %v7443 = vand.u32 %v7187, 255
        %v7444 = vand.u32 %v7188, 255
        %v7445 = vand.u32 %v7189, 255
        %v7446 = vand.u32 %v7190, 255
        %v7447 = vand.u32 %v7191, 255
        %v7448 = vand.u32 %v7192, 255
        %v7449 = vand.u32 %v7193, 255
        %v7450 = vand.u32 %v7194, 255
        %v7451 = vand.u32 %v7195, 255
        %v7452 = vand.u32 %v7196, 255
        %v7453 = vand.u32 %v7197, 255
        %v7454 = vand.u32 %v7198, 255
        %v7455 = vand.u32 %v7199, 255
        %v7456 = vand.u32 %v7200, 255
        %v7457 = vand.u32 %v7201, 255
        %v7458 = vand.u32 %v7202, 255
        %v7459 = vand.u32 %v7203, 255
        %v7460 = vand.u32 %v7204, 255
        %v7461 = vand.u32 %v7205, 255
        %v7462 = vand.u32 %v7206, 255
        %v7463 = vand.u32 %v7207, 255
        %v7464 = vand.u32 %v7208, 255
        %v7465 = vand.u32 %v7209, 255
        %v7466 = vand.u32 %v7210, 255
        %v7467 = vand.u32 %v7211, 255
        %v7468 = vand.u32 %v7212, 255
        %v7469 = vand.u32 %v7213, 255
        %v7470 = vand.u32 %v7214, 255
        %v7471 = vand.u32 %v7215, 255
        %v7472 = vand.u32 %v7216, 255
        %v7473 = vand.u32 %v7217, 255
        %v7474 = vand.u32 %v7218, 255
        %v7475 = vand.u32 %v7219, 255
        %v7476 = vand.u32 %v7220, 255
        %v7477 = vand.u32 %v7221, 255
        %v7478 = vand.u32 %v7222, 255
        %v7479 = vand.u32 %v7223, 255
        %v7480 = vand.u32 %v7224, 255
        %v7481 = vand.u32 %v7225, 255
        %v7482 = vand.u32 %v7226, 255
        %v7483 = vand.u32 %v7227, 255
        %v7484 = vand.u32 %v7228, 255
        %v7485 = vand.u32 %v7229, 255
        %v7486 = vand.u32 %v7230, 255
        %v7487 = vand.u32 %v7231, 255
        %v7488 = vand.u32 %v7232, 255
        %v7489 = vand.u32 %v7233, 255
        %v7490 = vand.u32 %v7234, 255
        %v7491 = vand.u32 %v7235, 255
        %v7492 = vand.u32 %v7236, 255
        %v7493 = vand.u32 %v7237, 255
        %v7494 = vand.u32 %v7238, 255
        %v7495 = vand.u32 %v7239, 255
        %v7496 = vand.u32 %v7240, 255
        %v7497 = vand.u32 %v7241, 255
        %v7498 = vand.u32 %v7242, 255
        %v7499 = vand.u32 %v7243, 255
        %v7500 = vand.u32 %v7244, 255
        %v7501 = vand.u32 %v7245, 255
        %v7502 = vand.u32 %v7246, 255
        %v7503 = vand.u32 %v7247, 255
        %v7504 = vand.u32 %v7248, 255
        %v7505 = vand.u32 %v7249, 255
        %v7506 = vand.u32 %v7250, 255
        %v7507 = vand.u32 %v7251, 255
        %v7508 = vand.u32 %v7252, 255
        %v7509 = vand.u32 %v7253, 255
        %v7510 = vand.u32 %v7254, 255
        %v7511 = vand.u32 %v7255, 255
        %v7512 = vand.u32 %v7256, 255
        %v7513 = vand.u32 %v7257, 255
        %v7514 = vand.u32 %v7258, 255
        %v7515 = vand.u32 %v7259, 255
        %v7516 = vand.u32 %v7260, 255
        %v7517 = vand.u32 %v7261, 255
        %v7518 = vand.u32 %v7262, 255
        %v7519 = vand.u32 %v7263, 255
        %v7520 = vand.u32 %v7264, 255
        %v7521 = vand.u32 %v7265, 255
        %v7522 = vand.u32 %v7266, 255
        %v7523 = vand.u32 %v7267, 255
        %v7524 = vand.u32 %v7268, 255
        %v7525 = vand.u32 %v7269, 255
        %v7526 = vand.u32 %v7270, 255
        %v7527 = vand.u32 %v7271, 255
        %v7528 = vand.u32 %v7272, 255
        %v7529 = vand.u32 %v7273, 255
        %v7530 = vand.u32 %v7274, 255
        %v7531 = vand.u32 %v7275, 255
        %v7532 = vand.u32 %v7276, 255
        %v7533 = vand.u32 %v7277, 255
        %v7534 = vand.u32 %v7278, 255
        %v7535 = vand.u32 %v7279, 255
        %v7536 = vand.u32 %v7280, 255
        %v7537 = vand.u32 %v7281, 255
        %v7538 = vand.u32 %v7282, 255
        %v7539 = vand.u32 %v7283, 255
        %v7540 = vand.u32 %v7284, 255
        %v7541 = vand.u32 %v7285, 255
        %v7542 = vand.u32 %v7286, 255
        %v7543 = vand.u32 %v7287, 255
        %v7544 = vand.u32 %v7288, 255
        %v7545 = vand.u32 %v7289, 255
        %v7546 = vand.u32 %v7290, 255
        %v7547 = vand.u32 %v7291, 255
        %v7548 = vand.u32 %v7292, 255
        %v7549 = vand.u32 %v7293, 255
        %v7550 = vand.u32 %v7294, 255
        %v7551 = vand.u32 %v7295, 255
        %v7552 = vand.u32 %v7296, 255
        %v7553 = vand.u32 %v7297, 255
        %v7554 = vand.u32 %v7298, 255
        %v7555 = vand.u32 %v7299, 255
        %v7556 = vand.u32 %v7300, 255
        %v7557 = vand.u32 %v7301, 255
        %v7558 = vand.u32 %v7302, 255
        %v7559 = vand.u32 %v7303, 255
        %v7560 = vand.u32 %v7304, 255
        %v7561 = vand.u32 %v7305, 255
        %v7562 = vand.u32 %v7306, 255
        %v7563 = vand.u32 %v7307, 255
        %v7564 = vand.u32 %v7308, 255
        %v7565 = vand.u32 %v7309, 255
        %v7566 = vand.u32 %v7310, 255
        %v7567 = vand.u32 %v7311, 255
        %v7568 = vand.u32 %v7312, 255
        %v7569 = vand.u32 %v7313, 255
        %v7570 = vand.u32 %v7314, 255
        %v7571 = vand.u32 %v7315, 255
        %v7572 = vand.u32 %v7316, 255
        %v7573 = vand.u32 %v7317, 255
        %v7574 = vand.u32 %v7318, 255
        %v7575 = vand.u32 %v7319, 255
        %v7576 = vand.u32 %v7320, 255
        %v7577 = vand.u32 %v7321, 255
        %v7578 = vand.u32 %v7322, 255
        %v7579 = vand.u32 %v7323, 255
        %v7580 = vand.u32 %v7324, 255
        %v7581 = vand.u32 %v7325, 255
        %v7582 = vand.u32 %v7326, 255
        %v7583 = vand.u32 %v7327, 255
        %v7584 = vand.u32 %v7328, 255
        %v7585 = vand.u32 %v7329, 255
        %v7586 = vand.u32 %v7330, 255
        %v7587 = vand.u32 %v7331, 255
        %v7588 = vand.u32 %v7332, 255
        %v7589 = vcvt.s32.f32 %v7333
        %v7590 = vcvt.s32.f32 %v7334
        %v7591 = vcvt.s32.f32 %v7335
        %v7592 = vcvt.s32.f32 %v7336
        %v7593 = vcvt.s32.f32 %v7337
        %v7594 = vcvt.s32.f32 %v7338
        %v7595 = vcvt.s32.f32 %v7339
        %v7596 = vcvt.s32.f32 %v7340
        %v7597 = vcvt.s32.f32 %v7341
        %v7598 = vcvt.s32.f32 %v7342
        %v7599 = vcvt.s32.f32 %v7343
        %v7600 = vcvt.s32.f32 %v7344
        %v7601 = vcvt.s32.f32 %v7345
        %v7602 = vcvt.s32.f32 %v7346
        %v7603 = vcvt.s32.f32 %v7347
        %v7604 = vcvt.s32.f32 %v7348
        %v7605 = vcvt.s32.f32 %v7349
        %v7606 = vcvt.s32.f32 %v7350
        %v7607 = vcvt.s32.f32 %v7351
        %v7608 = vcvt.s32.f32 %v7352
        %v7609 = vcvt.s32.f32 %v7353
        %v7610 = vcvt.s32.f32 %v7354
        %v7611 = vcvt.s32.f32 %v7355
        %v7612 = vcvt.s32.f32 %v7356
        %v7613 = vcvt.s32.f32 %v7357
        %v7614 = vcvt.s32.f32 %v7358
        %v7615 = vcvt.s32.f32 %v7359
        %v7616 = vcvt.s32.f32 %v7360
        %v7617 = vcvt.s32.f32 %v7361
        %v7618 = vcvt.s32.f32 %v7362
        %v7619 = vcvt.s32.f32 %v7363
        %v7620 = vcvt.s32.f32 %v7364
        %v7621 = vcvt.s32.f32 %v7365
        %v7622 = vcvt.s32.f32 %v7366
        %v7623 = vcvt.s32.f32 %v7367
        %v7624 = vcvt.s32.f32 %v7368
        %v7625 = vcvt.s32.f32 %v7369
        %v7626 = vcvt.s32.f32 %v7370
        %v7627 = vcvt.s32.f32 %v7371
        %v7628 = vcvt.s32.f32 %v7372
        %v7629 = vcvt.s32.f32 %v7373
        %v7630 = vcvt.s32.f32 %v7374
        %v7631 = vcvt.s32.f32 %v7375
        %v7632 = vcvt.s32.f32 %v7376
        %v7633 = vcvt.s32.f32 %v7377
        %v7634 = vcvt.s32.f32 %v7378
        %v7635 = vcvt.s32.f32 %v7379
        %v7636 = vcvt.s32.f32 %v7380
        %v7637 = vcvt.s32.f32 %v7381
        %v7638 = vcvt.s32.f32 %v7382
        %v7639 = vcvt.s32.f32 %v7383
        %v7640 = vcvt.s32.f32 %v7384
        %v7641 = vcvt.s32.f32 %v7385
        %v7642 = vcvt.s32.f32 %v7386
        %v7643 = vcvt.s32.f32 %v7387
        %v7644 = vcvt.s32.f32 %v7388
        %v7645 = vcvt.s32.f32 %v7389
        %v7646 = vcvt.s32.f32 %v7390
        %v7647 = vcvt.s32.f32 %v7391
        %v7648 = vcvt.s32.f32 %v7392
        %v7649 = vcvt.s32.f32 %v7393
        %v7650 = vcvt.s32.f32 %v7394
        %v7651 = vcvt.s32.f32 %v7395
        %v7652 = vcvt.s32.f32 %v7396
        %v7653 = vcvt.s32.f32 %v7397
        %v7654 = vcvt.s32.f32 %v7398
        %v7655 = vcvt.s32.f32 %v7399
        %v7656 = vcvt.s32.f32 %v7400
        %v7657 = vcvt.s32.f32 %v7401
        %v7658 = vcvt.s32.f32 %v7402
        %v7659 = vcvt.s32.f32 %v7403
        %v7660 = vcvt.s32.f32 %v7404
        %v7661 = vcvt.s32.f32 %v7405
        %v7662 = vcvt.s32.f32 %v7406
        %v7663 = vcvt.s32.f32 %v7407
        %v7664 = vcvt.s32.f32 %v7408
        %v7665 = vcvt.s32.f32 %v7409
        %v7666 = vcvt.s32.f32 %v7410
        %v7667 = vcvt.s32.f32 %v7411
        %v7668 = vcvt.s32.f32 %v7412
        %v7669 = vcvt.s32.f32 %v7413
        %v7670 = vcvt.s32.f32 %v7414
        %v7671 = vcvt.s32.f32 %v7415
        %v7672 = vcvt.s32.f32 %v7416
        %v7673 = vcvt.s32.f32 %v7417
        %v7674 = vcvt.s32.f32 %v7418
        %v7675 = vcvt.s32.f32 %v7419
        %v7676 = vcvt.s32.f32 %v7420
        %v7677 = vcvt.s32.f32 %v7421
        %v7678 = vcvt.s32.f32 %v7422
        %v7679 = vcvt.s32.f32 %v7423
        %v7680 = vcvt.s32.f32 %v7424
        %v7681 = vcvt.s32.f32 %v7425
        %v7682 = vcvt.s32.f32 %v7426
        %v7683 = vcvt.s32.f32 %v7427
        %v7684 = vcvt.s32.f32 %v7428
        %v7685 = vcvt.s32.f32 %v7429
        %v7686 = vcvt.s32.f32 %v7430
        %v7687 = vcvt.s32.f32 %v7431
        %v7688 = vcvt.s32.f32 %v7432
        %v7689 = vcvt.s32.f32 %v7433
        %v7690 = vcvt.s32.f32 %v7434
        %v7691 = vcvt.s32.f32 %v7435
        %v7692 = vcvt.s32.f32 %v7436
        %v7693 = vcvt.s32.f32 %v7437
        %v7694 = vcvt.s32.f32 %v7438
        %v7695 = vcvt.s32.f32 %v7439
        %v7696 = vcvt.s32.f32 %v7440
        %v7697 = vcvt.s32.f32 %v7441
        %v7698 = vcvt.s32.f32 %v7442
        %v7699 = vcvt.s32.f32 %v7443
        %v7700 = vcvt.s32.f32 %v7444
        %v7701 = vcvt.s32.f32 %v7445
        %v7702 = vcvt.s32.f32 %v7446
        %v7703 = vcvt.s32.f32 %v7447
        %v7704 = vcvt.s32.f32 %v7448
        %v7705 = vcvt.s32.f32 %v7449
        %v7706 = vcvt.s32.f32 %v7450
        %v7707 = vcvt.s32.f32 %v7451
        %v7708 = vcvt.s32.f32 %v7452
        %v7709 = vcvt.s32.f32 %v7453
        %v7710 = vcvt.s32.f32 %v7454
        %v7711 = vcvt.s32.f32 %v7455
        %v7712 = vcvt.s32.f32 %v7456
        %v7713 = vcvt.s32.f32 %v7457
        %v7714 = vcvt.s32.f32 %v7458
        %v7715 = vcvt.s32.f32 %v7459
        %v7716 = vcvt.s32.f32 %v7460
        %v7717 = vcvt.s32.f32 %v7461
        %v7718 = vcvt.s32.f32 %v7462
        %v7719 = vcvt.s32.f32 %v7463
        %v7720 = vcvt.s32.f32 %v7464
        %v7721 = vcvt.s32.f32 %v7465
        %v7722 = vcvt.s32.f32 %v7466
        %v7723 = vcvt.s32.f32 %v7467
        %v7724 = vcvt.s32.f32 %v7468
        %v7725 = vcvt.s32.f32 %v7469
        %v7726 = vcvt.s32.f32 %v7470
        %v7727 = vcvt.s32.f32 %v7471
        %v7728 = vcvt.s32.f32 %v7472
        %v7729 = vcvt.s32.f32 %v7473
        %v7730 = vcvt.s32.f32 %v7474
        %v7731 = vcvt.s32.f32 %v7475
        %v7732 = vcvt.s32.f32 %v7476
        %v7733 = vcvt.s32.f32 %v7477
        %v7734 = vcvt.s32.f32 %v7478
        %v7735 = vcvt.s32.f32 %v7479
        %v7736 = vcvt.s32.f32 %v7480
        %v7737 = vcvt.s32.f32 %v7481
        %v7738 = vcvt.s32.f32 %v7482
        %v7739 = vcvt.s32.f32 %v7483
        %v7740 = vcvt.s32.f32 %v7484
        %v7741 = vcvt.s32.f32 %v7485
        %v7742 = vcvt.s32.f32 %v7486
        %v7743 = vcvt.s32.f32 %v7487
        %v7744 = vcvt.s32.f32 %v7488
        %v7745 = vcvt.s32.f32 %v7489
        %v7746 = vcvt.s32.f32 %v7490
        %v7747 = vcvt.s32.f32 %v7491
        %v7748 = vcvt.s32.f32 %v7492
        %v7749 = vcvt.s32.f32 %v7493
        %v7750 = vcvt.s32.f32 %v7494
        %v7751 = vcvt.s32.f32 %v7495
        %v7752 = vcvt.s32.f32 %v7496
        %v7753 = vcvt.s32.f32 %v7497
        %v7754 = vcvt.s32.f32 %v7498
        %v7755 = vcvt.s32.f32 %v7499
        %v7756 = vcvt.s32.f32 %v7500
        %v7757 = vcvt.s32.f32 %v7501
        %v7758 = vcvt.s32.f32 %v7502
        %v7759 = vcvt.s32.f32 %v7503
        %v7760 = vcvt.s32.f32 %v7504
        %v7761 = vcvt.s32.f32 %v7505
        %v7762 = vcvt.s32.f32 %v7506
        %v7763 = vcvt.s32.f32 %v7507
        %v7764 = vcvt.s32.f32 %v7508
        %v7765 = vcvt.s32.f32 %v7509
        %v7766 = vcvt.s32.f32 %v7510
        %v7767 = vcvt.s32.f32 %v7511
        %v7768 = vcvt.s32.f32 %v7512
        %v7769 = vcvt.s32.f32 %v7513
        %v7770 = vcvt.s32.f32 %v7514
        %v7771 = vcvt.s32.f32 %v7515
        %v7772 = vcvt.s32.f32 %v7516
        %v7773 = vcvt.s32.f32 %v7517
        %v7774 = vcvt.s32.f32 %v7518
        %v7775 = vcvt.s32.f32 %v7519
        %v7776 = vcvt.s32.f32 %v7520
        %v7777 = vcvt.s32.f32 %v7521
        %v7778 = vcvt.s32.f32 %v7522
        %v7779 = vcvt.s32.f32 %v7523
        %v7780 = vcvt.s32.f32 %v7524
        %v7781 = vcvt.s32.f32 %v7525
        %v7782 = vcvt.s32.f32 %v7526
        %v7783 = vcvt.s32.f32 %v7527
        %v7784 = vcvt.s32.f32 %v7528
        %v7785 = vcvt.s32.f32 %v7529
        %v7786 = vcvt.s32.f32 %v7530
        %v7787 = vcvt.s32.f32 %v7531
        %v7788 = vcvt.s32.f32 %v7532
        %v7789 = vcvt.s32.f32 %v7533
        %v7790 = vcvt.s32.f32 %v7534
        %v7791 = vcvt.s32.f32 %v7535
        %v7792 = vcvt.s32.f32 %v7536
        %v7793 = vcvt.s32.f32 %v7537
        %v7794 = vcvt.s32.f32 %v7538
        %v7795 = vcvt.s32.f32 %v7539
        %v7796 = vcvt.s32.f32 %v7540
        %v7797 = vcvt.s32.f32 %v7541
        %v7798 = vcvt.s32.f32 %v7542
        %v7799 = vcvt.s32.f32 %v7543
        %v7800 = vcvt.s32.f32 %v7544
        %v7801 = vcvt.s32.f32 %v7545
        %v7802 = vcvt.s32.f32 %v7546
        %v7803 = vcvt.s32.f32 %v7547
        %v7804 = vcvt.s32.f32 %v7548
        %v7805 = vcvt.s32.f32 %v7549
        %v7806 = vcvt.s32.f32 %v7550
        %v7807 = vcvt.s32.f32 %v7551
        %v7808 = vcvt.s32.f32 %v7552
        %v7809 = vcvt.s32.f32 %v7553
        %v7810 = vcvt.s32.f32 %v7554
        %v7811 = vcvt.s32.f32 %v7555
        %v7812 = vcvt.s32.f32 %v7556
        %v7813 = vcvt.s32.f32 %v7557
        %v7814 = vcvt.s32.f32 %v7558
        %v7815 = vcvt.s32.f32 %v7559
        %v7816 = vcvt.s32.f32 %v7560
        %v7817 = vcvt.s32.f32 %v7561
        %v7818 = vcvt.s32.f32 %v7562
        %v7819 = vcvt.s32.f32 %v7563
        %v7820 = vcvt.s32.f32 %v7564
        %v7821 = vcvt.s32.f32 %v7565
        %v7822 = vcvt.s32.f32 %v7566
        %v7823 = vcvt.s32.f32 %v7567
        %v7824 = vcvt.s32.f32 %v7568
        %v7825 = vcvt.s32.f32 %v7569
        %v7826 = vcvt.s32.f32 %v7570
        %v7827 = vcvt.s32.f32 %v7571
        %v7828 = vcvt.s32.f32 %v7572
        %v7829 = vcvt.s32.f32 %v7573
        %v7830 = vcvt.s32.f32 %v7574
        %v7831 = vcvt.s32.f32 %v7575
        %v7832 = vcvt.s32.f32 %v7576
        %v7833 = vcvt.s32.f32 %v7577
        %v7834 = vcvt.s32.f32 %v7578
        %v7835 = vcvt.s32.f32 %v7579
        %v7836 = vcvt.s32.f32 %v7580
        %v7837 = vcvt.s32.f32 %v7581
        %v7838 = vcvt.s32.f32 %v7582
        %v7839 = vcvt.s32.f32 %v7583
        %v7840 = vcvt.s32.f32 %v7584
        %v7841 = vcvt.s32.f32 %v7585
        %v7842 = vcvt.s32.f32 %v7586
        %v7843 = vcvt.s32.f32 %v7587
        %v7844 = vcvt.s32.f32 %v7588
        %8101 = vset.pattern.permute.xlu0 2
        %8102 = vperm.xlu0 %8101, %v7589
        %v8103 = vpop.permute.xlu0 %8102
        %8104 = vset.pattern.permute.xlu0 2
        %8105 = vperm.xlu0 %8104, %v7590
        %v8106 = vpop.permute.xlu0 %8105
        %8107 = vset.pattern.permute.xlu0 2
        %8108 = vperm.xlu0 %8107, %v7591
        %v8109 = vpop.permute.xlu0 %8108
        %8110 = vset.pattern.permute.xlu0 2
        %8111 = vperm.xlu0 %8110, %v7592
        %v8112 = vpop.permute.xlu0 %8111
        %8113 = vset.pattern.permute.xlu0 2
        %8114 = vperm.xlu0 %8113, %v7593
        %v8115 = vpop.permute.xlu0 %8114
        %8116 = vset.pattern.permute.xlu0 2
        %8117 = vperm.xlu0 %8116, %v7594
        %v8118 = vpop.permute.xlu0 %8117
        %8119 = vset.pattern.permute.xlu0 2
        %8120 = vperm.xlu0 %8119, %v7595
        %v8121 = vpop.permute.xlu0 %8120
        %8122 = vset.pattern.permute.xlu0 2
        %8123 = vperm.xlu0 %8122, %v7596
        %v8124 = vpop.permute.xlu0 %8123
        %8125 = vset.pattern.permute.xlu0 2
        %8126 = vperm.xlu0 %8125, %v7597
        %v8127 = vpop.permute.xlu0 %8126
        %8128 = vset.pattern.permute.xlu0 2
        %8129 = vperm.xlu0 %8128, %v7598
        %v8130 = vpop.permute.xlu0 %8129
        %8131 = vset.pattern.permute.xlu0 2
        %8132 = vperm.xlu0 %8131, %v7599
        %v8133 = vpop.permute.xlu0 %8132
        %8134 = vset.pattern.permute.xlu0 2
        %8135 = vperm.xlu0 %8134, %v7600
        %v8136 = vpop.permute.xlu0 %8135
        %8137 = vset.pattern.permute.xlu0 2
        %8138 = vperm.xlu0 %8137, %v7601
        %v8139 = vpop.permute.xlu0 %8138
        %8140 = vset.pattern.permute.xlu0 2
        %8141 = vperm.xlu0 %8140, %v7602
        %v8142 = vpop.permute.xlu0 %8141
        %8143 = vset.pattern.permute.xlu0 2
        %8144 = vperm.xlu0 %8143, %v7603
        %v8145 = vpop.permute.xlu0 %8144
        %8146 = vset.pattern.permute.xlu0 2
        %8147 = vperm.xlu0 %8146, %v7604
        %v8148 = vpop.permute.xlu0 %8147
        %8149 = vset.pattern.permute.xlu0 2
        %8150 = vperm.xlu0 %8149, %v7605
        %v8151 = vpop.permute.xlu0 %8150
        %8152 = vset.pattern.permute.xlu0 2
        %8153 = vperm.xlu0 %8152, %v7606
        %v8154 = vpop.permute.xlu0 %8153
        %8155 = vset.pattern.permute.xlu0 2
        %8156 = vperm.xlu0 %8155, %v7607
        %v8157 = vpop.permute.xlu0 %8156
        %8158 = vset.pattern.permute.xlu0 2
        %8159 = vperm.xlu0 %8158, %v7608
        %v8160 = vpop.permute.xlu0 %8159
        %8161 = vset.pattern.permute.xlu0 2
        %8162 = vperm.xlu0 %8161, %v7609
        %v8163 = vpop.permute.xlu0 %8162
        %8164 = vset.pattern.permute.xlu0 2
        %8165 = vperm.xlu0 %8164, %v7610
        %v8166 = vpop.permute.xlu0 %8165
        %8167 = vset.pattern.permute.xlu0 2
        %8168 = vperm.xlu0 %8167, %v7611
        %v8169 = vpop.permute.xlu0 %8168
        %8170 = vset.pattern.permute.xlu0 2
        %8171 = vperm.xlu0 %8170, %v7612
        %v8172 = vpop.permute.xlu0 %8171
        %8173 = vset.pattern.permute.xlu0 2
        %8174 = vperm.xlu0 %8173, %v7613
        %v8175 = vpop.permute.xlu0 %8174
        %8176 = vset.pattern.permute.xlu0 2
        %8177 = vperm.xlu0 %8176, %v7614
        %v8178 = vpop.permute.xlu0 %8177
        %8179 = vset.pattern.permute.xlu0 2
        %8180 = vperm.xlu0 %8179, %v7615
        %v8181 = vpop.permute.xlu0 %8180
        %8182 = vset.pattern.permute.xlu0 2
        %8183 = vperm.xlu0 %8182, %v7616
        %v8184 = vpop.permute.xlu0 %8183
        %8185 = vset.pattern.permute.xlu0 2
        %8186 = vperm.xlu0 %8185, %v7617
        %v8187 = vpop.permute.xlu0 %8186
        %8188 = vset.pattern.permute.xlu0 2
        %8189 = vperm.xlu0 %8188, %v7618
        %v8190 = vpop.permute.xlu0 %8189
        %8191 = vset.pattern.permute.xlu0 2
        %8192 = vperm.xlu0 %8191, %v7619
        %v8193 = vpop.permute.xlu0 %8192
        %8194 = vset.pattern.permute.xlu0 2
        %8195 = vperm.xlu0 %8194, %v7620
        %v8196 = vpop.permute.xlu0 %8195
        %8197 = vset.pattern.permute.xlu0 2
        %8198 = vperm.xlu0 %8197, %v7621
        %v8199 = vpop.permute.xlu0 %8198
        %8200 = vset.pattern.permute.xlu0 2
        %8201 = vperm.xlu0 %8200, %v7622
        %v8202 = vpop.permute.xlu0 %8201
        %8203 = vset.pattern.permute.xlu0 2
        %8204 = vperm.xlu0 %8203, %v7623
        %v8205 = vpop.permute.xlu0 %8204
        %8206 = vset.pattern.permute.xlu0 2
        %8207 = vperm.xlu0 %8206, %v7624
        %v8208 = vpop.permute.xlu0 %8207
        %8209 = vset.pattern.permute.xlu0 2
        %8210 = vperm.xlu0 %8209, %v7625
        %v8211 = vpop.permute.xlu0 %8210
        %8212 = vset.pattern.permute.xlu0 2
        %8213 = vperm.xlu0 %8212, %v7626
        %v8214 = vpop.permute.xlu0 %8213
        %8215 = vset.pattern.permute.xlu0 2
        %8216 = vperm.xlu0 %8215, %v7627
        %v8217 = vpop.permute.xlu0 %8216
        %8218 = vset.pattern.permute.xlu0 2
        %8219 = vperm.xlu0 %8218, %v7628
        %v8220 = vpop.permute.xlu0 %8219
        %8221 = vset.pattern.permute.xlu0 2
        %8222 = vperm.xlu0 %8221, %v7629
        %v8223 = vpop.permute.xlu0 %8222
        %8224 = vset.pattern.permute.xlu0 2
        %8225 = vperm.xlu0 %8224, %v7630
        %v8226 = vpop.permute.xlu0 %8225
        %8227 = vset.pattern.permute.xlu0 2
        %8228 = vperm.xlu0 %8227, %v7631
        %v8229 = vpop.permute.xlu0 %8228
        %8230 = vset.pattern.permute.xlu0 2
        %8231 = vperm.xlu0 %8230, %v7632
        %v8232 = vpop.permute.xlu0 %8231
        %8233 = vset.pattern.permute.xlu0 2
        %8234 = vperm.xlu0 %8233, %v7633
        %v8235 = vpop.permute.xlu0 %8234
        %8236 = vset.pattern.permute.xlu0 2
        %8237 = vperm.xlu0 %8236, %v7634
        %v8238 = vpop.permute.xlu0 %8237
        %8239 = vset.pattern.permute.xlu0 2
        %8240 = vperm.xlu0 %8239, %v7635
        %v8241 = vpop.permute.xlu0 %8240
        %8242 = vset.pattern.permute.xlu0 2
        %8243 = vperm.xlu0 %8242, %v7636
        %v8244 = vpop.permute.xlu0 %8243
        %8245 = vset.pattern.permute.xlu0 2
        %8246 = vperm.xlu0 %8245, %v7637
        %v8247 = vpop.permute.xlu0 %8246
        %8248 = vset.pattern.permute.xlu0 2
        %8249 = vperm.xlu0 %8248, %v7638
        %v8250 = vpop.permute.xlu0 %8249
        %8251 = vset.pattern.permute.xlu0 2
        %8252 = vperm.xlu0 %8251, %v7639
        %v8253 = vpop.permute.xlu0 %8252
        %8254 = vset.pattern.permute.xlu0 2
        %8255 = vperm.xlu0 %8254, %v7640
        %v8256 = vpop.permute.xlu0 %8255
        %8257 = vset.pattern.permute.xlu0 2
        %8258 = vperm.xlu0 %8257, %v7641
        %v8259 = vpop.permute.xlu0 %8258
        %8260 = vset.pattern.permute.xlu0 2
        %8261 = vperm.xlu0 %8260, %v7642
        %v8262 = vpop.permute.xlu0 %8261
        %8263 = vset.pattern.permute.xlu0 2
        %8264 = vperm.xlu0 %8263, %v7643
        %v8265 = vpop.permute.xlu0 %8264
        %8266 = vset.pattern.permute.xlu0 2
        %8267 = vperm.xlu0 %8266, %v7644
        %v8268 = vpop.permute.xlu0 %8267
        %8269 = vset.pattern.permute.xlu0 2
        %8270 = vperm.xlu0 %8269, %v7645
        %v8271 = vpop.permute.xlu0 %8270
        %8272 = vset.pattern.permute.xlu0 2
        %8273 = vperm.xlu0 %8272, %v7646
        %v8274 = vpop.permute.xlu0 %8273
        %8275 = vset.pattern.permute.xlu0 2
        %8276 = vperm.xlu0 %8275, %v7647
        %v8277 = vpop.permute.xlu0 %8276
        %8278 = vset.pattern.permute.xlu0 2
        %8279 = vperm.xlu0 %8278, %v7648
        %v8280 = vpop.permute.xlu0 %8279
        %8281 = vset.pattern.permute.xlu0 2
        %8282 = vperm.xlu0 %8281, %v7649
        %v8283 = vpop.permute.xlu0 %8282
        %8284 = vset.pattern.permute.xlu0 2
        %8285 = vperm.xlu0 %8284, %v7650
        %v8286 = vpop.permute.xlu0 %8285
        %8287 = vset.pattern.permute.xlu0 2
        %8288 = vperm.xlu0 %8287, %v7651
        %v8289 = vpop.permute.xlu0 %8288
        %8290 = vset.pattern.permute.xlu0 2
        %8291 = vperm.xlu0 %8290, %v7652
        %v8292 = vpop.permute.xlu0 %8291
        %8293 = vset.pattern.permute.xlu0 2
        %8294 = vperm.xlu0 %8293, %v7653
        %v8295 = vpop.permute.xlu0 %8294
        %8296 = vset.pattern.permute.xlu0 2
        %8297 = vperm.xlu0 %8296, %v7654
        %v8298 = vpop.permute.xlu0 %8297
        %8299 = vset.pattern.permute.xlu0 2
        %8300 = vperm.xlu0 %8299, %v7655
        %v8301 = vpop.permute.xlu0 %8300
        %8302 = vset.pattern.permute.xlu0 2
        %8303 = vperm.xlu0 %8302, %v7656
        %v8304 = vpop.permute.xlu0 %8303
        %8305 = vset.pattern.permute.xlu0 2
        %8306 = vperm.xlu0 %8305, %v7657
        %v8307 = vpop.permute.xlu0 %8306
        %8308 = vset.pattern.permute.xlu0 2
        %8309 = vperm.xlu0 %8308, %v7658
        %v8310 = vpop.permute.xlu0 %8309
        %8311 = vset.pattern.permute.xlu0 2
        %8312 = vperm.xlu0 %8311, %v7659
        %v8313 = vpop.permute.xlu0 %8312
        %8314 = vset.pattern.permute.xlu0 2
        %8315 = vperm.xlu0 %8314, %v7660
        %v8316 = vpop.permute.xlu0 %8315
        %8317 = vset.pattern.permute.xlu0 2
        %8318 = vperm.xlu0 %8317, %v7661
        %v8319 = vpop.permute.xlu0 %8318
        %8320 = vset.pattern.permute.xlu0 2
        %8321 = vperm.xlu0 %8320, %v7662
        %v8322 = vpop.permute.xlu0 %8321
        %8323 = vset.pattern.permute.xlu0 2
        %8324 = vperm.xlu0 %8323, %v7663
        %v8325 = vpop.permute.xlu0 %8324
        %8326 = vset.pattern.permute.xlu0 2
        %8327 = vperm.xlu0 %8326, %v7664
        %v8328 = vpop.permute.xlu0 %8327
        %8329 = vset.pattern.permute.xlu0 2
        %8330 = vperm.xlu0 %8329, %v7665
        %v8331 = vpop.permute.xlu0 %8330
        %8332 = vset.pattern.permute.xlu0 2
        %8333 = vperm.xlu0 %8332, %v7666
        %v8334 = vpop.permute.xlu0 %8333
        %8335 = vset.pattern.permute.xlu0 2
        %8336 = vperm.xlu0 %8335, %v7667
        %v8337 = vpop.permute.xlu0 %8336
        %8338 = vset.pattern.permute.xlu0 2
        %8339 = vperm.xlu0 %8338, %v7668
        %v8340 = vpop.permute.xlu0 %8339
        %8341 = vset.pattern.permute.xlu0 2
        %8342 = vperm.xlu0 %8341, %v7669
        %v8343 = vpop.permute.xlu0 %8342
        %8344 = vset.pattern.permute.xlu0 2
        %8345 = vperm.xlu0 %8344, %v7670
        %v8346 = vpop.permute.xlu0 %8345
        %8347 = vset.pattern.permute.xlu0 2
        %8348 = vperm.xlu0 %8347, %v7671
        %v8349 = vpop.permute.xlu0 %8348
        %8350 = vset.pattern.permute.xlu0 2
        %8351 = vperm.xlu0 %8350, %v7672
        %v8352 = vpop.permute.xlu0 %8351
        %8353 = vset.pattern.permute.xlu0 2
        %8354 = vperm.xlu0 %8353, %v7673
        %v8355 = vpop.permute.xlu0 %8354
        %8356 = vset.pattern.permute.xlu0 2
        %8357 = vperm.xlu0 %8356, %v7674
        %v8358 = vpop.permute.xlu0 %8357
        %8359 = vset.pattern.permute.xlu0 2
        %8360 = vperm.xlu0 %8359, %v7675
        %v8361 = vpop.permute.xlu0 %8360
        %8362 = vset.pattern.permute.xlu0 2
        %8363 = vperm.xlu0 %8362, %v7676
        %v8364 = vpop.permute.xlu0 %8363
        %8365 = vset.pattern.permute.xlu0 2
        %8366 = vperm.xlu0 %8365, %v7677
        %v8367 = vpop.permute.xlu0 %8366
        %8368 = vset.pattern.permute.xlu0 2
        %8369 = vperm.xlu0 %8368, %v7678
        %v8370 = vpop.permute.xlu0 %8369
        %8371 = vset.pattern.permute.xlu0 2
        %8372 = vperm.xlu0 %8371, %v7679
        %v8373 = vpop.permute.xlu0 %8372
        %8374 = vset.pattern.permute.xlu0 2
        %8375 = vperm.xlu0 %8374, %v7680
        %v8376 = vpop.permute.xlu0 %8375
        %8377 = vset.pattern.permute.xlu0 2
        %8378 = vperm.xlu0 %8377, %v7681
        %v8379 = vpop.permute.xlu0 %8378
        %8380 = vset.pattern.permute.xlu0 2
        %8381 = vperm.xlu0 %8380, %v7682
        %v8382 = vpop.permute.xlu0 %8381
        %8383 = vset.pattern.permute.xlu0 2
        %8384 = vperm.xlu0 %8383, %v7683
        %v8385 = vpop.permute.xlu0 %8384
        %8386 = vset.pattern.permute.xlu0 2
        %8387 = vperm.xlu0 %8386, %v7684
        %v8388 = vpop.permute.xlu0 %8387
        %8389 = vset.pattern.permute.xlu0 2
        %8390 = vperm.xlu0 %8389, %v7685
        %v8391 = vpop.permute.xlu0 %8390
        %8392 = vset.pattern.permute.xlu0 2
        %8393 = vperm.xlu0 %8392, %v7686
        %v8394 = vpop.permute.xlu0 %8393
        %8395 = vset.pattern.permute.xlu0 2
        %8396 = vperm.xlu0 %8395, %v7687
        %v8397 = vpop.permute.xlu0 %8396
        %8398 = vset.pattern.permute.xlu0 2
        %8399 = vperm.xlu0 %8398, %v7688
        %v8400 = vpop.permute.xlu0 %8399
        %8401 = vset.pattern.permute.xlu0 2
        %8402 = vperm.xlu0 %8401, %v7689
        %v8403 = vpop.permute.xlu0 %8402
        %8404 = vset.pattern.permute.xlu0 2
        %8405 = vperm.xlu0 %8404, %v7690
        %v8406 = vpop.permute.xlu0 %8405
        %8407 = vset.pattern.permute.xlu0 2
        %8408 = vperm.xlu0 %8407, %v7691
        %v8409 = vpop.permute.xlu0 %8408
        %8410 = vset.pattern.permute.xlu0 2
        %8411 = vperm.xlu0 %8410, %v7692
        %v8412 = vpop.permute.xlu0 %8411
        %8413 = vset.pattern.permute.xlu0 2
        %8414 = vperm.xlu0 %8413, %v7693
        %v8415 = vpop.permute.xlu0 %8414
        %8416 = vset.pattern.permute.xlu0 2
        %8417 = vperm.xlu0 %8416, %v7694
        %v8418 = vpop.permute.xlu0 %8417
        %8419 = vset.pattern.permute.xlu0 2
        %8420 = vperm.xlu0 %8419, %v7695
        %v8421 = vpop.permute.xlu0 %8420
        %8422 = vset.pattern.permute.xlu0 2
        %8423 = vperm.xlu0 %8422, %v7696
        %v8424 = vpop.permute.xlu0 %8423
        %8425 = vset.pattern.permute.xlu0 2
        %8426 = vperm.xlu0 %8425, %v7697
        %v8427 = vpop.permute.xlu0 %8426
        %8428 = vset.pattern.permute.xlu0 2
        %8429 = vperm.xlu0 %8428, %v7698
        %v8430 = vpop.permute.xlu0 %8429
        %8431 = vset.pattern.permute.xlu0 2
        %8432 = vperm.xlu0 %8431, %v7699
        %v8433 = vpop.permute.xlu0 %8432
        %8434 = vset.pattern.permute.xlu0 2
        %8435 = vperm.xlu0 %8434, %v7700
        %v8436 = vpop.permute.xlu0 %8435
        %8437 = vset.pattern.permute.xlu0 2
        %8438 = vperm.xlu0 %8437, %v7701
        %v8439 = vpop.permute.xlu0 %8438
        %8440 = vset.pattern.permute.xlu0 2
        %8441 = vperm.xlu0 %8440, %v7702
        %v8442 = vpop.permute.xlu0 %8441
        %8443 = vset.pattern.permute.xlu0 2
        %8444 = vperm.xlu0 %8443, %v7703
        %v8445 = vpop.permute.xlu0 %8444
        %8446 = vset.pattern.permute.xlu0 2
        %8447 = vperm.xlu0 %8446, %v7704
        %v8448 = vpop.permute.xlu0 %8447
        %8449 = vset.pattern.permute.xlu0 2
        %8450 = vperm.xlu0 %8449, %v7705
        %v8451 = vpop.permute.xlu0 %8450
        %8452 = vset.pattern.permute.xlu0 2
        %8453 = vperm.xlu0 %8452, %v7706
        %v8454 = vpop.permute.xlu0 %8453
        %8455 = vset.pattern.permute.xlu0 2
        %8456 = vperm.xlu0 %8455, %v7707
        %v8457 = vpop.permute.xlu0 %8456
        %8458 = vset.pattern.permute.xlu0 2
        %8459 = vperm.xlu0 %8458, %v7708
        %v8460 = vpop.permute.xlu0 %8459
        %8461 = vset.pattern.permute.xlu0 2
        %8462 = vperm.xlu0 %8461, %v7709
        %v8463 = vpop.permute.xlu0 %8462
        %8464 = vset.pattern.permute.xlu0 2
        %8465 = vperm.xlu0 %8464, %v7710
        %v8466 = vpop.permute.xlu0 %8465
        %8467 = vset.pattern.permute.xlu0 2
        %8468 = vperm.xlu0 %8467, %v7711
        %v8469 = vpop.permute.xlu0 %8468
        %8470 = vset.pattern.permute.xlu0 2
        %8471 = vperm.xlu0 %8470, %v7712
        %v8472 = vpop.permute.xlu0 %8471
        %8473 = vset.pattern.permute.xlu0 2
        %8474 = vperm.xlu0 %8473, %v7713
        %v8475 = vpop.permute.xlu0 %8474
        %8476 = vset.pattern.permute.xlu0 2
        %8477 = vperm.xlu0 %8476, %v7714
        %v8478 = vpop.permute.xlu0 %8477
        %8479 = vset.pattern.permute.xlu0 2
        %8480 = vperm.xlu0 %8479, %v7715
        %v8481 = vpop.permute.xlu0 %8480
        %8482 = vset.pattern.permute.xlu0 2
        %8483 = vperm.xlu0 %8482, %v7716
        %v8484 = vpop.permute.xlu0 %8483
        %8485 = vset.pattern.permute.xlu0 2
        %8486 = vperm.xlu0 %8485, %v7717
        %v8487 = vpop.permute.xlu0 %8486
        %8488 = vset.pattern.permute.xlu0 2
        %8489 = vperm.xlu0 %8488, %v7718
        %v8490 = vpop.permute.xlu0 %8489
        %8491 = vset.pattern.permute.xlu0 2
        %8492 = vperm.xlu0 %8491, %v7719
        %v8493 = vpop.permute.xlu0 %8492
        %8494 = vset.pattern.permute.xlu0 2
        %8495 = vperm.xlu0 %8494, %v7720
        %v8496 = vpop.permute.xlu0 %8495
        %8497 = vset.pattern.permute.xlu0 2
        %8498 = vperm.xlu0 %8497, %v7721
        %v8499 = vpop.permute.xlu0 %8498
        %8500 = vset.pattern.permute.xlu0 2
        %8501 = vperm.xlu0 %8500, %v7722
        %v8502 = vpop.permute.xlu0 %8501
        %8503 = vset.pattern.permute.xlu0 2
        %8504 = vperm.xlu0 %8503, %v7723
        %v8505 = vpop.permute.xlu0 %8504
        %8506 = vset.pattern.permute.xlu0 2
        %8507 = vperm.xlu0 %8506, %v7724
        %v8508 = vpop.permute.xlu0 %8507
        %8509 = vset.pattern.permute.xlu0 2
        %8510 = vperm.xlu0 %8509, %v7725
        %v8511 = vpop.permute.xlu0 %8510
        %8512 = vset.pattern.permute.xlu0 2
        %8513 = vperm.xlu0 %8512, %v7726
        %v8514 = vpop.permute.xlu0 %8513
        %8515 = vset.pattern.permute.xlu0 2
        %8516 = vperm.xlu0 %8515, %v7727
        %v8517 = vpop.permute.xlu0 %8516
        %8518 = vset.pattern.permute.xlu0 2
        %8519 = vperm.xlu0 %8518, %v7728
        %v8520 = vpop.permute.xlu0 %8519
        %8521 = vset.pattern.permute.xlu0 2
        %8522 = vperm.xlu0 %8521, %v7729
        %v8523 = vpop.permute.xlu0 %8522
        %8524 = vset.pattern.permute.xlu0 2
        %8525 = vperm.xlu0 %8524, %v7730
        %v8526 = vpop.permute.xlu0 %8525
        %8527 = vset.pattern.permute.xlu0 2
        %8528 = vperm.xlu0 %8527, %v7731
        %v8529 = vpop.permute.xlu0 %8528
        %8530 = vset.pattern.permute.xlu0 2
        %8531 = vperm.xlu0 %8530, %v7732
        %v8532 = vpop.permute.xlu0 %8531
        %8533 = vset.pattern.permute.xlu0 2
        %8534 = vperm.xlu0 %8533, %v7733
        %v8535 = vpop.permute.xlu0 %8534
        %8536 = vset.pattern.permute.xlu0 2
        %8537 = vperm.xlu0 %8536, %v7734
        %v8538 = vpop.permute.xlu0 %8537
        %8539 = vset.pattern.permute.xlu0 2
        %8540 = vperm.xlu0 %8539, %v7735
        %v8541 = vpop.permute.xlu0 %8540
        %8542 = vset.pattern.permute.xlu0 2
        %8543 = vperm.xlu0 %8542, %v7736
        %v8544 = vpop.permute.xlu0 %8543
        %8545 = vset.pattern.permute.xlu0 2
        %8546 = vperm.xlu0 %8545, %v7737
        %v8547 = vpop.permute.xlu0 %8546
        %8548 = vset.pattern.permute.xlu0 2
        %8549 = vperm.xlu0 %8548, %v7738
        %v8550 = vpop.permute.xlu0 %8549
        %8551 = vset.pattern.permute.xlu0 2
        %8552 = vperm.xlu0 %8551, %v7739
        %v8553 = vpop.permute.xlu0 %8552
        %8554 = vset.pattern.permute.xlu0 2
        %8555 = vperm.xlu0 %8554, %v7740
        %v8556 = vpop.permute.xlu0 %8555
        %8557 = vset.pattern.permute.xlu0 2
        %8558 = vperm.xlu0 %8557, %v7741
        %v8559 = vpop.permute.xlu0 %8558
        %8560 = vset.pattern.permute.xlu0 2
        %8561 = vperm.xlu0 %8560, %v7742
        %v8562 = vpop.permute.xlu0 %8561
        %8563 = vset.pattern.permute.xlu0 2
        %8564 = vperm.xlu0 %8563, %v7743
        %v8565 = vpop.permute.xlu0 %8564
        %8566 = vset.pattern.permute.xlu0 2
        %8567 = vperm.xlu0 %8566, %v7744
        %v8568 = vpop.permute.xlu0 %8567
        %8569 = vset.pattern.permute.xlu0 2
        %8570 = vperm.xlu0 %8569, %v7745
        %v8571 = vpop.permute.xlu0 %8570
        %8572 = vset.pattern.permute.xlu0 2
        %8573 = vperm.xlu0 %8572, %v7746
        %v8574 = vpop.permute.xlu0 %8573
        %8575 = vset.pattern.permute.xlu0 2
        %8576 = vperm.xlu0 %8575, %v7747
        %v8577 = vpop.permute.xlu0 %8576
        %8578 = vset.pattern.permute.xlu0 2
        %8579 = vperm.xlu0 %8578, %v7748
        %v8580 = vpop.permute.xlu0 %8579
        %8581 = vset.pattern.permute.xlu0 2
        %8582 = vperm.xlu0 %8581, %v7749
        %v8583 = vpop.permute.xlu0 %8582
        %8584 = vset.pattern.permute.xlu0 2
        %8585 = vperm.xlu0 %8584, %v7750
        %v8586 = vpop.permute.xlu0 %8585
        %8587 = vset.pattern.permute.xlu0 2
        %8588 = vperm.xlu0 %8587, %v7751
        %v8589 = vpop.permute.xlu0 %8588
        %8590 = vset.pattern.permute.xlu0 2
        %8591 = vperm.xlu0 %8590, %v7752
        %v8592 = vpop.permute.xlu0 %8591
        %8593 = vset.pattern.permute.xlu0 2
        %8594 = vperm.xlu0 %8593, %v7753
        %v8595 = vpop.permute.xlu0 %8594
        %8596 = vset.pattern.permute.xlu0 2
        %8597 = vperm.xlu0 %8596, %v7754
        %v8598 = vpop.permute.xlu0 %8597
        %8599 = vset.pattern.permute.xlu0 2
        %8600 = vperm.xlu0 %8599, %v7755
        %v8601 = vpop.permute.xlu0 %8600
        %8602 = vset.pattern.permute.xlu0 2
        %8603 = vperm.xlu0 %8602, %v7756
        %v8604 = vpop.permute.xlu0 %8603
        %8605 = vset.pattern.permute.xlu0 2
        %8606 = vperm.xlu0 %8605, %v7757
        %v8607 = vpop.permute.xlu0 %8606
        %8608 = vset.pattern.permute.xlu0 2
        %8609 = vperm.xlu0 %8608, %v7758
        %v8610 = vpop.permute.xlu0 %8609
        %8611 = vset.pattern.permute.xlu0 2
        %8612 = vperm.xlu0 %8611, %v7759
        %v8613 = vpop.permute.xlu0 %8612
        %8614 = vset.pattern.permute.xlu0 2
        %8615 = vperm.xlu0 %8614, %v7760
        %v8616 = vpop.permute.xlu0 %8615
        %8617 = vset.pattern.permute.xlu0 2
        %8618 = vperm.xlu0 %8617, %v7761
        %v8619 = vpop.permute.xlu0 %8618
        %8620 = vset.pattern.permute.xlu0 2
        %8621 = vperm.xlu0 %8620, %v7762
        %v8622 = vpop.permute.xlu0 %8621
        %8623 = vset.pattern.permute.xlu0 2
        %8624 = vperm.xlu0 %8623, %v7763
        %v8625 = vpop.permute.xlu0 %8624
        %8626 = vset.pattern.permute.xlu0 2
        %8627 = vperm.xlu0 %8626, %v7764
        %v8628 = vpop.permute.xlu0 %8627
        %8629 = vset.pattern.permute.xlu0 2
        %8630 = vperm.xlu0 %8629, %v7765
        %v8631 = vpop.permute.xlu0 %8630
        %8632 = vset.pattern.permute.xlu0 2
        %8633 = vperm.xlu0 %8632, %v7766
        %v8634 = vpop.permute.xlu0 %8633
        %8635 = vset.pattern.permute.xlu0 2
        %8636 = vperm.xlu0 %8635, %v7767
        %v8637 = vpop.permute.xlu0 %8636
        %8638 = vset.pattern.permute.xlu0 2
        %8639 = vperm.xlu0 %8638, %v7768
        %v8640 = vpop.permute.xlu0 %8639
        %8641 = vset.pattern.permute.xlu0 2
        %8642 = vperm.xlu0 %8641, %v7769
        %v8643 = vpop.permute.xlu0 %8642
        %8644 = vset.pattern.permute.xlu0 2
        %8645 = vperm.xlu0 %8644, %v7770
        %v8646 = vpop.permute.xlu0 %8645
        %8647 = vset.pattern.permute.xlu0 2
        %8648 = vperm.xlu0 %8647, %v7771
        %v8649 = vpop.permute.xlu0 %8648
        %8650 = vset.pattern.permute.xlu0 2
        %8651 = vperm.xlu0 %8650, %v7772
        %v8652 = vpop.permute.xlu0 %8651
        %8653 = vset.pattern.permute.xlu0 2
        %8654 = vperm.xlu0 %8653, %v7773
        %v8655 = vpop.permute.xlu0 %8654
        %8656 = vset.pattern.permute.xlu0 2
        %8657 = vperm.xlu0 %8656, %v7774
        %v8658 = vpop.permute.xlu0 %8657
        %8659 = vset.pattern.permute.xlu0 2
        %8660 = vperm.xlu0 %8659, %v7775
        %v8661 = vpop.permute.xlu0 %8660
        %8662 = vset.pattern.permute.xlu0 2
        %8663 = vperm.xlu0 %8662, %v7776
        %v8664 = vpop.permute.xlu0 %8663
        %8665 = vset.pattern.permute.xlu0 2
        %8666 = vperm.xlu0 %8665, %v7777
        %v8667 = vpop.permute.xlu0 %8666
        %8668 = vset.pattern.permute.xlu0 2
        %8669 = vperm.xlu0 %8668, %v7778
        %v8670 = vpop.permute.xlu0 %8669
        %8671 = vset.pattern.permute.xlu0 2
        %8672 = vperm.xlu0 %8671, %v7779
        %v8673 = vpop.permute.xlu0 %8672
        %8674 = vset.pattern.permute.xlu0 2
        %8675 = vperm.xlu0 %8674, %v7780
        %v8676 = vpop.permute.xlu0 %8675
        %8677 = vset.pattern.permute.xlu0 2
        %8678 = vperm.xlu0 %8677, %v7781
        %v8679 = vpop.permute.xlu0 %8678
        %8680 = vset.pattern.permute.xlu0 2
        %8681 = vperm.xlu0 %8680, %v7782
        %v8682 = vpop.permute.xlu0 %8681
        %8683 = vset.pattern.permute.xlu0 2
        %8684 = vperm.xlu0 %8683, %v7783
        %v8685 = vpop.permute.xlu0 %8684
        %8686 = vset.pattern.permute.xlu0 2
        %8687 = vperm.xlu0 %8686, %v7784
        %v8688 = vpop.permute.xlu0 %8687
        %8689 = vset.pattern.permute.xlu0 2
        %8690 = vperm.xlu0 %8689, %v7785
        %v8691 = vpop.permute.xlu0 %8690
        %8692 = vset.pattern.permute.xlu0 2
        %8693 = vperm.xlu0 %8692, %v7786
        %v8694 = vpop.permute.xlu0 %8693
        %8695 = vset.pattern.permute.xlu0 2
        %8696 = vperm.xlu0 %8695, %v7787
        %v8697 = vpop.permute.xlu0 %8696
        %8698 = vset.pattern.permute.xlu0 2
        %8699 = vperm.xlu0 %8698, %v7788
        %v8700 = vpop.permute.xlu0 %8699
        %8701 = vset.pattern.permute.xlu0 2
        %8702 = vperm.xlu0 %8701, %v7789
        %v8703 = vpop.permute.xlu0 %8702
        %8704 = vset.pattern.permute.xlu0 2
        %8705 = vperm.xlu0 %8704, %v7790
        %v8706 = vpop.permute.xlu0 %8705
        %8707 = vset.pattern.permute.xlu0 2
        %8708 = vperm.xlu0 %8707, %v7791
        %v8709 = vpop.permute.xlu0 %8708
        %8710 = vset.pattern.permute.xlu0 2
        %8711 = vperm.xlu0 %8710, %v7792
        %v8712 = vpop.permute.xlu0 %8711
        %8713 = vset.pattern.permute.xlu0 2
        %8714 = vperm.xlu0 %8713, %v7793
        %v8715 = vpop.permute.xlu0 %8714
        %8716 = vset.pattern.permute.xlu0 2
        %8717 = vperm.xlu0 %8716, %v7794
        %v8718 = vpop.permute.xlu0 %8717
        %8719 = vset.pattern.permute.xlu0 2
        %8720 = vperm.xlu0 %8719, %v7795
        %v8721 = vpop.permute.xlu0 %8720
        %8722 = vset.pattern.permute.xlu0 2
        %8723 = vperm.xlu0 %8722, %v7796
        %v8724 = vpop.permute.xlu0 %8723
        %8725 = vset.pattern.permute.xlu0 2
        %8726 = vperm.xlu0 %8725, %v7797
        %v8727 = vpop.permute.xlu0 %8726
        %8728 = vset.pattern.permute.xlu0 2
        %8729 = vperm.xlu0 %8728, %v7798
        %v8730 = vpop.permute.xlu0 %8729
        %8731 = vset.pattern.permute.xlu0 2
        %8732 = vperm.xlu0 %8731, %v7799
        %v8733 = vpop.permute.xlu0 %8732
        %8734 = vset.pattern.permute.xlu0 2
        %8735 = vperm.xlu0 %8734, %v7800
        %v8736 = vpop.permute.xlu0 %8735
        %8737 = vset.pattern.permute.xlu0 2
        %8738 = vperm.xlu0 %8737, %v7801
        %v8739 = vpop.permute.xlu0 %8738
        %8740 = vset.pattern.permute.xlu0 2
        %8741 = vperm.xlu0 %8740, %v7802
        %v8742 = vpop.permute.xlu0 %8741
        %8743 = vset.pattern.permute.xlu0 2
        %8744 = vperm.xlu0 %8743, %v7803
        %v8745 = vpop.permute.xlu0 %8744
        %8746 = vset.pattern.permute.xlu0 2
        %8747 = vperm.xlu0 %8746, %v7804
        %v8748 = vpop.permute.xlu0 %8747
        %8749 = vset.pattern.permute.xlu0 2
        %8750 = vperm.xlu0 %8749, %v7805
        %v8751 = vpop.permute.xlu0 %8750
        %8752 = vset.pattern.permute.xlu0 2
        %8753 = vperm.xlu0 %8752, %v7806
        %v8754 = vpop.permute.xlu0 %8753
        %8755 = vset.pattern.permute.xlu0 2
        %8756 = vperm.xlu0 %8755, %v7807
        %v8757 = vpop.permute.xlu0 %8756
        %8758 = vset.pattern.permute.xlu0 2
        %8759 = vperm.xlu0 %8758, %v7808
        %v8760 = vpop.permute.xlu0 %8759
        %8761 = vset.pattern.permute.xlu0 2
        %8762 = vperm.xlu0 %8761, %v7809
        %v8763 = vpop.permute.xlu0 %8762
        %8764 = vset.pattern.permute.xlu0 2
        %8765 = vperm.xlu0 %8764, %v7810
        %v8766 = vpop.permute.xlu0 %8765
        %8767 = vset.pattern.permute.xlu0 2
        %8768 = vperm.xlu0 %8767, %v7811
        %v8769 = vpop.permute.xlu0 %8768
        %8770 = vset.pattern.permute.xlu0 2
        %8771 = vperm.xlu0 %8770, %v7812
        %v8772 = vpop.permute.xlu0 %8771
        %8773 = vset.pattern.permute.xlu0 2
        %8774 = vperm.xlu0 %8773, %v7813
        %v8775 = vpop.permute.xlu0 %8774
        %8776 = vset.pattern.permute.xlu0 2
        %8777 = vperm.xlu0 %8776, %v7814
        %v8778 = vpop.permute.xlu0 %8777
        %8779 = vset.pattern.permute.xlu0 2
        %8780 = vperm.xlu0 %8779, %v7815
        %v8781 = vpop.permute.xlu0 %8780
        %8782 = vset.pattern.permute.xlu0 2
        %8783 = vperm.xlu0 %8782, %v7816
        %v8784 = vpop.permute.xlu0 %8783
        %8785 = vset.pattern.permute.xlu0 2
        %8786 = vperm.xlu0 %8785, %v7817
        %v8787 = vpop.permute.xlu0 %8786
        %8788 = vset.pattern.permute.xlu0 2
        %8789 = vperm.xlu0 %8788, %v7818
        %v8790 = vpop.permute.xlu0 %8789
        %8791 = vset.pattern.permute.xlu0 2
        %8792 = vperm.xlu0 %8791, %v7819
        %v8793 = vpop.permute.xlu0 %8792
        %8794 = vset.pattern.permute.xlu0 2
        %8795 = vperm.xlu0 %8794, %v7820
        %v8796 = vpop.permute.xlu0 %8795
        %8797 = vset.pattern.permute.xlu0 2
        %8798 = vperm.xlu0 %8797, %v7821
        %v8799 = vpop.permute.xlu0 %8798
        %8800 = vset.pattern.permute.xlu0 2
        %8801 = vperm.xlu0 %8800, %v7822
        %v8802 = vpop.permute.xlu0 %8801
        %8803 = vset.pattern.permute.xlu0 2
        %8804 = vperm.xlu0 %8803, %v7823
        %v8805 = vpop.permute.xlu0 %8804
        %8806 = vset.pattern.permute.xlu0 2
        %8807 = vperm.xlu0 %8806, %v7824
        %v8808 = vpop.permute.xlu0 %8807
        %8809 = vset.pattern.permute.xlu0 2
        %8810 = vperm.xlu0 %8809, %v7825
        %v8811 = vpop.permute.xlu0 %8810
        %8812 = vset.pattern.permute.xlu0 2
        %8813 = vperm.xlu0 %8812, %v7826
        %v8814 = vpop.permute.xlu0 %8813
        %8815 = vset.pattern.permute.xlu0 2
        %8816 = vperm.xlu0 %8815, %v7827
        %v8817 = vpop.permute.xlu0 %8816
        %8818 = vset.pattern.permute.xlu0 2
        %8819 = vperm.xlu0 %8818, %v7828
        %v8820 = vpop.permute.xlu0 %8819
        %8821 = vset.pattern.permute.xlu0 2
        %8822 = vperm.xlu0 %8821, %v7829
        %v8823 = vpop.permute.xlu0 %8822
        %8824 = vset.pattern.permute.xlu0 2
        %8825 = vperm.xlu0 %8824, %v7830
        %v8826 = vpop.permute.xlu0 %8825
        %8827 = vset.pattern.permute.xlu0 2
        %8828 = vperm.xlu0 %8827, %v7831
        %v8829 = vpop.permute.xlu0 %8828
        %8830 = vset.pattern.permute.xlu0 2
        %8831 = vperm.xlu0 %8830, %v7832
        %v8832 = vpop.permute.xlu0 %8831
        %8833 = vset.pattern.permute.xlu0 2
        %8834 = vperm.xlu0 %8833, %v7833
        %v8835 = vpop.permute.xlu0 %8834
        %8836 = vset.pattern.permute.xlu0 2
        %8837 = vperm.xlu0 %8836, %v7834
        %v8838 = vpop.permute.xlu0 %8837
        %8839 = vset.pattern.permute.xlu0 2
        %8840 = vperm.xlu0 %8839, %v7835
        %v8841 = vpop.permute.xlu0 %8840
        %8842 = vset.pattern.permute.xlu0 2
        %8843 = vperm.xlu0 %8842, %v7836
        %v8844 = vpop.permute.xlu0 %8843
        %8845 = vset.pattern.permute.xlu0 2
        %8846 = vperm.xlu0 %8845, %v7837
        %v8847 = vpop.permute.xlu0 %8846
        %8848 = vset.pattern.permute.xlu0 2
        %8849 = vperm.xlu0 %8848, %v7838
        %v8850 = vpop.permute.xlu0 %8849
        %8851 = vset.pattern.permute.xlu0 2
        %8852 = vperm.xlu0 %8851, %v7839
        %v8853 = vpop.permute.xlu0 %8852
        %8854 = vset.pattern.permute.xlu0 2
        %8855 = vperm.xlu0 %8854, %v7840
        %v8856 = vpop.permute.xlu0 %8855
        %8857 = vset.pattern.permute.xlu0 2
        %8858 = vperm.xlu0 %8857, %v7841
        %v8859 = vpop.permute.xlu0 %8858
        %8860 = vset.pattern.permute.xlu0 2
        %8861 = vperm.xlu0 %8860, %v7842
        %v8862 = vpop.permute.xlu0 %8861
        %8863 = vset.pattern.permute.xlu0 2
        %8864 = vperm.xlu0 %8863, %v7843
        %v8865 = vpop.permute.xlu0 %8864
        %8866 = vset.pattern.permute.xlu0 2
        %8867 = vperm.xlu0 %8866, %v7844
        %v8868 = vpop.permute.xlu0 %8867
        %v8869 = vlaneseq
        %v8870 = vshrl.u32 %v8869, 7
        %v8871 = vsub.s32 %v2170, %v8870
        %v8872 = vrot.slane %v8103, %v8871
        %v8873 = vlaneseq
        %v8874 = vshrl.u32 %v8873, 7
        %v8875 = vsub.s32 %v2175, %v8874
        %v8876 = vrot.slane %v8106, %v8875
        %v8877 = vsel %vm2180, %v8876, %v8872
        %v8878 = vlaneseq
        %v8879 = vshrl.u32 %v8878, 7
        %v8880 = vsub.s32 %v2182, %v8879
        %v8881 = vrot.slane %v8109, %v8880
        %v8882 = vsel %vm2187, %v8881, %v8877
        %v8883 = vlaneseq
        %v8884 = vshrl.u32 %v8883, 7
        %v8885 = vsub.s32 %v2189, %v8884
        %v8886 = vrot.slane %v8112, %v8885
        %v8887 = vsel %vm2194, %v8886, %v8882
        %v8888 = vlaneseq
        %v8889 = vshrl.u32 %v8888, 7
        %v8890 = vsub.s32 %v2196, %v8889
        %v8891 = vrot.slane %v8115, %v8890
        %v8892 = vsel %vm2201, %v8891, %v8887
        %v8893 = vlaneseq
        %v8894 = vshrl.u32 %v8893, 7
        %v8895 = vsub.s32 %v2203, %v8894
        %v8896 = vrot.slane %v8118, %v8895
        %v8897 = vsel %vm2208, %v8896, %v8892
        %v8898 = vlaneseq
        %v8899 = vshrl.u32 %v8898, 7
        %v8900 = vsub.s32 %v2210, %v8899
        %v8901 = vrot.slane %v8121, %v8900
        %v8902 = vsel %vm2215, %v8901, %v8897
        %v8903 = vlaneseq
        %v8904 = vshrl.u32 %v8903, 7
        %v8905 = vsub.s32 %v2217, %v8904
        %v8906 = vrot.slane %v8124, %v8905
        %v8907 = vsel %vm2222, %v8906, %v8902
        %v8908 = vlaneseq
        %v8909 = vshrl.u32 %v8908, 7
        %v8910 = vsub.s32 %v2224, %v8909
        %v8911 = vrot.slane %v8127, %v8910
        %v8912 = vsel %vm2229, %v8911, %v8907
        %v8913 = vlaneseq
        %v8914 = vshrl.u32 %v8913, 7
        %v8915 = vsub.s32 %v2231, %v8914
        %v8916 = vrot.slane %v8130, %v8915
        %v8917 = vsel %vm2236, %v8916, %v8912
        %v8918 = vlaneseq
        %v8919 = vshrl.u32 %v8918, 7
        %v8920 = vsub.s32 %v2238, %v8919
        %v8921 = vrot.slane %v8133, %v8920
        %v8922 = vsel %vm2243, %v8921, %v8917
        %v8923 = vlaneseq
        %v8924 = vshrl.u32 %v8923, 7
        %v8925 = vsub.s32 %v2245, %v8924
        %v8926 = vrot.slane %v8136, %v8925
        %v8927 = vsel %vm2250, %v8926, %v8922
        %v8928 = vlaneseq
        %v8929 = vshrl.u32 %v8928, 7
        %v8930 = vsub.s32 %v2252, %v8929
        %v8931 = vrot.slane %v8139, %v8930
        %v8932 = vsel %vm2257, %v8931, %v8927
        %v8933 = vlaneseq
        %v8934 = vshrl.u32 %v8933, 7
        %v8935 = vsub.s32 %v2259, %v8934
        %v8936 = vrot.slane %v8142, %v8935
        %v8937 = vsel %vm2264, %v8936, %v8932
        %v8938 = vlaneseq
        %v8939 = vshrl.u32 %v8938, 7
        %v8940 = vsub.s32 %v2266, %v8939
        %v8941 = vrot.slane %v8145, %v8940
        %v8942 = vsel %vm2271, %v8941, %v8937
        %v8943 = vlaneseq
        %v8944 = vshrl.u32 %v8943, 7
        %v8945 = vsub.s32 %v2273, %v8944
        %v8946 = vrot.slane %v8148, %v8945
        %v8947 = vsel %vm2278, %v8946, %v8942
        %v8948 = vlaneseq
        %v8949 = vshrl.u32 %v8948, 7
        %v8950 = vsub.s32 %v2170, %v8949
        %v8951 = vrot.slane %v8151, %v8950
        %v8952 = vlaneseq
        %v8953 = vshrl.u32 %v8952, 7
        %v8954 = vsub.s32 %v2175, %v8953
        %v8955 = vrot.slane %v8154, %v8954
        %v8956 = vsel %vm2180, %v8955, %v8951
        %v8957 = vlaneseq
        %v8958 = vshrl.u32 %v8957, 7
        %v8959 = vsub.s32 %v2182, %v8958
        %v8960 = vrot.slane %v8157, %v8959
        %v8961 = vsel %vm2187, %v8960, %v8956
        %v8962 = vlaneseq
        %v8963 = vshrl.u32 %v8962, 7
        %v8964 = vsub.s32 %v2189, %v8963
        %v8965 = vrot.slane %v8160, %v8964
        %v8966 = vsel %vm2194, %v8965, %v8961
        %v8967 = vlaneseq
        %v8968 = vshrl.u32 %v8967, 7
        %v8969 = vsub.s32 %v2196, %v8968
        %v8970 = vrot.slane %v8163, %v8969
        %v8971 = vsel %vm2201, %v8970, %v8966
        %v8972 = vlaneseq
        %v8973 = vshrl.u32 %v8972, 7
        %v8974 = vsub.s32 %v2203, %v8973
        %v8975 = vrot.slane %v8166, %v8974
        %v8976 = vsel %vm2208, %v8975, %v8971
        %v8977 = vlaneseq
        %v8978 = vshrl.u32 %v8977, 7
        %v8979 = vsub.s32 %v2210, %v8978
        %v8980 = vrot.slane %v8169, %v8979
        %v8981 = vsel %vm2215, %v8980, %v8976
        %v8982 = vlaneseq
        %v8983 = vshrl.u32 %v8982, 7
        %v8984 = vsub.s32 %v2217, %v8983
        %v8985 = vrot.slane %v8172, %v8984
        %v8986 = vsel %vm2222, %v8985, %v8981
        %v8987 = vlaneseq
        %v8988 = vshrl.u32 %v8987, 7
        %v8989 = vsub.s32 %v2224, %v8988
        %v8990 = vrot.slane %v8175, %v8989
        %v8991 = vsel %vm2229, %v8990, %v8986
        %v8992 = vlaneseq
        %v8993 = vshrl.u32 %v8992, 7
        %v8994 = vsub.s32 %v2231, %v8993
        %v8995 = vrot.slane %v8178, %v8994
        %v8996 = vsel %vm2236, %v8995, %v8991
        %v8997 = vlaneseq
        %v8998 = vshrl.u32 %v8997, 7
        %v8999 = vsub.s32 %v2238, %v8998
        %v9000 = vrot.slane %v8181, %v8999
        %v9001 = vsel %vm2243, %v9000, %v8996
        %v9002 = vlaneseq
        %v9003 = vshrl.u32 %v9002, 7
        %v9004 = vsub.s32 %v2245, %v9003
        %v9005 = vrot.slane %v8184, %v9004
        %v9006 = vsel %vm2250, %v9005, %v9001
        %v9007 = vlaneseq
        %v9008 = vshrl.u32 %v9007, 7
        %v9009 = vsub.s32 %v2252, %v9008
        %v9010 = vrot.slane %v8187, %v9009
        %v9011 = vsel %vm2257, %v9010, %v9006
        %v9012 = vlaneseq
        %v9013 = vshrl.u32 %v9012, 7
        %v9014 = vsub.s32 %v2259, %v9013
        %v9015 = vrot.slane %v8190, %v9014
        %v9016 = vsel %vm2264, %v9015, %v9011
        %v9017 = vlaneseq
        %v9018 = vshrl.u32 %v9017, 7
        %v9019 = vsub.s32 %v2266, %v9018
        %v9020 = vrot.slane %v8193, %v9019
        %v9021 = vsel %vm2271, %v9020, %v9016
        %v9022 = vlaneseq
        %v9023 = vshrl.u32 %v9022, 7
        %v9024 = vsub.s32 %v2273, %v9023
        %v9025 = vrot.slane %v8196, %v9024
        %v9026 = vsel %vm2278, %v9025, %v9021
        %v9027 = vlaneseq
        %v9028 = vshrl.u32 %v9027, 7
        %v9029 = vsub.s32 %v2170, %v9028
        %v9030 = vrot.slane %v8199, %v9029
        %v9031 = vlaneseq
        %v9032 = vshrl.u32 %v9031, 7
        %v9033 = vsub.s32 %v2175, %v9032
        %v9034 = vrot.slane %v8202, %v9033
        %v9035 = vsel %vm2180, %v9034, %v9030
        %v9036 = vlaneseq
        %v9037 = vshrl.u32 %v9036, 7
        %v9038 = vsub.s32 %v2182, %v9037
        %v9039 = vrot.slane %v8205, %v9038
        %v9040 = vsel %vm2187, %v9039, %v9035
        %v9041 = vlaneseq
        %v9042 = vshrl.u32 %v9041, 7
        %v9043 = vsub.s32 %v2189, %v9042
        %v9044 = vrot.slane %v8208, %v9043
        %v9045 = vsel %vm2194, %v9044, %v9040
        %v9046 = vlaneseq
        %v9047 = vshrl.u32 %v9046, 7
        %v9048 = vsub.s32 %v2196, %v9047
        %v9049 = vrot.slane %v8211, %v9048
        %v9050 = vsel %vm2201, %v9049, %v9045
        %v9051 = vlaneseq
        %v9052 = vshrl.u32 %v9051, 7
        %v9053 = vsub.s32 %v2203, %v9052
        %v9054 = vrot.slane %v8214, %v9053
        %v9055 = vsel %vm2208, %v9054, %v9050
        %v9056 = vlaneseq
        %v9057 = vshrl.u32 %v9056, 7
        %v9058 = vsub.s32 %v2210, %v9057
        %v9059 = vrot.slane %v8217, %v9058
        %v9060 = vsel %vm2215, %v9059, %v9055
        %v9061 = vlaneseq
        %v9062 = vshrl.u32 %v9061, 7
        %v9063 = vsub.s32 %v2217, %v9062
        %v9064 = vrot.slane %v8220, %v9063
        %v9065 = vsel %vm2222, %v9064, %v9060
        %v9066 = vlaneseq
        %v9067 = vshrl.u32 %v9066, 7
        %v9068 = vsub.s32 %v2224, %v9067
        %v9069 = vrot.slane %v8223, %v9068
        %v9070 = vsel %vm2229, %v9069, %v9065
        %v9071 = vlaneseq
        %v9072 = vshrl.u32 %v9071, 7
        %v9073 = vsub.s32 %v2231, %v9072
        %v9074 = vrot.slane %v8226, %v9073
        %v9075 = vsel %vm2236, %v9074, %v9070
        %v9076 = vlaneseq
        %v9077 = vshrl.u32 %v9076, 7
        %v9078 = vsub.s32 %v2238, %v9077
        %v9079 = vrot.slane %v8229, %v9078
        %v9080 = vsel %vm2243, %v9079, %v9075
        %v9081 = vlaneseq
        %v9082 = vshrl.u32 %v9081, 7
        %v9083 = vsub.s32 %v2245, %v9082
        %v9084 = vrot.slane %v8232, %v9083
        %v9085 = vsel %vm2250, %v9084, %v9080
        %v9086 = vlaneseq
        %v9087 = vshrl.u32 %v9086, 7
        %v9088 = vsub.s32 %v2252, %v9087
        %v9089 = vrot.slane %v8235, %v9088
        %v9090 = vsel %vm2257, %v9089, %v9085
        %v9091 = vlaneseq
        %v9092 = vshrl.u32 %v9091, 7
        %v9093 = vsub.s32 %v2259, %v9092
        %v9094 = vrot.slane %v8238, %v9093
        %v9095 = vsel %vm2264, %v9094, %v9090
        %v9096 = vlaneseq
        %v9097 = vshrl.u32 %v9096, 7
        %v9098 = vsub.s32 %v2266, %v9097
        %v9099 = vrot.slane %v8241, %v9098
        %v9100 = vsel %vm2271, %v9099, %v9095
        %v9101 = vlaneseq
        %v9102 = vshrl.u32 %v9101, 7
        %v9103 = vsub.s32 %v2273, %v9102
        %v9104 = vrot.slane %v8244, %v9103
        %v9105 = vsel %vm2278, %v9104, %v9100
        %v9106 = vlaneseq
        %v9107 = vshrl.u32 %v9106, 7
        %v9108 = vsub.s32 %v2170, %v9107
        %v9109 = vrot.slane %v8247, %v9108
        %v9110 = vlaneseq
        %v9111 = vshrl.u32 %v9110, 7
        %v9112 = vsub.s32 %v2175, %v9111
        %v9113 = vrot.slane %v8250, %v9112
        %v9114 = vsel %vm2180, %v9113, %v9109
        %v9115 = vlaneseq
        %v9116 = vshrl.u32 %v9115, 7
        %v9117 = vsub.s32 %v2182, %v9116
        %v9118 = vrot.slane %v8253, %v9117
        %v9119 = vsel %vm2187, %v9118, %v9114
        %v9120 = vlaneseq
        %v9121 = vshrl.u32 %v9120, 7
        %v9122 = vsub.s32 %v2189, %v9121
        %v9123 = vrot.slane %v8256, %v9122
        %v9124 = vsel %vm2194, %v9123, %v9119
        %v9125 = vlaneseq
        %v9126 = vshrl.u32 %v9125, 7
        %v9127 = vsub.s32 %v2196, %v9126
        %v9128 = vrot.slane %v8259, %v9127
        %v9129 = vsel %vm2201, %v9128, %v9124
        %v9130 = vlaneseq
        %v9131 = vshrl.u32 %v9130, 7
        %v9132 = vsub.s32 %v2203, %v9131
        %v9133 = vrot.slane %v8262, %v9132
        %v9134 = vsel %vm2208, %v9133, %v9129
        %v9135 = vlaneseq
        %v9136 = vshrl.u32 %v9135, 7
        %v9137 = vsub.s32 %v2210, %v9136
        %v9138 = vrot.slane %v8265, %v9137
        %v9139 = vsel %vm2215, %v9138, %v9134
        %v9140 = vlaneseq
        %v9141 = vshrl.u32 %v9140, 7
        %v9142 = vsub.s32 %v2217, %v9141
        %v9143 = vrot.slane %v8268, %v9142
        %v9144 = vsel %vm2222, %v9143, %v9139
        %v9145 = vlaneseq
        %v9146 = vshrl.u32 %v9145, 7
        %v9147 = vsub.s32 %v2224, %v9146
        %v9148 = vrot.slane %v8271, %v9147
        %v9149 = vsel %vm2229, %v9148, %v9144
        %v9150 = vlaneseq
        %v9151 = vshrl.u32 %v9150, 7
        %v9152 = vsub.s32 %v2231, %v9151
        %v9153 = vrot.slane %v8274, %v9152
        %v9154 = vsel %vm2236, %v9153, %v9149
        %v9155 = vlaneseq
        %v9156 = vshrl.u32 %v9155, 7
        %v9157 = vsub.s32 %v2238, %v9156
        %v9158 = vrot.slane %v8277, %v9157
        %v9159 = vsel %vm2243, %v9158, %v9154
        %v9160 = vlaneseq
        %v9161 = vshrl.u32 %v9160, 7
        %v9162 = vsub.s32 %v2245, %v9161
        %v9163 = vrot.slane %v8280, %v9162
        %v9164 = vsel %vm2250, %v9163, %v9159
        %v9165 = vlaneseq
        %v9166 = vshrl.u32 %v9165, 7
        %v9167 = vsub.s32 %v2252, %v9166
        %v9168 = vrot.slane %v8283, %v9167
        %v9169 = vsel %vm2257, %v9168, %v9164
        %v9170 = vlaneseq
        %v9171 = vshrl.u32 %v9170, 7
        %v9172 = vsub.s32 %v2259, %v9171
        %v9173 = vrot.slane %v8286, %v9172
        %v9174 = vsel %vm2264, %v9173, %v9169
        %v9175 = vlaneseq
        %v9176 = vshrl.u32 %v9175, 7
        %v9177 = vsub.s32 %v2266, %v9176
        %v9178 = vrot.slane %v8289, %v9177
        %v9179 = vsel %vm2271, %v9178, %v9174
        %v9180 = vlaneseq
        %v9181 = vshrl.u32 %v9180, 7
        %v9182 = vsub.s32 %v2273, %v9181
        %v9183 = vrot.slane %v8292, %v9182
        %v9184 = vsel %vm2278, %v9183, %v9179
        %v9185 = vlaneseq
        %v9186 = vshrl.u32 %v9185, 7
        %v9187 = vsub.s32 %v2170, %v9186
        %v9188 = vrot.slane %v8295, %v9187
        %v9189 = vlaneseq
        %v9190 = vshrl.u32 %v9189, 7
        %v9191 = vsub.s32 %v2175, %v9190
        %v9192 = vrot.slane %v8298, %v9191
        %v9193 = vsel %vm2180, %v9192, %v9188
        %v9194 = vlaneseq
        %v9195 = vshrl.u32 %v9194, 7
        %v9196 = vsub.s32 %v2182, %v9195
        %v9197 = vrot.slane %v8301, %v9196
        %v9198 = vsel %vm2187, %v9197, %v9193
        %v9199 = vlaneseq
        %v9200 = vshrl.u32 %v9199, 7
        %v9201 = vsub.s32 %v2189, %v9200
        %v9202 = vrot.slane %v8304, %v9201
        %v9203 = vsel %vm2194, %v9202, %v9198
        %v9204 = vlaneseq
        %v9205 = vshrl.u32 %v9204, 7
        %v9206 = vsub.s32 %v2196, %v9205
        %v9207 = vrot.slane %v8307, %v9206
        %v9208 = vsel %vm2201, %v9207, %v9203
        %v9209 = vlaneseq
        %v9210 = vshrl.u32 %v9209, 7
        %v9211 = vsub.s32 %v2203, %v9210
        %v9212 = vrot.slane %v8310, %v9211
        %v9213 = vsel %vm2208, %v9212, %v9208
        %v9214 = vlaneseq
        %v9215 = vshrl.u32 %v9214, 7
        %v9216 = vsub.s32 %v2210, %v9215
        %v9217 = vrot.slane %v8313, %v9216
        %v9218 = vsel %vm2215, %v9217, %v9213
        %v9219 = vlaneseq
        %v9220 = vshrl.u32 %v9219, 7
        %v9221 = vsub.s32 %v2217, %v9220
        %v9222 = vrot.slane %v8316, %v9221
        %v9223 = vsel %vm2222, %v9222, %v9218
        %v9224 = vlaneseq
        %v9225 = vshrl.u32 %v9224, 7
        %v9226 = vsub.s32 %v2224, %v9225
        %v9227 = vrot.slane %v8319, %v9226
        %v9228 = vsel %vm2229, %v9227, %v9223
        %v9229 = vlaneseq
        %v9230 = vshrl.u32 %v9229, 7
        %v9231 = vsub.s32 %v2231, %v9230
        %v9232 = vrot.slane %v8322, %v9231
        %v9233 = vsel %vm2236, %v9232, %v9228
        %v9234 = vlaneseq
        %v9235 = vshrl.u32 %v9234, 7
        %v9236 = vsub.s32 %v2238, %v9235
        %v9237 = vrot.slane %v8325, %v9236
        %v9238 = vsel %vm2243, %v9237, %v9233
        %v9239 = vlaneseq
        %v9240 = vshrl.u32 %v9239, 7
        %v9241 = vsub.s32 %v2245, %v9240
        %v9242 = vrot.slane %v8328, %v9241
        %v9243 = vsel %vm2250, %v9242, %v9238
        %v9244 = vlaneseq
        %v9245 = vshrl.u32 %v9244, 7
        %v9246 = vsub.s32 %v2252, %v9245
        %v9247 = vrot.slane %v8331, %v9246
        %v9248 = vsel %vm2257, %v9247, %v9243
        %v9249 = vlaneseq
        %v9250 = vshrl.u32 %v9249, 7
        %v9251 = vsub.s32 %v2259, %v9250
        %v9252 = vrot.slane %v8334, %v9251
        %v9253 = vsel %vm2264, %v9252, %v9248
        %v9254 = vlaneseq
        %v9255 = vshrl.u32 %v9254, 7
        %v9256 = vsub.s32 %v2266, %v9255
        %v9257 = vrot.slane %v8337, %v9256
        %v9258 = vsel %vm2271, %v9257, %v9253
        %v9259 = vlaneseq
        %v9260 = vshrl.u32 %v9259, 7
        %v9261 = vsub.s32 %v2273, %v9260
        %v9262 = vrot.slane %v8340, %v9261
        %v9263 = vsel %vm2278, %v9262, %v9258
        %v9264 = vlaneseq
        %v9265 = vshrl.u32 %v9264, 7
        %v9266 = vsub.s32 %v2170, %v9265
        %v9267 = vrot.slane %v8343, %v9266
        %v9268 = vlaneseq
        %v9269 = vshrl.u32 %v9268, 7
        %v9270 = vsub.s32 %v2175, %v9269
        %v9271 = vrot.slane %v8346, %v9270
        %v9272 = vsel %vm2180, %v9271, %v9267
        %v9273 = vlaneseq
        %v9274 = vshrl.u32 %v9273, 7
        %v9275 = vsub.s32 %v2182, %v9274
        %v9276 = vrot.slane %v8349, %v9275
        %v9277 = vsel %vm2187, %v9276, %v9272
        %v9278 = vlaneseq
        %v9279 = vshrl.u32 %v9278, 7
        %v9280 = vsub.s32 %v2189, %v9279
        %v9281 = vrot.slane %v8352, %v9280
        %v9282 = vsel %vm2194, %v9281, %v9277
        %v9283 = vlaneseq
        %v9284 = vshrl.u32 %v9283, 7
        %v9285 = vsub.s32 %v2196, %v9284
        %v9286 = vrot.slane %v8355, %v9285
        %v9287 = vsel %vm2201, %v9286, %v9282
        %v9288 = vlaneseq
        %v9289 = vshrl.u32 %v9288, 7
        %v9290 = vsub.s32 %v2203, %v9289
        %v9291 = vrot.slane %v8358, %v9290
        %v9292 = vsel %vm2208, %v9291, %v9287
        %v9293 = vlaneseq
        %v9294 = vshrl.u32 %v9293, 7
        %v9295 = vsub.s32 %v2210, %v9294
        %v9296 = vrot.slane %v8361, %v9295
        %v9297 = vsel %vm2215, %v9296, %v9292
        %v9298 = vlaneseq
        %v9299 = vshrl.u32 %v9298, 7
        %v9300 = vsub.s32 %v2217, %v9299
        %v9301 = vrot.slane %v8364, %v9300
        %v9302 = vsel %vm2222, %v9301, %v9297
        %v9303 = vlaneseq
        %v9304 = vshrl.u32 %v9303, 7
        %v9305 = vsub.s32 %v2224, %v9304
        %v9306 = vrot.slane %v8367, %v9305
        %v9307 = vsel %vm2229, %v9306, %v9302
        %v9308 = vlaneseq
        %v9309 = vshrl.u32 %v9308, 7
        %v9310 = vsub.s32 %v2231, %v9309
        %v9311 = vrot.slane %v8370, %v9310
        %v9312 = vsel %vm2236, %v9311, %v9307
        %v9313 = vlaneseq
        %v9314 = vshrl.u32 %v9313, 7
        %v9315 = vsub.s32 %v2238, %v9314
        %v9316 = vrot.slane %v8373, %v9315
        %v9317 = vsel %vm2243, %v9316, %v9312
        %v9318 = vlaneseq
        %v9319 = vshrl.u32 %v9318, 7
        %v9320 = vsub.s32 %v2245, %v9319
        %v9321 = vrot.slane %v8376, %v9320
        %v9322 = vsel %vm2250, %v9321, %v9317
        %v9323 = vlaneseq
        %v9324 = vshrl.u32 %v9323, 7
        %v9325 = vsub.s32 %v2252, %v9324
        %v9326 = vrot.slane %v8379, %v9325
        %v9327 = vsel %vm2257, %v9326, %v9322
        %v9328 = vlaneseq
        %v9329 = vshrl.u32 %v9328, 7
        %v9330 = vsub.s32 %v2259, %v9329
        %v9331 = vrot.slane %v8382, %v9330
        %v9332 = vsel %vm2264, %v9331, %v9327
        %v9333 = vlaneseq
        %v9334 = vshrl.u32 %v9333, 7
        %v9335 = vsub.s32 %v2266, %v9334
        %v9336 = vrot.slane %v8385, %v9335
        %v9337 = vsel %vm2271, %v9336, %v9332
        %v9338 = vlaneseq
        %v9339 = vshrl.u32 %v9338, 7
        %v9340 = vsub.s32 %v2273, %v9339
        %v9341 = vrot.slane %v8388, %v9340
        %v9342 = vsel %vm2278, %v9341, %v9337
        %v9343 = vlaneseq
        %v9344 = vshrl.u32 %v9343, 7
        %v9345 = vsub.s32 %v2170, %v9344
        %v9346 = vrot.slane %v8391, %v9345
        %v9347 = vlaneseq
        %v9348 = vshrl.u32 %v9347, 7
        %v9349 = vsub.s32 %v2175, %v9348
        %v9350 = vrot.slane %v8394, %v9349
        %v9351 = vsel %vm2180, %v9350, %v9346
        %v9352 = vlaneseq
        %v9353 = vshrl.u32 %v9352, 7
        %v9354 = vsub.s32 %v2182, %v9353
        %v9355 = vrot.slane %v8397, %v9354
        %v9356 = vsel %vm2187, %v9355, %v9351
        %v9357 = vlaneseq
        %v9358 = vshrl.u32 %v9357, 7
        %v9359 = vsub.s32 %v2189, %v9358
        %v9360 = vrot.slane %v8400, %v9359
        %v9361 = vsel %vm2194, %v9360, %v9356
        %v9362 = vlaneseq
        %v9363 = vshrl.u32 %v9362, 7
        %v9364 = vsub.s32 %v2196, %v9363
        %v9365 = vrot.slane %v8403, %v9364
        %v9366 = vsel %vm2201, %v9365, %v9361
        %v9367 = vlaneseq
        %v9368 = vshrl.u32 %v9367, 7
        %v9369 = vsub.s32 %v2203, %v9368
        %v9370 = vrot.slane %v8406, %v9369
        %v9371 = vsel %vm2208, %v9370, %v9366
        %v9372 = vlaneseq
        %v9373 = vshrl.u32 %v9372, 7
        %v9374 = vsub.s32 %v2210, %v9373
        %v9375 = vrot.slane %v8409, %v9374
        %v9376 = vsel %vm2215, %v9375, %v9371
        %v9377 = vlaneseq
        %v9378 = vshrl.u32 %v9377, 7
        %v9379 = vsub.s32 %v2217, %v9378
        %v9380 = vrot.slane %v8412, %v9379
        %v9381 = vsel %vm2222, %v9380, %v9376
        %v9382 = vlaneseq
        %v9383 = vshrl.u32 %v9382, 7
        %v9384 = vsub.s32 %v2224, %v9383
        %v9385 = vrot.slane %v8415, %v9384
        %v9386 = vsel %vm2229, %v9385, %v9381
        %v9387 = vlaneseq
        %v9388 = vshrl.u32 %v9387, 7
        %v9389 = vsub.s32 %v2231, %v9388
        %v9390 = vrot.slane %v8418, %v9389
        %v9391 = vsel %vm2236, %v9390, %v9386
        %v9392 = vlaneseq
        %v9393 = vshrl.u32 %v9392, 7
        %v9394 = vsub.s32 %v2238, %v9393
        %v9395 = vrot.slane %v8421, %v9394
        %v9396 = vsel %vm2243, %v9395, %v9391
        %v9397 = vlaneseq
        %v9398 = vshrl.u32 %v9397, 7
        %v9399 = vsub.s32 %v2245, %v9398
        %v9400 = vrot.slane %v8424, %v9399
        %v9401 = vsel %vm2250, %v9400, %v9396
        %v9402 = vlaneseq
        %v9403 = vshrl.u32 %v9402, 7
        %v9404 = vsub.s32 %v2252, %v9403
        %v9405 = vrot.slane %v8427, %v9404
        %v9406 = vsel %vm2257, %v9405, %v9401
        %v9407 = vlaneseq
        %v9408 = vshrl.u32 %v9407, 7
        %v9409 = vsub.s32 %v2259, %v9408
        %v9410 = vrot.slane %v8430, %v9409
        %v9411 = vsel %vm2264, %v9410, %v9406
        %v9412 = vlaneseq
        %v9413 = vshrl.u32 %v9412, 7
        %v9414 = vsub.s32 %v2266, %v9413
        %v9415 = vrot.slane %v8433, %v9414
        %v9416 = vsel %vm2271, %v9415, %v9411
        %v9417 = vlaneseq
        %v9418 = vshrl.u32 %v9417, 7
        %v9419 = vsub.s32 %v2273, %v9418
        %v9420 = vrot.slane %v8436, %v9419
        %v9421 = vsel %vm2278, %v9420, %v9416
        %v9422 = vlaneseq
        %v9423 = vshrl.u32 %v9422, 7
        %v9424 = vsub.s32 %v2170, %v9423
        %v9425 = vrot.slane %v8439, %v9424
        %v9426 = vlaneseq
        %v9427 = vshrl.u32 %v9426, 7
        %v9428 = vsub.s32 %v2175, %v9427
        %v9429 = vrot.slane %v8442, %v9428
        %v9430 = vsel %vm2180, %v9429, %v9425
        %v9431 = vlaneseq
        %v9432 = vshrl.u32 %v9431, 7
        %v9433 = vsub.s32 %v2182, %v9432
        %v9434 = vrot.slane %v8445, %v9433
        %v9435 = vsel %vm2187, %v9434, %v9430
        %v9436 = vlaneseq
        %v9437 = vshrl.u32 %v9436, 7
        %v9438 = vsub.s32 %v2189, %v9437
        %v9439 = vrot.slane %v8448, %v9438
        %v9440 = vsel %vm2194, %v9439, %v9435
        %v9441 = vlaneseq
        %v9442 = vshrl.u32 %v9441, 7
        %v9443 = vsub.s32 %v2196, %v9442
        %v9444 = vrot.slane %v8451, %v9443
        %v9445 = vsel %vm2201, %v9444, %v9440
        %v9446 = vlaneseq
        %v9447 = vshrl.u32 %v9446, 7
        %v9448 = vsub.s32 %v2203, %v9447
        %v9449 = vrot.slane %v8454, %v9448
        %v9450 = vsel %vm2208, %v9449, %v9445
        %v9451 = vlaneseq
        %v9452 = vshrl.u32 %v9451, 7
        %v9453 = vsub.s32 %v2210, %v9452
        %v9454 = vrot.slane %v8457, %v9453
        %v9455 = vsel %vm2215, %v9454, %v9450
        %v9456 = vlaneseq
        %v9457 = vshrl.u32 %v9456, 7
        %v9458 = vsub.s32 %v2217, %v9457
        %v9459 = vrot.slane %v8460, %v9458
        %v9460 = vsel %vm2222, %v9459, %v9455
        %v9461 = vlaneseq
        %v9462 = vshrl.u32 %v9461, 7
        %v9463 = vsub.s32 %v2224, %v9462
        %v9464 = vrot.slane %v8463, %v9463
        %v9465 = vsel %vm2229, %v9464, %v9460
        %v9466 = vlaneseq
        %v9467 = vshrl.u32 %v9466, 7
        %v9468 = vsub.s32 %v2231, %v9467
        %v9469 = vrot.slane %v8466, %v9468
        %v9470 = vsel %vm2236, %v9469, %v9465
        %v9471 = vlaneseq
        %v9472 = vshrl.u32 %v9471, 7
        %v9473 = vsub.s32 %v2238, %v9472
        %v9474 = vrot.slane %v8469, %v9473
        %v9475 = vsel %vm2243, %v9474, %v9470
        %v9476 = vlaneseq
        %v9477 = vshrl.u32 %v9476, 7
        %v9478 = vsub.s32 %v2245, %v9477
        %v9479 = vrot.slane %v8472, %v9478
        %v9480 = vsel %vm2250, %v9479, %v9475
        %v9481 = vlaneseq
        %v9482 = vshrl.u32 %v9481, 7
        %v9483 = vsub.s32 %v2252, %v9482
        %v9484 = vrot.slane %v8475, %v9483
        %v9485 = vsel %vm2257, %v9484, %v9480
        %v9486 = vlaneseq
        %v9487 = vshrl.u32 %v9486, 7
        %v9488 = vsub.s32 %v2259, %v9487
        %v9489 = vrot.slane %v8478, %v9488
        %v9490 = vsel %vm2264, %v9489, %v9485
        %v9491 = vlaneseq
        %v9492 = vshrl.u32 %v9491, 7
        %v9493 = vsub.s32 %v2266, %v9492
        %v9494 = vrot.slane %v8481, %v9493
        %v9495 = vsel %vm2271, %v9494, %v9490
        %v9496 = vlaneseq
        %v9497 = vshrl.u32 %v9496, 7
        %v9498 = vsub.s32 %v2273, %v9497
        %v9499 = vrot.slane %v8484, %v9498
        %v9500 = vsel %vm2278, %v9499, %v9495
        %v9501 = vlaneseq
        %v9502 = vshrl.u32 %v9501, 7
        %v9503 = vsub.s32 %v2170, %v9502
        %v9504 = vrot.slane %v8487, %v9503
        %v9505 = vlaneseq
        %v9506 = vshrl.u32 %v9505, 7
        %v9507 = vsub.s32 %v2175, %v9506
        %v9508 = vrot.slane %v8490, %v9507
        %v9509 = vsel %vm2180, %v9508, %v9504
        %v9510 = vlaneseq
        %v9511 = vshrl.u32 %v9510, 7
        %v9512 = vsub.s32 %v2182, %v9511
        %v9513 = vrot.slane %v8493, %v9512
        %v9514 = vsel %vm2187, %v9513, %v9509
        %v9515 = vlaneseq
        %v9516 = vshrl.u32 %v9515, 7
        %v9517 = vsub.s32 %v2189, %v9516
        %v9518 = vrot.slane %v8496, %v9517
        %v9519 = vsel %vm2194, %v9518, %v9514
        %v9520 = vlaneseq
        %v9521 = vshrl.u32 %v9520, 7
        %v9522 = vsub.s32 %v2196, %v9521
        %v9523 = vrot.slane %v8499, %v9522
        %v9524 = vsel %vm2201, %v9523, %v9519
        %v9525 = vlaneseq
        %v9526 = vshrl.u32 %v9525, 7
        %v9527 = vsub.s32 %v2203, %v9526
        %v9528 = vrot.slane %v8502, %v9527
        %v9529 = vsel %vm2208, %v9528, %v9524
        %v9530 = vlaneseq
        %v9531 = vshrl.u32 %v9530, 7
        %v9532 = vsub.s32 %v2210, %v9531
        %v9533 = vrot.slane %v8505, %v9532
        %v9534 = vsel %vm2215, %v9533, %v9529
        %v9535 = vlaneseq
        %v9536 = vshrl.u32 %v9535, 7
        %v9537 = vsub.s32 %v2217, %v9536
        %v9538 = vrot.slane %v8508, %v9537
        %v9539 = vsel %vm2222, %v9538, %v9534
        %v9540 = vlaneseq
        %v9541 = vshrl.u32 %v9540, 7
        %v9542 = vsub.s32 %v2224, %v9541
        %v9543 = vrot.slane %v8511, %v9542
        %v9544 = vsel %vm2229, %v9543, %v9539
        %v9545 = vlaneseq
        %v9546 = vshrl.u32 %v9545, 7
        %v9547 = vsub.s32 %v2231, %v9546
        %v9548 = vrot.slane %v8514, %v9547
        %v9549 = vsel %vm2236, %v9548, %v9544
        %v9550 = vlaneseq
        %v9551 = vshrl.u32 %v9550, 7
        %v9552 = vsub.s32 %v2238, %v9551
        %v9553 = vrot.slane %v8517, %v9552
        %v9554 = vsel %vm2243, %v9553, %v9549
        %v9555 = vlaneseq
        %v9556 = vshrl.u32 %v9555, 7
        %v9557 = vsub.s32 %v2245, %v9556
        %v9558 = vrot.slane %v8520, %v9557
        %v9559 = vsel %vm2250, %v9558, %v9554
        %v9560 = vlaneseq
        %v9561 = vshrl.u32 %v9560, 7
        %v9562 = vsub.s32 %v2252, %v9561
        %v9563 = vrot.slane %v8523, %v9562
        %v9564 = vsel %vm2257, %v9563, %v9559
        %v9565 = vlaneseq
        %v9566 = vshrl.u32 %v9565, 7
        %v9567 = vsub.s32 %v2259, %v9566
        %v9568 = vrot.slane %v8526, %v9567
        %v9569 = vsel %vm2264, %v9568, %v9564
        %v9570 = vlaneseq
        %v9571 = vshrl.u32 %v9570, 7
        %v9572 = vsub.s32 %v2266, %v9571
        %v9573 = vrot.slane %v8529, %v9572
        %v9574 = vsel %vm2271, %v9573, %v9569
        %v9575 = vlaneseq
        %v9576 = vshrl.u32 %v9575, 7
        %v9577 = vsub.s32 %v2273, %v9576
        %v9578 = vrot.slane %v8532, %v9577
        %v9579 = vsel %vm2278, %v9578, %v9574
        %v9580 = vlaneseq
        %v9581 = vshrl.u32 %v9580, 7
        %v9582 = vsub.s32 %v2170, %v9581
        %v9583 = vrot.slane %v8535, %v9582
        %v9584 = vlaneseq
        %v9585 = vshrl.u32 %v9584, 7
        %v9586 = vsub.s32 %v2175, %v9585
        %v9587 = vrot.slane %v8538, %v9586
        %v9588 = vsel %vm2180, %v9587, %v9583
        %v9589 = vlaneseq
        %v9590 = vshrl.u32 %v9589, 7
        %v9591 = vsub.s32 %v2182, %v9590
        %v9592 = vrot.slane %v8541, %v9591
        %v9593 = vsel %vm2187, %v9592, %v9588
        %v9594 = vlaneseq
        %v9595 = vshrl.u32 %v9594, 7
        %v9596 = vsub.s32 %v2189, %v9595
        %v9597 = vrot.slane %v8544, %v9596
        %v9598 = vsel %vm2194, %v9597, %v9593
        %v9599 = vlaneseq
        %v9600 = vshrl.u32 %v9599, 7
        %v9601 = vsub.s32 %v2196, %v9600
        %v9602 = vrot.slane %v8547, %v9601
        %v9603 = vsel %vm2201, %v9602, %v9598
        %v9604 = vlaneseq
        %v9605 = vshrl.u32 %v9604, 7
        %v9606 = vsub.s32 %v2203, %v9605
        %v9607 = vrot.slane %v8550, %v9606
        %v9608 = vsel %vm2208, %v9607, %v9603
        %v9609 = vlaneseq
        %v9610 = vshrl.u32 %v9609, 7
        %v9611 = vsub.s32 %v2210, %v9610
        %v9612 = vrot.slane %v8553, %v9611
        %v9613 = vsel %vm2215, %v9612, %v9608
        %v9614 = vlaneseq
        %v9615 = vshrl.u32 %v9614, 7
        %v9616 = vsub.s32 %v2217, %v9615
        %v9617 = vrot.slane %v8556, %v9616
        %v9618 = vsel %vm2222, %v9617, %v9613
        %v9619 = vlaneseq
        %v9620 = vshrl.u32 %v9619, 7
        %v9621 = vsub.s32 %v2224, %v9620
        %v9622 = vrot.slane %v8559, %v9621
        %v9623 = vsel %vm2229, %v9622, %v9618
        %v9624 = vlaneseq
        %v9625 = vshrl.u32 %v9624, 7
        %v9626 = vsub.s32 %v2231, %v9625
        %v9627 = vrot.slane %v8562, %v9626
        %v9628 = vsel %vm2236, %v9627, %v9623
        %v9629 = vlaneseq
        %v9630 = vshrl.u32 %v9629, 7
        %v9631 = vsub.s32 %v2238, %v9630
        %v9632 = vrot.slane %v8565, %v9631
        %v9633 = vsel %vm2243, %v9632, %v9628
        %v9634 = vlaneseq
        %v9635 = vshrl.u32 %v9634, 7
        %v9636 = vsub.s32 %v2245, %v9635
        %v9637 = vrot.slane %v8568, %v9636
        %v9638 = vsel %vm2250, %v9637, %v9633
        %v9639 = vlaneseq
        %v9640 = vshrl.u32 %v9639, 7
        %v9641 = vsub.s32 %v2252, %v9640
        %v9642 = vrot.slane %v8571, %v9641
        %v9643 = vsel %vm2257, %v9642, %v9638
        %v9644 = vlaneseq
        %v9645 = vshrl.u32 %v9644, 7
        %v9646 = vsub.s32 %v2259, %v9645
        %v9647 = vrot.slane %v8574, %v9646
        %v9648 = vsel %vm2264, %v9647, %v9643
        %v9649 = vlaneseq
        %v9650 = vshrl.u32 %v9649, 7
        %v9651 = vsub.s32 %v2266, %v9650
        %v9652 = vrot.slane %v8577, %v9651
        %v9653 = vsel %vm2271, %v9652, %v9648
        %v9654 = vlaneseq
        %v9655 = vshrl.u32 %v9654, 7
        %v9656 = vsub.s32 %v2273, %v9655
        %v9657 = vrot.slane %v8580, %v9656
        %v9658 = vsel %vm2278, %v9657, %v9653
        %v9659 = vlaneseq
        %v9660 = vshrl.u32 %v9659, 7
        %v9661 = vsub.s32 %v2170, %v9660
        %v9662 = vrot.slane %v8583, %v9661
        %v9663 = vlaneseq
        %v9664 = vshrl.u32 %v9663, 7
        %v9665 = vsub.s32 %v2175, %v9664
        %v9666 = vrot.slane %v8586, %v9665
        %v9667 = vsel %vm2180, %v9666, %v9662
        %v9668 = vlaneseq
        %v9669 = vshrl.u32 %v9668, 7
        %v9670 = vsub.s32 %v2182, %v9669
        %v9671 = vrot.slane %v8589, %v9670
        %v9672 = vsel %vm2187, %v9671, %v9667
        %v9673 = vlaneseq
        %v9674 = vshrl.u32 %v9673, 7
        %v9675 = vsub.s32 %v2189, %v9674
        %v9676 = vrot.slane %v8592, %v9675
        %v9677 = vsel %vm2194, %v9676, %v9672
        %v9678 = vlaneseq
        %v9679 = vshrl.u32 %v9678, 7
        %v9680 = vsub.s32 %v2196, %v9679
        %v9681 = vrot.slane %v8595, %v9680
        %v9682 = vsel %vm2201, %v9681, %v9677
        %v9683 = vlaneseq
        %v9684 = vshrl.u32 %v9683, 7
        %v9685 = vsub.s32 %v2203, %v9684
        %v9686 = vrot.slane %v8598, %v9685
        %v9687 = vsel %vm2208, %v9686, %v9682
        %v9688 = vlaneseq
        %v9689 = vshrl.u32 %v9688, 7
        %v9690 = vsub.s32 %v2210, %v9689
        %v9691 = vrot.slane %v8601, %v9690
        %v9692 = vsel %vm2215, %v9691, %v9687
        %v9693 = vlaneseq
        %v9694 = vshrl.u32 %v9693, 7
        %v9695 = vsub.s32 %v2217, %v9694
        %v9696 = vrot.slane %v8604, %v9695
        %v9697 = vsel %vm2222, %v9696, %v9692
        %v9698 = vlaneseq
        %v9699 = vshrl.u32 %v9698, 7
        %v9700 = vsub.s32 %v2224, %v9699
        %v9701 = vrot.slane %v8607, %v9700
        %v9702 = vsel %vm2229, %v9701, %v9697
        %v9703 = vlaneseq
        %v9704 = vshrl.u32 %v9703, 7
        %v9705 = vsub.s32 %v2231, %v9704
        %v9706 = vrot.slane %v8610, %v9705
        %v9707 = vsel %vm2236, %v9706, %v9702
        %v9708 = vlaneseq
        %v9709 = vshrl.u32 %v9708, 7
        %v9710 = vsub.s32 %v2238, %v9709
        %v9711 = vrot.slane %v8613, %v9710
        %v9712 = vsel %vm2243, %v9711, %v9707
        %v9713 = vlaneseq
        %v9714 = vshrl.u32 %v9713, 7
        %v9715 = vsub.s32 %v2245, %v9714
        %v9716 = vrot.slane %v8616, %v9715
        %v9717 = vsel %vm2250, %v9716, %v9712
        %v9718 = vlaneseq
        %v9719 = vshrl.u32 %v9718, 7
        %v9720 = vsub.s32 %v2252, %v9719
        %v9721 = vrot.slane %v8619, %v9720
        %v9722 = vsel %vm2257, %v9721, %v9717
        %v9723 = vlaneseq
        %v9724 = vshrl.u32 %v9723, 7
        %v9725 = vsub.s32 %v2259, %v9724
        %v9726 = vrot.slane %v8622, %v9725
        %v9727 = vsel %vm2264, %v9726, %v9722
        %v9728 = vlaneseq
        %v9729 = vshrl.u32 %v9728, 7
        %v9730 = vsub.s32 %v2266, %v9729
        %v9731 = vrot.slane %v8625, %v9730
        %v9732 = vsel %vm2271, %v9731, %v9727
        %v9733 = vlaneseq
        %v9734 = vshrl.u32 %v9733, 7
        %v9735 = vsub.s32 %v2273, %v9734
        %v9736 = vrot.slane %v8628, %v9735
        %v9737 = vsel %vm2278, %v9736, %v9732
        %v9738 = vlaneseq
        %v9739 = vshrl.u32 %v9738, 7
        %v9740 = vsub.s32 %v2170, %v9739
        %v9741 = vrot.slane %v8631, %v9740
        %v9742 = vlaneseq
        %v9743 = vshrl.u32 %v9742, 7
        %v9744 = vsub.s32 %v2175, %v9743
        %v9745 = vrot.slane %v8634, %v9744
        %v9746 = vsel %vm2180, %v9745, %v9741
        %v9747 = vlaneseq
        %v9748 = vshrl.u32 %v9747, 7
        %v9749 = vsub.s32 %v2182, %v9748
        %v9750 = vrot.slane %v8637, %v9749
        %v9751 = vsel %vm2187, %v9750, %v9746
        %v9752 = vlaneseq
        %v9753 = vshrl.u32 %v9752, 7
        %v9754 = vsub.s32 %v2189, %v9753
        %v9755 = vrot.slane %v8640, %v9754
        %v9756 = vsel %vm2194, %v9755, %v9751
        %v9757 = vlaneseq
        %v9758 = vshrl.u32 %v9757, 7
        %v9759 = vsub.s32 %v2196, %v9758
        %v9760 = vrot.slane %v8643, %v9759
        %v9761 = vsel %vm2201, %v9760, %v9756
        %v9762 = vlaneseq
        %v9763 = vshrl.u32 %v9762, 7
        %v9764 = vsub.s32 %v2203, %v9763
        %v9765 = vrot.slane %v8646, %v9764
        %v9766 = vsel %vm2208, %v9765, %v9761
        %v9767 = vlaneseq
        %v9768 = vshrl.u32 %v9767, 7
        %v9769 = vsub.s32 %v2210, %v9768
        %v9770 = vrot.slane %v8649, %v9769
        %v9771 = vsel %vm2215, %v9770, %v9766
        %v9772 = vlaneseq
        %v9773 = vshrl.u32 %v9772, 7
        %v9774 = vsub.s32 %v2217, %v9773
        %v9775 = vrot.slane %v8652, %v9774
        %v9776 = vsel %vm2222, %v9775, %v9771
        %v9777 = vlaneseq
        %v9778 = vshrl.u32 %v9777, 7
        %v9779 = vsub.s32 %v2224, %v9778
        %v9780 = vrot.slane %v8655, %v9779
        %v9781 = vsel %vm2229, %v9780, %v9776
        %v9782 = vlaneseq
        %v9783 = vshrl.u32 %v9782, 7
        %v9784 = vsub.s32 %v2231, %v9783
        %v9785 = vrot.slane %v8658, %v9784
        %v9786 = vsel %vm2236, %v9785, %v9781
        %v9787 = vlaneseq
        %v9788 = vshrl.u32 %v9787, 7
        %v9789 = vsub.s32 %v2238, %v9788
        %v9790 = vrot.slane %v8661, %v9789
        %v9791 = vsel %vm2243, %v9790, %v9786
        %v9792 = vlaneseq
        %v9793 = vshrl.u32 %v9792, 7
        %v9794 = vsub.s32 %v2245, %v9793
        %v9795 = vrot.slane %v8664, %v9794
        %v9796 = vsel %vm2250, %v9795, %v9791
        %v9797 = vlaneseq
        %v9798 = vshrl.u32 %v9797, 7
        %v9799 = vsub.s32 %v2252, %v9798
        %v9800 = vrot.slane %v8667, %v9799
        %v9801 = vsel %vm2257, %v9800, %v9796
        %v9802 = vlaneseq
        %v9803 = vshrl.u32 %v9802, 7
        %v9804 = vsub.s32 %v2259, %v9803
        %v9805 = vrot.slane %v8670, %v9804
        %v9806 = vsel %vm2264, %v9805, %v9801
        %v9807 = vlaneseq
        %v9808 = vshrl.u32 %v9807, 7
        %v9809 = vsub.s32 %v2266, %v9808
        %v9810 = vrot.slane %v8673, %v9809
        %v9811 = vsel %vm2271, %v9810, %v9806
        %v9812 = vlaneseq
        %v9813 = vshrl.u32 %v9812, 7
        %v9814 = vsub.s32 %v2273, %v9813
        %v9815 = vrot.slane %v8676, %v9814
        %v9816 = vsel %vm2278, %v9815, %v9811
        %v9817 = vlaneseq
        %v9818 = vshrl.u32 %v9817, 7
        %v9819 = vsub.s32 %v2170, %v9818
        %v9820 = vrot.slane %v8679, %v9819
        %v9821 = vlaneseq
        %v9822 = vshrl.u32 %v9821, 7
        %v9823 = vsub.s32 %v2175, %v9822
        %v9824 = vrot.slane %v8682, %v9823
        %v9825 = vsel %vm2180, %v9824, %v9820
        %v9826 = vlaneseq
        %v9827 = vshrl.u32 %v9826, 7
        %v9828 = vsub.s32 %v2182, %v9827
        %v9829 = vrot.slane %v8685, %v9828
        %v9830 = vsel %vm2187, %v9829, %v9825
        %v9831 = vlaneseq
        %v9832 = vshrl.u32 %v9831, 7
        %v9833 = vsub.s32 %v2189, %v9832
        %v9834 = vrot.slane %v8688, %v9833
        %v9835 = vsel %vm2194, %v9834, %v9830
        %v9836 = vlaneseq
        %v9837 = vshrl.u32 %v9836, 7
        %v9838 = vsub.s32 %v2196, %v9837
        %v9839 = vrot.slane %v8691, %v9838
        %v9840 = vsel %vm2201, %v9839, %v9835
        %v9841 = vlaneseq
        %v9842 = vshrl.u32 %v9841, 7
        %v9843 = vsub.s32 %v2203, %v9842
        %v9844 = vrot.slane %v8694, %v9843
        %v9845 = vsel %vm2208, %v9844, %v9840
        %v9846 = vlaneseq
        %v9847 = vshrl.u32 %v9846, 7
        %v9848 = vsub.s32 %v2210, %v9847
        %v9849 = vrot.slane %v8697, %v9848
        %v9850 = vsel %vm2215, %v9849, %v9845
        %v9851 = vlaneseq
        %v9852 = vshrl.u32 %v9851, 7
        %v9853 = vsub.s32 %v2217, %v9852
        %v9854 = vrot.slane %v8700, %v9853
        %v9855 = vsel %vm2222, %v9854, %v9850
        %v9856 = vlaneseq
        %v9857 = vshrl.u32 %v9856, 7
        %v9858 = vsub.s32 %v2224, %v9857
        %v9859 = vrot.slane %v8703, %v9858
        %v9860 = vsel %vm2229, %v9859, %v9855
        %v9861 = vlaneseq
        %v9862 = vshrl.u32 %v9861, 7
        %v9863 = vsub.s32 %v2231, %v9862
        %v9864 = vrot.slane %v8706, %v9863
        %v9865 = vsel %vm2236, %v9864, %v9860
        %v9866 = vlaneseq
        %v9867 = vshrl.u32 %v9866, 7
        %v9868 = vsub.s32 %v2238, %v9867
        %v9869 = vrot.slane %v8709, %v9868
        %v9870 = vsel %vm2243, %v9869, %v9865
        %v9871 = vlaneseq
        %v9872 = vshrl.u32 %v9871, 7
        %v9873 = vsub.s32 %v2245, %v9872
        %v9874 = vrot.slane %v8712, %v9873
        %v9875 = vsel %vm2250, %v9874, %v9870
        %v9876 = vlaneseq
        %v9877 = vshrl.u32 %v9876, 7
        %v9878 = vsub.s32 %v2252, %v9877
        %v9879 = vrot.slane %v8715, %v9878
        %v9880 = vsel %vm2257, %v9879, %v9875
        %v9881 = vlaneseq
        %v9882 = vshrl.u32 %v9881, 7
        %v9883 = vsub.s32 %v2259, %v9882
        %v9884 = vrot.slane %v8718, %v9883
        %v9885 = vsel %vm2264, %v9884, %v9880
        %v9886 = vlaneseq
        %v9887 = vshrl.u32 %v9886, 7
        %v9888 = vsub.s32 %v2266, %v9887
        %v9889 = vrot.slane %v8721, %v9888
        %v9890 = vsel %vm2271, %v9889, %v9885
        %v9891 = vlaneseq
        %v9892 = vshrl.u32 %v9891, 7
        %v9893 = vsub.s32 %v2273, %v9892
        %v9894 = vrot.slane %v8724, %v9893
        %v9895 = vsel %vm2278, %v9894, %v9890
        %v9896 = vlaneseq
        %v9897 = vshrl.u32 %v9896, 7
        %v9898 = vsub.s32 %v2170, %v9897
        %v9899 = vrot.slane %v8727, %v9898
        %v9900 = vlaneseq
        %v9901 = vshrl.u32 %v9900, 7
        %v9902 = vsub.s32 %v2175, %v9901
        %v9903 = vrot.slane %v8730, %v9902
        %v9904 = vsel %vm2180, %v9903, %v9899
        %v9905 = vlaneseq
        %v9906 = vshrl.u32 %v9905, 7
        %v9907 = vsub.s32 %v2182, %v9906
        %v9908 = vrot.slane %v8733, %v9907
        %v9909 = vsel %vm2187, %v9908, %v9904
        %v9910 = vlaneseq
        %v9911 = vshrl.u32 %v9910, 7
        %v9912 = vsub.s32 %v2189, %v9911
        %v9913 = vrot.slane %v8736, %v9912
        %v9914 = vsel %vm2194, %v9913, %v9909
        %v9915 = vlaneseq
        %v9916 = vshrl.u32 %v9915, 7
        %v9917 = vsub.s32 %v2196, %v9916
        %v9918 = vrot.slane %v8739, %v9917
        %v9919 = vsel %vm2201, %v9918, %v9914
        %v9920 = vlaneseq
        %v9921 = vshrl.u32 %v9920, 7
        %v9922 = vsub.s32 %v2203, %v9921
        %v9923 = vrot.slane %v8742, %v9922
        %v9924 = vsel %vm2208, %v9923, %v9919
        %v9925 = vlaneseq
        %v9926 = vshrl.u32 %v9925, 7
        %v9927 = vsub.s32 %v2210, %v9926
        %v9928 = vrot.slane %v8745, %v9927
        %v9929 = vsel %vm2215, %v9928, %v9924
        %v9930 = vlaneseq
        %v9931 = vshrl.u32 %v9930, 7
        %v9932 = vsub.s32 %v2217, %v9931
        %v9933 = vrot.slane %v8748, %v9932
        %v9934 = vsel %vm2222, %v9933, %v9929
        %v9935 = vlaneseq
        %v9936 = vshrl.u32 %v9935, 7
        %v9937 = vsub.s32 %v2224, %v9936
        %v9938 = vrot.slane %v8751, %v9937
        %v9939 = vsel %vm2229, %v9938, %v9934
        %v9940 = vlaneseq
        %v9941 = vshrl.u32 %v9940, 7
        %v9942 = vsub.s32 %v2231, %v9941
        %v9943 = vrot.slane %v8754, %v9942
        %v9944 = vsel %vm2236, %v9943, %v9939
        %v9945 = vlaneseq
        %v9946 = vshrl.u32 %v9945, 7
        %v9947 = vsub.s32 %v2238, %v9946
        %v9948 = vrot.slane %v8757, %v9947
        %v9949 = vsel %vm2243, %v9948, %v9944
        %v9950 = vlaneseq
        %v9951 = vshrl.u32 %v9950, 7
        %v9952 = vsub.s32 %v2245, %v9951
        %v9953 = vrot.slane %v8760, %v9952
        %v9954 = vsel %vm2250, %v9953, %v9949
        %v9955 = vlaneseq
        %v9956 = vshrl.u32 %v9955, 7
        %v9957 = vsub.s32 %v2252, %v9956
        %v9958 = vrot.slane %v8763, %v9957
        %v9959 = vsel %vm2257, %v9958, %v9954
        %v9960 = vlaneseq
        %v9961 = vshrl.u32 %v9960, 7
        %v9962 = vsub.s32 %v2259, %v9961
        %v9963 = vrot.slane %v8766, %v9962
        %v9964 = vsel %vm2264, %v9963, %v9959
        %v9965 = vlaneseq
        %v9966 = vshrl.u32 %v9965, 7
        %v9967 = vsub.s32 %v2266, %v9966
        %v9968 = vrot.slane %v8769, %v9967
        %v9969 = vsel %vm2271, %v9968, %v9964
        %v9970 = vlaneseq
        %v9971 = vshrl.u32 %v9970, 7
        %v9972 = vsub.s32 %v2273, %v9971
        %v9973 = vrot.slane %v8772, %v9972
        %v9974 = vsel %vm2278, %v9973, %v9969
        %v9975 = vlaneseq
        %v9976 = vshrl.u32 %v9975, 7
        %v9977 = vsub.s32 %v2170, %v9976
        %v9978 = vrot.slane %v8775, %v9977
        %v9979 = vlaneseq
        %v9980 = vshrl.u32 %v9979, 7
        %v9981 = vsub.s32 %v2175, %v9980
        %v9982 = vrot.slane %v8778, %v9981
        %v9983 = vsel %vm2180, %v9982, %v9978
        %v9984 = vlaneseq
        %v9985 = vshrl.u32 %v9984, 7
        %v9986 = vsub.s32 %v2182, %v9985
        %v9987 = vrot.slane %v8781, %v9986
        %v9988 = vsel %vm2187, %v9987, %v9983
        %v9989 = vlaneseq
        %v9990 = vshrl.u32 %v9989, 7
        %v9991 = vsub.s32 %v2189, %v9990
        %v9992 = vrot.slane %v8784, %v9991
        %v9993 = vsel %vm2194, %v9992, %v9988
        %v9994 = vlaneseq
        %v9995 = vshrl.u32 %v9994, 7
        %v9996 = vsub.s32 %v2196, %v9995
        %v9997 = vrot.slane %v8787, %v9996
        %v9998 = vsel %vm2201, %v9997, %v9993
        %v9999 = vlaneseq
        %v10000 = vshrl.u32 %v9999, 7
        %v10001 = vsub.s32 %v2203, %v10000
        %v10002 = vrot.slane %v8790, %v10001
        %v10003 = vsel %vm2208, %v10002, %v9998
        %v10004 = vlaneseq
        %v10005 = vshrl.u32 %v10004, 7
        %v10006 = vsub.s32 %v2210, %v10005
        %v10007 = vrot.slane %v8793, %v10006
        %v10008 = vsel %vm2215, %v10007, %v10003
        %v10009 = vlaneseq
        %v10010 = vshrl.u32 %v10009, 7
        %v10011 = vsub.s32 %v2217, %v10010
        %v10012 = vrot.slane %v8796, %v10011
        %v10013 = vsel %vm2222, %v10012, %v10008
        %v10014 = vlaneseq
        %v10015 = vshrl.u32 %v10014, 7
        %v10016 = vsub.s32 %v2224, %v10015
        %v10017 = vrot.slane %v8799, %v10016
        %v10018 = vsel %vm2229, %v10017, %v10013
        %v10019 = vlaneseq
        %v10020 = vshrl.u32 %v10019, 7
        %v10021 = vsub.s32 %v2231, %v10020
        %v10022 = vrot.slane %v8802, %v10021
        %v10023 = vsel %vm2236, %v10022, %v10018
        %v10024 = vlaneseq
        %v10025 = vshrl.u32 %v10024, 7
        %v10026 = vsub.s32 %v2238, %v10025
        %v10027 = vrot.slane %v8805, %v10026
        %v10028 = vsel %vm2243, %v10027, %v10023
        %v10029 = vlaneseq
        %v10030 = vshrl.u32 %v10029, 7
        %v10031 = vsub.s32 %v2245, %v10030
        %v10032 = vrot.slane %v8808, %v10031
        %v10033 = vsel %vm2250, %v10032, %v10028
        %v10034 = vlaneseq
        %v10035 = vshrl.u32 %v10034, 7
        %v10036 = vsub.s32 %v2252, %v10035
        %v10037 = vrot.slane %v8811, %v10036
        %v10038 = vsel %vm2257, %v10037, %v10033
        %v10039 = vlaneseq
        %v10040 = vshrl.u32 %v10039, 7
        %v10041 = vsub.s32 %v2259, %v10040
        %v10042 = vrot.slane %v8814, %v10041
        %v10043 = vsel %vm2264, %v10042, %v10038
        %v10044 = vlaneseq
        %v10045 = vshrl.u32 %v10044, 7
        %v10046 = vsub.s32 %v2266, %v10045
        %v10047 = vrot.slane %v8817, %v10046
        %v10048 = vsel %vm2271, %v10047, %v10043
        %v10049 = vlaneseq
        %v10050 = vshrl.u32 %v10049, 7
        %v10051 = vsub.s32 %v2273, %v10050
        %v10052 = vrot.slane %v8820, %v10051
        %v10053 = vsel %vm2278, %v10052, %v10048
        %v10054 = vlaneseq
        %v10055 = vshrl.u32 %v10054, 7
        %v10056 = vsub.s32 %v2170, %v10055
        %v10057 = vrot.slane %v8823, %v10056
        %v10058 = vlaneseq
        %v10059 = vshrl.u32 %v10058, 7
        %v10060 = vsub.s32 %v2175, %v10059
        %v10061 = vrot.slane %v8826, %v10060
        %v10062 = vsel %vm2180, %v10061, %v10057
        %v10063 = vlaneseq
        %v10064 = vshrl.u32 %v10063, 7
        %v10065 = vsub.s32 %v2182, %v10064
        %v10066 = vrot.slane %v8829, %v10065
        %v10067 = vsel %vm2187, %v10066, %v10062
        %v10068 = vlaneseq
        %v10069 = vshrl.u32 %v10068, 7
        %v10070 = vsub.s32 %v2189, %v10069
        %v10071 = vrot.slane %v8832, %v10070
        %v10072 = vsel %vm2194, %v10071, %v10067
        %v10073 = vlaneseq
        %v10074 = vshrl.u32 %v10073, 7
        %v10075 = vsub.s32 %v2196, %v10074
        %v10076 = vrot.slane %v8835, %v10075
        %v10077 = vsel %vm2201, %v10076, %v10072
        %v10078 = vlaneseq
        %v10079 = vshrl.u32 %v10078, 7
        %v10080 = vsub.s32 %v2203, %v10079
        %v10081 = vrot.slane %v8838, %v10080
        %v10082 = vsel %vm2208, %v10081, %v10077
        %v10083 = vlaneseq
        %v10084 = vshrl.u32 %v10083, 7
        %v10085 = vsub.s32 %v2210, %v10084
        %v10086 = vrot.slane %v8841, %v10085
        %v10087 = vsel %vm2215, %v10086, %v10082
        %v10088 = vlaneseq
        %v10089 = vshrl.u32 %v10088, 7
        %v10090 = vsub.s32 %v2217, %v10089
        %v10091 = vrot.slane %v8844, %v10090
        %v10092 = vsel %vm2222, %v10091, %v10087
        %v10093 = vlaneseq
        %v10094 = vshrl.u32 %v10093, 7
        %v10095 = vsub.s32 %v2224, %v10094
        %v10096 = vrot.slane %v8847, %v10095
        %v10097 = vsel %vm2229, %v10096, %v10092
        %v10098 = vlaneseq
        %v10099 = vshrl.u32 %v10098, 7
        %v10100 = vsub.s32 %v2231, %v10099
        %v10101 = vrot.slane %v8850, %v10100
        %v10102 = vsel %vm2236, %v10101, %v10097
        %v10103 = vlaneseq
        %v10104 = vshrl.u32 %v10103, 7
        %v10105 = vsub.s32 %v2238, %v10104
        %v10106 = vrot.slane %v8853, %v10105
        %v10107 = vsel %vm2243, %v10106, %v10102
        %v10108 = vlaneseq
        %v10109 = vshrl.u32 %v10108, 7
        %v10110 = vsub.s32 %v2245, %v10109
        %v10111 = vrot.slane %v8856, %v10110
        %v10112 = vsel %vm2250, %v10111, %v10107
        %v10113 = vlaneseq
        %v10114 = vshrl.u32 %v10113, 7
        %v10115 = vsub.s32 %v2252, %v10114
        %v10116 = vrot.slane %v8859, %v10115
        %v10117 = vsel %vm2257, %v10116, %v10112
        %v10118 = vlaneseq
        %v10119 = vshrl.u32 %v10118, 7
        %v10120 = vsub.s32 %v2259, %v10119
        %v10121 = vrot.slane %v8862, %v10120
        %v10122 = vsel %vm2264, %v10121, %v10117
        %v10123 = vlaneseq
        %v10124 = vshrl.u32 %v10123, 7
        %v10125 = vsub.s32 %v2266, %v10124
        %v10126 = vrot.slane %v8865, %v10125
        %v10127 = vsel %vm2271, %v10126, %v10122
        %v10128 = vlaneseq
        %v10129 = vshrl.u32 %v10128, 7
        %v10130 = vsub.s32 %v2273, %v10129
        %v10131 = vrot.slane %v8868, %v10130
        %v10132 = vsel %vm2278, %v10131, %v10127
        %v10133 = vsel %vm3465, %v9026, %v8947
        %v10134 = vsel %vm3467, %v9105, %v10133
        %v10135 = vsel %vm3469, %v9184, %v10134
        %v10136 = vsel %vm3471, %v9263, %v10135
        %v10137 = vsel %vm3473, %v9342, %v10136
        %v10138 = vsel %vm3475, %v9421, %v10137
        %v10139 = vsel %vm3477, %v9500, %v10138
        %v10140 = vsel %vm3465, %v9658, %v9579
        %v10141 = vsel %vm3467, %v9737, %v10140
        %v10142 = vsel %vm3469, %v9816, %v10141
        %v10143 = vsel %vm3471, %v9895, %v10142
        %v10144 = vsel %vm3473, %v9974, %v10143
        %v10145 = vsel %vm3475, %v10053, %v10144
        %v10146 = vsel %vm3477, %v10132, %v10145
        %s10149 = scalar_lea.vmem %s112, 32 [#allocation2]
        %10150 = vst [vmem:[%s10149] sm:$0xff] %v10139
        %10151 = vst [vmem:[%s10149 + $0x8] sm:$0xff] %v10146
        %s10152 = sand.u32 %s49, 1
        %s10153 = scalar_lea.sflag [#allocation3], %s10152
        %s10154 = sand.u32 %s49, 1
        %s10155 = smul.addr %s10154, 48
        %s10156 = scalar_lea.vmem [#allocation2], %s10155
        // Predicated region
        $region25: #{tpu_custom_call.1} parent=23 // pred_check
          %p10157 = pneg %p59
        $region26: #{tpu_custom_call.1} parent=23 // pred_check_branch
          %10159 = sbr.rel (%p10157) target = $region28
        $region27: #{tpu_custom_call.1} parent=23 // pred_region
          #allocation5 [shape = 'u32[6]{0}', space=smem, size = 0x18, scoped, tag = 'DMA stride descriptor']
          %s10160 = smul.u32 2, %s15
          %s10162 = ssub.s32 768, 768
          %10163 = vsyncadd %s10153, %s10162
          %s10164 = smul.addr %s10160, 128
          %s10165 = scalar_lea.hbm %s1, %s10164
          %s10167 = sshll.u32 1, 14
          %s10168 = sxor.u32 4294967295, %s10167
          %s10171 = sshll.u32 7, 18
          %s10172 = sxor.u32 4294967295, %s10171
          %s10173 = sand.u32 0, %s10172
          %s10175 = sor.u32 %s10173, 0
          %s10177 = sshll.u32 3, 24
          %s10178 = sxor.u32 4294967295, %s10177
          %s10179 = sand.u32 %s10175, %s10178
          %s10181 = sor.u32 %s10179, 0
          %s10182 = sshll.u32 %s10156, 4
          %s10183 = int_to_ptr.vmem [resolvable:$true] %s10182
          %10189 = sst [smem:[#allocation5]] 256
          %s10190 = scalar_lea.smem [#allocation5], 1
          %10191 = sst [smem:[%s10190]] 1024
          %s10192 = scalar_lea.smem [#allocation5], 2
          %10193 = sst [smem:[%s10192]] 2
          %s10194 = scalar_lea.smem [#allocation5], 3
          %10195 = sst [smem:[%s10194]] 128
          %s10196 = scalar_lea.smem [#allocation5], 4
          %10197 = sst [smem:[%s10196]] 128
          %s10198 = scalar_lea.smem [#allocation5], 5
          %10199 = sst [smem:[%s10198]] 8
          %10201 = dma.general %s10183, 768, %s10165, %s10153, [#allocation4], [#allocation5], %s10181, 0
        $region28: #{tpu_custom_call.1} parent=23 // pred_fallthru
          _
      $region24: #{tpu_custom_call.1} parent=5 // pred_fallthru
        _
      %p10202 = scmp.le.s32.totalorder 2, %s10
      // Predicated region
      $region29: #{tpu_custom_call.1} parent=5 // pred_check
        %p10203 = pneg %p10202
      $region30: #{tpu_custom_call.1} parent=5 // pred_check_branch
        %10205 = sbr.rel (%p10203) target = $region32
      $region31: #{tpu_custom_call.1} parent=5 // pred_region
        %s10206 = ssub.s32 %s10, 2
        // Predicated region
        $region33: #{tpu_custom_call.1} parent=31 // pred_check
          %p10207 = pneg %p65
        $region34: #{tpu_custom_call.1} parent=31 // pred_check_branch
          %10209 = sbr.rel (%p10207) target = $region36
        $region35: #{tpu_custom_call.1} parent=31 // pred_region
          %s10210 = sand.u32 %s50, 1
          %s10211 = scalar_lea.sflag [#allocation3], %s10210
          %s10212 = sand.u32 %s50, 1
          %s10213 = smul.addr %s10212, 48
          %s10214 = scalar_lea.vmem [#allocation2], %s10213
          %10215 = dma.done %s10211, 768
        $region36: #{tpu_custom_call.1} parent=31 // pred_fallthru
          _
      $region32: #{tpu_custom_call.1} parent=5 // pred_fallthru
        _
    $region6: #{tpu_custom_call.1} parent=1 // loop_footer
      %s14 = sadd.s32 1, %s10
    $region7: #{tpu_custom_call.1} parent=1 // loop_footer_branch
      %9 = sbr.rel target = $region3
    $region8: #{tpu_custom_call.1} parent=1 // loop_exit
      _
    %10216 = vsyncpa [#allocation3], 1
    %s10217 = scalar_lea.sflag [#allocation3], 1
    %10218 = vsyncpa %s10217, 1

</llo_original>
